<compile_context>
chip_gen: v5e
topology: v5e:2x2
jax: 0.10.0
libtpu: 0.0.40
codegen_flags: <defaults>
</compile_context>

<pallas_src>
import jax
import jax.numpy as jnp
from jax import lax
from jax.experimental import pallas as pl
from jax.experimental.pallas import tpu as pltpu

N_EMBD = 384
N_HEAD = 1
HEAD_SIZE = N_EMBD // N_HEAD          # 384
HIDDEN = 4 * N_EMBD                   # 1536
DROPOUT_P = 0.2
LN_EPS = 1e-5
TM_MAX = 1024                         # FFN row-tile cap (safe on v5e/v6e/v7x)
VMEM_LIMIT = 32 * 1024 * 1024         # explicit scoped-VMEM limit for both calls


def _round_up(a, b):
    return (a + b - 1) // b * b


def _fused_qkv_weight(params):
    """(C, 3H) bf16 weight [Q | K | V]; Q columns pre-scaled by head_size^-0.5."""
    scale = jnp.float32(HEAD_SIZE) ** -0.5
    wqkv = jnp.concatenate(
        [params["wq"] * scale, params["wk"], params["wv"]], axis=1)
    return wqkv.astype(jnp.bfloat16)


# --------------------------------------------------------------------------
# Kernel 1: single-head causal attention + proj + dropout + residual + LN1
# --------------------------------------------------------------------------
def _attn_ln1_kernel(x_ref, wqkv_ref, wp_ref, bp_ref,
                     amask_ref, pmask_ref, g_ref, beta_ref, o_ref):
    # x: (T, C) f32; wqkv: (C, 3H) bf16 (Q pre-scaled); masks bf16 {0, 1.25}.
    x = x_ref[...]
    xb = x.astype(jnp.bfloat16)

    # Fused QKV projection on the MXU (bf16 x bf16 -> f32 accumulate).
    qkv = jnp.dot(xb, wqkv_ref[...], preferred_element_type=jnp.float32)  # (T, 3H)
    q = qkv[:, :HEAD_SIZE].astype(jnp.bfloat16)
    k = qkv[:, HEAD_SIZE:2 * HEAD_SIZE].astype(jnp.bfloat16)
    v = qkv[:, 2 * HEAD_SIZE:].astype(jnp.bfloat16)

    # scores = q @ k^T: contraction on the last dim of both operands, so the
    # MXU consumes the transposed RHS natively (no XLU transpose).
    scores = lax.dot_general(q, k, (((1,), (1,)), ((), ())),
                             preferred_element_type=jnp.float32)          # (T, T)
    T = scores.shape[0]
    row = lax.broadcasted_iota(jnp.int32, (T, T), 0)
    col = lax.broadcasted_iota(jnp.int32, (T, T), 1)
    scores = jnp.where(row >= col, scores, -jnp.inf)

    # Softmax in f32 (diagonal always unmasked -> row max is finite, no NaNs).
    scores = scores - jnp.max(scores, axis=-1, keepdims=True)
    p = jnp.exp(scores)
    p = p * pl.reciprocal(jnp.sum(p, axis=-1, keepdims=True), approx=True)
    p = p * amask_ref[...].astype(jnp.float32)          # attention-weight dropout

    attn = jnp.dot(p.astype(jnp.bfloat16), v,
                   preferred_element_type=jnp.float32)                    # (T, H)
    proj = jnp.dot(attn.astype(jnp.bfloat16), wp_ref[...],
                   preferred_element_type=jnp.float32) + bp_ref[...]
    proj = proj * pmask_ref[...].astype(jnp.float32)    # projection dropout

    # residual + LayerNorm1
    z = x + proj
    mu = jnp.mean(z, axis=-1, keepdims=True)
    var = jnp.mean(jnp.square(z - mu), axis=-1, keepdims=True)
    zn = (z - mu) * lax.rsqrt(var + jnp.float32(LN_EPS))
    o_ref[...] = (zn * g_ref[...] + beta_ref[...]).astype(o_ref.dtype)


# --------------------------------------------------------------------------
# Kernel 2: FFN (Linear/ReLU/Linear/dropout) + residual + LN2, row-tiled
# --------------------------------------------------------------------------
def _ffn_ln2_kernel(x_ref, w1_ref, b1_ref, w2_ref, b2_ref, mask_ref,
                    g_ref, beta_ref, o_ref):
    x = x_ref[...]                                      # (TM, C) f32
    h = jnp.dot(x.astype(jnp.bfloat16), w1_ref[...],
                preferred_element_type=jnp.float32) + b1_ref[...]
    h = jnp.maximum(h, 0.0)
    y = jnp.dot(h.astype(jnp.bfloat16), w2_ref[...],
                preferred_element_type=jnp.float32) + b2_ref[...]
    y = y * mask_ref[...].astype(jnp.float32)           # FFN-output dropout

    z = x + y                                           # residual
    mu = jnp.mean(z, axis=-1, keepdims=True)
    var = jnp.mean(jnp.square(z - mu), axis=-1, keepdims=True)
    zn = (z - mu) * lax.rsqrt(var + jnp.float32(LN_EPS))
    o_ref[...] = (zn * g_ref[...] + beta_ref[...]).astype(o_ref.dtype)


# --------------------------------------------------------------------------
# Wrapper
# --------------------------------------------------------------------------
@jax.jit
def transformer_block(x, params, masks):
    """x: (B, T, C) f32; masks = (amask, pmask, fmask), bf16, pre-scaled."""
    B, T, C = x.shape
    amask, pmask, fmask = masks
    bf16 = jnp.bfloat16

    wqkv = _fused_qkv_weight(params)                    # (C, 3H) bf16
    wp = params["wp"].astype(bf16)
    bp = params["bp"].reshape(1, C)
    g1 = params["g1"].reshape(1, C)
    be1 = params["be1"].reshape(1, C)
    w1 = params["w1"].astype(bf16)
    b1 = params["b1"].reshape(1, HIDDEN)
    w2 = params["w2"].astype(bf16)
    b2 = params["b2"].reshape(1, C)
    g2 = params["g2"].reshape(1, C)
    be2 = params["be2"].reshape(1, C)

    # ---- attention + residual + LayerNorm1 (grid over batch) ----
    x1 = pl.pallas_call(
        _attn_ln1_kernel,
        out_shape=jax.ShapeDtypeStruct((B, T, C), jnp.float32),
        grid=(B,),
        in_specs=[
            pl.BlockSpec((None, T, C), lambda b: (b, 0, 0)),        # x
            pl.BlockSpec((C, 3 * HEAD_SIZE), lambda b: (0, 0)),     # fused Wqkv
            pl.BlockSpec((HEAD_SIZE, C), lambda b: (0, 0)),         # Wproj
            pl.BlockSpec((1, C), lambda b: (0, 0)),                 # bproj
            pl.BlockSpec((None, T, T), lambda b: (b, 0, 0)),        # attn dropout (bf16)
            pl.BlockSpec((None, T, C), lambda b: (b, 0, 0)),        # proj dropout (bf16)
            pl.BlockSpec((1, C), lambda b: (0, 0)),                 # ln1 gamma
            pl.BlockSpec((1, C), lambda b: (0, 0)),                 # ln1 beta
        ],
        out_specs=pl.BlockSpec((None, T, C), lambda b: (b, 0, 0)),
        compiler_params=pltpu.CompilerParams(
            dimension_semantics=("parallel",),
            vmem_limit_bytes=VMEM_LIMIT),
    )(x, wqkv, wp, bp, amask, pmask, g1, be1)

    # ---- FFN + residual + LayerNorm2 (row tiles of M = B*T, no host pad) ----
    N = B * T
    TM = min(TM_MAX, _round_up(N, 8))
    xf = x1.reshape(N, C)
    fm = fmask.reshape(N, C)

    out = pl.pallas_call(
        _ffn_ln2_kernel,
        out_shape=jax.ShapeDtypeStruct((N, C), jnp.float32),
        grid=(pl.cdiv(N, TM),),
        in_specs=[
            pl.BlockSpec((TM, C), lambda i: (i, 0)),                # x tile
            pl.BlockSpec((C, HIDDEN), lambda i: (0, 0)),            # W1 (resident)
            pl.BlockSpec((1, HIDDEN), lambda i: (0, 0)),            # b1
            pl.BlockSpec((HIDDEN, C), lambda i: (0, 0)),            # W2 (resident)
            pl.BlockSpec((1, C), lambda i: (0, 0)),                 # b2
            pl.BlockSpec((TM, C), lambda i: (i, 0)),                # dropout tile (bf16)
            pl.BlockSpec((1, C), lambda i: (0, 0)),                 # ln2 gamma
            pl.BlockSpec((1, C), lambda i: (0, 0)),                 # ln2 beta
        ],
        out_specs=pl.BlockSpec((TM, C), lambda i: (i, 0)),
        compiler_params=pltpu.CompilerParams(
            dimension_semantics=("parallel",),
            vmem_limit_bytes=VMEM_LIMIT),
    )(xf, w1, b1, w2, b2, fm, g2, be2)

    return out.reshape(B, T, C)


# --------------------------------------------------------------------------
# Params, dropout masks, pure-JAX reference
# --------------------------------------------------------------------------
def init_params(key):
    ks = jax.random.split(key, 6)

    def lin(k, fan_in, w_shape, b_shape=None):
        bound = 1.0 / jnp.sqrt(jnp.float32(fan_in))
        kw, kb = jax.random.split(k)
        w = jax.random.uniform(kw, w_shape, jnp.float32, -bound, bound)
        if b_shape is None:
            return w
        b = jax.random.uniform(kb, b_shape, jnp.float32, -bound, bound)
        return w, b

    wk = lin(ks[0], N_EMBD, (N_EMBD, HEAD_SIZE))
    wq = lin(ks[1], N_EMBD, (N_EMBD, HEAD_SIZE))
    wv = lin(ks[2], N_EMBD, (N_EMBD, HEAD_SIZE))
    wp, bp = lin(ks[3], HEAD_SIZE * N_HEAD, (HEAD_SIZE * N_HEAD, N_EMBD), (N_EMBD,))
    w1, b1 = lin(ks[4], N_EMBD, (N_EMBD, HIDDEN), (HIDDEN,))
    w2, b2 = lin(ks[5], HIDDEN, (HIDDEN, N_EMBD), (N_EMBD,))
    ones = jnp.ones((N_EMBD,), jnp.float32)
    zeros = jnp.zeros((N_EMBD,), jnp.float32)
    return dict(wk=wk, wq=wq, wv=wv, wp=wp, bp=bp, g1=ones, be1=zeros,
                w1=w1, b1=b1, w2=w2, b2=b2, g2=ones, be2=zeros)


def make_dropout_masks(key, B, T):
    """Inverted-dropout masks {0, 1/(1-p)} in bf16 (both values exact)."""
    keep = 1.0 - DROPOUT_P
    k1, k2, k3 = jax.random.split(key, 3)

    def mk(k, shape):
        m = jax.random.bernoulli(k, keep, shape).astype(jnp.float32) / keep
        return m.astype(jnp.bfloat16)

    return (mk(k1, (B, T, T)),
            mk(k2, (B, T, N_EMBD)),
            mk(k3, (B, T, N_EMBD)))


def _layernorm(z, g, b):
    mu = jnp.mean(z, axis=-1, keepdims=True)
    var = jnp.mean(jnp.square(z - mu), axis=-1, keepdims=True)
    return (z - mu) * lax.rsqrt(var + LN_EPS) * g + b


def reference_block(x, p, amask, pmask, fmask):
    """Pure-JAX reference with the same bf16 cast points as the kernels."""
    f32, bf16 = jnp.float32, jnp.bfloat16
    B, T, C = x.shape
    wqkv = _fused_qkv_weight(p)
    xb = x.astype(bf16)
    qkv = jnp.einsum("btc,cd->btd", xb, wqkv, preferred_element_type=f32)
    q = qkv[..., :HEAD_SIZE].astype(bf16)
    k = qkv[..., HEAD_SIZE:2 * HEAD_SIZE].astype(bf16)
    v = qkv[..., 2 * HEAD_SIZE:].astype(bf16)
    wei = jnp.einsum("bth,bsh->bts", q, k, preferred_element_type=f32)
    causal = jnp.tril(jnp.ones((T, T), bool))
    wei = jnp.where(causal[None], wei, -jnp.inf)
    wei = jax.nn.softmax(wei, axis=-1) * amask.astype(f32)
    attn = jnp.einsum("bts,bsh->bth", wei.astype(bf16), v, preferred_element_type=f32)
    proj = jnp.einsum("bth,hc->btc", attn.astype(bf16), p["wp"].astype(bf16),
                      preferred_element_type=f32) + p["bp"]
    proj = proj * pmask.astype(f32)
    x1 = _layernorm(x + proj, p["g1"], p["be1"])
    h = jnp.einsum("btc,cd->btd", x1.astype(bf16), p["w1"].astype(bf16),
                   preferred_element_type=f32) + p["b1"]
    h = jnp.maximum(h, 0.0)
    y = jnp.einsum("btd,dc->btc", h.astype(bf16), p["w2"].astype(bf16),
                   preferred_element_type=f32) + p["b2"]
    y = y * fmask.astype(f32)
    return _layernorm(x1 + y, p["g2"], p["be2"])


if __name__ == "__main__":
    key = jax.random.PRNGKey(0)
    kx, kp, kd = jax.random.split(key, 3)

    B, T = 2, 8                                # small; C fixed at 384 by the module
    x = jax.random.normal(kx, (B, T, N_EMBD), dtype=jnp.float32)
    params = init_params(kp)
    masks = make_dropout_masks(kd, B, T)

    out = transformer_block(x, params, masks)
    jax.block_until_ready(out)

    ref = reference_block(x, params, *masks)
    assert out.shape == (B, T, N_EMBD)
    assert bool(jnp.all(jnp.isfinite(out)))
    max_err = float(jnp.max(jnp.abs(out - ref)))
    assert max_err < 5e-2, f"kernel/reference mismatch, max abs err={max_err}"

    print("KERNEL_OK")
</pallas_src>

<mosaic_0001>
module attributes {stable_mosaic.version = 11 : i64} {
  func.func @_attn_ln1_kernel(%arg0: i32, %arg1: memref<1x8x384xf32, #tpu.memory_space<vmem>>, %arg2: memref<384x1152xbf16, #tpu.memory_space<vmem>>, %arg3: memref<384x384xbf16, #tpu.memory_space<vmem>>, %arg4: memref<1x384xf32, #tpu.memory_space<vmem>>, %arg5: memref<1x8x8xbf16, #tpu.memory_space<vmem>>, %arg6: memref<1x8x384xbf16, #tpu.memory_space<vmem>>, %arg7: memref<1x384xf32, #tpu.memory_space<vmem>>, %arg8: memref<1x384xf32, #tpu.memory_space<vmem>>, %arg9: memref<1x8x384xf32, #tpu.memory_space<vmem>>) attributes {dimension_semantics = [#tpu.dimension_semantics<parallel>], iteration_bounds = array<i64: 2>, scalar_prefetch = 0 : i64, scratch_operands = 0 : i64, tpu.core_type = #tpu.core_type<tc>, window_params = [{transform_indices = @transform_0, window_bounds = array<i64: 1, 8, 384>}, {pipeline_mode = #tpu.pipeline_mode<synchronous>, transform_indices = @transform_1, window_bounds = array<i64: 384, 1152>}, {pipeline_mode = #tpu.pipeline_mode<synchronous>, transform_indices = @transform_2, window_bounds = array<i64: 384, 384>}, {pipeline_mode = #tpu.pipeline_mode<synchronous>, transform_indices = @transform_3, window_bounds = array<i64: 1, 384>}, {transform_indices = @transform_4, window_bounds = array<i64: 1, 8, 8>}, {transform_indices = @transform_5, window_bounds = array<i64: 1, 8, 384>}, {pipeline_mode = #tpu.pipeline_mode<synchronous>, transform_indices = @transform_6, window_bounds = array<i64: 1, 384>}, {pipeline_mode = #tpu.pipeline_mode<synchronous>, transform_indices = @transform_7, window_bounds = array<i64: 1, 384>}, {transform_indices = @transform_8, window_bounds = array<i64: 1, 8, 384>}]} {
    %c0 = arith.constant 0 : index
    %c0_0 = arith.constant 0 : index
    %c0_1 = arith.constant 0 : index
    %0 = vector.load %arg1[%c0, %c0_0, %c0_1] : memref<1x8x384xf32, #tpu.memory_space<vmem>>, vector<1x8x384xf32>
    %1 = vector.shape_cast %0 : vector<1x8x384xf32> to vector<8x384xf32>
    %2 = arith.truncf %1 : vector<8x384xf32> to vector<8x384xbf16>
    %c0_2 = arith.constant 0 : index
    %c0_3 = arith.constant 0 : index
    %3 = vector.load %arg2[%c0_2, %c0_3] : memref<384x1152xbf16, #tpu.memory_space<vmem>>, vector<384x1152xbf16>
    %cst = arith.constant dense<0.000000e+00> : vector<8x1152xf32>
    %4 = tpu.matmul %2, %3, %cst {dimension_numbers = #tpu.dot_dimension_numbers<[1], [0], [0], [1], [0, 0, 1, 1], [], []>} : vector<8x384xbf16>, vector<384x1152xbf16>, vector<8x1152xf32> -> vector<8x1152xf32>
    %5 = vector.extract_strided_slice %4 {offsets = [0, 0], sizes = [8, 384], strides = [1, 1]} : vector<8x1152xf32> to vector<8x384xf32>
    %6 = arith.truncf %5 : vector<8x384xf32> to vector<8x384xbf16>
    %7 = vector.extract_strided_slice %4 {offsets = [0, 384], sizes = [8, 384], strides = [1, 1]} : vector<8x1152xf32> to vector<8x384xf32>
    %8 = arith.truncf %7 : vector<8x384xf32> to vector<8x384xbf16>
    %9 = vector.extract_strided_slice %4 {offsets = [0, 768], sizes = [8, 384], strides = [1, 1]} : vector<8x1152xf32> to vector<8x384xf32>
    %10 = arith.truncf %9 : vector<8x384xf32> to vector<8x384xbf16>
    %cst_4 = arith.constant dense<0.000000e+00> : vector<8x8xf32>
    %11 = tpu.matmul %6, %8, %cst_4 {dimension_numbers = #tpu.dot_dimension_numbers<[1], [1], [0], [0], [0, 0, 1, 0], [], []>} : vector<8x384xbf16>, vector<8x384xbf16>, vector<8x8xf32> -> vector<8x8xf32>
    %12 = tpu.iota {dimensions = array<i32: 0>} : vector<8x8xi32>
    %13 = tpu.iota {dimensions = array<i32: 1>} : vector<8x8xi32>
    %14 = arith.cmpi sge, %12, %13 : vector<8x8xi32>
    %cst_5 = arith.constant 0xFF800000 : f32
    %15 = vector.broadcast %cst_5 : f32 to vector<8x8xf32>
    %16 = arith.select %14, %11, %15 : vector<8x8xi1>, vector<8x8xf32>
    %cst_6 = arith.constant dense<0xFF800000> : vector<8xf32>
    %17 = vector.multi_reduction <maximumf>, %16, %cst_6 [1] : vector<8x8xf32> to vector<8xf32>
    %18 = vector.shape_cast %17 : vector<8xf32> to vector<8x1xf32>
    %19 = vector.broadcast %18 : vector<8x1xf32> to vector<8x8xf32>
    %20 = arith.subf %16, %19 : vector<8x8xf32>
    %21 = math.exp %20 : vector<8x8xf32>
    %cst_7 = arith.constant dense<0.000000e+00> : vector<8xf32>
    %22 = vector.multi_reduction <add>, %21, %cst_7 [1] : vector<8x8xf32> to vector<8xf32>
    %23 = vector.shape_cast %22 : vector<8xf32> to vector<8x1xf32>
    %24 = tpu.reciprocal %23 {approx = true} : vector<8x1xf32> -> vector<8x1xf32>
    %25 = vector.broadcast %24 : vector<8x1xf32> to vector<8x8xf32>
    %26 = arith.mulf %21, %25 : vector<8x8xf32>
    %c0_8 = arith.constant 0 : index
    %c0_9 = arith.constant 0 : index
    %c0_10 = arith.constant 0 : index
    %27 = vector.load %arg5[%c0_8, %c0_9, %c0_10] : memref<1x8x8xbf16, #tpu.memory_space<vmem>>, vector<1x8x8xbf16>
    %28 = vector.shape_cast %27 : vector<1x8x8xbf16> to vector<8x8xbf16>
    %29 = arith.extf %28 : vector<8x8xbf16> to vector<8x8xf32>
    %30 = arith.mulf %26, %29 : vector<8x8xf32>
    %31 = arith.truncf %30 : vector<8x8xf32> to vector<8x8xbf16>
    %cst_11 = arith.constant dense<0.000000e+00> : vector<8x384xf32>
    %32 = tpu.matmul %31, %10, %cst_11 {dimension_numbers = #tpu.dot_dimension_numbers<[1], [0], [0], [1], [0, 0, 1, 1], [], []>} : vector<8x8xbf16>, vector<8x384xbf16>, vector<8x384xf32> -> vector<8x384xf32>
    %33 = arith.truncf %32 : vector<8x384xf32> to vector<8x384xbf16>
    %c0_12 = arith.constant 0 : index
    %c0_13 = arith.constant 0 : index
    %34 = vector.load %arg3[%c0_12, %c0_13] : memref<384x384xbf16, #tpu.memory_space<vmem>>, vector<384x384xbf16>
    %cst_14 = arith.constant dense<0.000000e+00> : vector<8x384xf32>
    %35 = tpu.matmul %33, %34, %cst_14 {dimension_numbers = #tpu.dot_dimension_numbers<[1], [0], [0], [1], [0, 0, 1, 1], [], []>} : vector<8x384xbf16>, vector<384x384xbf16>, vector<8x384xf32> -> vector<8x384xf32>
    %c0_15 = arith.constant 0 : index
    %c0_16 = arith.constant 0 : index
    %36 = vector.load %arg4[%c0_15, %c0_16] : memref<1x384xf32, #tpu.memory_space<vmem>>, vector<1x384xf32>
    %37 = vector.broadcast %36 : vector<1x384xf32> to vector<8x384xf32>
    %38 = arith.addf %35, %37 : vector<8x384xf32>
    %c0_17 = arith.constant 0 : index
    %c0_18 = arith.constant 0 : index
    %c0_19 = arith.constant 0 : index
    %39 = vector.load %arg6[%c0_17, %c0_18, %c0_19] : memref<1x8x384xbf16, #tpu.memory_space<vmem>>, vector<1x8x384xbf16>
    %40 = vector.shape_cast %39 : vector<1x8x384xbf16> to vector<8x384xbf16>
    %41 = arith.extf %40 : vector<8x384xbf16> to vector<8x384xf32>
    %42 = arith.mulf %38, %41 : vector<8x384xf32>
    %43 = arith.addf %1, %42 : vector<8x384xf32>
    %cst_20 = arith.constant dense<0.000000e+00> : vector<8xf32>
    %44 = vector.multi_reduction <add>, %43, %cst_20 [1] : vector<8x384xf32> to vector<8xf32>
    %45 = vector.shape_cast %44 : vector<8xf32> to vector<8x1xf32>
    %cst_21 = arith.constant 3.840000e+02 : f32
    %46 = vector.broadcast %cst_21 : f32 to vector<8x1xf32>
    %47 = arith.divf %45, %46 : vector<8x1xf32>
    %48 = vector.broadcast %47 : vector<8x1xf32> to vector<8x384xf32>
    %49 = arith.subf %43, %48 : vector<8x384xf32>
    %50 = arith.mulf %49, %49 : vector<8x384xf32>
    %cst_22 = arith.constant dense<0.000000e+00> : vector<8xf32>
    %51 = vector.multi_reduction <add>, %50, %cst_22 [1] : vector<8x384xf32> to vector<8xf32>
    %52 = vector.shape_cast %51 : vector<8xf32> to vector<8x1xf32>
    %cst_23 = arith.constant 3.840000e+02 : f32
    %53 = vector.broadcast %cst_23 : f32 to vector<8x1xf32>
    %54 = arith.divf %52, %53 : vector<8x1xf32>
    %55 = vector.broadcast %47 : vector<8x1xf32> to vector<8x384xf32>
    %56 = arith.subf %43, %55 : vector<8x384xf32>
    %cst_24 = arith.constant 9.99999974E-6 : f32
    %57 = vector.broadcast %cst_24 : f32 to vector<8x1xf32>
    %58 = arith.addf %54, %57 : vector<8x1xf32>
    %59 = math.rsqrt %58 : vector<8x1xf32>
    %60 = vector.broadcast %59 : vector<8x1xf32> to vector<8x384xf32>
    %61 = arith.mulf %56, %60 : vector<8x384xf32>
    %c0_25 = arith.constant 0 : index
    %c0_26 = arith.constant 0 : index
    %62 = vector.load %arg7[%c0_25, %c0_26] : memref<1x384xf32, #tpu.memory_space<vmem>>, vector<1x384xf32>
    %63 = vector.broadcast %62 : vector<1x384xf32> to vector<8x384xf32>
    %64 = arith.mulf %61, %63 : vector<8x384xf32>
    %c0_27 = arith.constant 0 : index
    %c0_28 = arith.constant 0 : index
    %65 = vector.load %arg8[%c0_27, %c0_28] : memref<1x384xf32, #tpu.memory_space<vmem>>, vector<1x384xf32>
    %66 = vector.broadcast %65 : vector<1x384xf32> to vector<8x384xf32>
    %67 = arith.addf %64, %66 : vector<8x384xf32>
    %c0_29 = arith.constant 0 : index
    %c0_30 = arith.constant 0 : index
    %c0_31 = arith.constant 0 : index
    %68 = vector.load %arg9[%c0_29, %c0_30, %c0_31] : memref<1x8x384xf32, #tpu.memory_space<vmem>>, vector<1x8x384xf32>
    %69 = vector.shape_cast %68 : vector<1x8x384xf32> to vector<8x384xf32>
    %70 = vector.shape_cast %67 : vector<8x384xf32> to vector<1x8x384xf32>
    tpu.vector_store %arg9[%c0_29, %c0_30, %c0_31], %70 {strides = array<i32>} : memref<1x8x384xf32, #tpu.memory_space<vmem>>, vector<1x8x384xf32>,
    return
  }
  func.func @transform_0(%arg0: i32) -> (i32, i32, i32) {
    %c0_i32 = arith.constant 0 : i32
    %c0_i32_0 = arith.constant 0 : i32
    %c0_i32_1 = arith.constant 0 : i32
    return %arg0, %c0_i32, %c0_i32_0 : i32, i32, i32
  }
  func.func @transform_1(%arg0: i32) -> (i32, i32) {
    %c0_i32 = arith.constant 0 : i32
    %c0_i32_0 = arith.constant 0 : i32
    %c0_i32_1 = arith.constant 0 : i32
    return %c0_i32, %c0_i32_0 : i32, i32
  }
  func.func @transform_2(%arg0: i32) -> (i32, i32) {
    %c0_i32 = arith.constant 0 : i32
    %c0_i32_0 = arith.constant 0 : i32
    %c0_i32_1 = arith.constant 0 : i32
    return %c0_i32, %c0_i32_0 : i32, i32
  }
  func.func @transform_3(%arg0: i32) -> (i32, i32) {
    %c0_i32 = arith.constant 0 : i32
    %c0_i32_0 = arith.constant 0 : i32
    %c0_i32_1 = arith.constant 0 : i32
    return %c0_i32, %c0_i32_0 : i32, i32
  }
  func.func @transform_4(%arg0: i32) -> (i32, i32, i32) {
    %c0_i32 = arith.constant 0 : i32
    %c0_i32_0 = arith.constant 0 : i32
    %c0_i32_1 = arith.constant 0 : i32
    return %arg0, %c0_i32, %c0_i32_0 : i32, i32, i32
  }
  func.func @transform_5(%arg0: i32) -> (i32, i32, i32) {
    %c0_i32 = arith.constant 0 : i32
    %c0_i32_0 = arith.constant 0 : i32
    %c0_i32_1 = arith.constant 0 : i32
    return %arg0, %c0_i32, %c0_i32_0 : i32, i32, i32
  }
  func.func @transform_6(%arg0: i32) -> (i32, i32) {
    %c0_i32 = arith.constant 0 : i32
    %c0_i32_0 = arith.constant 0 : i32
    %c0_i32_1 = arith.constant 0 : i32
    return %c0_i32, %c0_i32_0 : i32, i32
  }
  func.func @transform_7(%arg0: i32) -> (i32, i32) {
    %c0_i32 = arith.constant 0 : i32
    %c0_i32_0 = arith.constant 0 : i32
    %c0_i32_1 = arith.constant 0 : i32
    return %c0_i32, %c0_i32_0 : i32, i32
  }
  func.func @transform_8(%arg0: i32) -> (i32, i32, i32) {
    %c0_i32 = arith.constant 0 : i32
    %c0_i32_0 = arith.constant 0 : i32
    %c0_i32_1 = arith.constant 0 : i32
    return %arg0, %c0_i32, %c0_i32_0 : i32, i32, i32
  }
}

module attributes {stable_mosaic.version = 11 : i64} {
  func.func @_ffn_ln2_kernel(%arg0: i32, %arg1: memref<16x384xf32, #tpu.memory_space<vmem>>, %arg2: memref<384x1536xbf16, #tpu.memory_space<vmem>>, %arg3: memref<1x1536xf32, #tpu.memory_space<vmem>>, %arg4: memref<1536x384xbf16, #tpu.memory_space<vmem>>, %arg5: memref<1x384xf32, #tpu.memory_space<vmem>>, %arg6: memref<16x384xbf16, #tpu.memory_space<vmem>>, %arg7: memref<1x384xf32, #tpu.memory_space<vmem>>, %arg8: memref<1x384xf32, #tpu.memory_space<vmem>>, %arg9: memref<16x384xf32, #tpu.memory_space<vmem>>) attributes {dimension_semantics = [#tpu.dimension_semantics<parallel>], iteration_bounds = array<i64: 1>, scalar_prefetch = 0 : i64, scratch_operands = 0 : i64, tpu.core_type = #tpu.core_type<tc>, window_params = [{transform_indices = @transform_0, window_bounds = array<i64: 16, 384>}, {pipeline_mode = #tpu.pipeline_mode<synchronous>, transform_indices = @transform_1, window_bounds = array<i64: 384, 1536>}, {pipeline_mode = #tpu.pipeline_mode<synchronous>, transform_indices = @transform_2, window_bounds = array<i64: 1, 1536>}, {pipeline_mode = #tpu.pipeline_mode<synchronous>, transform_indices = @transform_3, window_bounds = array<i64: 1536, 384>}, {pipeline_mode = #tpu.pipeline_mode<synchronous>, transform_indices = @transform_4, window_bounds = array<i64: 1, 384>}, {transform_indices = @transform_5, window_bounds = array<i64: 16, 384>}, {pipeline_mode = #tpu.pipeline_mode<synchronous>, transform_indices = @transform_6, window_bounds = array<i64: 1, 384>}, {pipeline_mode = #tpu.pipeline_mode<synchronous>, transform_indices = @transform_7, window_bounds = array<i64: 1, 384>}, {transform_indices = @transform_8, window_bounds = array<i64: 16, 384>}]} {
    %c0 = arith.constant 0 : index
    %c0_0 = arith.constant 0 : index
    %0 = vector.load %arg1[%c0, %c0_0] : memref<16x384xf32, #tpu.memory_space<vmem>>, vector<16x384xf32>
    %1 = arith.truncf %0 : vector<16x384xf32> to vector<16x384xbf16>
    %c0_1 = arith.constant 0 : index
    %c0_2 = arith.constant 0 : index
    %2 = vector.load %arg2[%c0_1, %c0_2] : memref<384x1536xbf16, #tpu.memory_space<vmem>>, vector<384x1536xbf16>
    %cst = arith.constant dense<0.000000e+00> : vector<16x1536xf32>
    %3 = tpu.matmul %1, %2, %cst {dimension_numbers = #tpu.dot_dimension_numbers<[1], [0], [0], [1], [0, 0, 1, 1], [], []>} : vector<16x384xbf16>, vector<384x1536xbf16>, vector<16x1536xf32> -> vector<16x1536xf32>
    %c0_3 = arith.constant 0 : index
    %c0_4 = arith.constant 0 : index
    %4 = vector.load %arg3[%c0_3, %c0_4] : memref<1x1536xf32, #tpu.memory_space<vmem>>, vector<1x1536xf32>
    %5 = vector.broadcast %4 : vector<1x1536xf32> to vector<16x1536xf32>
    %6 = arith.addf %3, %5 : vector<16x1536xf32>
    %cst_5 = arith.constant 0.000000e+00 : f32
    %7 = vector.broadcast %cst_5 : f32 to vector<16x1536xf32>
    %8 = arith.maximumf %6, %7 : vector<16x1536xf32>
    %9 = arith.truncf %8 : vector<16x1536xf32> to vector<16x1536xbf16>
    %c0_6 = arith.constant 0 : index
    %c0_7 = arith.constant 0 : index
    %10 = vector.load %arg4[%c0_6, %c0_7] : memref<1536x384xbf16, #tpu.memory_space<vmem>>, vector<1536x384xbf16>
    %cst_8 = arith.constant dense<0.000000e+00> : vector<16x384xf32>
    %11 = tpu.matmul %9, %10, %cst_8 {dimension_numbers = #tpu.dot_dimension_numbers<[1], [0], [0], [1], [0, 0, 1, 1], [], []>} : vector<16x1536xbf16>, vector<1536x384xbf16>, vector<16x384xf32> -> vector<16x384xf32>
    %c0_9 = arith.constant 0 : index
    %c0_10 = arith.constant 0 : index
    %12 = vector.load %arg5[%c0_9, %c0_10] : memref<1x384xf32, #tpu.memory_space<vmem>>, vector<1x384xf32>
    %13 = vector.broadcast %12 : vector<1x384xf32> to vector<16x384xf32>
    %14 = arith.addf %11, %13 : vector<16x384xf32>
    %c0_11 = arith.constant 0 : index
    %c0_12 = arith.constant 0 : index
    %15 = vector.load %arg6[%c0_11, %c0_12] : memref<16x384xbf16, #tpu.memory_space<vmem>>, vector<16x384xbf16>
    %16 = arith.extf %15 : vector<16x384xbf16> to vector<16x384xf32>
    %17 = arith.mulf %14, %16 : vector<16x384xf32>
    %18 = arith.addf %0, %17 : vector<16x384xf32>
    %cst_13 = arith.constant dense<0.000000e+00> : vector<16xf32>
    %19 = vector.multi_reduction <add>, %18, %cst_13 [1] : vector<16x384xf32> to vector<16xf32>
    %20 = vector.shape_cast %19 : vector<16xf32> to vector<16x1xf32>
    %cst_14 = arith.constant 3.840000e+02 : f32
    %21 = vector.broadcast %cst_14 : f32 to vector<16x1xf32>
    %22 = arith.divf %20, %21 : vector<16x1xf32>
    %23 = vector.broadcast %22 : vector<16x1xf32> to vector<16x384xf32>
    %24 = arith.subf %18, %23 : vector<16x384xf32>
    %25 = arith.mulf %24, %24 : vector<16x384xf32>
    %cst_15 = arith.constant dense<0.000000e+00> : vector<16xf32>
    %26 = vector.multi_reduction <add>, %25, %cst_15 [1] : vector<16x384xf32> to vector<16xf32>
    %27 = vector.shape_cast %26 : vector<16xf32> to vector<16x1xf32>
    %cst_16 = arith.constant 3.840000e+02 : f32
    %28 = vector.broadcast %cst_16 : f32 to vector<16x1xf32>
    %29 = arith.divf %27, %28 : vector<16x1xf32>
    %30 = vector.broadcast %22 : vector<16x1xf32> to vector<16x384xf32>
    %31 = arith.subf %18, %30 : vector<16x384xf32>
    %cst_17 = arith.constant 9.99999974E-6 : f32
    %32 = vector.broadcast %cst_17 : f32 to vector<16x1xf32>
    %33 = arith.addf %29, %32 : vector<16x1xf32>
    %34 = math.rsqrt %33 : vector<16x1xf32>
    %35 = vector.broadcast %34 : vector<16x1xf32> to vector<16x384xf32>
    %36 = arith.mulf %31, %35 : vector<16x384xf32>
    %c0_18 = arith.constant 0 : index
    %c0_19 = arith.constant 0 : index
    %37 = vector.load %arg7[%c0_18, %c0_19] : memref<1x384xf32, #tpu.memory_space<vmem>>, vector<1x384xf32>
    %38 = vector.broadcast %37 : vector<1x384xf32> to vector<16x384xf32>
    %39 = arith.mulf %36, %38 : vector<16x384xf32>
    %c0_20 = arith.constant 0 : index
    %c0_21 = arith.constant 0 : index
    %40 = vector.load %arg8[%c0_20, %c0_21] : memref<1x384xf32, #tpu.memory_space<vmem>>, vector<1x384xf32>
    %41 = vector.broadcast %40 : vector<1x384xf32> to vector<16x384xf32>
    %42 = arith.addf %39, %41 : vector<16x384xf32>
    %c0_22 = arith.constant 0 : index
    %c0_23 = arith.constant 0 : index
    %43 = vector.load %arg9[%c0_22, %c0_23] : memref<16x384xf32, #tpu.memory_space<vmem>>, vector<16x384xf32>
    tpu.vector_store %arg9[%c0_22, %c0_23], %42 {strides = array<i32>} : memref<16x384xf32, #tpu.memory_space<vmem>>, vector<16x384xf32>,
    return
  }
  func.func @transform_0(%arg0: i32) -> (i32, i32) {
    %c0_i32 = arith.constant 0 : i32
    %c0_i32_0 = arith.constant 0 : i32
    return %arg0, %c0_i32 : i32, i32
  }
  func.func @transform_1(%arg0: i32) -> (i32, i32) {
    %c0_i32 = arith.constant 0 : i32
    %c0_i32_0 = arith.constant 0 : i32
    %c0_i32_1 = arith.constant 0 : i32
    return %c0_i32, %c0_i32_0 : i32, i32
  }
  func.func @transform_2(%arg0: i32) -> (i32, i32) {
    %c0_i32 = arith.constant 0 : i32
    %c0_i32_0 = arith.constant 0 : i32
    %c0_i32_1 = arith.constant 0 : i32
    return %c0_i32, %c0_i32_0 : i32, i32
  }
  func.func @transform_3(%arg0: i32) -> (i32, i32) {
    %c0_i32 = arith.constant 0 : i32
    %c0_i32_0 = arith.constant 0 : i32
    %c0_i32_1 = arith.constant 0 : i32
    return %c0_i32, %c0_i32_0 : i32, i32
  }
  func.func @transform_4(%arg0: i32) -> (i32, i32) {
    %c0_i32 = arith.constant 0 : i32
    %c0_i32_0 = arith.constant 0 : i32
    %c0_i32_1 = arith.constant 0 : i32
    return %c0_i32, %c0_i32_0 : i32, i32
  }
  func.func @transform_5(%arg0: i32) -> (i32, i32) {
    %c0_i32 = arith.constant 0 : i32
    %c0_i32_0 = arith.constant 0 : i32
    return %arg0, %c0_i32 : i32, i32
  }
  func.func @transform_6(%arg0: i32) -> (i32, i32) {
    %c0_i32 = arith.constant 0 : i32
    %c0_i32_0 = arith.constant 0 : i32
    %c0_i32_1 = arith.constant 0 : i32
    return %c0_i32, %c0_i32_0 : i32, i32
  }
  func.func @transform_7(%arg0: i32) -> (i32, i32) {
    %c0_i32 = arith.constant 0 : i32
    %c0_i32_0 = arith.constant 0 : i32
    %c0_i32_1 = arith.constant 0 : i32
    return %c0_i32, %c0_i32_0 : i32, i32
  }
  func.func @transform_8(%arg0: i32) -> (i32, i32) {
    %c0_i32 = arith.constant 0 : i32
    %c0_i32_0 = arith.constant 0 : i32
    return %arg0, %c0_i32 : i32, i32
  }
}

</mosaic_0001>

<llo_original>
// kernel: transformer_block.2
$region0: #{transformer_block.2}
  #allocation0 [shape = 'u32[]', space=smem, size = 0x4, offset = 0x4, fixed_abs, tag = 'smem constant byte address 0x4 - core index']
  #allocation1 [shape = 'u32[72,128]{1,0:T(1,128)}', space=vmem, size = 0x9000, scoped, tag = 'internal scratch']
  %s0 = inlined_call_operand.vmem [shape: f32[2,8,384], index: 0, kind: input, shape index: {}]
  %s1 = inlined_call_operand.vmem [shape: bf16[384,1152], index: 1, kind: input, shape index: {}]
  %s2 = inlined_call_operand.vmem [shape: bf16[384,384], index: 2, kind: input, shape index: {}]
  %s3 = inlined_call_operand.vmem [shape: f32[1,384], index: 3, kind: input, shape index: {}]
  %s4 = inlined_call_operand.vmem [shape: bf16[2,8,8], index: 4, kind: input, shape index: {}]
  %s5 = inlined_call_operand.vmem [shape: bf16[2,8,384], index: 5, kind: input, shape index: {}]
  %s6 = inlined_call_operand.vmem [shape: f32[1,384], index: 6, kind: input, shape index: {}]
  %s7 = inlined_call_operand.vmem [shape: f32[1,384], index: 7, kind: input, shape index: {}]
  %s8 = inlined_call_operand.vmem [shape: f32[2,8,384], index: 8, kind: output, shape index: {}]
  %s9 = sld [smem:[#allocation0]]
  $region65: #{transformer_block.2} parent=0
    _
  %s11 = ssub.s32 1, %s9
  %s12 = scalar_select 0, %s11, %s9
  loop: start=0, step=1, limit=4
  $region2: #{transformer_block.2} parent=0 // loop_pre_header
    _
  $region3: #{transformer_block.2} parent=0 // loop_header
    %s14 = sphi 0, %s18
    %p15 = scmp.ge.s32.totalorder %s14, 4
    %s24 = sphi 0, %s26
    %s27 = sphi 0, %s24
    %s28 = sphi 0, %s27
    %s44 = sphi 0, %s28
    %s48 = sphi 0, %s48
    %s50 = sphi 0, %s48
    %s51 = sphi 0, %s50
    %s65 = sphi 0, %s51
    %s69 = sphi 0, %s69
    %s71 = sphi 0, %s69
    %s72 = sphi 0, %s71
    %s86 = sphi 0, %s72
    %s90 = sphi 0, %s90
    %s92 = sphi 0, %s90
    %s93 = sphi 0, %s92
    %s107 = sphi 0, %s93
    %s113 = sphi 0, %s115
    %s116 = sphi 0, %s113
    %s117 = sphi 0, %s116
    %s133 = sphi 0, %s117
    %s139 = sphi 0, %s141
    %s142 = sphi 0, %s139
    %s143 = sphi 0, %s142
    %s159 = sphi 0, %s143
    %s163 = sphi 0, %s163
    %s165 = sphi 0, %s163
    %s166 = sphi 0, %s165
    %s180 = sphi 0, %s166
    %s184 = sphi 0, %s184
    %s186 = sphi 0, %s184
    %s187 = sphi 0, %s186
    %s201 = sphi 0, %s187
    %s207 = sphi 0, %s209
    %s210 = sphi 0, %s207
    %s211 = sphi 0, %s210
    %s227 = sphi 0, %s211
  $region4: #{transformer_block.2} parent=0 // loop_header_branch
    %17 = sbr.rel (%p15) target = $region8
  $region5: #{transformer_block.2} parent=0 // loop_body
    %s19 = ssub.s32 %s14, 1
    %s20 = ssub.s32 %s14, 2
    %s21 = sadd.s32 %s14, 1
    %s22 = ssub.s32 %s14, %s21
    %p23 = scmp.eq.s32.totalorder %s22, 0
    %s25 = sadd.s32 %s24, 1
    %s26 = scalar_select %p23, %s24, %s25
    %p29 = pneg %p23
    %p30 = scmp.eq.s32.totalorder %s14, 1
    %p31 = por %p29, %p30
    %p32 = scmp.ne.s32.totalorder %s24, %s27
    %p33 = scmp.eq.s32.totalorder %s14, 0
    %p34 = por %p32, %p33
    %p35 = scmp.ne.s32.totalorder %s24, %s27
    %p36 = scmp.eq.s32.totalorder %s19, 1
    %p37 = por %p35, %p36
    %p38 = scmp.ne.s32.totalorder %s27, %s28
    %p39 = scmp.eq.s32.totalorder %s19, 0
    %p40 = por %p38, %p39
    %p41 = scmp.ne.s32.totalorder %s27, %s28
    %p42 = scmp.eq.s32.totalorder %s20, 1
    %p43 = por %p41, %p42
    %p45 = scmp.ne.s32.totalorder %s28, %s44
    %p46 = scmp.eq.s32.totalorder %s20, 0
    %p47 = por %p45, %p46
    %s49 = sadd.s32 %s48, 1
    %p52 = scmp.eq.s32.totalorder %s14, 1
    %p53 = scmp.ne.s32.totalorder %s48, %s50
    %p54 = scmp.eq.s32.totalorder %s14, 0
    %p55 = por %p53, %p54
    %p56 = scmp.ne.s32.totalorder %s48, %s50
    %p57 = scmp.eq.s32.totalorder %s19, 1
    %p58 = por %p56, %p57
    %p59 = scmp.ne.s32.totalorder %s50, %s51
    %p60 = scmp.eq.s32.totalorder %s19, 0
    %p61 = por %p59, %p60
    %p62 = scmp.ne.s32.totalorder %s50, %s51
    %p63 = scmp.eq.s32.totalorder %s20, 1
    %p64 = por %p62, %p63
    %p66 = scmp.ne.s32.totalorder %s51, %s65
    %p67 = scmp.eq.s32.totalorder %s20, 0
    %p68 = por %p66, %p67
    %s70 = sadd.s32 %s69, 1
    %p73 = scmp.eq.s32.totalorder %s14, 1
    %p74 = scmp.ne.s32.totalorder %s69, %s71
    %p75 = scmp.eq.s32.totalorder %s14, 0
    %p76 = por %p74, %p75
    %p77 = scmp.ne.s32.totalorder %s69, %s71
    %p78 = scmp.eq.s32.totalorder %s19, 1
    %p79 = por %p77, %p78
    %p80 = scmp.ne.s32.totalorder %s71, %s72
    %p81 = scmp.eq.s32.totalorder %s19, 0
    %p82 = por %p80, %p81
    %p83 = scmp.ne.s32.totalorder %s71, %s72
    %p84 = scmp.eq.s32.totalorder %s20, 1
    %p85 = por %p83, %p84
    %p87 = scmp.ne.s32.totalorder %s72, %s86
    %p88 = scmp.eq.s32.totalorder %s20, 0
    %p89 = por %p87, %p88
    %s91 = sadd.s32 %s90, 1
    %p94 = scmp.eq.s32.totalorder %s14, 1
    %p95 = scmp.ne.s32.totalorder %s90, %s92
    %p96 = scmp.eq.s32.totalorder %s14, 0
    %p97 = por %p95, %p96
    %p98 = scmp.ne.s32.totalorder %s90, %s92
    %p99 = scmp.eq.s32.totalorder %s19, 1
    %p100 = por %p98, %p99
    %p101 = scmp.ne.s32.totalorder %s92, %s93
    %p102 = scmp.eq.s32.totalorder %s19, 0
    %p103 = por %p101, %p102
    %p104 = scmp.ne.s32.totalorder %s92, %s93
    %p105 = scmp.eq.s32.totalorder %s20, 1
    %p106 = por %p104, %p105
    %p108 = scmp.ne.s32.totalorder %s93, %s107
    %p109 = scmp.eq.s32.totalorder %s20, 0
    %p110 = por %p108, %p109
    %s111 = ssub.s32 %s14, %s21
    %p112 = scmp.eq.s32.totalorder %s111, 0
    %s114 = sadd.s32 %s113, 1
    %s115 = scalar_select %p112, %s113, %s114
    %p118 = pneg %p112
    %p119 = scmp.eq.s32.totalorder %s14, 1
    %p120 = por %p118, %p119
    %p121 = scmp.ne.s32.totalorder %s113, %s116
    %p122 = scmp.eq.s32.totalorder %s14, 0
    %p123 = por %p121, %p122
    %p124 = scmp.ne.s32.totalorder %s113, %s116
    %p125 = scmp.eq.s32.totalorder %s19, 1
    %p126 = por %p124, %p125
    %p127 = scmp.ne.s32.totalorder %s116, %s117
    %p128 = scmp.eq.s32.totalorder %s19, 0
    %p129 = por %p127, %p128
    %p130 = scmp.ne.s32.totalorder %s116, %s117
    %p131 = scmp.eq.s32.totalorder %s20, 1
    %p132 = por %p130, %p131
    %p134 = scmp.ne.s32.totalorder %s117, %s133
    %p135 = scmp.eq.s32.totalorder %s20, 0
    %p136 = por %p134, %p135
    %s137 = ssub.s32 %s14, %s21
    %p138 = scmp.eq.s32.totalorder %s137, 0
    %s140 = sadd.s32 %s139, 1
    %s141 = scalar_select %p138, %s139, %s140
    %p144 = pneg %p138
    %p145 = scmp.eq.s32.totalorder %s14, 1
    %p146 = por %p144, %p145
    %p147 = scmp.ne.s32.totalorder %s139, %s142
    %p148 = scmp.eq.s32.totalorder %s14, 0
    %p149 = por %p147, %p148
    %p150 = scmp.ne.s32.totalorder %s139, %s142
    %p151 = scmp.eq.s32.totalorder %s19, 1
    %p152 = por %p150, %p151
    %p153 = scmp.ne.s32.totalorder %s142, %s143
    %p154 = scmp.eq.s32.totalorder %s19, 0
    %p155 = por %p153, %p154
    %p156 = scmp.ne.s32.totalorder %s142, %s143
    %p157 = scmp.eq.s32.totalorder %s20, 1
    %p158 = por %p156, %p157
    %p160 = scmp.ne.s32.totalorder %s143, %s159
    %p161 = scmp.eq.s32.totalorder %s20, 0
    %p162 = por %p160, %p161
    %s164 = sadd.s32 %s163, 1
    %p167 = scmp.eq.s32.totalorder %s14, 1
    %p168 = scmp.ne.s32.totalorder %s163, %s165
    %p169 = scmp.eq.s32.totalorder %s14, 0
    %p170 = por %p168, %p169
    %p171 = scmp.ne.s32.totalorder %s163, %s165
    %p172 = scmp.eq.s32.totalorder %s19, 1
    %p173 = por %p171, %p172
    %p174 = scmp.ne.s32.totalorder %s165, %s166
    %p175 = scmp.eq.s32.totalorder %s19, 0
    %p176 = por %p174, %p175
    %p177 = scmp.ne.s32.totalorder %s165, %s166
    %p178 = scmp.eq.s32.totalorder %s20, 1
    %p179 = por %p177, %p178
    %p181 = scmp.ne.s32.totalorder %s166, %s180
    %p182 = scmp.eq.s32.totalorder %s20, 0
    %p183 = por %p181, %p182
    %s185 = sadd.s32 %s184, 1
    %p188 = scmp.eq.s32.totalorder %s14, 1
    %p189 = scmp.ne.s32.totalorder %s184, %s186
    %p190 = scmp.eq.s32.totalorder %s14, 0
    %p191 = por %p189, %p190
    %p192 = scmp.ne.s32.totalorder %s184, %s186
    %p193 = scmp.eq.s32.totalorder %s19, 1
    %p194 = por %p192, %p193
    %p195 = scmp.ne.s32.totalorder %s186, %s187
    %p196 = scmp.eq.s32.totalorder %s19, 0
    %p197 = por %p195, %p196
    %p198 = scmp.ne.s32.totalorder %s186, %s187
    %p199 = scmp.eq.s32.totalorder %s20, 1
    %p200 = por %p198, %p199
    %p202 = scmp.ne.s32.totalorder %s187, %s201
    %p203 = scmp.eq.s32.totalorder %s20, 0
    %p204 = por %p202, %p203
    %s205 = ssub.s32 %s14, %s21
    %p206 = scmp.eq.s32.totalorder %s205, 0
    %s208 = sadd.s32 %s207, 1
    %s209 = scalar_select %p206, %s207, %s208
    %p212 = pneg %p206
    %p213 = scmp.eq.s32.totalorder %s14, 1
    %p214 = por %p212, %p213
    %p215 = scmp.ne.s32.totalorder %s207, %s210
    %p216 = scmp.eq.s32.totalorder %s14, 0
    %p217 = por %p215, %p216
    %p218 = scmp.ne.s32.totalorder %s207, %s210
    %p219 = scmp.eq.s32.totalorder %s19, 1
    %p220 = por %p218, %p219
    %p221 = scmp.ne.s32.totalorder %s210, %s211
    %p222 = scmp.eq.s32.totalorder %s19, 0
    %p223 = por %p221, %p222
    %p224 = scmp.ne.s32.totalorder %s210, %s211
    %p225 = scmp.eq.s32.totalorder %s20, 1
    %p226 = por %p224, %p225
    %p228 = scmp.ne.s32.totalorder %s211, %s227
    %p229 = scmp.eq.s32.totalorder %s20, 0
    %p230 = por %p228, %p229
    %p231 = scmp.le.s32.totalorder 1, %s14
    %p232 = scmp.lt.s32.totalorder %s14, 3
    %p233 = pnand %p231, %p232
    %p234 = pneg %p233
    // Predicated region
    $region9: #{transformer_block.2} parent=5 // pred_check
      _
    $region10: #{transformer_block.2} parent=5 // pred_check_branch
      %236 = sbr.rel (%p233) target = $region12
    $region11: #{transformer_block.2} parent=5 // pred_region
      %s237 = ssub.s32 %s14, 1
      // Predicated region
      $region13: #{transformer_block.2} parent=11 // pred_check
        %p238 = pneg %p61
      $region14: #{transformer_block.2} parent=11 // pred_check_branch
        %240 = sbr.rel (%p238) target = $region16
      $region15: #{transformer_block.2} parent=11 // pred_region
        _
      $region16: #{transformer_block.2} parent=11 // pred_fallthru
        _
      // Predicated region
      $region17: #{transformer_block.2} parent=11 // pred_check
        %p241 = pneg %p82
      $region18: #{transformer_block.2} parent=11 // pred_check_branch
        %243 = sbr.rel (%p241) target = $region20
      $region19: #{transformer_block.2} parent=11 // pred_region
        _
      $region20: #{transformer_block.2} parent=11 // pred_fallthru
        _
      // Predicated region
      $region21: #{transformer_block.2} parent=11 // pred_check
        %p244 = pneg %p103
      $region22: #{transformer_block.2} parent=11 // pred_check_branch
        %246 = sbr.rel (%p244) target = $region24
      $region23: #{transformer_block.2} parent=11 // pred_region
        _
      $region24: #{transformer_block.2} parent=11 // pred_fallthru
        _
      // Predicated region
      $region25: #{transformer_block.2} parent=11 // pred_check
        %p247 = pneg %p176
      $region26: #{transformer_block.2} parent=11 // pred_check_branch
        %249 = sbr.rel (%p247) target = $region28
      $region27: #{transformer_block.2} parent=11 // pred_region
        _
      $region28: #{transformer_block.2} parent=11 // pred_fallthru
        _
      // Predicated region
      $region29: #{transformer_block.2} parent=11 // pred_check
        %p250 = pneg %p197
      $region30: #{transformer_block.2} parent=11 // pred_check_branch
        %252 = sbr.rel (%p250) target = $region32
      $region31: #{transformer_block.2} parent=11 // pred_region
        _
      $region32: #{transformer_block.2} parent=11 // pred_fallthru
        _
    $region12: #{transformer_block.2} parent=5 // pred_fallthru
      _
    %p253 = scmp.lt.s32.totalorder %s14, 2
    // Predicated region
    $region33: #{transformer_block.2} parent=5 // pred_check
      %p254 = pneg %p253
    $region34: #{transformer_block.2} parent=5 // pred_check_branch
      %256 = sbr.rel (%p254) target = $region36
    $region35: #{transformer_block.2} parent=5 // pred_region
      // Predicated region
      $region37: #{transformer_block.2} parent=35 // pred_check
        %p257 = pneg %p34
      $region38: #{transformer_block.2} parent=35 // pred_check_branch
        %259 = sbr.rel (%p257) target = $region40
      $region39: #{transformer_block.2} parent=35 // pred_region
        %p260 = scmp.lt.s32.totalorder %s14, 1
        %s261 = scalar_select %p260, %s14, 1
        %s262 = smul.addr %s261, 3
        %s263 = smul.addr %s262, 8
        %s264 = scalar_lea.vmem %s0, %s263
      $region40: #{transformer_block.2} parent=35 // pred_fallthru
        _
      // Predicated region
      $region41: #{transformer_block.2} parent=35 // pred_check
        %p265 = pneg %p123
      $region42: #{transformer_block.2} parent=35 // pred_check_branch
        %267 = sbr.rel (%p265) target = $region44
      $region43: #{transformer_block.2} parent=35 // pred_region
        %p268 = scmp.lt.s32.totalorder %s14, 1
        %s269 = scalar_select %p268, %s14, 1
        %s270 = smul.addr %s269, 4
        %s271 = scalar_lea.vmem %s4, %s270
      $region44: #{transformer_block.2} parent=35 // pred_fallthru
        _
      // Predicated region
      $region45: #{transformer_block.2} parent=35 // pred_check
        %p272 = pneg %p149
      $region46: #{transformer_block.2} parent=35 // pred_check_branch
        %274 = sbr.rel (%p272) target = $region48
      $region47: #{transformer_block.2} parent=35 // pred_region
        %p275 = scmp.lt.s32.totalorder %s14, 1
        %s276 = scalar_select %p275, %s14, 1
        %s277 = smul.addr %s276, 3
        %s278 = smul.addr %s277, 4
        %s279 = scalar_lea.vmem %s5, %s278
      $region48: #{transformer_block.2} parent=35 // pred_fallthru
        _
    $region36: #{transformer_block.2} parent=5 // pred_fallthru
      _
    %p280 = scmp.le.s32.totalorder 1, %s14
    %p281 = scmp.lt.s32.totalorder %s14, 3
    %p282 = pnand %p280, %p281
    %p283 = pneg %p282
    // Predicated region
    $region49: #{transformer_block.2} parent=5 // pred_check
      _
    $region50: #{transformer_block.2} parent=5 // pred_check_branch
      %285 = sbr.rel (%p282) target = $region52
    $region51: #{transformer_block.2} parent=5 // pred_region
      %s286 = ssub.s32 %s14, 1
      %p287 = scmp.lt.s32.totalorder %s19, 1
      %s288 = scalar_select %p287, %s19, 1
      %s289 = smul.addr %s288, 3
      %s290 = smul.addr %s289, 8
      %s291 = scalar_lea.vmem %s0, %s290
      %p292 = pneg %p40
      %p293 = pneg %p37
      %p294 = pneg %p61
      %p295 = pneg %p58
      %p296 = pneg %p82
      %p297 = pneg %p79
      %p298 = pneg %p103
      %p299 = pneg %p100
      %p300 = scmp.lt.s32.totalorder %s19, 1
      %s301 = scalar_select %p300, %s19, 1
      %s302 = smul.addr %s301, 4
      %s303 = scalar_lea.vmem %s4, %s302
      %p304 = pneg %p129
      %p305 = pneg %p126
      %p306 = scmp.lt.s32.totalorder %s19, 1
      %s307 = scalar_select %p306, %s19, 1
      %s308 = smul.addr %s307, 3
      %s309 = smul.addr %s308, 4
      %s310 = scalar_lea.vmem %s5, %s309
      %p311 = pneg %p155
      %p312 = pneg %p152
      %p313 = pneg %p176
      %p314 = pneg %p173
      %p315 = pneg %p197
      %p316 = pneg %p194
      %p317 = pneg %p223
      %p318 = pneg %p220
      %p319 = scmp.lt.s32.totalorder %s19, 1
      %s320 = scalar_select %p319, %s19, 1
      %s321 = smul.addr %s320, 3
      %s322 = smul.addr %s321, 8
      %s323 = scalar_lea.vmem %s8, %s322
      %p324 = scmp.lt.s32.totalorder %s19, 1
      %s325 = scalar_select %p324, %s19, 1
      %s326 = smul.addr %s325, 3
      %s327 = smul.addr %s326, 8
      %s328 = scalar_lea.vmem %s0, %s327
      %p329 = scmp.lt.s32.totalorder %s19, 1
      %s330 = scalar_select %p329, %s19, 1
      %s331 = smul.addr %s330, 4
      %s332 = scalar_lea.vmem %s4, %s331
      %p333 = scmp.lt.s32.totalorder %s19, 1
      %s334 = scalar_select %p333, %s19, 1
      %s335 = smul.addr %s334, 3
      %s336 = smul.addr %s335, 4
      %s337 = scalar_lea.vmem %s5, %s336
      %p338 = scmp.lt.s32.totalorder %s19, 1
      %s339 = scalar_select %p338, %s19, 1
      %s340 = smul.addr %s339, 3
      %s341 = smul.addr %s340, 8
      %s342 = scalar_lea.vmem %s8, %s341
      %v344 = vld [vmem:[%s328] sm:$0xff]
      %v345 = vld [vmem:[%s328 + $0x8] sm:$0xff]
      %v346 = vld [vmem:[%s328 + $0x10] sm:$0xff]
      %v347 = vpack.c.bf16 %v344, %v344
      %v348 = vpack.c.bf16 %v345, %v345
      %v349 = vpack.c.bf16 %v346, %v346
      %v350 = vld [vmem:[%s1] sm:$0xff]
      %v351 = vld [vmem:[%s1 + $0x8] sm:$0xff]
      %v352 = vld [vmem:[%s1 + $0x10] sm:$0xff]
      %v353 = vld [vmem:[%s1 + $0x18] sm:$0xff]
      %v354 = vld [vmem:[%s1 + $0x20] sm:$0xf]
      %v355 = vld [vmem:[%s1 + $0x24] sm:$0xff]
      %v356 = vld [vmem:[%s1 + $0x2c] sm:$0xff]
      %v357 = vld [vmem:[%s1 + $0x34] sm:$0xff]
      %v358 = vld [vmem:[%s1 + $0x3c] sm:$0xff]
      %v359 = vld [vmem:[%s1 + $0x44] sm:$0xf]
      %v360 = vld [vmem:[%s1 + $0x48] sm:$0xff]
      %v361 = vld [vmem:[%s1 + $0x50] sm:$0xff]
      %v362 = vld [vmem:[%s1 + $0x58] sm:$0xff]
      %v363 = vld [vmem:[%s1 + $0x60] sm:$0xff]
      %v364 = vld [vmem:[%s1 + $0x68] sm:$0xf]
      %v365 = vld [vmem:[%s1 + $0x6c] sm:$0xff]
      %v366 = vld [vmem:[%s1 + $0x74] sm:$0xff]
      %v367 = vld [vmem:[%s1 + $0x7c] sm:$0xff]
      %v368 = vld [vmem:[%s1 + $0x84] sm:$0xff]
      %v369 = vld [vmem:[%s1 + $0x8c] sm:$0xf]
      %v370 = vld [vmem:[%s1 + $0x90] sm:$0xff]
      %v371 = vld [vmem:[%s1 + $0x98] sm:$0xff]
      %v372 = vld [vmem:[%s1 + $0xa0] sm:$0xff]
      %v373 = vld [vmem:[%s1 + $0xa8] sm:$0xff]
      %v374 = vld [vmem:[%s1 + $0xb0] sm:$0xf]
      %v375 = vld [vmem:[%s1 + $0xb4] sm:$0xff]
      %v376 = vld [vmem:[%s1 + $0xbc] sm:$0xff]
      %v377 = vld [vmem:[%s1 + $0xc4] sm:$0xff]
      %v378 = vld [vmem:[%s1 + $0xcc] sm:$0xff]
      %v379 = vld [vmem:[%s1 + $0xd4] sm:$0xf]
      %v380 = vld [vmem:[%s1 + $0xd8] sm:$0xff]
      %v381 = vld [vmem:[%s1 + $0xe0] sm:$0xff]
      %v382 = vld [vmem:[%s1 + $0xe8] sm:$0xff]
      %v383 = vld [vmem:[%s1 + $0xf0] sm:$0xff]
      %v384 = vld [vmem:[%s1 + $0xf8] sm:$0xf]
      %v385 = vld [vmem:[%s1 + $0xfc] sm:$0xff]
      %v386 = vld [vmem:[%s1 + $0x104] sm:$0xff]
      %v387 = vld [vmem:[%s1 + $0x10c] sm:$0xff]
      %v388 = vld [vmem:[%s1 + $0x114] sm:$0xff]
      %v389 = vld [vmem:[%s1 + $0x11c] sm:$0xf]
      %v390 = vld [vmem:[%s1 + $0x120] sm:$0xff]
      %v391 = vld [vmem:[%s1 + $0x128] sm:$0xff]
      %v392 = vld [vmem:[%s1 + $0x130] sm:$0xff]
      %v393 = vld [vmem:[%s1 + $0x138] sm:$0xff]
      %v394 = vld [vmem:[%s1 + $0x140] sm:$0xf]
      %v395 = vld [vmem:[%s1 + $0x144] sm:$0xff]
      %v396 = vld [vmem:[%s1 + $0x14c] sm:$0xff]
      %v397 = vld [vmem:[%s1 + $0x154] sm:$0xff]
      %v398 = vld [vmem:[%s1 + $0x15c] sm:$0xff]
      %v399 = vld [vmem:[%s1 + $0x164] sm:$0xf]
      %v400 = vld [vmem:[%s1 + $0x168] sm:$0xff]
      %v401 = vld [vmem:[%s1 + $0x170] sm:$0xff]
      %v402 = vld [vmem:[%s1 + $0x178] sm:$0xff]
      %v403 = vld [vmem:[%s1 + $0x180] sm:$0xff]
      %v404 = vld [vmem:[%s1 + $0x188] sm:$0xf]
      %v405 = vld [vmem:[%s1 + $0x18c] sm:$0xff]
      %v406 = vld [vmem:[%s1 + $0x194] sm:$0xff]
      %v407 = vld [vmem:[%s1 + $0x19c] sm:$0xff]
      %v408 = vld [vmem:[%s1 + $0x1a4] sm:$0xff]
      %v409 = vld [vmem:[%s1 + $0x1ac] sm:$0xf]
      %v410 = vld [vmem:[%s1 + $0x1b0] sm:$0xff]
      %v411 = vld [vmem:[%s1 + $0x1b8] sm:$0xff]
      %v412 = vld [vmem:[%s1 + $0x1c0] sm:$0xff]
      %v413 = vld [vmem:[%s1 + $0x1c8] sm:$0xff]
      %v414 = vld [vmem:[%s1 + $0x1d0] sm:$0xf]
      %v415 = vld [vmem:[%s1 + $0x1d4] sm:$0xff]
      %v416 = vld [vmem:[%s1 + $0x1dc] sm:$0xff]
      %v417 = vld [vmem:[%s1 + $0x1e4] sm:$0xff]
      %v418 = vld [vmem:[%s1 + $0x1ec] sm:$0xff]
      %v419 = vld [vmem:[%s1 + $0x1f4] sm:$0xf]
      %v420 = vld [vmem:[%s1 + $0x1f8] sm:$0xff]
      %v421 = vld [vmem:[%s1 + $0x200] sm:$0xff]
      %v422 = vld [vmem:[%s1 + $0x208] sm:$0xff]
      %v423 = vld [vmem:[%s1 + $0x210] sm:$0xff]
      %v424 = vld [vmem:[%s1 + $0x218] sm:$0xf]
      %v425 = vld [vmem:[%s1 + $0x21c] sm:$0xff]
      %v426 = vld [vmem:[%s1 + $0x224] sm:$0xff]
      %v427 = vld [vmem:[%s1 + $0x22c] sm:$0xff]
      %v428 = vld [vmem:[%s1 + $0x234] sm:$0xff]
      %v429 = vld [vmem:[%s1 + $0x23c] sm:$0xf]
      %v430 = vld [vmem:[%s1 + $0x240] sm:$0xff]
      %v431 = vld [vmem:[%s1 + $0x248] sm:$0xff]
      %v432 = vld [vmem:[%s1 + $0x250] sm:$0xff]
      %v433 = vld [vmem:[%s1 + $0x258] sm:$0xff]
      %v434 = vld [vmem:[%s1 + $0x260] sm:$0xf]
      %v435 = vld [vmem:[%s1 + $0x264] sm:$0xff]
      %v436 = vld [vmem:[%s1 + $0x26c] sm:$0xff]
      %v437 = vld [vmem:[%s1 + $0x274] sm:$0xff]
      %v438 = vld [vmem:[%s1 + $0x27c] sm:$0xff]
      %v439 = vld [vmem:[%s1 + $0x284] sm:$0xf]
      %v440 = vld [vmem:[%s1 + $0x288] sm:$0xff]
      %v441 = vld [vmem:[%s1 + $0x290] sm:$0xff]
      %v442 = vld [vmem:[%s1 + $0x298] sm:$0xff]
      %v443 = vld [vmem:[%s1 + $0x2a0] sm:$0xff]
      %v444 = vld [vmem:[%s1 + $0x2a8] sm:$0xf]
      %v445 = vld [vmem:[%s1 + $0x2ac] sm:$0xff]
      %v446 = vld [vmem:[%s1 + $0x2b4] sm:$0xff]
      %v447 = vld [vmem:[%s1 + $0x2bc] sm:$0xff]
      %v448 = vld [vmem:[%s1 + $0x2c4] sm:$0xff]
      %v449 = vld [vmem:[%s1 + $0x2cc] sm:$0xf]
      %v450 = vld [vmem:[%s1 + $0x2d0] sm:$0xff]
      %v451 = vld [vmem:[%s1 + $0x2d8] sm:$0xff]
      %v452 = vld [vmem:[%s1 + $0x2e0] sm:$0xff]
      %v453 = vld [vmem:[%s1 + $0x2e8] sm:$0xff]
      %v454 = vld [vmem:[%s1 + $0x2f0] sm:$0xf]
      %v455 = vld [vmem:[%s1 + $0x2f4] sm:$0xff]
      %v456 = vld [vmem:[%s1 + $0x2fc] sm:$0xff]
      %v457 = vld [vmem:[%s1 + $0x304] sm:$0xff]
      %v458 = vld [vmem:[%s1 + $0x30c] sm:$0xff]
      %v459 = vld [vmem:[%s1 + $0x314] sm:$0xf]
      %v460 = vld [vmem:[%s1 + $0x318] sm:$0xff]
      %v461 = vld [vmem:[%s1 + $0x320] sm:$0xff]
      %v462 = vld [vmem:[%s1 + $0x328] sm:$0xff]
      %v463 = vld [vmem:[%s1 + $0x330] sm:$0xff]
      %v464 = vld [vmem:[%s1 + $0x338] sm:$0xf]
      %v465 = vld [vmem:[%s1 + $0x33c] sm:$0xff]
      %v466 = vld [vmem:[%s1 + $0x344] sm:$0xff]
      %v467 = vld [vmem:[%s1 + $0x34c] sm:$0xff]
      %v468 = vld [vmem:[%s1 + $0x354] sm:$0xff]
      %v469 = vld [vmem:[%s1 + $0x35c] sm:$0xf]
      %v470 = vld [vmem:[%s1 + $0x360] sm:$0xff]
      %v471 = vld [vmem:[%s1 + $0x368] sm:$0xff]
      %v472 = vld [vmem:[%s1 + $0x370] sm:$0xff]
      %v473 = vld [vmem:[%s1 + $0x378] sm:$0xff]
      %v474 = vld [vmem:[%s1 + $0x380] sm:$0xf]
      %v475 = vld [vmem:[%s1 + $0x384] sm:$0xff]
      %v476 = vld [vmem:[%s1 + $0x38c] sm:$0xff]
      %v477 = vld [vmem:[%s1 + $0x394] sm:$0xff]
      %v478 = vld [vmem:[%s1 + $0x39c] sm:$0xff]
      %v479 = vld [vmem:[%s1 + $0x3a4] sm:$0xf]
      %v480 = vld [vmem:[%s1 + $0x3a8] sm:$0xff]
      %v481 = vld [vmem:[%s1 + $0x3b0] sm:$0xff]
      %v482 = vld [vmem:[%s1 + $0x3b8] sm:$0xff]
      %v483 = vld [vmem:[%s1 + $0x3c0] sm:$0xff]
      %v484 = vld [vmem:[%s1 + $0x3c8] sm:$0xf]
      %v485 = vld [vmem:[%s1 + $0x3cc] sm:$0xff]
      %v486 = vld [vmem:[%s1 + $0x3d4] sm:$0xff]
      %v487 = vld [vmem:[%s1 + $0x3dc] sm:$0xff]
      %v488 = vld [vmem:[%s1 + $0x3e4] sm:$0xff]
      %v489 = vld [vmem:[%s1 + $0x3ec] sm:$0xf]
      %v490 = vld [vmem:[%s1 + $0x3f0] sm:$0xff]
      %v491 = vld [vmem:[%s1 + $0x3f8] sm:$0xff]
      %v492 = vld [vmem:[%s1 + $0x400] sm:$0xff]
      %v493 = vld [vmem:[%s1 + $0x408] sm:$0xff]
      %v494 = vld [vmem:[%s1 + $0x410] sm:$0xf]
      %v495 = vld [vmem:[%s1 + $0x414] sm:$0xff]
      %v496 = vld [vmem:[%s1 + $0x41c] sm:$0xff]
      %v497 = vld [vmem:[%s1 + $0x424] sm:$0xff]
      %v498 = vld [vmem:[%s1 + $0x42c] sm:$0xff]
      %v499 = vld [vmem:[%s1 + $0x434] sm:$0xf]
      %v500 = vld [vmem:[%s1 + $0x438] sm:$0xff]
      %v501 = vld [vmem:[%s1 + $0x440] sm:$0xff]
      %v502 = vld [vmem:[%s1 + $0x448] sm:$0xff]
      %v503 = vld [vmem:[%s1 + $0x450] sm:$0xff]
      %v504 = vld [vmem:[%s1 + $0x458] sm:$0xf]
      %v505 = vld [vmem:[%s1 + $0x45c] sm:$0xff]
      %v506 = vld [vmem:[%s1 + $0x464] sm:$0xff]
      %v507 = vld [vmem:[%s1 + $0x46c] sm:$0xff]
      %v508 = vld [vmem:[%s1 + $0x474] sm:$0xff]
      %v509 = vld [vmem:[%s1 + $0x47c] sm:$0xf]
      %v510 = vld [vmem:[%s1 + $0x480] sm:$0xff]
      %v511 = vld [vmem:[%s1 + $0x488] sm:$0xff]
      %v512 = vld [vmem:[%s1 + $0x490] sm:$0xff]
      %v513 = vld [vmem:[%s1 + $0x498] sm:$0xff]
      %v514 = vld [vmem:[%s1 + $0x4a0] sm:$0xf]
      %v515 = vld [vmem:[%s1 + $0x4a4] sm:$0xff]
      %v516 = vld [vmem:[%s1 + $0x4ac] sm:$0xff]
      %v517 = vld [vmem:[%s1 + $0x4b4] sm:$0xff]
      %v518 = vld [vmem:[%s1 + $0x4bc] sm:$0xff]
      %v519 = vld [vmem:[%s1 + $0x4c4] sm:$0xf]
      %v520 = vld [vmem:[%s1 + $0x4c8] sm:$0xff]
      %v521 = vld [vmem:[%s1 + $0x4d0] sm:$0xff]
      %v522 = vld [vmem:[%s1 + $0x4d8] sm:$0xff]
      %v523 = vld [vmem:[%s1 + $0x4e0] sm:$0xff]
      %v524 = vld [vmem:[%s1 + $0x4e8] sm:$0xf]
      %v525 = vld [vmem:[%s1 + $0x4ec] sm:$0xff]
      %v526 = vld [vmem:[%s1 + $0x4f4] sm:$0xff]
      %v527 = vld [vmem:[%s1 + $0x4fc] sm:$0xff]
      %v528 = vld [vmem:[%s1 + $0x504] sm:$0xff]
      %v529 = vld [vmem:[%s1 + $0x50c] sm:$0xf]
      %v530 = vld [vmem:[%s1 + $0x510] sm:$0xff]
      %v531 = vld [vmem:[%s1 + $0x518] sm:$0xff]
      %v532 = vld [vmem:[%s1 + $0x520] sm:$0xff]
      %v533 = vld [vmem:[%s1 + $0x528] sm:$0xff]
      %v534 = vld [vmem:[%s1 + $0x530] sm:$0xf]
      %v535 = vld [vmem:[%s1 + $0x534] sm:$0xff]
      %v536 = vld [vmem:[%s1 + $0x53c] sm:$0xff]
      %v537 = vld [vmem:[%s1 + $0x544] sm:$0xff]
      %v538 = vld [vmem:[%s1 + $0x54c] sm:$0xff]
      %v539 = vld [vmem:[%s1 + $0x554] sm:$0xf]
      %v540 = vld [vmem:[%s1 + $0x558] sm:$0xff]
      %v541 = vld [vmem:[%s1 + $0x560] sm:$0xff]
      %v542 = vld [vmem:[%s1 + $0x568] sm:$0xff]
      %v543 = vld [vmem:[%s1 + $0x570] sm:$0xff]
      %v544 = vld [vmem:[%s1 + $0x578] sm:$0xf]
      %v545 = vld [vmem:[%s1 + $0x57c] sm:$0xff]
      %v546 = vld [vmem:[%s1 + $0x584] sm:$0xff]
      %v547 = vld [vmem:[%s1 + $0x58c] sm:$0xff]
      %v548 = vld [vmem:[%s1 + $0x594] sm:$0xff]
      %v549 = vld [vmem:[%s1 + $0x59c] sm:$0xf]
      %v550 = vld [vmem:[%s1 + $0x5a0] sm:$0xff]
      %v551 = vld [vmem:[%s1 + $0x5a8] sm:$0xff]
      %v552 = vld [vmem:[%s1 + $0x5b0] sm:$0xff]
      %v553 = vld [vmem:[%s1 + $0x5b8] sm:$0xff]
      %v554 = vld [vmem:[%s1 + $0x5c0] sm:$0xf]
      %v555 = vld [vmem:[%s1 + $0x5c4] sm:$0xff]
      %v556 = vld [vmem:[%s1 + $0x5cc] sm:$0xff]
      %v557 = vld [vmem:[%s1 + $0x5d4] sm:$0xff]
      %v558 = vld [vmem:[%s1 + $0x5dc] sm:$0xff]
      %v559 = vld [vmem:[%s1 + $0x5e4] sm:$0xf]
      %v560 = vld [vmem:[%s1 + $0x5e8] sm:$0xff]
      %v561 = vld [vmem:[%s1 + $0x5f0] sm:$0xff]
      %v562 = vld [vmem:[%s1 + $0x5f8] sm:$0xff]
      %v563 = vld [vmem:[%s1 + $0x600] sm:$0xff]
      %v564 = vld [vmem:[%s1 + $0x608] sm:$0xf]
      %v565 = vld [vmem:[%s1 + $0x60c] sm:$0xff]
      %v566 = vld [vmem:[%s1 + $0x614] sm:$0xff]
      %v567 = vld [vmem:[%s1 + $0x61c] sm:$0xff]
      %v568 = vld [vmem:[%s1 + $0x624] sm:$0xff]
      %v569 = vld [vmem:[%s1 + $0x62c] sm:$0xf]
      %v570 = vld [vmem:[%s1 + $0x630] sm:$0xff]
      %v571 = vld [vmem:[%s1 + $0x638] sm:$0xff]
      %v572 = vld [vmem:[%s1 + $0x640] sm:$0xff]
      %v573 = vld [vmem:[%s1 + $0x648] sm:$0xff]
      %v574 = vld [vmem:[%s1 + $0x650] sm:$0xf]
      %v575 = vld [vmem:[%s1 + $0x654] sm:$0xff]
      %v576 = vld [vmem:[%s1 + $0x65c] sm:$0xff]
      %v577 = vld [vmem:[%s1 + $0x664] sm:$0xff]
      %v578 = vld [vmem:[%s1 + $0x66c] sm:$0xff]
      %v579 = vld [vmem:[%s1 + $0x674] sm:$0xf]
      %v580 = vld [vmem:[%s1 + $0x678] sm:$0xff]
      %v581 = vld [vmem:[%s1 + $0x680] sm:$0xff]
      %v582 = vld [vmem:[%s1 + $0x688] sm:$0xff]
      %v583 = vld [vmem:[%s1 + $0x690] sm:$0xff]
      %v584 = vld [vmem:[%s1 + $0x698] sm:$0xf]
      %v585 = vld [vmem:[%s1 + $0x69c] sm:$0xff]
      %v586 = vld [vmem:[%s1 + $0x6a4] sm:$0xff]
      %v587 = vld [vmem:[%s1 + $0x6ac] sm:$0xff]
      %v588 = vld [vmem:[%s1 + $0x6b4] sm:$0xff]
      %v589 = vld [vmem:[%s1 + $0x6bc] sm:$0xf]
      %v830 = vunpack.c.l.b16 %v350
      %v831 = vunpack.c.h.b16 %v350
      %v832 = vunpack.c.l.b16 %v351
      %v833 = vunpack.c.h.b16 %v351
      %v834 = vunpack.c.l.b16 %v352
      %v835 = vunpack.c.h.b16 %v352
      %v836 = vunpack.c.l.b16 %v353
      %v837 = vunpack.c.h.b16 %v353
      %v838 = vunpack.c.l.b16 %v354
      %v839 = vunpack.c.l.b16 %v355
      %v840 = vunpack.c.h.b16 %v355
      %v841 = vunpack.c.l.b16 %v356
      %v842 = vunpack.c.h.b16 %v356
      %v843 = vunpack.c.l.b16 %v357
      %v844 = vunpack.c.h.b16 %v357
      %v845 = vunpack.c.l.b16 %v358
      %v846 = vunpack.c.h.b16 %v358
      %v847 = vunpack.c.l.b16 %v359
      %v848 = vunpack.c.l.b16 %v360
      %v849 = vunpack.c.h.b16 %v360
      %v850 = vunpack.c.l.b16 %v361
      %v851 = vunpack.c.h.b16 %v361
      %v852 = vunpack.c.l.b16 %v362
      %v853 = vunpack.c.h.b16 %v362
      %v854 = vunpack.c.l.b16 %v363
      %v855 = vunpack.c.h.b16 %v363
      %v856 = vunpack.c.l.b16 %v364
      %v857 = vunpack.c.l.b16 %v365
      %v858 = vunpack.c.h.b16 %v365
      %v859 = vunpack.c.l.b16 %v366
      %v860 = vunpack.c.h.b16 %v366
      %v861 = vunpack.c.l.b16 %v367
      %v862 = vunpack.c.h.b16 %v367
      %v863 = vunpack.c.l.b16 %v368
      %v864 = vunpack.c.h.b16 %v368
      %v865 = vunpack.c.l.b16 %v369
      %v866 = vunpack.c.l.b16 %v370
      %v867 = vunpack.c.h.b16 %v370
      %v868 = vunpack.c.l.b16 %v371
      %v869 = vunpack.c.h.b16 %v371
      %v870 = vunpack.c.l.b16 %v372
      %v871 = vunpack.c.h.b16 %v372
      %v872 = vunpack.c.l.b16 %v373
      %v873 = vunpack.c.h.b16 %v373
      %v874 = vunpack.c.l.b16 %v374
      %v875 = vunpack.c.l.b16 %v375
      %v876 = vunpack.c.h.b16 %v375
      %v877 = vunpack.c.l.b16 %v376
      %v878 = vunpack.c.h.b16 %v376
      %v879 = vunpack.c.l.b16 %v377
      %v880 = vunpack.c.h.b16 %v377
      %v881 = vunpack.c.l.b16 %v378
      %v882 = vunpack.c.h.b16 %v378
      %v883 = vunpack.c.l.b16 %v379
      %v884 = vunpack.c.l.b16 %v380
      %v885 = vunpack.c.h.b16 %v380
      %v886 = vunpack.c.l.b16 %v381
      %v887 = vunpack.c.h.b16 %v381
      %v888 = vunpack.c.l.b16 %v382
      %v889 = vunpack.c.h.b16 %v382
      %v890 = vunpack.c.l.b16 %v383
      %v891 = vunpack.c.h.b16 %v383
      %v892 = vunpack.c.l.b16 %v384
      %v893 = vunpack.c.l.b16 %v385
      %v894 = vunpack.c.h.b16 %v385
      %v895 = vunpack.c.l.b16 %v386
      %v896 = vunpack.c.h.b16 %v386
      %v897 = vunpack.c.l.b16 %v387
      %v898 = vunpack.c.h.b16 %v387
      %v899 = vunpack.c.l.b16 %v388
      %v900 = vunpack.c.h.b16 %v388
      %v901 = vunpack.c.l.b16 %v389
      %v902 = vunpack.c.l.b16 %v390
      %v903 = vunpack.c.h.b16 %v390
      %v904 = vunpack.c.l.b16 %v391
      %v905 = vunpack.c.h.b16 %v391
      %v906 = vunpack.c.l.b16 %v392
      %v907 = vunpack.c.h.b16 %v392
      %v908 = vunpack.c.l.b16 %v393
      %v909 = vunpack.c.h.b16 %v393
      %v910 = vunpack.c.l.b16 %v394
      %v911 = vunpack.c.l.b16 %v395
      %v912 = vunpack.c.h.b16 %v395
      %v913 = vunpack.c.l.b16 %v396
      %v914 = vunpack.c.h.b16 %v396
      %v915 = vunpack.c.l.b16 %v397
      %v916 = vunpack.c.h.b16 %v397
      %v917 = vunpack.c.l.b16 %v398
      %v918 = vunpack.c.h.b16 %v398
      %v919 = vunpack.c.l.b16 %v399
      %v920 = vunpack.c.l.b16 %v400
      %v921 = vunpack.c.h.b16 %v400
      %v922 = vunpack.c.l.b16 %v401
      %v923 = vunpack.c.h.b16 %v401
      %v924 = vunpack.c.l.b16 %v402
      %v925 = vunpack.c.h.b16 %v402
      %v926 = vunpack.c.l.b16 %v403
      %v927 = vunpack.c.h.b16 %v403
      %v928 = vunpack.c.l.b16 %v404
      %v929 = vunpack.c.l.b16 %v405
      %v930 = vunpack.c.h.b16 %v405
      %v931 = vunpack.c.l.b16 %v406
      %v932 = vunpack.c.h.b16 %v406
      %v933 = vunpack.c.l.b16 %v407
      %v934 = vunpack.c.h.b16 %v407
      %v935 = vunpack.c.l.b16 %v408
      %v936 = vunpack.c.h.b16 %v408
      %v937 = vunpack.c.l.b16 %v409
      %v938 = vunpack.c.l.b16 %v410
      %v939 = vunpack.c.h.b16 %v410
      %v940 = vunpack.c.l.b16 %v411
      %v941 = vunpack.c.h.b16 %v411
      %v942 = vunpack.c.l.b16 %v412
      %v943 = vunpack.c.h.b16 %v412
      %v944 = vunpack.c.l.b16 %v413
      %v945 = vunpack.c.h.b16 %v413
      %v946 = vunpack.c.l.b16 %v414
      %v947 = vunpack.c.l.b16 %v415
      %v948 = vunpack.c.h.b16 %v415
      %v949 = vunpack.c.l.b16 %v416
      %v950 = vunpack.c.h.b16 %v416
      %v951 = vunpack.c.l.b16 %v417
      %v952 = vunpack.c.h.b16 %v417
      %v953 = vunpack.c.l.b16 %v418
      %v954 = vunpack.c.h.b16 %v418
      %v955 = vunpack.c.l.b16 %v419
      %v956 = vunpack.c.l.b16 %v420
      %v957 = vunpack.c.h.b16 %v420
      %v958 = vunpack.c.l.b16 %v421
      %v959 = vunpack.c.h.b16 %v421
      %v960 = vunpack.c.l.b16 %v422
      %v961 = vunpack.c.h.b16 %v422
      %v962 = vunpack.c.l.b16 %v423
      %v963 = vunpack.c.h.b16 %v423
      %v964 = vunpack.c.l.b16 %v424
      %v965 = vunpack.c.l.b16 %v425
      %v966 = vunpack.c.h.b16 %v425
      %v967 = vunpack.c.l.b16 %v426
      %v968 = vunpack.c.h.b16 %v426
      %v969 = vunpack.c.l.b16 %v427
      %v970 = vunpack.c.h.b16 %v427
      %v971 = vunpack.c.l.b16 %v428
      %v972 = vunpack.c.h.b16 %v428
      %v973 = vunpack.c.l.b16 %v429
      %v974 = vunpack.c.l.b16 %v430
      %v975 = vunpack.c.h.b16 %v430
      %v976 = vunpack.c.l.b16 %v431
      %v977 = vunpack.c.h.b16 %v431
      %v978 = vunpack.c.l.b16 %v432
      %v979 = vunpack.c.h.b16 %v432
      %v980 = vunpack.c.l.b16 %v433
      %v981 = vunpack.c.h.b16 %v433
      %v982 = vunpack.c.l.b16 %v434
      %v983 = vunpack.c.l.b16 %v435
      %v984 = vunpack.c.h.b16 %v435
      %v985 = vunpack.c.l.b16 %v436
      %v986 = vunpack.c.h.b16 %v436
      %v987 = vunpack.c.l.b16 %v437
      %v988 = vunpack.c.h.b16 %v437
      %v989 = vunpack.c.l.b16 %v438
      %v990 = vunpack.c.h.b16 %v438
      %v991 = vunpack.c.l.b16 %v439
      %v992 = vunpack.c.l.b16 %v440
      %v993 = vunpack.c.h.b16 %v440
      %v994 = vunpack.c.l.b16 %v441
      %v995 = vunpack.c.h.b16 %v441
      %v996 = vunpack.c.l.b16 %v442
      %v997 = vunpack.c.h.b16 %v442
      %v998 = vunpack.c.l.b16 %v443
      %v999 = vunpack.c.h.b16 %v443
      %v1000 = vunpack.c.l.b16 %v444
      %v1001 = vunpack.c.l.b16 %v445
      %v1002 = vunpack.c.h.b16 %v445
      %v1003 = vunpack.c.l.b16 %v446
      %v1004 = vunpack.c.h.b16 %v446
      %v1005 = vunpack.c.l.b16 %v447
      %v1006 = vunpack.c.h.b16 %v447
      %v1007 = vunpack.c.l.b16 %v448
      %v1008 = vunpack.c.h.b16 %v448
      %v1009 = vunpack.c.l.b16 %v449
      %v1010 = vunpack.c.l.b16 %v450
      %v1011 = vunpack.c.h.b16 %v450
      %v1012 = vunpack.c.l.b16 %v451
      %v1013 = vunpack.c.h.b16 %v451
      %v1014 = vunpack.c.l.b16 %v452
      %v1015 = vunpack.c.h.b16 %v452
      %v1016 = vunpack.c.l.b16 %v453
      %v1017 = vunpack.c.h.b16 %v453
      %v1018 = vunpack.c.l.b16 %v454
      %v1019 = vunpack.c.l.b16 %v455
      %v1020 = vunpack.c.h.b16 %v455
      %v1021 = vunpack.c.l.b16 %v456
      %v1022 = vunpack.c.h.b16 %v456
      %v1023 = vunpack.c.l.b16 %v457
      %v1024 = vunpack.c.h.b16 %v457
      %v1025 = vunpack.c.l.b16 %v458
      %v1026 = vunpack.c.h.b16 %v458
      %v1027 = vunpack.c.l.b16 %v459
      %v1028 = vunpack.c.l.b16 %v460
      %v1029 = vunpack.c.h.b16 %v460
      %v1030 = vunpack.c.l.b16 %v461
      %v1031 = vunpack.c.h.b16 %v461
      %v1032 = vunpack.c.l.b16 %v462
      %v1033 = vunpack.c.h.b16 %v462
      %v1034 = vunpack.c.l.b16 %v463
      %v1035 = vunpack.c.h.b16 %v463
      %v1036 = vunpack.c.l.b16 %v464
      %v1037 = vunpack.c.l.b16 %v465
      %v1038 = vunpack.c.h.b16 %v465
      %v1039 = vunpack.c.l.b16 %v466
      %v1040 = vunpack.c.h.b16 %v466
      %v1041 = vunpack.c.l.b16 %v467
      %v1042 = vunpack.c.h.b16 %v467
      %v1043 = vunpack.c.l.b16 %v468
      %v1044 = vunpack.c.h.b16 %v468
      %v1045 = vunpack.c.l.b16 %v469
      %v1046 = vunpack.c.l.b16 %v470
      %v1047 = vunpack.c.h.b16 %v470
      %v1048 = vunpack.c.l.b16 %v471
      %v1049 = vunpack.c.h.b16 %v471
      %v1050 = vunpack.c.l.b16 %v472
      %v1051 = vunpack.c.h.b16 %v472
      %v1052 = vunpack.c.l.b16 %v473
      %v1053 = vunpack.c.h.b16 %v473
      %v1054 = vunpack.c.l.b16 %v474
      %v1055 = vunpack.c.l.b16 %v475
      %v1056 = vunpack.c.h.b16 %v475
      %v1057 = vunpack.c.l.b16 %v476
      %v1058 = vunpack.c.h.b16 %v476
      %v1059 = vunpack.c.l.b16 %v477
      %v1060 = vunpack.c.h.b16 %v477
      %v1061 = vunpack.c.l.b16 %v478
      %v1062 = vunpack.c.h.b16 %v478
      %v1063 = vunpack.c.l.b16 %v479
      %v1064 = vunpack.c.l.b16 %v480
      %v1065 = vunpack.c.h.b16 %v480
      %v1066 = vunpack.c.l.b16 %v481
      %v1067 = vunpack.c.h.b16 %v481
      %v1068 = vunpack.c.l.b16 %v482
      %v1069 = vunpack.c.h.b16 %v482
      %v1070 = vunpack.c.l.b16 %v483
      %v1071 = vunpack.c.h.b16 %v483
      %v1072 = vunpack.c.l.b16 %v484
      %v1073 = vunpack.c.l.b16 %v485
      %v1074 = vunpack.c.h.b16 %v485
      %v1075 = vunpack.c.l.b16 %v486
      %v1076 = vunpack.c.h.b16 %v486
      %v1077 = vunpack.c.l.b16 %v487
      %v1078 = vunpack.c.h.b16 %v487
      %v1079 = vunpack.c.l.b16 %v488
      %v1080 = vunpack.c.h.b16 %v488
      %v1081 = vunpack.c.l.b16 %v489
      %v1082 = vunpack.c.l.b16 %v490
      %v1083 = vunpack.c.h.b16 %v490
      %v1084 = vunpack.c.l.b16 %v491
      %v1085 = vunpack.c.h.b16 %v491
      %v1086 = vunpack.c.l.b16 %v492
      %v1087 = vunpack.c.h.b16 %v492
      %v1088 = vunpack.c.l.b16 %v493
      %v1089 = vunpack.c.h.b16 %v493
      %v1090 = vunpack.c.l.b16 %v494
      %v1091 = vunpack.c.l.b16 %v495
      %v1092 = vunpack.c.h.b16 %v495
      %v1093 = vunpack.c.l.b16 %v496
      %v1094 = vunpack.c.h.b16 %v496
      %v1095 = vunpack.c.l.b16 %v497
      %v1096 = vunpack.c.h.b16 %v497
      %v1097 = vunpack.c.l.b16 %v498
      %v1098 = vunpack.c.h.b16 %v498
      %v1099 = vunpack.c.l.b16 %v499
      %v1100 = vunpack.c.l.b16 %v500
      %v1101 = vunpack.c.h.b16 %v500
      %v1102 = vunpack.c.l.b16 %v501
      %v1103 = vunpack.c.h.b16 %v501
      %v1104 = vunpack.c.l.b16 %v502
      %v1105 = vunpack.c.h.b16 %v502
      %v1106 = vunpack.c.l.b16 %v503
      %v1107 = vunpack.c.h.b16 %v503
      %v1108 = vunpack.c.l.b16 %v504
      %v1109 = vunpack.c.l.b16 %v505
      %v1110 = vunpack.c.h.b16 %v505
      %v1111 = vunpack.c.l.b16 %v506
      %v1112 = vunpack.c.h.b16 %v506
      %v1113 = vunpack.c.l.b16 %v507
      %v1114 = vunpack.c.h.b16 %v507
      %v1115 = vunpack.c.l.b16 %v508
      %v1116 = vunpack.c.h.b16 %v508
      %v1117 = vunpack.c.l.b16 %v509
      %v1118 = vunpack.c.l.b16 %v510
      %v1119 = vunpack.c.h.b16 %v510
      %v1120 = vunpack.c.l.b16 %v511
      %v1121 = vunpack.c.h.b16 %v511
      %v1122 = vunpack.c.l.b16 %v512
      %v1123 = vunpack.c.h.b16 %v512
      %v1124 = vunpack.c.l.b16 %v513
      %v1125 = vunpack.c.h.b16 %v513
      %v1126 = vunpack.c.l.b16 %v514
      %v1127 = vunpack.c.l.b16 %v515
      %v1128 = vunpack.c.h.b16 %v515
      %v1129 = vunpack.c.l.b16 %v516
      %v1130 = vunpack.c.h.b16 %v516
      %v1131 = vunpack.c.l.b16 %v517
      %v1132 = vunpack.c.h.b16 %v517
      %v1133 = vunpack.c.l.b16 %v518
      %v1134 = vunpack.c.h.b16 %v518
      %v1135 = vunpack.c.l.b16 %v519
      %v1136 = vunpack.c.l.b16 %v520
      %v1137 = vunpack.c.h.b16 %v520
      %v1138 = vunpack.c.l.b16 %v521
      %v1139 = vunpack.c.h.b16 %v521
      %v1140 = vunpack.c.l.b16 %v522
      %v1141 = vunpack.c.h.b16 %v522
      %v1142 = vunpack.c.l.b16 %v523
      %v1143 = vunpack.c.h.b16 %v523
      %v1144 = vunpack.c.l.b16 %v524
      %v1145 = vunpack.c.l.b16 %v525
      %v1146 = vunpack.c.h.b16 %v525
      %v1147 = vunpack.c.l.b16 %v526
      %v1148 = vunpack.c.h.b16 %v526
      %v1149 = vunpack.c.l.b16 %v527
      %v1150 = vunpack.c.h.b16 %v527
      %v1151 = vunpack.c.l.b16 %v528
      %v1152 = vunpack.c.h.b16 %v528
      %v1153 = vunpack.c.l.b16 %v529
      %v1154 = vunpack.c.l.b16 %v530
      %v1155 = vunpack.c.h.b16 %v530
      %v1156 = vunpack.c.l.b16 %v531
      %v1157 = vunpack.c.h.b16 %v531
      %v1158 = vunpack.c.l.b16 %v532
      %v1159 = vunpack.c.h.b16 %v532
      %v1160 = vunpack.c.l.b16 %v533
      %v1161 = vunpack.c.h.b16 %v533
      %v1162 = vunpack.c.l.b16 %v534
      %v1163 = vunpack.c.l.b16 %v535
      %v1164 = vunpack.c.h.b16 %v535
      %v1165 = vunpack.c.l.b16 %v536
      %v1166 = vunpack.c.h.b16 %v536
      %v1167 = vunpack.c.l.b16 %v537
      %v1168 = vunpack.c.h.b16 %v537
      %v1169 = vunpack.c.l.b16 %v538
      %v1170 = vunpack.c.h.b16 %v538
      %v1171 = vunpack.c.l.b16 %v539
      %v1172 = vunpack.c.l.b16 %v540
      %v1173 = vunpack.c.h.b16 %v540
      %v1174 = vunpack.c.l.b16 %v541
      %v1175 = vunpack.c.h.b16 %v541
      %v1176 = vunpack.c.l.b16 %v542
      %v1177 = vunpack.c.h.b16 %v542
      %v1178 = vunpack.c.l.b16 %v543
      %v1179 = vunpack.c.h.b16 %v543
      %v1180 = vunpack.c.l.b16 %v544
      %v1181 = vunpack.c.l.b16 %v545
      %v1182 = vunpack.c.h.b16 %v545
      %v1183 = vunpack.c.l.b16 %v546
      %v1184 = vunpack.c.h.b16 %v546
      %v1185 = vunpack.c.l.b16 %v547
      %v1186 = vunpack.c.h.b16 %v547
      %v1187 = vunpack.c.l.b16 %v548
      %v1188 = vunpack.c.h.b16 %v548
      %v1189 = vunpack.c.l.b16 %v549
      %v1190 = vunpack.c.l.b16 %v550
      %v1191 = vunpack.c.h.b16 %v550
      %v1192 = vunpack.c.l.b16 %v551
      %v1193 = vunpack.c.h.b16 %v551
      %v1194 = vunpack.c.l.b16 %v552
      %v1195 = vunpack.c.h.b16 %v552
      %v1196 = vunpack.c.l.b16 %v553
      %v1197 = vunpack.c.h.b16 %v553
      %v1198 = vunpack.c.l.b16 %v554
      %v1199 = vunpack.c.l.b16 %v555
      %v1200 = vunpack.c.h.b16 %v555
      %v1201 = vunpack.c.l.b16 %v556
      %v1202 = vunpack.c.h.b16 %v556
      %v1203 = vunpack.c.l.b16 %v557
      %v1204 = vunpack.c.h.b16 %v557
      %v1205 = vunpack.c.l.b16 %v558
      %v1206 = vunpack.c.h.b16 %v558
      %v1207 = vunpack.c.l.b16 %v559
      %v1208 = vunpack.c.l.b16 %v560
      %v1209 = vunpack.c.h.b16 %v560
      %v1210 = vunpack.c.l.b16 %v561
      %v1211 = vunpack.c.h.b16 %v561
      %v1212 = vunpack.c.l.b16 %v562
      %v1213 = vunpack.c.h.b16 %v562
      %v1214 = vunpack.c.l.b16 %v563
      %v1215 = vunpack.c.h.b16 %v563
      %v1216 = vunpack.c.l.b16 %v564
      %v1217 = vunpack.c.l.b16 %v565
      %v1218 = vunpack.c.h.b16 %v565
      %v1219 = vunpack.c.l.b16 %v566
      %v1220 = vunpack.c.h.b16 %v566
      %v1221 = vunpack.c.l.b16 %v567
      %v1222 = vunpack.c.h.b16 %v567
      %v1223 = vunpack.c.l.b16 %v568
      %v1224 = vunpack.c.h.b16 %v568
      %v1225 = vunpack.c.l.b16 %v569
      %v1226 = vunpack.c.l.b16 %v570
      %v1227 = vunpack.c.h.b16 %v570
      %v1228 = vunpack.c.l.b16 %v571
      %v1229 = vunpack.c.h.b16 %v571
      %v1230 = vunpack.c.l.b16 %v572
      %v1231 = vunpack.c.h.b16 %v572
      %v1232 = vunpack.c.l.b16 %v573
      %v1233 = vunpack.c.h.b16 %v573
      %v1234 = vunpack.c.l.b16 %v574
      %v1235 = vunpack.c.l.b16 %v575
      %v1236 = vunpack.c.h.b16 %v575
      %v1237 = vunpack.c.l.b16 %v576
      %v1238 = vunpack.c.h.b16 %v576
      %v1239 = vunpack.c.l.b16 %v577
      %v1240 = vunpack.c.h.b16 %v577
      %v1241 = vunpack.c.l.b16 %v578
      %v1242 = vunpack.c.h.b16 %v578
      %v1243 = vunpack.c.l.b16 %v579
      %v1244 = vunpack.c.l.b16 %v580
      %v1245 = vunpack.c.h.b16 %v580
      %v1246 = vunpack.c.l.b16 %v581
      %v1247 = vunpack.c.h.b16 %v581
      %v1248 = vunpack.c.l.b16 %v582
      %v1249 = vunpack.c.h.b16 %v582
      %v1250 = vunpack.c.l.b16 %v583
      %v1251 = vunpack.c.h.b16 %v583
      %v1252 = vunpack.c.l.b16 %v584
      %v1253 = vunpack.c.l.b16 %v585
      %v1254 = vunpack.c.h.b16 %v585
      %v1255 = vunpack.c.l.b16 %v586
      %v1256 = vunpack.c.h.b16 %v586
      %v1257 = vunpack.c.l.b16 %v587
      %v1258 = vunpack.c.h.b16 %v587
      %v1259 = vunpack.c.l.b16 %v588
      %v1260 = vunpack.c.h.b16 %v588
      %v1261 = vunpack.c.l.b16 %v589
      %v1262 = vpack.c.b16 %v839, %v830
      %v1263 = vpack.c.b16 %v840, %v831
      %v1264 = vpack.c.b16 %v841, %v832
      %v1265 = vpack.c.b16 %v842, %v833
      %v1266 = vpack.c.b16 %v843, %v834
      %v1267 = vpack.c.b16 %v844, %v835
      %v1268 = vpack.c.b16 %v845, %v836
      %v1269 = vpack.c.b16 %v846, %v837
      %v1270 = vpack.c.b16 %v847, %v838
      %v1271 = vpack.c.b16 %v857, %v848
      %v1272 = vpack.c.b16 %v858, %v849
      %v1273 = vpack.c.b16 %v859, %v850
      %v1274 = vpack.c.b16 %v860, %v851
      %v1275 = vpack.c.b16 %v861, %v852
      %v1276 = vpack.c.b16 %v862, %v853
      %v1277 = vpack.c.b16 %v863, %v854
      %v1278 = vpack.c.b16 %v864, %v855
      %v1279 = vpack.c.b16 %v865, %v856
      %v1280 = vpack.c.b16 %v875, %v866
      %v1281 = vpack.c.b16 %v876, %v867
      %v1282 = vpack.c.b16 %v877, %v868
      %v1283 = vpack.c.b16 %v878, %v869
      %v1284 = vpack.c.b16 %v879, %v870
      %v1285 = vpack.c.b16 %v880, %v871
      %v1286 = vpack.c.b16 %v881, %v872
      %v1287 = vpack.c.b16 %v882, %v873
      %v1288 = vpack.c.b16 %v883, %v874
      %v1289 = vpack.c.b16 %v893, %v884
      %v1290 = vpack.c.b16 %v894, %v885
      %v1291 = vpack.c.b16 %v895, %v886
      %v1292 = vpack.c.b16 %v896, %v887
      %v1293 = vpack.c.b16 %v897, %v888
      %v1294 = vpack.c.b16 %v898, %v889
      %v1295 = vpack.c.b16 %v899, %v890
      %v1296 = vpack.c.b16 %v900, %v891
      %v1297 = vpack.c.b16 %v901, %v892
      %v1298 = vpack.c.b16 %v911, %v902
      %v1299 = vpack.c.b16 %v912, %v903
      %v1300 = vpack.c.b16 %v913, %v904
      %v1301 = vpack.c.b16 %v914, %v905
      %v1302 = vpack.c.b16 %v915, %v906
      %v1303 = vpack.c.b16 %v916, %v907
      %v1304 = vpack.c.b16 %v917, %v908
      %v1305 = vpack.c.b16 %v918, %v909
      %v1306 = vpack.c.b16 %v919, %v910
      %v1307 = vpack.c.b16 %v929, %v920
      %v1308 = vpack.c.b16 %v930, %v921
      %v1309 = vpack.c.b16 %v931, %v922
      %v1310 = vpack.c.b16 %v932, %v923
      %v1311 = vpack.c.b16 %v933, %v924
      %v1312 = vpack.c.b16 %v934, %v925
      %v1313 = vpack.c.b16 %v935, %v926
      %v1314 = vpack.c.b16 %v936, %v927
      %v1315 = vpack.c.b16 %v937, %v928
      %v1316 = vpack.c.b16 %v947, %v938
      %v1317 = vpack.c.b16 %v948, %v939
      %v1318 = vpack.c.b16 %v949, %v940
      %v1319 = vpack.c.b16 %v950, %v941
      %v1320 = vpack.c.b16 %v951, %v942
      %v1321 = vpack.c.b16 %v952, %v943
      %v1322 = vpack.c.b16 %v953, %v944
      %v1323 = vpack.c.b16 %v954, %v945
      %v1324 = vpack.c.b16 %v955, %v946
      %v1325 = vpack.c.b16 %v965, %v956
      %v1326 = vpack.c.b16 %v966, %v957
      %v1327 = vpack.c.b16 %v967, %v958
      %v1328 = vpack.c.b16 %v968, %v959
      %v1329 = vpack.c.b16 %v969, %v960
      %v1330 = vpack.c.b16 %v970, %v961
      %v1331 = vpack.c.b16 %v971, %v962
      %v1332 = vpack.c.b16 %v972, %v963
      %v1333 = vpack.c.b16 %v973, %v964
      %v1334 = vpack.c.b16 %v983, %v974
      %v1335 = vpack.c.b16 %v984, %v975
      %v1336 = vpack.c.b16 %v985, %v976
      %v1337 = vpack.c.b16 %v986, %v977
      %v1338 = vpack.c.b16 %v987, %v978
      %v1339 = vpack.c.b16 %v988, %v979
      %v1340 = vpack.c.b16 %v989, %v980
      %v1341 = vpack.c.b16 %v990, %v981
      %v1342 = vpack.c.b16 %v991, %v982
      %v1343 = vpack.c.b16 %v1001, %v992
      %v1344 = vpack.c.b16 %v1002, %v993
      %v1345 = vpack.c.b16 %v1003, %v994
      %v1346 = vpack.c.b16 %v1004, %v995
      %v1347 = vpack.c.b16 %v1005, %v996
      %v1348 = vpack.c.b16 %v1006, %v997
      %v1349 = vpack.c.b16 %v1007, %v998
      %v1350 = vpack.c.b16 %v1008, %v999
      %v1351 = vpack.c.b16 %v1009, %v1000
      %v1352 = vpack.c.b16 %v1019, %v1010
      %v1353 = vpack.c.b16 %v1020, %v1011
      %v1354 = vpack.c.b16 %v1021, %v1012
      %v1355 = vpack.c.b16 %v1022, %v1013
      %v1356 = vpack.c.b16 %v1023, %v1014
      %v1357 = vpack.c.b16 %v1024, %v1015
      %v1358 = vpack.c.b16 %v1025, %v1016
      %v1359 = vpack.c.b16 %v1026, %v1017
      %v1360 = vpack.c.b16 %v1027, %v1018
      %v1361 = vpack.c.b16 %v1037, %v1028
      %v1362 = vpack.c.b16 %v1038, %v1029
      %v1363 = vpack.c.b16 %v1039, %v1030
      %v1364 = vpack.c.b16 %v1040, %v1031
      %v1365 = vpack.c.b16 %v1041, %v1032
      %v1366 = vpack.c.b16 %v1042, %v1033
      %v1367 = vpack.c.b16 %v1043, %v1034
      %v1368 = vpack.c.b16 %v1044, %v1035
      %v1369 = vpack.c.b16 %v1045, %v1036
      %v1370 = vpack.c.b16 %v1055, %v1046
      %v1371 = vpack.c.b16 %v1056, %v1047
      %v1372 = vpack.c.b16 %v1057, %v1048
      %v1373 = vpack.c.b16 %v1058, %v1049
      %v1374 = vpack.c.b16 %v1059, %v1050
      %v1375 = vpack.c.b16 %v1060, %v1051
      %v1376 = vpack.c.b16 %v1061, %v1052
      %v1377 = vpack.c.b16 %v1062, %v1053
      %v1378 = vpack.c.b16 %v1063, %v1054
      %v1379 = vpack.c.b16 %v1073, %v1064
      %v1380 = vpack.c.b16 %v1074, %v1065
      %v1381 = vpack.c.b16 %v1075, %v1066
      %v1382 = vpack.c.b16 %v1076, %v1067
      %v1383 = vpack.c.b16 %v1077, %v1068
      %v1384 = vpack.c.b16 %v1078, %v1069
      %v1385 = vpack.c.b16 %v1079, %v1070
      %v1386 = vpack.c.b16 %v1080, %v1071
      %v1387 = vpack.c.b16 %v1081, %v1072
      %v1388 = vpack.c.b16 %v1091, %v1082
      %v1389 = vpack.c.b16 %v1092, %v1083
      %v1390 = vpack.c.b16 %v1093, %v1084
      %v1391 = vpack.c.b16 %v1094, %v1085
      %v1392 = vpack.c.b16 %v1095, %v1086
      %v1393 = vpack.c.b16 %v1096, %v1087
      %v1394 = vpack.c.b16 %v1097, %v1088
      %v1395 = vpack.c.b16 %v1098, %v1089
      %v1396 = vpack.c.b16 %v1099, %v1090
      %v1397 = vpack.c.b16 %v1109, %v1100
      %v1398 = vpack.c.b16 %v1110, %v1101
      %v1399 = vpack.c.b16 %v1111, %v1102
      %v1400 = vpack.c.b16 %v1112, %v1103
      %v1401 = vpack.c.b16 %v1113, %v1104
      %v1402 = vpack.c.b16 %v1114, %v1105
      %v1403 = vpack.c.b16 %v1115, %v1106
      %v1404 = vpack.c.b16 %v1116, %v1107
      %v1405 = vpack.c.b16 %v1117, %v1108
      %v1406 = vpack.c.b16 %v1127, %v1118
      %v1407 = vpack.c.b16 %v1128, %v1119
      %v1408 = vpack.c.b16 %v1129, %v1120
      %v1409 = vpack.c.b16 %v1130, %v1121
      %v1410 = vpack.c.b16 %v1131, %v1122
      %v1411 = vpack.c.b16 %v1132, %v1123
      %v1412 = vpack.c.b16 %v1133, %v1124
      %v1413 = vpack.c.b16 %v1134, %v1125
      %v1414 = vpack.c.b16 %v1135, %v1126
      %v1415 = vpack.c.b16 %v1145, %v1136
      %v1416 = vpack.c.b16 %v1146, %v1137
      %v1417 = vpack.c.b16 %v1147, %v1138
      %v1418 = vpack.c.b16 %v1148, %v1139
      %v1419 = vpack.c.b16 %v1149, %v1140
      %v1420 = vpack.c.b16 %v1150, %v1141
      %v1421 = vpack.c.b16 %v1151, %v1142
      %v1422 = vpack.c.b16 %v1152, %v1143
      %v1423 = vpack.c.b16 %v1153, %v1144
      %v1424 = vpack.c.b16 %v1163, %v1154
      %v1425 = vpack.c.b16 %v1164, %v1155
      %v1426 = vpack.c.b16 %v1165, %v1156
      %v1427 = vpack.c.b16 %v1166, %v1157
      %v1428 = vpack.c.b16 %v1167, %v1158
      %v1429 = vpack.c.b16 %v1168, %v1159
      %v1430 = vpack.c.b16 %v1169, %v1160
      %v1431 = vpack.c.b16 %v1170, %v1161
      %v1432 = vpack.c.b16 %v1171, %v1162
      %v1433 = vpack.c.b16 %v1181, %v1172
      %v1434 = vpack.c.b16 %v1182, %v1173
      %v1435 = vpack.c.b16 %v1183, %v1174
      %v1436 = vpack.c.b16 %v1184, %v1175
      %v1437 = vpack.c.b16 %v1185, %v1176
      %v1438 = vpack.c.b16 %v1186, %v1177
      %v1439 = vpack.c.b16 %v1187, %v1178
      %v1440 = vpack.c.b16 %v1188, %v1179
      %v1441 = vpack.c.b16 %v1189, %v1180
      %v1442 = vpack.c.b16 %v1199, %v1190
      %v1443 = vpack.c.b16 %v1200, %v1191
      %v1444 = vpack.c.b16 %v1201, %v1192
      %v1445 = vpack.c.b16 %v1202, %v1193
      %v1446 = vpack.c.b16 %v1203, %v1194
      %v1447 = vpack.c.b16 %v1204, %v1195
      %v1448 = vpack.c.b16 %v1205, %v1196
      %v1449 = vpack.c.b16 %v1206, %v1197
      %v1450 = vpack.c.b16 %v1207, %v1198
      %v1451 = vpack.c.b16 %v1217, %v1208
      %v1452 = vpack.c.b16 %v1218, %v1209
      %v1453 = vpack.c.b16 %v1219, %v1210
      %v1454 = vpack.c.b16 %v1220, %v1211
      %v1455 = vpack.c.b16 %v1221, %v1212
      %v1456 = vpack.c.b16 %v1222, %v1213
      %v1457 = vpack.c.b16 %v1223, %v1214
      %v1458 = vpack.c.b16 %v1224, %v1215
      %v1459 = vpack.c.b16 %v1225, %v1216
      %v1460 = vpack.c.b16 %v1235, %v1226
      %v1461 = vpack.c.b16 %v1236, %v1227
      %v1462 = vpack.c.b16 %v1237, %v1228
      %v1463 = vpack.c.b16 %v1238, %v1229
      %v1464 = vpack.c.b16 %v1239, %v1230
      %v1465 = vpack.c.b16 %v1240, %v1231
      %v1466 = vpack.c.b16 %v1241, %v1232
      %v1467 = vpack.c.b16 %v1242, %v1233
      %v1468 = vpack.c.b16 %v1243, %v1234
      %v1469 = vpack.c.b16 %v1253, %v1244
      %v1470 = vpack.c.b16 %v1254, %v1245
      %v1471 = vpack.c.b16 %v1255, %v1246
      %v1472 = vpack.c.b16 %v1256, %v1247
      %v1473 = vpack.c.b16 %v1257, %v1248
      %v1474 = vpack.c.b16 %v1258, %v1249
      %v1475 = vpack.c.b16 %v1259, %v1250
      %v1476 = vpack.c.b16 %v1260, %v1251
      %v1477 = vpack.c.b16 %v1261, %v1252
      %1694 = vmatpush.bf16.msra.mxu0 %v1325
      %1695 = vmatpush.bf16.msra.mxu0 %v1316
      %1696 = vmatpush.bf16.msra.mxu0 %v1307
      %1697 = vmatpush.bf16.msra.mxu0 %v1298
      %1698 = vmatpush.bf16.msra.mxu0 %v1289
      %1699 = vmatpush.bf16.msra.mxu0 %v1280
      %1700 = vmatpush.bf16.msra.mxu0 %v1271
      %1701 = vmatpush.bf16.msra.mxu0 %v1262
      %1702 = vmatmul.bf16.gmra.mxu0 %v347
      %v1703 = vpop.f32.mrf.mxu0
      %v1704 = vadd.f32 0.0, %v1703
      %v1705 = vpop.f32.mrf.mxu0
      %1706 = vdwg.mxu0
      %1707 = vmatpush.bf16.msra.mxu0 %v1397
      %1708 = vmatpush.bf16.msra.mxu0 %v1388
      %1709 = vmatpush.bf16.msra.mxu0 %v1379
      %1710 = vmatpush.bf16.msra.mxu0 %v1370
      %1711 = vmatpush.bf16.msra.mxu0 %v1361
      %1712 = vmatpush.bf16.msra.mxu0 %v1352
      %1713 = vmatpush.bf16.msra.mxu0 %v1343
      %1714 = vmatpush.bf16.msra.mxu0 %v1334
      %1715 = vmatmul.bf16.gmra.mxu0 %v348
      %v1716 = vpop.f32.mrf.mxu0
      %v1717 = vadd.f32 %v1704, %v1716
      %v1718 = vpop.f32.mrf.mxu0
      %1719 = vdwg.mxu0
      %1720 = vmatpush.bf16.msra.mxu0 %v1469
      %1721 = vmatpush.bf16.msra.mxu0 %v1460
      %1722 = vmatpush.bf16.msra.mxu0 %v1451
      %1723 = vmatpush.bf16.msra.mxu0 %v1442
      %1724 = vmatpush.bf16.msra.mxu0 %v1433
      %1725 = vmatpush.bf16.msra.mxu0 %v1424
      %1726 = vmatpush.bf16.msra.mxu0 %v1415
      %1727 = vmatpush.bf16.msra.mxu0 %v1406
      %1728 = vmatmul.bf16.gmra.mxu0 %v349
      %v1729 = vpop.f32.mrf.mxu0
      %v1730 = vadd.f32 %v1717, %v1729
      %v1731 = vpop.f32.mrf.mxu0
      %1732 = vdwg.mxu0
      %1733 = vmatpush.bf16.msra.mxu0 %v1326
      %1734 = vmatpush.bf16.msra.mxu0 %v1317
      %1735 = vmatpush.bf16.msra.mxu0 %v1308
      %1736 = vmatpush.bf16.msra.mxu0 %v1299
      %1737 = vmatpush.bf16.msra.mxu0 %v1290
      %1738 = vmatpush.bf16.msra.mxu0 %v1281
      %1739 = vmatpush.bf16.msra.mxu0 %v1272
      %1740 = vmatpush.bf16.msra.mxu0 %v1263
      %1741 = vmatmul.bf16.gmra.mxu0 %v347
      %v1742 = vpop.f32.mrf.mxu0
      %v1743 = vadd.f32 0.0, %v1742
      %v1744 = vpop.f32.mrf.mxu0
      %1745 = vdwg.mxu0
      %1746 = vmatpush.bf16.msra.mxu0 %v1398
      %1747 = vmatpush.bf16.msra.mxu0 %v1389
      %1748 = vmatpush.bf16.msra.mxu0 %v1380
      %1749 = vmatpush.bf16.msra.mxu0 %v1371
      %1750 = vmatpush.bf16.msra.mxu0 %v1362
      %1751 = vmatpush.bf16.msra.mxu0 %v1353
      %1752 = vmatpush.bf16.msra.mxu0 %v1344
      %1753 = vmatpush.bf16.msra.mxu0 %v1335
      %1754 = vmatmul.bf16.gmra.mxu0 %v348
      %v1755 = vpop.f32.mrf.mxu0
      %v1756 = vadd.f32 %v1743, %v1755
      %v1757 = vpop.f32.mrf.mxu0
      %1758 = vdwg.mxu0
      %1759 = vmatpush.bf16.msra.mxu0 %v1470
      %1760 = vmatpush.bf16.msra.mxu0 %v1461
      %1761 = vmatpush.bf16.msra.mxu0 %v1452
      %1762 = vmatpush.bf16.msra.mxu0 %v1443
      %1763 = vmatpush.bf16.msra.mxu0 %v1434
      %1764 = vmatpush.bf16.msra.mxu0 %v1425
      %1765 = vmatpush.bf16.msra.mxu0 %v1416
      %1766 = vmatpush.bf16.msra.mxu0 %v1407
      %1767 = vmatmul.bf16.gmra.mxu0 %v349
      %v1768 = vpop.f32.mrf.mxu0
      %v1769 = vadd.f32 %v1756, %v1768
      %v1770 = vpop.f32.mrf.mxu0
      %1771 = vdwg.mxu0
      %1772 = vmatpush.bf16.msra.mxu0 %v1327
      %1773 = vmatpush.bf16.msra.mxu0 %v1318
      %1774 = vmatpush.bf16.msra.mxu0 %v1309
      %1775 = vmatpush.bf16.msra.mxu0 %v1300
      %1776 = vmatpush.bf16.msra.mxu0 %v1291
      %1777 = vmatpush.bf16.msra.mxu0 %v1282
      %1778 = vmatpush.bf16.msra.mxu0 %v1273
      %1779 = vmatpush.bf16.msra.mxu0 %v1264
      %1780 = vmatmul.bf16.gmra.mxu0 %v347
      %v1781 = vpop.f32.mrf.mxu0
      %v1782 = vadd.f32 0.0, %v1781
      %v1783 = vpop.f32.mrf.mxu0
      %1784 = vdwg.mxu0
      %1785 = vmatpush.bf16.msra.mxu0 %v1399
      %1786 = vmatpush.bf16.msra.mxu0 %v1390
      %1787 = vmatpush.bf16.msra.mxu0 %v1381
      %1788 = vmatpush.bf16.msra.mxu0 %v1372
      %1789 = vmatpush.bf16.msra.mxu0 %v1363
      %1790 = vmatpush.bf16.msra.mxu0 %v1354
      %1791 = vmatpush.bf16.msra.mxu0 %v1345
      %1792 = vmatpush.bf16.msra.mxu0 %v1336
      %1793 = vmatmul.bf16.gmra.mxu0 %v348
      %v1794 = vpop.f32.mrf.mxu0
      %v1795 = vadd.f32 %v1782, %v1794
      %v1796 = vpop.f32.mrf.mxu0
      %1797 = vdwg.mxu0
      %1798 = vmatpush.bf16.msra.mxu0 %v1471
      %1799 = vmatpush.bf16.msra.mxu0 %v1462
      %1800 = vmatpush.bf16.msra.mxu0 %v1453
      %1801 = vmatpush.bf16.msra.mxu0 %v1444
      %1802 = vmatpush.bf16.msra.mxu0 %v1435
      %1803 = vmatpush.bf16.msra.mxu0 %v1426
      %1804 = vmatpush.bf16.msra.mxu0 %v1417
      %1805 = vmatpush.bf16.msra.mxu0 %v1408
      %1806 = vmatmul.bf16.gmra.mxu0 %v349
      %v1807 = vpop.f32.mrf.mxu0
      %v1808 = vadd.f32 %v1795, %v1807
      %v1809 = vpop.f32.mrf.mxu0
      %1810 = vdwg.mxu0
      %1811 = vmatpush.bf16.msra.mxu0 %v1328
      %1812 = vmatpush.bf16.msra.mxu0 %v1319
      %1813 = vmatpush.bf16.msra.mxu0 %v1310
      %1814 = vmatpush.bf16.msra.mxu0 %v1301
      %1815 = vmatpush.bf16.msra.mxu0 %v1292
      %1816 = vmatpush.bf16.msra.mxu0 %v1283
      %1817 = vmatpush.bf16.msra.mxu0 %v1274
      %1818 = vmatpush.bf16.msra.mxu0 %v1265
      %1819 = vmatmul.bf16.gmra.mxu0 %v347
      %v1820 = vpop.f32.mrf.mxu0
      %v1821 = vadd.f32 0.0, %v1820
      %v1822 = vpop.f32.mrf.mxu0
      %1823 = vdwg.mxu0
      %1824 = vmatpush.bf16.msra.mxu0 %v1400
      %1825 = vmatpush.bf16.msra.mxu0 %v1391
      %1826 = vmatpush.bf16.msra.mxu0 %v1382
      %1827 = vmatpush.bf16.msra.mxu0 %v1373
      %1828 = vmatpush.bf16.msra.mxu0 %v1364
      %1829 = vmatpush.bf16.msra.mxu0 %v1355
      %1830 = vmatpush.bf16.msra.mxu0 %v1346
      %1831 = vmatpush.bf16.msra.mxu0 %v1337
      %1832 = vmatmul.bf16.gmra.mxu0 %v348
      %v1833 = vpop.f32.mrf.mxu0
      %v1834 = vadd.f32 %v1821, %v1833
      %v1835 = vpop.f32.mrf.mxu0
      %1836 = vdwg.mxu0
      %1837 = vmatpush.bf16.msra.mxu0 %v1472
      %1838 = vmatpush.bf16.msra.mxu0 %v1463
      %1839 = vmatpush.bf16.msra.mxu0 %v1454
      %1840 = vmatpush.bf16.msra.mxu0 %v1445
      %1841 = vmatpush.bf16.msra.mxu0 %v1436
      %1842 = vmatpush.bf16.msra.mxu0 %v1427
      %1843 = vmatpush.bf16.msra.mxu0 %v1418
      %1844 = vmatpush.bf16.msra.mxu0 %v1409
      %1845 = vmatmul.bf16.gmra.mxu0 %v349
      %v1846 = vpop.f32.mrf.mxu0
      %v1847 = vadd.f32 %v1834, %v1846
      %v1848 = vpop.f32.mrf.mxu0
      %1849 = vdwg.mxu0
      %1850 = vmatpush.bf16.msra.mxu0 %v1329
      %1851 = vmatpush.bf16.msra.mxu0 %v1320
      %1852 = vmatpush.bf16.msra.mxu0 %v1311
      %1853 = vmatpush.bf16.msra.mxu0 %v1302
      %1854 = vmatpush.bf16.msra.mxu0 %v1293
      %1855 = vmatpush.bf16.msra.mxu0 %v1284
      %1856 = vmatpush.bf16.msra.mxu0 %v1275
      %1857 = vmatpush.bf16.msra.mxu0 %v1266
      %1858 = vmatmul.bf16.gmra.mxu0 %v347
      %v1859 = vpop.f32.mrf.mxu0
      %v1860 = vadd.f32 0.0, %v1859
      %v1861 = vpop.f32.mrf.mxu0
      %1862 = vdwg.mxu0
      %1863 = vmatpush.bf16.msra.mxu0 %v1401
      %1864 = vmatpush.bf16.msra.mxu0 %v1392
      %1865 = vmatpush.bf16.msra.mxu0 %v1383
      %1866 = vmatpush.bf16.msra.mxu0 %v1374
      %1867 = vmatpush.bf16.msra.mxu0 %v1365
      %1868 = vmatpush.bf16.msra.mxu0 %v1356
      %1869 = vmatpush.bf16.msra.mxu0 %v1347
      %1870 = vmatpush.bf16.msra.mxu0 %v1338
      %1871 = vmatmul.bf16.gmra.mxu0 %v348
      %v1872 = vpop.f32.mrf.mxu0
      %v1873 = vadd.f32 %v1860, %v1872
      %v1874 = vpop.f32.mrf.mxu0
      %1875 = vdwg.mxu0
      %1876 = vmatpush.bf16.msra.mxu0 %v1473
      %1877 = vmatpush.bf16.msra.mxu0 %v1464
      %1878 = vmatpush.bf16.msra.mxu0 %v1455
      %1879 = vmatpush.bf16.msra.mxu0 %v1446
      %1880 = vmatpush.bf16.msra.mxu0 %v1437
      %1881 = vmatpush.bf16.msra.mxu0 %v1428
      %1882 = vmatpush.bf16.msra.mxu0 %v1419
      %1883 = vmatpush.bf16.msra.mxu0 %v1410
      %1884 = vmatmul.bf16.gmra.mxu0 %v349
      %v1885 = vpop.f32.mrf.mxu0
      %v1886 = vadd.f32 %v1873, %v1885
      %v1887 = vpop.f32.mrf.mxu0
      %1888 = vdwg.mxu0
      %1889 = vmatpush.bf16.msra.mxu0 %v1330
      %1890 = vmatpush.bf16.msra.mxu0 %v1321
      %1891 = vmatpush.bf16.msra.mxu0 %v1312
      %1892 = vmatpush.bf16.msra.mxu0 %v1303
      %1893 = vmatpush.bf16.msra.mxu0 %v1294
      %1894 = vmatpush.bf16.msra.mxu0 %v1285
      %1895 = vmatpush.bf16.msra.mxu0 %v1276
      %1896 = vmatpush.bf16.msra.mxu0 %v1267
      %1897 = vmatmul.bf16.gmra.mxu0 %v347
      %v1898 = vpop.f32.mrf.mxu0
      %v1899 = vadd.f32 0.0, %v1898
      %v1900 = vpop.f32.mrf.mxu0
      %1901 = vdwg.mxu0
      %1902 = vmatpush.bf16.msra.mxu0 %v1402
      %1903 = vmatpush.bf16.msra.mxu0 %v1393
      %1904 = vmatpush.bf16.msra.mxu0 %v1384
      %1905 = vmatpush.bf16.msra.mxu0 %v1375
      %1906 = vmatpush.bf16.msra.mxu0 %v1366
      %1907 = vmatpush.bf16.msra.mxu0 %v1357
      %1908 = vmatpush.bf16.msra.mxu0 %v1348
      %1909 = vmatpush.bf16.msra.mxu0 %v1339
      %1910 = vmatmul.bf16.gmra.mxu0 %v348
      %v1911 = vpop.f32.mrf.mxu0
      %v1912 = vadd.f32 %v1899, %v1911
      %v1913 = vpop.f32.mrf.mxu0
      %1914 = vdwg.mxu0
      %1915 = vmatpush.bf16.msra.mxu0 %v1474
      %1916 = vmatpush.bf16.msra.mxu0 %v1465
      %1917 = vmatpush.bf16.msra.mxu0 %v1456
      %1918 = vmatpush.bf16.msra.mxu0 %v1447
      %1919 = vmatpush.bf16.msra.mxu0 %v1438
      %1920 = vmatpush.bf16.msra.mxu0 %v1429
      %1921 = vmatpush.bf16.msra.mxu0 %v1420
      %1922 = vmatpush.bf16.msra.mxu0 %v1411
      %1923 = vmatmul.bf16.gmra.mxu0 %v349
      %v1924 = vpop.f32.mrf.mxu0
      %v1925 = vadd.f32 %v1912, %v1924
      %v1926 = vpop.f32.mrf.mxu0
      %1927 = vdwg.mxu0
      %1928 = vmatpush.bf16.msra.mxu0 %v1331
      %1929 = vmatpush.bf16.msra.mxu0 %v1322
      %1930 = vmatpush.bf16.msra.mxu0 %v1313
      %1931 = vmatpush.bf16.msra.mxu0 %v1304
      %1932 = vmatpush.bf16.msra.mxu0 %v1295
      %1933 = vmatpush.bf16.msra.mxu0 %v1286
      %1934 = vmatpush.bf16.msra.mxu0 %v1277
      %1935 = vmatpush.bf16.msra.mxu0 %v1268
      %1936 = vmatmul.bf16.gmra.mxu0 %v347
      %v1937 = vpop.f32.mrf.mxu0
      %v1938 = vadd.f32 0.0, %v1937
      %v1939 = vpop.f32.mrf.mxu0
      %1940 = vdwg.mxu0
      %1941 = vmatpush.bf16.msra.mxu0 %v1403
      %1942 = vmatpush.bf16.msra.mxu0 %v1394
      %1943 = vmatpush.bf16.msra.mxu0 %v1385
      %1944 = vmatpush.bf16.msra.mxu0 %v1376
      %1945 = vmatpush.bf16.msra.mxu0 %v1367
      %1946 = vmatpush.bf16.msra.mxu0 %v1358
      %1947 = vmatpush.bf16.msra.mxu0 %v1349
      %1948 = vmatpush.bf16.msra.mxu0 %v1340
      %1949 = vmatmul.bf16.gmra.mxu0 %v348
      %v1950 = vpop.f32.mrf.mxu0
      %v1951 = vadd.f32 %v1938, %v1950
      %v1952 = vpop.f32.mrf.mxu0
      %1953 = vdwg.mxu0
      %1954 = vmatpush.bf16.msra.mxu0 %v1475
      %1955 = vmatpush.bf16.msra.mxu0 %v1466
      %1956 = vmatpush.bf16.msra.mxu0 %v1457
      %1957 = vmatpush.bf16.msra.mxu0 %v1448
      %1958 = vmatpush.bf16.msra.mxu0 %v1439
      %1959 = vmatpush.bf16.msra.mxu0 %v1430
      %1960 = vmatpush.bf16.msra.mxu0 %v1421
      %1961 = vmatpush.bf16.msra.mxu0 %v1412
      %1962 = vmatmul.bf16.gmra.mxu0 %v349
      %v1963 = vpop.f32.mrf.mxu0
      %v1964 = vadd.f32 %v1951, %v1963
      %v1965 = vpop.f32.mrf.mxu0
      %1966 = vdwg.mxu0
      %1967 = vmatpush.bf16.msra.mxu0 %v1332
      %1968 = vmatpush.bf16.msra.mxu0 %v1323
      %1969 = vmatpush.bf16.msra.mxu0 %v1314
      %1970 = vmatpush.bf16.msra.mxu0 %v1305
      %1971 = vmatpush.bf16.msra.mxu0 %v1296
      %1972 = vmatpush.bf16.msra.mxu0 %v1287
      %1973 = vmatpush.bf16.msra.mxu0 %v1278
      %1974 = vmatpush.bf16.msra.mxu0 %v1269
      %1975 = vmatmul.bf16.gmra.mxu0 %v347
      %v1976 = vpop.f32.mrf.mxu0
      %v1977 = vadd.f32 0.0, %v1976
      %v1978 = vpop.f32.mrf.mxu0
      %1979 = vdwg.mxu0
      %1980 = vmatpush.bf16.msra.mxu0 %v1404
      %1981 = vmatpush.bf16.msra.mxu0 %v1395
      %1982 = vmatpush.bf16.msra.mxu0 %v1386
      %1983 = vmatpush.bf16.msra.mxu0 %v1377
      %1984 = vmatpush.bf16.msra.mxu0 %v1368
      %1985 = vmatpush.bf16.msra.mxu0 %v1359
      %1986 = vmatpush.bf16.msra.mxu0 %v1350
      %1987 = vmatpush.bf16.msra.mxu0 %v1341
      %1988 = vmatmul.bf16.gmra.mxu0 %v348
      %v1989 = vpop.f32.mrf.mxu0
      %v1990 = vadd.f32 %v1977, %v1989
      %v1991 = vpop.f32.mrf.mxu0
      %1992 = vdwg.mxu0
      %1993 = vmatpush.bf16.msra.mxu0 %v1476
      %1994 = vmatpush.bf16.msra.mxu0 %v1467
      %1995 = vmatpush.bf16.msra.mxu0 %v1458
      %1996 = vmatpush.bf16.msra.mxu0 %v1449
      %1997 = vmatpush.bf16.msra.mxu0 %v1440
      %1998 = vmatpush.bf16.msra.mxu0 %v1431
      %1999 = vmatpush.bf16.msra.mxu0 %v1422
      %2000 = vmatpush.bf16.msra.mxu0 %v1413
      %2001 = vmatmul.bf16.gmra.mxu0 %v349
      %v2002 = vpop.f32.mrf.mxu0
      %v2003 = vadd.f32 %v1990, %v2002
      %v2004 = vpop.f32.mrf.mxu0
      %2005 = vdwg.mxu0
      %2006 = vmatpush.bf16.msra.mxu0 %v1333
      %2007 = vmatpush.bf16.msra.mxu0 %v1324
      %2008 = vmatpush.bf16.msra.mxu0 %v1315
      %2009 = vmatpush.bf16.msra.mxu0 %v1306
      %2010 = vmatpush.bf16.msra.mxu0 %v1297
      %2011 = vmatpush.bf16.msra.mxu0 %v1288
      %2012 = vmatpush.bf16.msra.mxu0 %v1279
      %2013 = vmatpush.bf16.msra.mxu0 %v1270
      %2014 = vmatmul.bf16.gmra.mxu0 %v347
      %v2015 = vpop.f32.mrf.mxu0
      %v2016 = vadd.f32 0.0, %v2015
      %v2017 = vpop.f32.mrf.mxu0
      %2018 = vdwg.mxu0
      %2019 = vmatpush.bf16.msra.mxu0 %v1405
      %2020 = vmatpush.bf16.msra.mxu0 %v1396
      %2021 = vmatpush.bf16.msra.mxu0 %v1387
      %2022 = vmatpush.bf16.msra.mxu0 %v1378
      %2023 = vmatpush.bf16.msra.mxu0 %v1369
      %2024 = vmatpush.bf16.msra.mxu0 %v1360
      %2025 = vmatpush.bf16.msra.mxu0 %v1351
      %2026 = vmatpush.bf16.msra.mxu0 %v1342
      %2027 = vmatmul.bf16.gmra.mxu0 %v348
      %v2028 = vpop.f32.mrf.mxu0
      %v2029 = vadd.f32 %v2016, %v2028
      %v2030 = vpop.f32.mrf.mxu0
      %2031 = vdwg.mxu0
      %2032 = vmatpush.bf16.msra.mxu0 %v1477
      %2033 = vmatpush.bf16.msra.mxu0 %v1468
      %2034 = vmatpush.bf16.msra.mxu0 %v1459
      %2035 = vmatpush.bf16.msra.mxu0 %v1450
      %2036 = vmatpush.bf16.msra.mxu0 %v1441
      %2037 = vmatpush.bf16.msra.mxu0 %v1432
      %2038 = vmatpush.bf16.msra.mxu0 %v1423
      %2039 = vmatpush.bf16.msra.mxu0 %v1414
      %2040 = vmatmul.bf16.gmra.mxu0 %v349
      %v2041 = vpop.f32.mrf.mxu0
      %v2042 = vadd.f32 %v2029, %v2041
      %v2043 = vpop.f32.mrf.mxu0
      %2044 = vdwg.mxu0
      %v2045 = vpack.c.bf16 %v1730, %v1730
      %v2046 = vpack.c.bf16 %v1769, %v1769
      %v2047 = vpack.c.bf16 %v1808, %v1808
      %v2048 = vpack.c.bf16 %v1847, %v1847
      %v2049 = vpack.c.bf16 %v1886, %v1886
      %v2050 = vpack.c.bf16 %v1925, %v1925
      %v2051 = vpack.c.bf16 %v1964, %v1964
      %v2052 = vpack.c.bf16 %v2003, %v2003
      %v2053 = vpack.c.bf16 %v2042, %v2042
      %2054 = vmatpush.bf16.xpose.msra.mxu0 0
      %2055 = vmatpush.bf16.xpose.msra.mxu0 0
      %2056 = vmatpush.bf16.xpose.msra.mxu0 0
      %2057 = vmatpush.bf16.xpose.msra.mxu0 0
      %2058 = vmatpush.bf16.xpose.msra.mxu0 0
      %2059 = vmatpush.bf16.xpose.msra.mxu0 0
      %2060 = vmatpush.bf16.xpose.msra.mxu0 0
      %2061 = vmatpush.bf16.xpose.msra.mxu0 %v2048
      %2062 = vmatmul.bf16.gmra.mxu0 %v2045
      %v2063 = vpop.f32.mrf.mxu0
      %v2064 = vadd.f32 0.0, %v2063
      %v2065 = vpop.f32.mrf.mxu0
      %2066 = vdwg.mxu0
      %2067 = vmatpush.bf16.xpose.msra.mxu0 0
      %2068 = vmatpush.bf16.xpose.msra.mxu0 0
      %2069 = vmatpush.bf16.xpose.msra.mxu0 0
      %2070 = vmatpush.bf16.xpose.msra.mxu0 0
      %2071 = vmatpush.bf16.xpose.msra.mxu0 0
      %2072 = vmatpush.bf16.xpose.msra.mxu0 0
      %2073 = vmatpush.bf16.xpose.msra.mxu0 0
      %2074 = vmatpush.bf16.xpose.msra.mxu0 %v2049
      %2075 = vmatmul.bf16.gmra.mxu0 %v2046
      %v2076 = vpop.f32.mrf.mxu0
      %v2077 = vadd.f32 %v2064, %v2076
      %v2078 = vpop.f32.mrf.mxu0
      %2079 = vdwg.mxu0
      %2080 = vmatpush.bf16.xpose.msra.mxu0 0
      %2081 = vmatpush.bf16.xpose.msra.mxu0 0
      %2082 = vmatpush.bf16.xpose.msra.mxu0 0
      %2083 = vmatpush.bf16.xpose.msra.mxu0 0
      %2084 = vmatpush.bf16.xpose.msra.mxu0 0
      %2085 = vmatpush.bf16.xpose.msra.mxu0 0
      %2086 = vmatpush.bf16.xpose.msra.mxu0 0
      %2087 = vmatpush.bf16.xpose.msra.mxu0 %v2050
      %2088 = vmatmul.bf16.gmra.mxu0 %v2047
      %v2089 = vpop.f32.mrf.mxu0
      %v2090 = vadd.f32 %v2077, %v2089
      %v2091 = vpop.f32.mrf.mxu0
      %2092 = vdwg.mxu0
      %v2093 = vlaneseq
      %v2094 = vshrl.u32 %v2093, 7
      %v2095 = vlaneseq
      %v2096 = vand.u32 %v2095, 127
      %vm2097 = vcmp.ge.s32.totalorder %v2094, %v2096
      %v2098 = vsel %vm2097, %v2090, -inf
      %vm2099 = vcmask 64512
      %v2100 = vsel %vm2099, %v2098, -inf
      %2101 = vmax.xlane.f32.xlu0 %v2100
      %v2102 = vpop.xlane.xlu0 %2101
      %v2103 = vsub.f32 %v2098, %v2102
      %v2104 = vmul.f32 %v2103, 1.442695
      %v2105 = vpow.pop %v2104
      %v2106 = vsel %vm2099, %v2105, 0.0
      %2107 = vadd.xlane.f32.xlu0 %v2106
      %v2108 = vpop.xlane.xlu0 %2107
      %v2109 = vrcp.pop %v2108
      %v2110 = vmul.f32 %v2105, %v2109
      %v2111 = vld [vmem:[%s332] sm:$0xf]
      %v2112 = vunpack.c.l.bf16 %v2111
      %v2113 = vmul.f32 %v2110, %v2112
      %v2114 = vpack.c.bf16 %v2113, %v2113
      %v2116 = vsel %vm2099, %v2114, 0
      %vm2118 = vcmask 1043456
      %v2120 = vsel %vm2118, %v2051, 0
      %v2123 = vsel %vm2118, %v2052, 0
      %v2126 = vsel %vm2118, %v2053, 0
      %2128 = vmatpush.bf16.msra.mxu0 0
      %2129 = vmatpush.bf16.msra.mxu0 0
      %2130 = vmatpush.bf16.msra.mxu0 0
      %2131 = vmatpush.bf16.msra.mxu0 0
      %2132 = vmatpush.bf16.msra.mxu0 0
      %2133 = vmatpush.bf16.msra.mxu0 0
      %2134 = vmatpush.bf16.msra.mxu0 0
      %2135 = vmatpush.bf16.msra.mxu0 %v2120
      %2136 = vmatmul.bf16.gmra.mxu0 %v2116
      %v2137 = vpop.f32.mrf.mxu0
      %v2138 = vadd.f32 0.0, %v2137
      %v2139 = vpop.f32.mrf.mxu0
      %2140 = vdwg.mxu0
      %2141 = vmatpush.bf16.msra.mxu0 0
      %2142 = vmatpush.bf16.msra.mxu0 0
      %2143 = vmatpush.bf16.msra.mxu0 0
      %2144 = vmatpush.bf16.msra.mxu0 0
      %2145 = vmatpush.bf16.msra.mxu0 0
      %2146 = vmatpush.bf16.msra.mxu0 0
      %2147 = vmatpush.bf16.msra.mxu0 0
      %2148 = vmatpush.bf16.msra.mxu0 %v2123
      %2149 = vmatmul.bf16.gmra.mxu0 %v2116
      %v2150 = vpop.f32.mrf.mxu0
      %v2151 = vadd.f32 0.0, %v2150
      %v2152 = vpop.f32.mrf.mxu0
      %2153 = vdwg.mxu0
      %2154 = vmatpush.bf16.msra.mxu0 0
      %2155 = vmatpush.bf16.msra.mxu0 0
      %2156 = vmatpush.bf16.msra.mxu0 0
      %2157 = vmatpush.bf16.msra.mxu0 0
      %2158 = vmatpush.bf16.msra.mxu0 0
      %2159 = vmatpush.bf16.msra.mxu0 0
      %2160 = vmatpush.bf16.msra.mxu0 0
      %2161 = vmatpush.bf16.msra.mxu0 %v2126
      %2162 = vmatmul.bf16.gmra.mxu0 %v2116
      %v2163 = vpop.f32.mrf.mxu0
      %v2164 = vadd.f32 0.0, %v2163
      %v2165 = vpop.f32.mrf.mxu0
      %2166 = vdwg.mxu0
      %v2167 = vpack.c.bf16 %v2138, %v2138
      %v2168 = vpack.c.bf16 %v2151, %v2151
      %v2169 = vpack.c.bf16 %v2164, %v2164
      %v2170 = vld [vmem:[%s2] sm:$0xff]
      %v2171 = vld [vmem:[%s2 + $0x8] sm:$0xf]
      %v2172 = vld [vmem:[%s2 + $0xc] sm:$0xff]
      %v2173 = vld [vmem:[%s2 + $0x14] sm:$0xf]
      %v2174 = vld [vmem:[%s2 + $0x18] sm:$0xff]
      %v2175 = vld [vmem:[%s2 + $0x20] sm:$0xf]
      %v2176 = vld [vmem:[%s2 + $0x24] sm:$0xff]
      %v2177 = vld [vmem:[%s2 + $0x2c] sm:$0xf]
      %v2178 = vld [vmem:[%s2 + $0x30] sm:$0xff]
      %v2179 = vld [vmem:[%s2 + $0x38] sm:$0xf]
      %v2180 = vld [vmem:[%s2 + $0x3c] sm:$0xff]
      %v2181 = vld [vmem:[%s2 + $0x44] sm:$0xf]
      %v2182 = vld [vmem:[%s2 + $0x48] sm:$0xff]
      %v2183 = vld [vmem:[%s2 + $0x50] sm:$0xf]
      %v2184 = vld [vmem:[%s2 + $0x54] sm:$0xff]
      %v2185 = vld [vmem:[%s2 + $0x5c] sm:$0xf]
      %v2186 = vld [vmem:[%s2 + $0x60] sm:$0xff]
      %v2187 = vld [vmem:[%s2 + $0x68] sm:$0xf]
      %v2188 = vld [vmem:[%s2 + $0x6c] sm:$0xff]
      %v2189 = vld [vmem:[%s2 + $0x74] sm:$0xf]
      %v2190 = vld [vmem:[%s2 + $0x78] sm:$0xff]
      %v2191 = vld [vmem:[%s2 + $0x80] sm:$0xf]
      %v2192 = vld [vmem:[%s2 + $0x84] sm:$0xff]
      %v2193 = vld [vmem:[%s2 + $0x8c] sm:$0xf]
      %v2194 = vld [vmem:[%s2 + $0x90] sm:$0xff]
      %v2195 = vld [vmem:[%s2 + $0x98] sm:$0xf]
      %v2196 = vld [vmem:[%s2 + $0x9c] sm:$0xff]
      %v2197 = vld [vmem:[%s2 + $0xa4] sm:$0xf]
      %v2198 = vld [vmem:[%s2 + $0xa8] sm:$0xff]
      %v2199 = vld [vmem:[%s2 + $0xb0] sm:$0xf]
      %v2200 = vld [vmem:[%s2 + $0xb4] sm:$0xff]
      %v2201 = vld [vmem:[%s2 + $0xbc] sm:$0xf]
      %v2202 = vld [vmem:[%s2 + $0xc0] sm:$0xff]
      %v2203 = vld [vmem:[%s2 + $0xc8] sm:$0xf]
      %v2204 = vld [vmem:[%s2 + $0xcc] sm:$0xff]
      %v2205 = vld [vmem:[%s2 + $0xd4] sm:$0xf]
      %v2206 = vld [vmem:[%s2 + $0xd8] sm:$0xff]
      %v2207 = vld [vmem:[%s2 + $0xe0] sm:$0xf]
      %v2208 = vld [vmem:[%s2 + $0xe4] sm:$0xff]
      %v2209 = vld [vmem:[%s2 + $0xec] sm:$0xf]
      %v2210 = vld [vmem:[%s2 + $0xf0] sm:$0xff]
      %v2211 = vld [vmem:[%s2 + $0xf8] sm:$0xf]
      %v2212 = vld [vmem:[%s2 + $0xfc] sm:$0xff]
      %v2213 = vld [vmem:[%s2 + $0x104] sm:$0xf]
      %v2214 = vld [vmem:[%s2 + $0x108] sm:$0xff]
      %v2215 = vld [vmem:[%s2 + $0x110] sm:$0xf]
      %v2216 = vld [vmem:[%s2 + $0x114] sm:$0xff]
      %v2217 = vld [vmem:[%s2 + $0x11c] sm:$0xf]
      %v2218 = vld [vmem:[%s2 + $0x120] sm:$0xff]
      %v2219 = vld [vmem:[%s2 + $0x128] sm:$0xf]
      %v2220 = vld [vmem:[%s2 + $0x12c] sm:$0xff]
      %v2221 = vld [vmem:[%s2 + $0x134] sm:$0xf]
      %v2222 = vld [vmem:[%s2 + $0x138] sm:$0xff]
      %v2223 = vld [vmem:[%s2 + $0x140] sm:$0xf]
      %v2224 = vld [vmem:[%s2 + $0x144] sm:$0xff]
      %v2225 = vld [vmem:[%s2 + $0x14c] sm:$0xf]
      %v2226 = vld [vmem:[%s2 + $0x150] sm:$0xff]
      %v2227 = vld [vmem:[%s2 + $0x158] sm:$0xf]
      %v2228 = vld [vmem:[%s2 + $0x15c] sm:$0xff]
      %v2229 = vld [vmem:[%s2 + $0x164] sm:$0xf]
      %v2230 = vld [vmem:[%s2 + $0x168] sm:$0xff]
      %v2231 = vld [vmem:[%s2 + $0x170] sm:$0xf]
      %v2232 = vld [vmem:[%s2 + $0x174] sm:$0xff]
      %v2233 = vld [vmem:[%s2 + $0x17c] sm:$0xf]
      %v2234 = vld [vmem:[%s2 + $0x180] sm:$0xff]
      %v2235 = vld [vmem:[%s2 + $0x188] sm:$0xf]
      %v2236 = vld [vmem:[%s2 + $0x18c] sm:$0xff]
      %v2237 = vld [vmem:[%s2 + $0x194] sm:$0xf]
      %v2238 = vld [vmem:[%s2 + $0x198] sm:$0xff]
      %v2239 = vld [vmem:[%s2 + $0x1a0] sm:$0xf]
      %v2240 = vld [vmem:[%s2 + $0x1a4] sm:$0xff]
      %v2241 = vld [vmem:[%s2 + $0x1ac] sm:$0xf]
      %v2242 = vld [vmem:[%s2 + $0x1b0] sm:$0xff]
      %v2243 = vld [vmem:[%s2 + $0x1b8] sm:$0xf]
      %v2244 = vld [vmem:[%s2 + $0x1bc] sm:$0xff]
      %v2245 = vld [vmem:[%s2 + $0x1c4] sm:$0xf]
      %v2246 = vld [vmem:[%s2 + $0x1c8] sm:$0xff]
      %v2247 = vld [vmem:[%s2 + $0x1d0] sm:$0xf]
      %v2248 = vld [vmem:[%s2 + $0x1d4] sm:$0xff]
      %v2249 = vld [vmem:[%s2 + $0x1dc] sm:$0xf]
      %v2250 = vld [vmem:[%s2 + $0x1e0] sm:$0xff]
      %v2251 = vld [vmem:[%s2 + $0x1e8] sm:$0xf]
      %v2252 = vld [vmem:[%s2 + $0x1ec] sm:$0xff]
      %v2253 = vld [vmem:[%s2 + $0x1f4] sm:$0xf]
      %v2254 = vld [vmem:[%s2 + $0x1f8] sm:$0xff]
      %v2255 = vld [vmem:[%s2 + $0x200] sm:$0xf]
      %v2256 = vld [vmem:[%s2 + $0x204] sm:$0xff]
      %v2257 = vld [vmem:[%s2 + $0x20c] sm:$0xf]
      %v2258 = vld [vmem:[%s2 + $0x210] sm:$0xff]
      %v2259 = vld [vmem:[%s2 + $0x218] sm:$0xf]
      %v2260 = vld [vmem:[%s2 + $0x21c] sm:$0xff]
      %v2261 = vld [vmem:[%s2 + $0x224] sm:$0xf]
      %v2262 = vld [vmem:[%s2 + $0x228] sm:$0xff]
      %v2263 = vld [vmem:[%s2 + $0x230] sm:$0xf]
      %v2264 = vld [vmem:[%s2 + $0x234] sm:$0xff]
      %v2265 = vld [vmem:[%s2 + $0x23c] sm:$0xf]
      %v2266 = vld [vmem:[%s3] sm:$0x7]
      %v2268 = vperm.slane %v2266, 0
      %v2269 = vperm.slane %v2266, 1
      %v2270 = vperm.slane %v2266, 2
      %v2370 = vunpack.c.l.b16 %v2170
      %v2371 = vunpack.c.h.b16 %v2170
      %v2372 = vunpack.c.l.b16 %v2171
      %v2373 = vunpack.c.l.b16 %v2172
      %v2374 = vunpack.c.h.b16 %v2172
      %v2375 = vunpack.c.l.b16 %v2173
      %v2376 = vunpack.c.l.b16 %v2174
      %v2377 = vunpack.c.h.b16 %v2174
      %v2378 = vunpack.c.l.b16 %v2175
      %v2379 = vunpack.c.l.b16 %v2176
      %v2380 = vunpack.c.h.b16 %v2176
      %v2381 = vunpack.c.l.b16 %v2177
      %v2382 = vunpack.c.l.b16 %v2178
      %v2383 = vunpack.c.h.b16 %v2178
      %v2384 = vunpack.c.l.b16 %v2179
      %v2385 = vunpack.c.l.b16 %v2180
      %v2386 = vunpack.c.h.b16 %v2180
      %v2387 = vunpack.c.l.b16 %v2181
      %v2388 = vunpack.c.l.b16 %v2182
      %v2389 = vunpack.c.h.b16 %v2182
      %v2390 = vunpack.c.l.b16 %v2183
      %v2391 = vunpack.c.l.b16 %v2184
      %v2392 = vunpack.c.h.b16 %v2184
      %v2393 = vunpack.c.l.b16 %v2185
      %v2394 = vunpack.c.l.b16 %v2186
      %v2395 = vunpack.c.h.b16 %v2186
      %v2396 = vunpack.c.l.b16 %v2187
      %v2397 = vunpack.c.l.b16 %v2188
      %v2398 = vunpack.c.h.b16 %v2188
      %v2399 = vunpack.c.l.b16 %v2189
      %v2400 = vunpack.c.l.b16 %v2190
      %v2401 = vunpack.c.h.b16 %v2190
      %v2402 = vunpack.c.l.b16 %v2191
      %v2403 = vunpack.c.l.b16 %v2192
      %v2404 = vunpack.c.h.b16 %v2192
      %v2405 = vunpack.c.l.b16 %v2193
      %v2406 = vunpack.c.l.b16 %v2194
      %v2407 = vunpack.c.h.b16 %v2194
      %v2408 = vunpack.c.l.b16 %v2195
      %v2409 = vunpack.c.l.b16 %v2196
      %v2410 = vunpack.c.h.b16 %v2196
      %v2411 = vunpack.c.l.b16 %v2197
      %v2412 = vunpack.c.l.b16 %v2198
      %v2413 = vunpack.c.h.b16 %v2198
      %v2414 = vunpack.c.l.b16 %v2199
      %v2415 = vunpack.c.l.b16 %v2200
      %v2416 = vunpack.c.h.b16 %v2200
      %v2417 = vunpack.c.l.b16 %v2201
      %v2418 = vunpack.c.l.b16 %v2202
      %v2419 = vunpack.c.h.b16 %v2202
      %v2420 = vunpack.c.l.b16 %v2203
      %v2421 = vunpack.c.l.b16 %v2204
      %v2422 = vunpack.c.h.b16 %v2204
      %v2423 = vunpack.c.l.b16 %v2205
      %v2424 = vunpack.c.l.b16 %v2206
      %v2425 = vunpack.c.h.b16 %v2206
      %v2426 = vunpack.c.l.b16 %v2207
      %v2427 = vunpack.c.l.b16 %v2208
      %v2428 = vunpack.c.h.b16 %v2208
      %v2429 = vunpack.c.l.b16 %v2209
      %v2430 = vunpack.c.l.b16 %v2210
      %v2431 = vunpack.c.h.b16 %v2210
      %v2432 = vunpack.c.l.b16 %v2211
      %v2433 = vunpack.c.l.b16 %v2212
      %v2434 = vunpack.c.h.b16 %v2212
      %v2435 = vunpack.c.l.b16 %v2213
      %v2436 = vunpack.c.l.b16 %v2214
      %v2437 = vunpack.c.h.b16 %v2214
      %v2438 = vunpack.c.l.b16 %v2215
      %v2439 = vunpack.c.l.b16 %v2216
      %v2440 = vunpack.c.h.b16 %v2216
      %v2441 = vunpack.c.l.b16 %v2217
      %v2442 = vunpack.c.l.b16 %v2218
      %v2443 = vunpack.c.h.b16 %v2218
      %v2444 = vunpack.c.l.b16 %v2219
      %v2445 = vunpack.c.l.b16 %v2220
      %v2446 = vunpack.c.h.b16 %v2220
      %v2447 = vunpack.c.l.b16 %v2221
      %v2448 = vunpack.c.l.b16 %v2222
      %v2449 = vunpack.c.h.b16 %v2222
      %v2450 = vunpack.c.l.b16 %v2223
      %v2451 = vunpack.c.l.b16 %v2224
      %v2452 = vunpack.c.h.b16 %v2224
      %v2453 = vunpack.c.l.b16 %v2225
      %v2454 = vunpack.c.l.b16 %v2226
      %v2455 = vunpack.c.h.b16 %v2226
      %v2456 = vunpack.c.l.b16 %v2227
      %v2457 = vunpack.c.l.b16 %v2228
      %v2458 = vunpack.c.h.b16 %v2228
      %v2459 = vunpack.c.l.b16 %v2229
      %v2460 = vunpack.c.l.b16 %v2230
      %v2461 = vunpack.c.h.b16 %v2230
      %v2462 = vunpack.c.l.b16 %v2231
      %v2463 = vunpack.c.l.b16 %v2232
      %v2464 = vunpack.c.h.b16 %v2232
      %v2465 = vunpack.c.l.b16 %v2233
      %v2466 = vunpack.c.l.b16 %v2234
      %v2467 = vunpack.c.h.b16 %v2234
      %v2468 = vunpack.c.l.b16 %v2235
      %v2469 = vunpack.c.l.b16 %v2236
      %v2470 = vunpack.c.h.b16 %v2236
      %v2471 = vunpack.c.l.b16 %v2237
      %v2472 = vunpack.c.l.b16 %v2238
      %v2473 = vunpack.c.h.b16 %v2238
      %v2474 = vunpack.c.l.b16 %v2239
      %v2475 = vunpack.c.l.b16 %v2240
      %v2476 = vunpack.c.h.b16 %v2240
      %v2477 = vunpack.c.l.b16 %v2241
      %v2478 = vunpack.c.l.b16 %v2242
      %v2479 = vunpack.c.h.b16 %v2242
      %v2480 = vunpack.c.l.b16 %v2243
      %v2481 = vunpack.c.l.b16 %v2244
      %v2482 = vunpack.c.h.b16 %v2244
      %v2483 = vunpack.c.l.b16 %v2245
      %v2484 = vunpack.c.l.b16 %v2246
      %v2485 = vunpack.c.h.b16 %v2246
      %v2486 = vunpack.c.l.b16 %v2247
      %v2487 = vunpack.c.l.b16 %v2248
      %v2488 = vunpack.c.h.b16 %v2248
      %v2489 = vunpack.c.l.b16 %v2249
      %v2490 = vunpack.c.l.b16 %v2250
      %v2491 = vunpack.c.h.b16 %v2250
      %v2492 = vunpack.c.l.b16 %v2251
      %v2493 = vunpack.c.l.b16 %v2252
      %v2494 = vunpack.c.h.b16 %v2252
      %v2495 = vunpack.c.l.b16 %v2253
      %v2496 = vunpack.c.l.b16 %v2254
      %v2497 = vunpack.c.h.b16 %v2254
      %v2498 = vunpack.c.l.b16 %v2255
      %v2499 = vunpack.c.l.b16 %v2256
      %v2500 = vunpack.c.h.b16 %v2256
      %v2501 = vunpack.c.l.b16 %v2257
      %v2502 = vunpack.c.l.b16 %v2258
      %v2503 = vunpack.c.h.b16 %v2258
      %v2504 = vunpack.c.l.b16 %v2259
      %v2505 = vunpack.c.l.b16 %v2260
      %v2506 = vunpack.c.h.b16 %v2260
      %v2507 = vunpack.c.l.b16 %v2261
      %v2508 = vunpack.c.l.b16 %v2262
      %v2509 = vunpack.c.h.b16 %v2262
      %v2510 = vunpack.c.l.b16 %v2263
      %v2511 = vunpack.c.l.b16 %v2264
      %v2512 = vunpack.c.h.b16 %v2264
      %v2513 = vunpack.c.l.b16 %v2265
      %v2514 = vpack.c.b16 %v2373, %v2370
      %v2515 = vpack.c.b16 %v2374, %v2371
      %v2516 = vpack.c.b16 %v2375, %v2372
      %v2517 = vpack.c.b16 %v2379, %v2376
      %v2518 = vpack.c.b16 %v2380, %v2377
      %v2519 = vpack.c.b16 %v2381, %v2378
      %v2520 = vpack.c.b16 %v2385, %v2382
      %v2521 = vpack.c.b16 %v2386, %v2383
      %v2522 = vpack.c.b16 %v2387, %v2384
      %v2523 = vpack.c.b16 %v2391, %v2388
      %v2524 = vpack.c.b16 %v2392, %v2389
      %v2525 = vpack.c.b16 %v2393, %v2390
      %v2526 = vpack.c.b16 %v2397, %v2394
      %v2527 = vpack.c.b16 %v2398, %v2395
      %v2528 = vpack.c.b16 %v2399, %v2396
      %v2529 = vpack.c.b16 %v2403, %v2400
      %v2530 = vpack.c.b16 %v2404, %v2401
      %v2531 = vpack.c.b16 %v2405, %v2402
      %v2532 = vpack.c.b16 %v2409, %v2406
      %v2533 = vpack.c.b16 %v2410, %v2407
      %v2534 = vpack.c.b16 %v2411, %v2408
      %v2535 = vpack.c.b16 %v2415, %v2412
      %v2536 = vpack.c.b16 %v2416, %v2413
      %v2537 = vpack.c.b16 %v2417, %v2414
      %v2538 = vpack.c.b16 %v2421, %v2418
      %v2539 = vpack.c.b16 %v2422, %v2419
      %v2540 = vpack.c.b16 %v2423, %v2420
      %v2541 = vpack.c.b16 %v2427, %v2424
      %v2542 = vpack.c.b16 %v2428, %v2425
      %v2543 = vpack.c.b16 %v2429, %v2426
      %v2544 = vpack.c.b16 %v2433, %v2430
      %v2545 = vpack.c.b16 %v2434, %v2431
      %v2546 = vpack.c.b16 %v2435, %v2432
      %v2547 = vpack.c.b16 %v2439, %v2436
      %v2548 = vpack.c.b16 %v2440, %v2437
      %v2549 = vpack.c.b16 %v2441, %v2438
      %v2550 = vpack.c.b16 %v2445, %v2442
      %v2551 = vpack.c.b16 %v2446, %v2443
      %v2552 = vpack.c.b16 %v2447, %v2444
      %v2553 = vpack.c.b16 %v2451, %v2448
      %v2554 = vpack.c.b16 %v2452, %v2449
      %v2555 = vpack.c.b16 %v2453, %v2450
      %v2556 = vpack.c.b16 %v2457, %v2454
      %v2557 = vpack.c.b16 %v2458, %v2455
      %v2558 = vpack.c.b16 %v2459, %v2456
      %v2559 = vpack.c.b16 %v2463, %v2460
      %v2560 = vpack.c.b16 %v2464, %v2461
      %v2561 = vpack.c.b16 %v2465, %v2462
      %v2562 = vpack.c.b16 %v2469, %v2466
      %v2563 = vpack.c.b16 %v2470, %v2467
      %v2564 = vpack.c.b16 %v2471, %v2468
      %v2565 = vpack.c.b16 %v2475, %v2472
      %v2566 = vpack.c.b16 %v2476, %v2473
      %v2567 = vpack.c.b16 %v2477, %v2474
      %v2568 = vpack.c.b16 %v2481, %v2478
      %v2569 = vpack.c.b16 %v2482, %v2479
      %v2570 = vpack.c.b16 %v2483, %v2480
      %v2571 = vpack.c.b16 %v2487, %v2484
      %v2572 = vpack.c.b16 %v2488, %v2485
      %v2573 = vpack.c.b16 %v2489, %v2486
      %v2574 = vpack.c.b16 %v2493, %v2490
      %v2575 = vpack.c.b16 %v2494, %v2491
      %v2576 = vpack.c.b16 %v2495, %v2492
      %v2577 = vpack.c.b16 %v2499, %v2496
      %v2578 = vpack.c.b16 %v2500, %v2497
      %v2579 = vpack.c.b16 %v2501, %v2498
      %v2580 = vpack.c.b16 %v2505, %v2502
      %v2581 = vpack.c.b16 %v2506, %v2503
      %v2582 = vpack.c.b16 %v2507, %v2504
      %v2583 = vpack.c.b16 %v2511, %v2508
      %v2584 = vpack.c.b16 %v2512, %v2509
      %v2585 = vpack.c.b16 %v2513, %v2510
      %2658 = vmatpush.bf16.msra.mxu0 %v2535
      %2659 = vmatpush.bf16.msra.mxu0 %v2532
      %2660 = vmatpush.bf16.msra.mxu0 %v2529
      %2661 = vmatpush.bf16.msra.mxu0 %v2526
      %2662 = vmatpush.bf16.msra.mxu0 %v2523
      %2663 = vmatpush.bf16.msra.mxu0 %v2520
      %2664 = vmatpush.bf16.msra.mxu0 %v2517
      %2665 = vmatpush.bf16.msra.mxu0 %v2514
      %2666 = vmatmul.bf16.gmra.mxu0 %v2167
      %v2667 = vpop.f32.mrf.mxu0
      %v2668 = vadd.f32 %v2268, %v2667
      %v2669 = vpop.f32.mrf.mxu0
      %2670 = vdwg.mxu0
      %2671 = vmatpush.bf16.msra.mxu0 %v2559
      %2672 = vmatpush.bf16.msra.mxu0 %v2556
      %2673 = vmatpush.bf16.msra.mxu0 %v2553
      %2674 = vmatpush.bf16.msra.mxu0 %v2550
      %2675 = vmatpush.bf16.msra.mxu0 %v2547
      %2676 = vmatpush.bf16.msra.mxu0 %v2544
      %2677 = vmatpush.bf16.msra.mxu0 %v2541
      %2678 = vmatpush.bf16.msra.mxu0 %v2538
      %2679 = vmatmul.bf16.gmra.mxu0 %v2168
      %v2680 = vpop.f32.mrf.mxu0
      %v2681 = vadd.f32 %v2668, %v2680
      %v2682 = vpop.f32.mrf.mxu0
      %2683 = vdwg.mxu0
      %2684 = vmatpush.bf16.msra.mxu0 %v2583
      %2685 = vmatpush.bf16.msra.mxu0 %v2580
      %2686 = vmatpush.bf16.msra.mxu0 %v2577
      %2687 = vmatpush.bf16.msra.mxu0 %v2574
      %2688 = vmatpush.bf16.msra.mxu0 %v2571
      %2689 = vmatpush.bf16.msra.mxu0 %v2568
      %2690 = vmatpush.bf16.msra.mxu0 %v2565
      %2691 = vmatpush.bf16.msra.mxu0 %v2562
      %2692 = vmatmul.bf16.gmra.mxu0 %v2169
      %v2693 = vpop.f32.mrf.mxu0
      %v2694 = vadd.f32 %v2681, %v2693
      %v2695 = vpop.f32.mrf.mxu0
      %2696 = vdwg.mxu0
      %2697 = vmatpush.bf16.msra.mxu0 %v2536
      %2698 = vmatpush.bf16.msra.mxu0 %v2533
      %2699 = vmatpush.bf16.msra.mxu0 %v2530
      %2700 = vmatpush.bf16.msra.mxu0 %v2527
      %2701 = vmatpush.bf16.msra.mxu0 %v2524
      %2702 = vmatpush.bf16.msra.mxu0 %v2521
      %2703 = vmatpush.bf16.msra.mxu0 %v2518
      %2704 = vmatpush.bf16.msra.mxu0 %v2515
      %2705 = vmatmul.bf16.gmra.mxu0 %v2167
      %v2706 = vpop.f32.mrf.mxu0
      %v2707 = vadd.f32 %v2269, %v2706
      %v2708 = vpop.f32.mrf.mxu0
      %2709 = vdwg.mxu0
      %2710 = vmatpush.bf16.msra.mxu0 %v2560
      %2711 = vmatpush.bf16.msra.mxu0 %v2557
      %2712 = vmatpush.bf16.msra.mxu0 %v2554
      %2713 = vmatpush.bf16.msra.mxu0 %v2551
      %2714 = vmatpush.bf16.msra.mxu0 %v2548
      %2715 = vmatpush.bf16.msra.mxu0 %v2545
      %2716 = vmatpush.bf16.msra.mxu0 %v2542
      %2717 = vmatpush.bf16.msra.mxu0 %v2539
      %2718 = vmatmul.bf16.gmra.mxu0 %v2168
      %v2719 = vpop.f32.mrf.mxu0
      %v2720 = vadd.f32 %v2707, %v2719
      %v2721 = vpop.f32.mrf.mxu0
      %2722 = vdwg.mxu0
      %2723 = vmatpush.bf16.msra.mxu0 %v2584
      %2724 = vmatpush.bf16.msra.mxu0 %v2581
      %2725 = vmatpush.bf16.msra.mxu0 %v2578
      %2726 = vmatpush.bf16.msra.mxu0 %v2575
      %2727 = vmatpush.bf16.msra.mxu0 %v2572
      %2728 = vmatpush.bf16.msra.mxu0 %v2569
      %2729 = vmatpush.bf16.msra.mxu0 %v2566
      %2730 = vmatpush.bf16.msra.mxu0 %v2563
      %2731 = vmatmul.bf16.gmra.mxu0 %v2169
      %v2732 = vpop.f32.mrf.mxu0
      %v2733 = vadd.f32 %v2720, %v2732
      %v2734 = vpop.f32.mrf.mxu0
      %2735 = vdwg.mxu0
      %2736 = vmatpush.bf16.msra.mxu0 %v2537
      %2737 = vmatpush.bf16.msra.mxu0 %v2534
      %2738 = vmatpush.bf16.msra.mxu0 %v2531
      %2739 = vmatpush.bf16.msra.mxu0 %v2528
      %2740 = vmatpush.bf16.msra.mxu0 %v2525
      %2741 = vmatpush.bf16.msra.mxu0 %v2522
      %2742 = vmatpush.bf16.msra.mxu0 %v2519
      %2743 = vmatpush.bf16.msra.mxu0 %v2516
      %2744 = vmatmul.bf16.gmra.mxu0 %v2167
      %v2745 = vpop.f32.mrf.mxu0
      %v2746 = vadd.f32 %v2270, %v2745
      %v2747 = vpop.f32.mrf.mxu0
      %2748 = vdwg.mxu0
      %2749 = vmatpush.bf16.msra.mxu0 %v2561
      %2750 = vmatpush.bf16.msra.mxu0 %v2558
      %2751 = vmatpush.bf16.msra.mxu0 %v2555
      %2752 = vmatpush.bf16.msra.mxu0 %v2552
      %2753 = vmatpush.bf16.msra.mxu0 %v2549
      %2754 = vmatpush.bf16.msra.mxu0 %v2546
      %2755 = vmatpush.bf16.msra.mxu0 %v2543
      %2756 = vmatpush.bf16.msra.mxu0 %v2540
      %2757 = vmatmul.bf16.gmra.mxu0 %v2168
      %v2758 = vpop.f32.mrf.mxu0
      %v2759 = vadd.f32 %v2746, %v2758
      %v2760 = vpop.f32.mrf.mxu0
      %2761 = vdwg.mxu0
      %2762 = vmatpush.bf16.msra.mxu0 %v2585
      %2763 = vmatpush.bf16.msra.mxu0 %v2582
      %2764 = vmatpush.bf16.msra.mxu0 %v2579
      %2765 = vmatpush.bf16.msra.mxu0 %v2576
      %2766 = vmatpush.bf16.msra.mxu0 %v2573
      %2767 = vmatpush.bf16.msra.mxu0 %v2570
      %2768 = vmatpush.bf16.msra.mxu0 %v2567
      %2769 = vmatpush.bf16.msra.mxu0 %v2564
      %2770 = vmatmul.bf16.gmra.mxu0 %v2169
      %v2771 = vpop.f32.mrf.mxu0
      %v2772 = vadd.f32 %v2759, %v2771
      %v2773 = vpop.f32.mrf.mxu0
      %2774 = vdwg.mxu0
      %v2775 = vld [vmem:[%s337] sm:$0xff]
      %v2776 = vld [vmem:[%s337 + $0x8] sm:$0xf]
      %v2777 = vunpack.c.l.bf16 %v2775
      %v2778 = vunpack.c.h.bf16 %v2775
      %v2779 = vunpack.c.l.bf16 %v2776
      %v2780 = vmul.f32 %v2694, %v2777
      %v2781 = vmul.f32 %v2733, %v2778
      %v2782 = vmul.f32 %v2772, %v2779
      %v2783 = vadd.f32 %v344, %v2780
      %v2784 = vadd.f32 %v345, %v2781
      %v2785 = vadd.f32 %v346, %v2782
      %v2786 = vadd.f32 %v2783, %v2784
      %v2787 = vadd.f32 %v2786, %v2785
      %2788 = vadd.xlane.f32.xlu0 %v2787
      %v2789 = vpop.xlane.xlu0 %2788
      %v2790 = vrcp.pop 384.0
      %v2791 = vmul.f32 384.0, %v2790
      %v2792 = vsub.f32 1.0, %v2791
      %v2793 = vmul.f32 %v2790, %v2792
      %v2794 = vadd.f32 %v2790, %v2793
      %vm2795 = vweird.f32 %v2790
      %v2796 = vsel %vm2795, %v2790, %v2794
      %v2797 = vmul.f32 %v2789, %v2796
      %v2798 = vsub.f32 %v2783, %v2797
      %v2799 = vsub.f32 %v2784, %v2797
      %v2800 = vsub.f32 %v2785, %v2797
      %v2801 = vmul.f32 %v2798, %v2798
      %v2802 = vmul.f32 %v2799, %v2799
      %v2803 = vmul.f32 %v2800, %v2800
      %v2804 = vadd.f32 %v2801, %v2802
      %v2805 = vadd.f32 %v2804, %v2803
      %2806 = vadd.xlane.f32.xlu0 %v2805
      %v2807 = vpop.xlane.xlu0 %2806
      %v2808 = vmul.f32 %v2807, %v2796
      %v2809 = vadd.f32 %v2808, 1e-05
      %v2810 = vrsqrt.pop %v2809
      %v2811 = vmul.f32 %v2810, %v2809
      %v2812 = vmul.f32 %v2811, %v2810
      %v2813 = vmul.f32 0.5, %v2812
      %v2814 = vsub.f32 1.5, %v2813
      %v2815 = vmul.f32 %v2810, %v2814
      %vm2816 = vweird.f32 %v2809
      %vm2817 = vweird.f32 %v2810
      %vm2818 = vmor %vm2816, %vm2817
      %v2819 = vsel %vm2818, %v2810, %v2815
      %v2820 = vmul.f32 %v2798, %v2819
      %v2821 = vmul.f32 %v2799, %v2819
      %v2822 = vmul.f32 %v2800, %v2819
      %v2823 = vld [vmem:[%s6] sm:$0x7]
      %v2825 = vperm.slane %v2823, 0
      %v2826 = vperm.slane %v2823, 1
      %v2827 = vperm.slane %v2823, 2
      %v2831 = vmul.f32 %v2820, %v2825
      %v2832 = vmul.f32 %v2821, %v2826
      %v2833 = vmul.f32 %v2822, %v2827
      %v2834 = vld [vmem:[%s7] sm:$0x7]
      %v2836 = vperm.slane %v2834, 0
      %v2837 = vperm.slane %v2834, 1
      %v2838 = vperm.slane %v2834, 2
      %v2842 = vadd.f32 %v2831, %v2836
      %v2843 = vadd.f32 %v2832, %v2837
      %v2844 = vadd.f32 %v2833, %v2838
      %2845 = vst [vmem:[%s342] sm:$0xff] %v2842
      %2846 = vst [vmem:[%s342 + $0x8] sm:$0xff] %v2843
      %2847 = vst [vmem:[%s342 + $0x10] sm:$0xff] %v2844
      %p2848 = scmp.lt.s32.totalorder %s19, 1
      %s2849 = scalar_select %p2848, %s19, 1
      %s2850 = smul.addr %s2849, 3
      %s2851 = smul.addr %s2850, 8
      %s2852 = scalar_lea.vmem %s8, %s2851
      // Predicated region
      $region53: #{transformer_block.2} parent=51 // pred_check
        %p2853 = pneg %p220
      $region54: #{transformer_block.2} parent=51 // pred_check_branch
        %2855 = sbr.rel (%p2853) target = $region56
      $region55: #{transformer_block.2} parent=51 // pred_region
        _
      $region56: #{transformer_block.2} parent=51 // pred_fallthru
        _
    $region52: #{transformer_block.2} parent=5 // pred_fallthru
      _
    %p2856 = scmp.le.s32.totalorder 2, %s14
    // Predicated region
    $region57: #{transformer_block.2} parent=5 // pred_check
      %p2857 = pneg %p2856
    $region58: #{transformer_block.2} parent=5 // pred_check_branch
      %2859 = sbr.rel (%p2857) target = $region60
    $region59: #{transformer_block.2} parent=5 // pred_region
      %s2860 = ssub.s32 %s14, 2
      // Predicated region
      $region61: #{transformer_block.2} parent=59 // pred_check
        %p2861 = pneg %p226
      $region62: #{transformer_block.2} parent=59 // pred_check_branch
        %2863 = sbr.rel (%p2861) target = $region64
      $region63: #{transformer_block.2} parent=59 // pred_region
        %p2864 = scmp.lt.s32.totalorder %s20, 1
        %s2865 = scalar_select %p2864, %s20, 1
        %s2866 = smul.addr %s2865, 3
        %s2867 = smul.addr %s2866, 8
        %s2868 = scalar_lea.vmem %s8, %s2867
      $region64: #{transformer_block.2} parent=59 // pred_fallthru
        _
    $region60: #{transformer_block.2} parent=5 // pred_fallthru
      _
  $region6: #{transformer_block.2} parent=0 // loop_footer
    %s18 = sadd.s32 1, %s14
  $region7: #{transformer_block.2} parent=0 // loop_footer_branch
    %13 = sbr.rel target = $region3
  $region8: #{transformer_block.2} parent=0 // loop_exit
    _

// kernel: transformer_block.3
$region0: #{transformer_block.3}
  #allocation0 [shape = 'u32[]', space=smem, size = 0x4, offset = 0x4, fixed_abs, tag = 'smem constant byte address 0x4 - core index']
  #allocation1 [shape = 'u32[72,128]{1,0:T(1,128)}', space=vmem, size = 0x9000, scoped, tag = 'internal scratch']
  %s0 = inlined_call_operand.vmem [shape: f32[16,384], index: 0, kind: input, shape index: {}]
  %s1 = inlined_call_operand.vmem [shape: bf16[384,1536], index: 1, kind: input, shape index: {}]
  %s2 = inlined_call_operand.vmem [shape: f32[1,1536], index: 2, kind: input, shape index: {}]
  %s3 = inlined_call_operand.vmem [shape: bf16[1536,384], index: 3, kind: input, shape index: {}]
  %s4 = inlined_call_operand.vmem [shape: f32[1,384], index: 4, kind: input, shape index: {}]
  %s5 = inlined_call_operand.vmem [shape: bf16[16,384], index: 5, kind: input, shape index: {}]
  %s6 = inlined_call_operand.vmem [shape: f32[1,384], index: 6, kind: input, shape index: {}]
  %s7 = inlined_call_operand.vmem [shape: f32[1,384], index: 7, kind: input, shape index: {}]
  %s8 = inlined_call_operand.hbm [shape: f32[16,384], index: 8, kind: output, shape index: {}]
  %s9 = sld [smem:[#allocation0]]
  $region42: #{transformer_block.3} parent=0
    _
  %s11 = ssub.s32 1, %s9
  %s12 = scalar_select 0, %s11, %s9
  $region1: #{transformer_block.3} parent=0
    #allocation2 [shape = 'u8[24576]{0}', space=vmem, size = 0x6000, scoped, tag = 'output window, operand 0, single buffered']
    #allocation3 [shape = 's32[1]{0}', space=sflag, size = 0x4, scoped, tag = 'scoped memory for transformer_block.3']
    %13 = vsyncpa [#allocation3], 0
    // Predicated region
    $region2: #{transformer_block.3} parent=1 // pred_check
      _
    $region3: #{transformer_block.3} parent=1 // pred_check_branch
      %15 = sbr.rel (0) target = $region5
    $region4: #{transformer_block.3} parent=1 // pred_region
      _
    $region5: #{transformer_block.3} parent=1 // pred_fallthru
      _
    // Predicated region
    $region6: #{transformer_block.3} parent=1 // pred_check
      _
    $region7: #{transformer_block.3} parent=1 // pred_check_branch
      %17 = sbr.rel (0) target = $region9
    $region8: #{transformer_block.3} parent=1 // pred_region
      _
    $region9: #{transformer_block.3} parent=1 // pred_fallthru
      _
    // Predicated region
    $region10: #{transformer_block.3} parent=1 // pred_check
      _
    $region11: #{transformer_block.3} parent=1 // pred_check_branch
      %19 = sbr.rel (0) target = $region13
    $region12: #{transformer_block.3} parent=1 // pred_region
      _
    $region13: #{transformer_block.3} parent=1 // pred_fallthru
      _
    // Predicated region
    $region14: #{transformer_block.3} parent=1 // pred_check
      _
    $region15: #{transformer_block.3} parent=1 // pred_check_branch
      %21 = sbr.rel (0) target = $region17
    $region16: #{transformer_block.3} parent=1 // pred_region
      _
    $region17: #{transformer_block.3} parent=1 // pred_fallthru
      _
    // Predicated region
    $region18: #{transformer_block.3} parent=1 // pred_check
      _
    $region19: #{transformer_block.3} parent=1 // pred_check_branch
      %23 = sbr.rel (0) target = $region21
    $region20: #{transformer_block.3} parent=1 // pred_region
      _
    $region21: #{transformer_block.3} parent=1 // pred_fallthru
      _
    // Predicated region
    $region22: #{transformer_block.3} parent=1 // pred_check
      _
    $region23: #{transformer_block.3} parent=1 // pred_check_branch
      %25 = sbr.rel (0) target = $region25
    $region24: #{transformer_block.3} parent=1 // pred_region
      _
    $region25: #{transformer_block.3} parent=1 // pred_fallthru
      _
    // Predicated region
    $region26: #{transformer_block.3} parent=1 // pred_check
      _
    $region27: #{transformer_block.3} parent=1 // pred_check_branch
      %27 = sbr.rel (0) target = $region29
    $region28: #{transformer_block.3} parent=1 // pred_region
      _
    $region29: #{transformer_block.3} parent=1 // pred_fallthru
      _
    // Predicated region
    $region30: #{transformer_block.3} parent=1 // pred_check
      _
    $region31: #{transformer_block.3} parent=1 // pred_check_branch
      %29 = sbr.rel (0) target = $region33
    $region32: #{transformer_block.3} parent=1 // pred_region
      _
    $region33: #{transformer_block.3} parent=1 // pred_fallthru
      _
    %v30 = vld [vmem:[%s0] sm:$0xff]
    %v31 = vld [vmem:[%s0 + $0x8] sm:$0xff]
    %v32 = vld [vmem:[%s0 + $0x10] sm:$0xff]
    %v33 = vld [vmem:[%s0 + $0x18] sm:$0xff]
    %v34 = vld [vmem:[%s0 + $0x20] sm:$0xff]
    %v35 = vld [vmem:[%s0 + $0x28] sm:$0xff]
    %v36 = vpack.c.bf16 %v33, %v30
    %v37 = vpack.c.bf16 %v34, %v31
    %v38 = vpack.c.bf16 %v35, %v32
    %v39 = vld [vmem:[%s1] sm:$0xff]
    %v40 = vld [vmem:[%s1 + $0x8] sm:$0xff]
    %v41 = vld [vmem:[%s1 + $0x10] sm:$0xff]
    %v42 = vld [vmem:[%s1 + $0x18] sm:$0xff]
    %v43 = vld [vmem:[%s1 + $0x20] sm:$0xff]
    %v44 = vld [vmem:[%s1 + $0x28] sm:$0xff]
    %v45 = vld [vmem:[%s1 + $0x30] sm:$0xff]
    %v46 = vld [vmem:[%s1 + $0x38] sm:$0xff]
    %v47 = vld [vmem:[%s1 + $0x40] sm:$0xff]
    %v48 = vld [vmem:[%s1 + $0x48] sm:$0xff]
    %v49 = vld [vmem:[%s1 + $0x50] sm:$0xff]
    %v50 = vld [vmem:[%s1 + $0x58] sm:$0xff]
    %v51 = vld [vmem:[%s1 + $0x60] sm:$0xff]
    %v52 = vld [vmem:[%s1 + $0x68] sm:$0xff]
    %v53 = vld [vmem:[%s1 + $0x70] sm:$0xff]
    %v54 = vld [vmem:[%s1 + $0x78] sm:$0xff]
    %v55 = vld [vmem:[%s1 + $0x80] sm:$0xff]
    %v56 = vld [vmem:[%s1 + $0x88] sm:$0xff]
    %v57 = vld [vmem:[%s1 + $0x90] sm:$0xff]
    %v58 = vld [vmem:[%s1 + $0x98] sm:$0xff]
    %v59 = vld [vmem:[%s1 + $0xa0] sm:$0xff]
    %v60 = vld [vmem:[%s1 + $0xa8] sm:$0xff]
    %v61 = vld [vmem:[%s1 + $0xb0] sm:$0xff]
    %v62 = vld [vmem:[%s1 + $0xb8] sm:$0xff]
    %v63 = vld [vmem:[%s1 + $0xc0] sm:$0xff]
    %v64 = vld [vmem:[%s1 + $0xc8] sm:$0xff]
    %v65 = vld [vmem:[%s1 + $0xd0] sm:$0xff]
    %v66 = vld [vmem:[%s1 + $0xd8] sm:$0xff]
    %v67 = vld [vmem:[%s1 + $0xe0] sm:$0xff]
    %v68 = vld [vmem:[%s1 + $0xe8] sm:$0xff]
    %v69 = vld [vmem:[%s1 + $0xf0] sm:$0xff]
    %v70 = vld [vmem:[%s1 + $0xf8] sm:$0xff]
    %v71 = vld [vmem:[%s1 + $0x100] sm:$0xff]
    %v72 = vld [vmem:[%s1 + $0x108] sm:$0xff]
    %v73 = vld [vmem:[%s1 + $0x110] sm:$0xff]
    %v74 = vld [vmem:[%s1 + $0x118] sm:$0xff]
    %v75 = vld [vmem:[%s1 + $0x120] sm:$0xff]
    %v76 = vld [vmem:[%s1 + $0x128] sm:$0xff]
    %v77 = vld [vmem:[%s1 + $0x130] sm:$0xff]
    %v78 = vld [vmem:[%s1 + $0x138] sm:$0xff]
    %v79 = vld [vmem:[%s1 + $0x140] sm:$0xff]
    %v80 = vld [vmem:[%s1 + $0x148] sm:$0xff]
    %v81 = vld [vmem:[%s1 + $0x150] sm:$0xff]
    %v82 = vld [vmem:[%s1 + $0x158] sm:$0xff]
    %v83 = vld [vmem:[%s1 + $0x160] sm:$0xff]
    %v84 = vld [vmem:[%s1 + $0x168] sm:$0xff]
    %v85 = vld [vmem:[%s1 + $0x170] sm:$0xff]
    %v86 = vld [vmem:[%s1 + $0x178] sm:$0xff]
    %v87 = vld [vmem:[%s1 + $0x180] sm:$0xff]
    %v88 = vld [vmem:[%s1 + $0x188] sm:$0xff]
    %v89 = vld [vmem:[%s1 + $0x190] sm:$0xff]
    %v90 = vld [vmem:[%s1 + $0x198] sm:$0xff]
    %v91 = vld [vmem:[%s1 + $0x1a0] sm:$0xff]
    %v92 = vld [vmem:[%s1 + $0x1a8] sm:$0xff]
    %v93 = vld [vmem:[%s1 + $0x1b0] sm:$0xff]
    %v94 = vld [vmem:[%s1 + $0x1b8] sm:$0xff]
    %v95 = vld [vmem:[%s1 + $0x1c0] sm:$0xff]
    %v96 = vld [vmem:[%s1 + $0x1c8] sm:$0xff]
    %v97 = vld [vmem:[%s1 + $0x1d0] sm:$0xff]
    %v98 = vld [vmem:[%s1 + $0x1d8] sm:$0xff]
    %v99 = vld [vmem:[%s1 + $0x1e0] sm:$0xff]
    %v100 = vld [vmem:[%s1 + $0x1e8] sm:$0xff]
    %v101 = vld [vmem:[%s1 + $0x1f0] sm:$0xff]
    %v102 = vld [vmem:[%s1 + $0x1f8] sm:$0xff]
    %v103 = vld [vmem:[%s1 + $0x200] sm:$0xff]
    %v104 = vld [vmem:[%s1 + $0x208] sm:$0xff]
    %v105 = vld [vmem:[%s1 + $0x210] sm:$0xff]
    %v106 = vld [vmem:[%s1 + $0x218] sm:$0xff]
    %v107 = vld [vmem:[%s1 + $0x220] sm:$0xff]
    %v108 = vld [vmem:[%s1 + $0x228] sm:$0xff]
    %v109 = vld [vmem:[%s1 + $0x230] sm:$0xff]
    %v110 = vld [vmem:[%s1 + $0x238] sm:$0xff]
    %v111 = vld [vmem:[%s1 + $0x240] sm:$0xff]
    %v112 = vld [vmem:[%s1 + $0x248] sm:$0xff]
    %v113 = vld [vmem:[%s1 + $0x250] sm:$0xff]
    %v114 = vld [vmem:[%s1 + $0x258] sm:$0xff]
    %v115 = vld [vmem:[%s1 + $0x260] sm:$0xff]
    %v116 = vld [vmem:[%s1 + $0x268] sm:$0xff]
    %v117 = vld [vmem:[%s1 + $0x270] sm:$0xff]
    %v118 = vld [vmem:[%s1 + $0x278] sm:$0xff]
    %v119 = vld [vmem:[%s1 + $0x280] sm:$0xff]
    %v120 = vld [vmem:[%s1 + $0x288] sm:$0xff]
    %v121 = vld [vmem:[%s1 + $0x290] sm:$0xff]
    %v122 = vld [vmem:[%s1 + $0x298] sm:$0xff]
    %v123 = vld [vmem:[%s1 + $0x2a0] sm:$0xff]
    %v124 = vld [vmem:[%s1 + $0x2a8] sm:$0xff]
    %v125 = vld [vmem:[%s1 + $0x2b0] sm:$0xff]
    %v126 = vld [vmem:[%s1 + $0x2b8] sm:$0xff]
    %v127 = vld [vmem:[%s1 + $0x2c0] sm:$0xff]
    %v128 = vld [vmem:[%s1 + $0x2c8] sm:$0xff]
    %v129 = vld [vmem:[%s1 + $0x2d0] sm:$0xff]
    %v130 = vld [vmem:[%s1 + $0x2d8] sm:$0xff]
    %v131 = vld [vmem:[%s1 + $0x2e0] sm:$0xff]
    %v132 = vld [vmem:[%s1 + $0x2e8] sm:$0xff]
    %v133 = vld [vmem:[%s1 + $0x2f0] sm:$0xff]
    %v134 = vld [vmem:[%s1 + $0x2f8] sm:$0xff]
    %v135 = vld [vmem:[%s1 + $0x300] sm:$0xff]
    %v136 = vld [vmem:[%s1 + $0x308] sm:$0xff]
    %v137 = vld [vmem:[%s1 + $0x310] sm:$0xff]
    %v138 = vld [vmem:[%s1 + $0x318] sm:$0xff]
    %v139 = vld [vmem:[%s1 + $0x320] sm:$0xff]
    %v140 = vld [vmem:[%s1 + $0x328] sm:$0xff]
    %v141 = vld [vmem:[%s1 + $0x330] sm:$0xff]
    %v142 = vld [vmem:[%s1 + $0x338] sm:$0xff]
    %v143 = vld [vmem:[%s1 + $0x340] sm:$0xff]
    %v144 = vld [vmem:[%s1 + $0x348] sm:$0xff]
    %v145 = vld [vmem:[%s1 + $0x350] sm:$0xff]
    %v146 = vld [vmem:[%s1 + $0x358] sm:$0xff]
    %v147 = vld [vmem:[%s1 + $0x360] sm:$0xff]
    %v148 = vld [vmem:[%s1 + $0x368] sm:$0xff]
    %v149 = vld [vmem:[%s1 + $0x370] sm:$0xff]
    %v150 = vld [vmem:[%s1 + $0x378] sm:$0xff]
    %v151 = vld [vmem:[%s1 + $0x380] sm:$0xff]
    %v152 = vld [vmem:[%s1 + $0x388] sm:$0xff]
    %v153 = vld [vmem:[%s1 + $0x390] sm:$0xff]
    %v154 = vld [vmem:[%s1 + $0x398] sm:$0xff]
    %v155 = vld [vmem:[%s1 + $0x3a0] sm:$0xff]
    %v156 = vld [vmem:[%s1 + $0x3a8] sm:$0xff]
    %v157 = vld [vmem:[%s1 + $0x3b0] sm:$0xff]
    %v158 = vld [vmem:[%s1 + $0x3b8] sm:$0xff]
    %v159 = vld [vmem:[%s1 + $0x3c0] sm:$0xff]
    %v160 = vld [vmem:[%s1 + $0x3c8] sm:$0xff]
    %v161 = vld [vmem:[%s1 + $0x3d0] sm:$0xff]
    %v162 = vld [vmem:[%s1 + $0x3d8] sm:$0xff]
    %v163 = vld [vmem:[%s1 + $0x3e0] sm:$0xff]
    %v164 = vld [vmem:[%s1 + $0x3e8] sm:$0xff]
    %v165 = vld [vmem:[%s1 + $0x3f0] sm:$0xff]
    %v166 = vld [vmem:[%s1 + $0x3f8] sm:$0xff]
    %v167 = vld [vmem:[%s1 + $0x400] sm:$0xff]
    %v168 = vld [vmem:[%s1 + $0x408] sm:$0xff]
    %v169 = vld [vmem:[%s1 + $0x410] sm:$0xff]
    %v170 = vld [vmem:[%s1 + $0x418] sm:$0xff]
    %v171 = vld [vmem:[%s1 + $0x420] sm:$0xff]
    %v172 = vld [vmem:[%s1 + $0x428] sm:$0xff]
    %v173 = vld [vmem:[%s1 + $0x430] sm:$0xff]
    %v174 = vld [vmem:[%s1 + $0x438] sm:$0xff]
    %v175 = vld [vmem:[%s1 + $0x440] sm:$0xff]
    %v176 = vld [vmem:[%s1 + $0x448] sm:$0xff]
    %v177 = vld [vmem:[%s1 + $0x450] sm:$0xff]
    %v178 = vld [vmem:[%s1 + $0x458] sm:$0xff]
    %v179 = vld [vmem:[%s1 + $0x460] sm:$0xff]
    %v180 = vld [vmem:[%s1 + $0x468] sm:$0xff]
    %v181 = vld [vmem:[%s1 + $0x470] sm:$0xff]
    %v182 = vld [vmem:[%s1 + $0x478] sm:$0xff]
    %v183 = vld [vmem:[%s1 + $0x480] sm:$0xff]
    %v184 = vld [vmem:[%s1 + $0x488] sm:$0xff]
    %v185 = vld [vmem:[%s1 + $0x490] sm:$0xff]
    %v186 = vld [vmem:[%s1 + $0x498] sm:$0xff]
    %v187 = vld [vmem:[%s1 + $0x4a0] sm:$0xff]
    %v188 = vld [vmem:[%s1 + $0x4a8] sm:$0xff]
    %v189 = vld [vmem:[%s1 + $0x4b0] sm:$0xff]
    %v190 = vld [vmem:[%s1 + $0x4b8] sm:$0xff]
    %v191 = vld [vmem:[%s1 + $0x4c0] sm:$0xff]
    %v192 = vld [vmem:[%s1 + $0x4c8] sm:$0xff]
    %v193 = vld [vmem:[%s1 + $0x4d0] sm:$0xff]
    %v194 = vld [vmem:[%s1 + $0x4d8] sm:$0xff]
    %v195 = vld [vmem:[%s1 + $0x4e0] sm:$0xff]
    %v196 = vld [vmem:[%s1 + $0x4e8] sm:$0xff]
    %v197 = vld [vmem:[%s1 + $0x4f0] sm:$0xff]
    %v198 = vld [vmem:[%s1 + $0x4f8] sm:$0xff]
    %v199 = vld [vmem:[%s1 + $0x500] sm:$0xff]
    %v200 = vld [vmem:[%s1 + $0x508] sm:$0xff]
    %v201 = vld [vmem:[%s1 + $0x510] sm:$0xff]
    %v202 = vld [vmem:[%s1 + $0x518] sm:$0xff]
    %v203 = vld [vmem:[%s1 + $0x520] sm:$0xff]
    %v204 = vld [vmem:[%s1 + $0x528] sm:$0xff]
    %v205 = vld [vmem:[%s1 + $0x530] sm:$0xff]
    %v206 = vld [vmem:[%s1 + $0x538] sm:$0xff]
    %v207 = vld [vmem:[%s1 + $0x540] sm:$0xff]
    %v208 = vld [vmem:[%s1 + $0x548] sm:$0xff]
    %v209 = vld [vmem:[%s1 + $0x550] sm:$0xff]
    %v210 = vld [vmem:[%s1 + $0x558] sm:$0xff]
    %v211 = vld [vmem:[%s1 + $0x560] sm:$0xff]
    %v212 = vld [vmem:[%s1 + $0x568] sm:$0xff]
    %v213 = vld [vmem:[%s1 + $0x570] sm:$0xff]
    %v214 = vld [vmem:[%s1 + $0x578] sm:$0xff]
    %v215 = vld [vmem:[%s1 + $0x580] sm:$0xff]
    %v216 = vld [vmem:[%s1 + $0x588] sm:$0xff]
    %v217 = vld [vmem:[%s1 + $0x590] sm:$0xff]
    %v218 = vld [vmem:[%s1 + $0x598] sm:$0xff]
    %v219 = vld [vmem:[%s1 + $0x5a0] sm:$0xff]
    %v220 = vld [vmem:[%s1 + $0x5a8] sm:$0xff]
    %v221 = vld [vmem:[%s1 + $0x5b0] sm:$0xff]
    %v222 = vld [vmem:[%s1 + $0x5b8] sm:$0xff]
    %v223 = vld [vmem:[%s1 + $0x5c0] sm:$0xff]
    %v224 = vld [vmem:[%s1 + $0x5c8] sm:$0xff]
    %v225 = vld [vmem:[%s1 + $0x5d0] sm:$0xff]
    %v226 = vld [vmem:[%s1 + $0x5d8] sm:$0xff]
    %v227 = vld [vmem:[%s1 + $0x5e0] sm:$0xff]
    %v228 = vld [vmem:[%s1 + $0x5e8] sm:$0xff]
    %v229 = vld [vmem:[%s1 + $0x5f0] sm:$0xff]
    %v230 = vld [vmem:[%s1 + $0x5f8] sm:$0xff]
    %v231 = vld [vmem:[%s1 + $0x600] sm:$0xff]
    %v232 = vld [vmem:[%s1 + $0x608] sm:$0xff]
    %v233 = vld [vmem:[%s1 + $0x610] sm:$0xff]
    %v234 = vld [vmem:[%s1 + $0x618] sm:$0xff]
    %v235 = vld [vmem:[%s1 + $0x620] sm:$0xff]
    %v236 = vld [vmem:[%s1 + $0x628] sm:$0xff]
    %v237 = vld [vmem:[%s1 + $0x630] sm:$0xff]
    %v238 = vld [vmem:[%s1 + $0x638] sm:$0xff]
    %v239 = vld [vmem:[%s1 + $0x640] sm:$0xff]
    %v240 = vld [vmem:[%s1 + $0x648] sm:$0xff]
    %v241 = vld [vmem:[%s1 + $0x650] sm:$0xff]
    %v242 = vld [vmem:[%s1 + $0x658] sm:$0xff]
    %v243 = vld [vmem:[%s1 + $0x660] sm:$0xff]
    %v244 = vld [vmem:[%s1 + $0x668] sm:$0xff]
    %v245 = vld [vmem:[%s1 + $0x670] sm:$0xff]
    %v246 = vld [vmem:[%s1 + $0x678] sm:$0xff]
    %v247 = vld [vmem:[%s1 + $0x680] sm:$0xff]
    %v248 = vld [vmem:[%s1 + $0x688] sm:$0xff]
    %v249 = vld [vmem:[%s1 + $0x690] sm:$0xff]
    %v250 = vld [vmem:[%s1 + $0x698] sm:$0xff]
    %v251 = vld [vmem:[%s1 + $0x6a0] sm:$0xff]
    %v252 = vld [vmem:[%s1 + $0x6a8] sm:$0xff]
    %v253 = vld [vmem:[%s1 + $0x6b0] sm:$0xff]
    %v254 = vld [vmem:[%s1 + $0x6b8] sm:$0xff]
    %v255 = vld [vmem:[%s1 + $0x6c0] sm:$0xff]
    %v256 = vld [vmem:[%s1 + $0x6c8] sm:$0xff]
    %v257 = vld [vmem:[%s1 + $0x6d0] sm:$0xff]
    %v258 = vld [vmem:[%s1 + $0x6d8] sm:$0xff]
    %v259 = vld [vmem:[%s1 + $0x6e0] sm:$0xff]
    %v260 = vld [vmem:[%s1 + $0x6e8] sm:$0xff]
    %v261 = vld [vmem:[%s1 + $0x6f0] sm:$0xff]
    %v262 = vld [vmem:[%s1 + $0x6f8] sm:$0xff]
    %v263 = vld [vmem:[%s1 + $0x700] sm:$0xff]
    %v264 = vld [vmem:[%s1 + $0x708] sm:$0xff]
    %v265 = vld [vmem:[%s1 + $0x710] sm:$0xff]
    %v266 = vld [vmem:[%s1 + $0x718] sm:$0xff]
    %v267 = vld [vmem:[%s1 + $0x720] sm:$0xff]
    %v268 = vld [vmem:[%s1 + $0x728] sm:$0xff]
    %v269 = vld [vmem:[%s1 + $0x730] sm:$0xff]
    %v270 = vld [vmem:[%s1 + $0x738] sm:$0xff]
    %v271 = vld [vmem:[%s1 + $0x740] sm:$0xff]
    %v272 = vld [vmem:[%s1 + $0x748] sm:$0xff]
    %v273 = vld [vmem:[%s1 + $0x750] sm:$0xff]
    %v274 = vld [vmem:[%s1 + $0x758] sm:$0xff]
    %v275 = vld [vmem:[%s1 + $0x760] sm:$0xff]
    %v276 = vld [vmem:[%s1 + $0x768] sm:$0xff]
    %v277 = vld [vmem:[%s1 + $0x770] sm:$0xff]
    %v278 = vld [vmem:[%s1 + $0x778] sm:$0xff]
    %v279 = vld [vmem:[%s1 + $0x780] sm:$0xff]
    %v280 = vld [vmem:[%s1 + $0x788] sm:$0xff]
    %v281 = vld [vmem:[%s1 + $0x790] sm:$0xff]
    %v282 = vld [vmem:[%s1 + $0x798] sm:$0xff]
    %v283 = vld [vmem:[%s1 + $0x7a0] sm:$0xff]
    %v284 = vld [vmem:[%s1 + $0x7a8] sm:$0xff]
    %v285 = vld [vmem:[%s1 + $0x7b0] sm:$0xff]
    %v286 = vld [vmem:[%s1 + $0x7b8] sm:$0xff]
    %v287 = vld [vmem:[%s1 + $0x7c0] sm:$0xff]
    %v288 = vld [vmem:[%s1 + $0x7c8] sm:$0xff]
    %v289 = vld [vmem:[%s1 + $0x7d0] sm:$0xff]
    %v290 = vld [vmem:[%s1 + $0x7d8] sm:$0xff]
    %v291 = vld [vmem:[%s1 + $0x7e0] sm:$0xff]
    %v292 = vld [vmem:[%s1 + $0x7e8] sm:$0xff]
    %v293 = vld [vmem:[%s1 + $0x7f0] sm:$0xff]
    %v294 = vld [vmem:[%s1 + $0x7f8] sm:$0xff]
    %v295 = vld [vmem:[%s1 + $0x800] sm:$0xff]
    %v296 = vld [vmem:[%s1 + $0x808] sm:$0xff]
    %v297 = vld [vmem:[%s1 + $0x810] sm:$0xff]
    %v298 = vld [vmem:[%s1 + $0x818] sm:$0xff]
    %v299 = vld [vmem:[%s1 + $0x820] sm:$0xff]
    %v300 = vld [vmem:[%s1 + $0x828] sm:$0xff]
    %v301 = vld [vmem:[%s1 + $0x830] sm:$0xff]
    %v302 = vld [vmem:[%s1 + $0x838] sm:$0xff]
    %v303 = vld [vmem:[%s1 + $0x840] sm:$0xff]
    %v304 = vld [vmem:[%s1 + $0x848] sm:$0xff]
    %v305 = vld [vmem:[%s1 + $0x850] sm:$0xff]
    %v306 = vld [vmem:[%s1 + $0x858] sm:$0xff]
    %v307 = vld [vmem:[%s1 + $0x860] sm:$0xff]
    %v308 = vld [vmem:[%s1 + $0x868] sm:$0xff]
    %v309 = vld [vmem:[%s1 + $0x870] sm:$0xff]
    %v310 = vld [vmem:[%s1 + $0x878] sm:$0xff]
    %v311 = vld [vmem:[%s1 + $0x880] sm:$0xff]
    %v312 = vld [vmem:[%s1 + $0x888] sm:$0xff]
    %v313 = vld [vmem:[%s1 + $0x890] sm:$0xff]
    %v314 = vld [vmem:[%s1 + $0x898] sm:$0xff]
    %v315 = vld [vmem:[%s1 + $0x8a0] sm:$0xff]
    %v316 = vld [vmem:[%s1 + $0x8a8] sm:$0xff]
    %v317 = vld [vmem:[%s1 + $0x8b0] sm:$0xff]
    %v318 = vld [vmem:[%s1 + $0x8b8] sm:$0xff]
    %v319 = vld [vmem:[%s1 + $0x8c0] sm:$0xff]
    %v320 = vld [vmem:[%s1 + $0x8c8] sm:$0xff]
    %v321 = vld [vmem:[%s1 + $0x8d0] sm:$0xff]
    %v322 = vld [vmem:[%s1 + $0x8d8] sm:$0xff]
    %v323 = vld [vmem:[%s1 + $0x8e0] sm:$0xff]
    %v324 = vld [vmem:[%s1 + $0x8e8] sm:$0xff]
    %v325 = vld [vmem:[%s1 + $0x8f0] sm:$0xff]
    %v326 = vld [vmem:[%s1 + $0x8f8] sm:$0xff]
    %v327 = vld [vmem:[%s2] sm:$0xff]
    %v328 = vld [vmem:[%s2 + $0x8] sm:$0xf]
    %v331 = vperm.slane %v327, 0
    %v332 = vperm.slane %v327, 1
    %v333 = vperm.slane %v327, 2
    %v334 = vperm.slane %v327, 3
    %v335 = vperm.slane %v327, 4
    %v336 = vperm.slane %v327, 5
    %v337 = vperm.slane %v327, 6
    %v338 = vperm.slane %v327, 7
    %v339 = vperm.slane %v328, 0
    %v340 = vperm.slane %v328, 1
    %v341 = vperm.slane %v328, 2
    %v342 = vperm.slane %v328, 3
    %v643 = vunpack.c.l.b16 %v39
    %v644 = vunpack.c.h.b16 %v39
    %v645 = vunpack.c.l.b16 %v40
    %v646 = vunpack.c.h.b16 %v40
    %v647 = vunpack.c.l.b16 %v41
    %v648 = vunpack.c.h.b16 %v41
    %v649 = vunpack.c.l.b16 %v42
    %v650 = vunpack.c.h.b16 %v42
    %v651 = vunpack.c.l.b16 %v43
    %v652 = vunpack.c.h.b16 %v43
    %v653 = vunpack.c.l.b16 %v44
    %v654 = vunpack.c.h.b16 %v44
    %v655 = vunpack.c.l.b16 %v45
    %v656 = vunpack.c.h.b16 %v45
    %v657 = vunpack.c.l.b16 %v46
    %v658 = vunpack.c.h.b16 %v46
    %v659 = vunpack.c.l.b16 %v47
    %v660 = vunpack.c.h.b16 %v47
    %v661 = vunpack.c.l.b16 %v48
    %v662 = vunpack.c.h.b16 %v48
    %v663 = vunpack.c.l.b16 %v49
    %v664 = vunpack.c.h.b16 %v49
    %v665 = vunpack.c.l.b16 %v50
    %v666 = vunpack.c.h.b16 %v50
    %v667 = vunpack.c.l.b16 %v51
    %v668 = vunpack.c.h.b16 %v51
    %v669 = vunpack.c.l.b16 %v52
    %v670 = vunpack.c.h.b16 %v52
    %v671 = vunpack.c.l.b16 %v53
    %v672 = vunpack.c.h.b16 %v53
    %v673 = vunpack.c.l.b16 %v54
    %v674 = vunpack.c.h.b16 %v54
    %v675 = vunpack.c.l.b16 %v55
    %v676 = vunpack.c.h.b16 %v55
    %v677 = vunpack.c.l.b16 %v56
    %v678 = vunpack.c.h.b16 %v56
    %v679 = vunpack.c.l.b16 %v57
    %v680 = vunpack.c.h.b16 %v57
    %v681 = vunpack.c.l.b16 %v58
    %v682 = vunpack.c.h.b16 %v58
    %v683 = vunpack.c.l.b16 %v59
    %v684 = vunpack.c.h.b16 %v59
    %v685 = vunpack.c.l.b16 %v60
    %v686 = vunpack.c.h.b16 %v60
    %v687 = vunpack.c.l.b16 %v61
    %v688 = vunpack.c.h.b16 %v61
    %v689 = vunpack.c.l.b16 %v62
    %v690 = vunpack.c.h.b16 %v62
    %v691 = vunpack.c.l.b16 %v63
    %v692 = vunpack.c.h.b16 %v63
    %v693 = vunpack.c.l.b16 %v64
    %v694 = vunpack.c.h.b16 %v64
    %v695 = vunpack.c.l.b16 %v65
    %v696 = vunpack.c.h.b16 %v65
    %v697 = vunpack.c.l.b16 %v66
    %v698 = vunpack.c.h.b16 %v66
    %v699 = vunpack.c.l.b16 %v67
    %v700 = vunpack.c.h.b16 %v67
    %v701 = vunpack.c.l.b16 %v68
    %v702 = vunpack.c.h.b16 %v68
    %v703 = vunpack.c.l.b16 %v69
    %v704 = vunpack.c.h.b16 %v69
    %v705 = vunpack.c.l.b16 %v70
    %v706 = vunpack.c.h.b16 %v70
    %v707 = vunpack.c.l.b16 %v71
    %v708 = vunpack.c.h.b16 %v71
    %v709 = vunpack.c.l.b16 %v72
    %v710 = vunpack.c.h.b16 %v72
    %v711 = vunpack.c.l.b16 %v73
    %v712 = vunpack.c.h.b16 %v73
    %v713 = vunpack.c.l.b16 %v74
    %v714 = vunpack.c.h.b16 %v74
    %v715 = vunpack.c.l.b16 %v75
    %v716 = vunpack.c.h.b16 %v75
    %v717 = vunpack.c.l.b16 %v76
    %v718 = vunpack.c.h.b16 %v76
    %v719 = vunpack.c.l.b16 %v77
    %v720 = vunpack.c.h.b16 %v77
    %v721 = vunpack.c.l.b16 %v78
    %v722 = vunpack.c.h.b16 %v78
    %v723 = vunpack.c.l.b16 %v79
    %v724 = vunpack.c.h.b16 %v79
    %v725 = vunpack.c.l.b16 %v80
    %v726 = vunpack.c.h.b16 %v80
    %v727 = vunpack.c.l.b16 %v81
    %v728 = vunpack.c.h.b16 %v81
    %v729 = vunpack.c.l.b16 %v82
    %v730 = vunpack.c.h.b16 %v82
    %v731 = vunpack.c.l.b16 %v83
    %v732 = vunpack.c.h.b16 %v83
    %v733 = vunpack.c.l.b16 %v84
    %v734 = vunpack.c.h.b16 %v84
    %v735 = vunpack.c.l.b16 %v85
    %v736 = vunpack.c.h.b16 %v85
    %v737 = vunpack.c.l.b16 %v86
    %v738 = vunpack.c.h.b16 %v86
    %v739 = vunpack.c.l.b16 %v87
    %v740 = vunpack.c.h.b16 %v87
    %v741 = vunpack.c.l.b16 %v88
    %v742 = vunpack.c.h.b16 %v88
    %v743 = vunpack.c.l.b16 %v89
    %v744 = vunpack.c.h.b16 %v89
    %v745 = vunpack.c.l.b16 %v90
    %v746 = vunpack.c.h.b16 %v90
    %v747 = vunpack.c.l.b16 %v91
    %v748 = vunpack.c.h.b16 %v91
    %v749 = vunpack.c.l.b16 %v92
    %v750 = vunpack.c.h.b16 %v92
    %v751 = vunpack.c.l.b16 %v93
    %v752 = vunpack.c.h.b16 %v93
    %v753 = vunpack.c.l.b16 %v94
    %v754 = vunpack.c.h.b16 %v94
    %v755 = vunpack.c.l.b16 %v95
    %v756 = vunpack.c.h.b16 %v95
    %v757 = vunpack.c.l.b16 %v96
    %v758 = vunpack.c.h.b16 %v96
    %v759 = vunpack.c.l.b16 %v97
    %v760 = vunpack.c.h.b16 %v97
    %v761 = vunpack.c.l.b16 %v98
    %v762 = vunpack.c.h.b16 %v98
    %v763 = vunpack.c.l.b16 %v99
    %v764 = vunpack.c.h.b16 %v99
    %v765 = vunpack.c.l.b16 %v100
    %v766 = vunpack.c.h.b16 %v100
    %v767 = vunpack.c.l.b16 %v101
    %v768 = vunpack.c.h.b16 %v101
    %v769 = vunpack.c.l.b16 %v102
    %v770 = vunpack.c.h.b16 %v102
    %v771 = vunpack.c.l.b16 %v103
    %v772 = vunpack.c.h.b16 %v103
    %v773 = vunpack.c.l.b16 %v104
    %v774 = vunpack.c.h.b16 %v104
    %v775 = vunpack.c.l.b16 %v105
    %v776 = vunpack.c.h.b16 %v105
    %v777 = vunpack.c.l.b16 %v106
    %v778 = vunpack.c.h.b16 %v106
    %v779 = vunpack.c.l.b16 %v107
    %v780 = vunpack.c.h.b16 %v107
    %v781 = vunpack.c.l.b16 %v108
    %v782 = vunpack.c.h.b16 %v108
    %v783 = vunpack.c.l.b16 %v109
    %v784 = vunpack.c.h.b16 %v109
    %v785 = vunpack.c.l.b16 %v110
    %v786 = vunpack.c.h.b16 %v110
    %v787 = vunpack.c.l.b16 %v111
    %v788 = vunpack.c.h.b16 %v111
    %v789 = vunpack.c.l.b16 %v112
    %v790 = vunpack.c.h.b16 %v112
    %v791 = vunpack.c.l.b16 %v113
    %v792 = vunpack.c.h.b16 %v113
    %v793 = vunpack.c.l.b16 %v114
    %v794 = vunpack.c.h.b16 %v114
    %v795 = vunpack.c.l.b16 %v115
    %v796 = vunpack.c.h.b16 %v115
    %v797 = vunpack.c.l.b16 %v116
    %v798 = vunpack.c.h.b16 %v116
    %v799 = vunpack.c.l.b16 %v117
    %v800 = vunpack.c.h.b16 %v117
    %v801 = vunpack.c.l.b16 %v118
    %v802 = vunpack.c.h.b16 %v118
    %v803 = vunpack.c.l.b16 %v119
    %v804 = vunpack.c.h.b16 %v119
    %v805 = vunpack.c.l.b16 %v120
    %v806 = vunpack.c.h.b16 %v120
    %v807 = vunpack.c.l.b16 %v121
    %v808 = vunpack.c.h.b16 %v121
    %v809 = vunpack.c.l.b16 %v122
    %v810 = vunpack.c.h.b16 %v122
    %v811 = vunpack.c.l.b16 %v123
    %v812 = vunpack.c.h.b16 %v123
    %v813 = vunpack.c.l.b16 %v124
    %v814 = vunpack.c.h.b16 %v124
    %v815 = vunpack.c.l.b16 %v125
    %v816 = vunpack.c.h.b16 %v125
    %v817 = vunpack.c.l.b16 %v126
    %v818 = vunpack.c.h.b16 %v126
    %v819 = vunpack.c.l.b16 %v127
    %v820 = vunpack.c.h.b16 %v127
    %v821 = vunpack.c.l.b16 %v128
    %v822 = vunpack.c.h.b16 %v128
    %v823 = vunpack.c.l.b16 %v129
    %v824 = vunpack.c.h.b16 %v129
    %v825 = vunpack.c.l.b16 %v130
    %v826 = vunpack.c.h.b16 %v130
    %v827 = vunpack.c.l.b16 %v131
    %v828 = vunpack.c.h.b16 %v131
    %v829 = vunpack.c.l.b16 %v132
    %v830 = vunpack.c.h.b16 %v132
    %v831 = vunpack.c.l.b16 %v133
    %v832 = vunpack.c.h.b16 %v133
    %v833 = vunpack.c.l.b16 %v134
    %v834 = vunpack.c.h.b16 %v134
    %v835 = vunpack.c.l.b16 %v135
    %v836 = vunpack.c.h.b16 %v135
    %v837 = vunpack.c.l.b16 %v136
    %v838 = vunpack.c.h.b16 %v136
    %v839 = vunpack.c.l.b16 %v137
    %v840 = vunpack.c.h.b16 %v137
    %v841 = vunpack.c.l.b16 %v138
    %v842 = vunpack.c.h.b16 %v138
    %v843 = vunpack.c.l.b16 %v139
    %v844 = vunpack.c.h.b16 %v139
    %v845 = vunpack.c.l.b16 %v140
    %v846 = vunpack.c.h.b16 %v140
    %v847 = vunpack.c.l.b16 %v141
    %v848 = vunpack.c.h.b16 %v141
    %v849 = vunpack.c.l.b16 %v142
    %v850 = vunpack.c.h.b16 %v142
    %v851 = vunpack.c.l.b16 %v143
    %v852 = vunpack.c.h.b16 %v143
    %v853 = vunpack.c.l.b16 %v144
    %v854 = vunpack.c.h.b16 %v144
    %v855 = vunpack.c.l.b16 %v145
    %v856 = vunpack.c.h.b16 %v145
    %v857 = vunpack.c.l.b16 %v146
    %v858 = vunpack.c.h.b16 %v146
    %v859 = vunpack.c.l.b16 %v147
    %v860 = vunpack.c.h.b16 %v147
    %v861 = vunpack.c.l.b16 %v148
    %v862 = vunpack.c.h.b16 %v148
    %v863 = vunpack.c.l.b16 %v149
    %v864 = vunpack.c.h.b16 %v149
    %v865 = vunpack.c.l.b16 %v150
    %v866 = vunpack.c.h.b16 %v150
    %v867 = vunpack.c.l.b16 %v151
    %v868 = vunpack.c.h.b16 %v151
    %v869 = vunpack.c.l.b16 %v152
    %v870 = vunpack.c.h.b16 %v152
    %v871 = vunpack.c.l.b16 %v153
    %v872 = vunpack.c.h.b16 %v153
    %v873 = vunpack.c.l.b16 %v154
    %v874 = vunpack.c.h.b16 %v154
    %v875 = vunpack.c.l.b16 %v155
    %v876 = vunpack.c.h.b16 %v155
    %v877 = vunpack.c.l.b16 %v156
    %v878 = vunpack.c.h.b16 %v156
    %v879 = vunpack.c.l.b16 %v157
    %v880 = vunpack.c.h.b16 %v157
    %v881 = vunpack.c.l.b16 %v158
    %v882 = vunpack.c.h.b16 %v158
    %v883 = vunpack.c.l.b16 %v159
    %v884 = vunpack.c.h.b16 %v159
    %v885 = vunpack.c.l.b16 %v160
    %v886 = vunpack.c.h.b16 %v160
    %v887 = vunpack.c.l.b16 %v161
    %v888 = vunpack.c.h.b16 %v161
    %v889 = vunpack.c.l.b16 %v162
    %v890 = vunpack.c.h.b16 %v162
    %v891 = vunpack.c.l.b16 %v163
    %v892 = vunpack.c.h.b16 %v163
    %v893 = vunpack.c.l.b16 %v164
    %v894 = vunpack.c.h.b16 %v164
    %v895 = vunpack.c.l.b16 %v165
    %v896 = vunpack.c.h.b16 %v165
    %v897 = vunpack.c.l.b16 %v166
    %v898 = vunpack.c.h.b16 %v166
    %v899 = vunpack.c.l.b16 %v167
    %v900 = vunpack.c.h.b16 %v167
    %v901 = vunpack.c.l.b16 %v168
    %v902 = vunpack.c.h.b16 %v168
    %v903 = vunpack.c.l.b16 %v169
    %v904 = vunpack.c.h.b16 %v169
    %v905 = vunpack.c.l.b16 %v170
    %v906 = vunpack.c.h.b16 %v170
    %v907 = vunpack.c.l.b16 %v171
    %v908 = vunpack.c.h.b16 %v171
    %v909 = vunpack.c.l.b16 %v172
    %v910 = vunpack.c.h.b16 %v172
    %v911 = vunpack.c.l.b16 %v173
    %v912 = vunpack.c.h.b16 %v173
    %v913 = vunpack.c.l.b16 %v174
    %v914 = vunpack.c.h.b16 %v174
    %v915 = vunpack.c.l.b16 %v175
    %v916 = vunpack.c.h.b16 %v175
    %v917 = vunpack.c.l.b16 %v176
    %v918 = vunpack.c.h.b16 %v176
    %v919 = vunpack.c.l.b16 %v177
    %v920 = vunpack.c.h.b16 %v177
    %v921 = vunpack.c.l.b16 %v178
    %v922 = vunpack.c.h.b16 %v178
    %v923 = vunpack.c.l.b16 %v179
    %v924 = vunpack.c.h.b16 %v179
    %v925 = vunpack.c.l.b16 %v180
    %v926 = vunpack.c.h.b16 %v180
    %v927 = vunpack.c.l.b16 %v181
    %v928 = vunpack.c.h.b16 %v181
    %v929 = vunpack.c.l.b16 %v182
    %v930 = vunpack.c.h.b16 %v182
    %v931 = vunpack.c.l.b16 %v183
    %v932 = vunpack.c.h.b16 %v183
    %v933 = vunpack.c.l.b16 %v184
    %v934 = vunpack.c.h.b16 %v184
    %v935 = vunpack.c.l.b16 %v185
    %v936 = vunpack.c.h.b16 %v185
    %v937 = vunpack.c.l.b16 %v186
    %v938 = vunpack.c.h.b16 %v186
    %v939 = vunpack.c.l.b16 %v187
    %v940 = vunpack.c.h.b16 %v187
    %v941 = vunpack.c.l.b16 %v188
    %v942 = vunpack.c.h.b16 %v188
    %v943 = vunpack.c.l.b16 %v189
    %v944 = vunpack.c.h.b16 %v189
    %v945 = vunpack.c.l.b16 %v190
    %v946 = vunpack.c.h.b16 %v190
    %v947 = vunpack.c.l.b16 %v191
    %v948 = vunpack.c.h.b16 %v191
    %v949 = vunpack.c.l.b16 %v192
    %v950 = vunpack.c.h.b16 %v192
    %v951 = vunpack.c.l.b16 %v193
    %v952 = vunpack.c.h.b16 %v193
    %v953 = vunpack.c.l.b16 %v194
    %v954 = vunpack.c.h.b16 %v194
    %v955 = vunpack.c.l.b16 %v195
    %v956 = vunpack.c.h.b16 %v195
    %v957 = vunpack.c.l.b16 %v196
    %v958 = vunpack.c.h.b16 %v196
    %v959 = vunpack.c.l.b16 %v197
    %v960 = vunpack.c.h.b16 %v197
    %v961 = vunpack.c.l.b16 %v198
    %v962 = vunpack.c.h.b16 %v198
    %v963 = vunpack.c.l.b16 %v199
    %v964 = vunpack.c.h.b16 %v199
    %v965 = vunpack.c.l.b16 %v200
    %v966 = vunpack.c.h.b16 %v200
    %v967 = vunpack.c.l.b16 %v201
    %v968 = vunpack.c.h.b16 %v201
    %v969 = vunpack.c.l.b16 %v202
    %v970 = vunpack.c.h.b16 %v202
    %v971 = vunpack.c.l.b16 %v203
    %v972 = vunpack.c.h.b16 %v203
    %v973 = vunpack.c.l.b16 %v204
    %v974 = vunpack.c.h.b16 %v204
    %v975 = vunpack.c.l.b16 %v205
    %v976 = vunpack.c.h.b16 %v205
    %v977 = vunpack.c.l.b16 %v206
    %v978 = vunpack.c.h.b16 %v206
    %v979 = vunpack.c.l.b16 %v207
    %v980 = vunpack.c.h.b16 %v207
    %v981 = vunpack.c.l.b16 %v208
    %v982 = vunpack.c.h.b16 %v208
    %v983 = vunpack.c.l.b16 %v209
    %v984 = vunpack.c.h.b16 %v209
    %v985 = vunpack.c.l.b16 %v210
    %v986 = vunpack.c.h.b16 %v210
    %v987 = vunpack.c.l.b16 %v211
    %v988 = vunpack.c.h.b16 %v211
    %v989 = vunpack.c.l.b16 %v212
    %v990 = vunpack.c.h.b16 %v212
    %v991 = vunpack.c.l.b16 %v213
    %v992 = vunpack.c.h.b16 %v213
    %v993 = vunpack.c.l.b16 %v214
    %v994 = vunpack.c.h.b16 %v214
    %v995 = vunpack.c.l.b16 %v215
    %v996 = vunpack.c.h.b16 %v215
    %v997 = vunpack.c.l.b16 %v216
    %v998 = vunpack.c.h.b16 %v216
    %v999 = vunpack.c.l.b16 %v217
    %v1000 = vunpack.c.h.b16 %v217
    %v1001 = vunpack.c.l.b16 %v218
    %v1002 = vunpack.c.h.b16 %v218
    %v1003 = vunpack.c.l.b16 %v219
    %v1004 = vunpack.c.h.b16 %v219
    %v1005 = vunpack.c.l.b16 %v220
    %v1006 = vunpack.c.h.b16 %v220
    %v1007 = vunpack.c.l.b16 %v221
    %v1008 = vunpack.c.h.b16 %v221
    %v1009 = vunpack.c.l.b16 %v222
    %v1010 = vunpack.c.h.b16 %v222
    %v1011 = vunpack.c.l.b16 %v223
    %v1012 = vunpack.c.h.b16 %v223
    %v1013 = vunpack.c.l.b16 %v224
    %v1014 = vunpack.c.h.b16 %v224
    %v1015 = vunpack.c.l.b16 %v225
    %v1016 = vunpack.c.h.b16 %v225
    %v1017 = vunpack.c.l.b16 %v226
    %v1018 = vunpack.c.h.b16 %v226
    %v1019 = vunpack.c.l.b16 %v227
    %v1020 = vunpack.c.h.b16 %v227
    %v1021 = vunpack.c.l.b16 %v228
    %v1022 = vunpack.c.h.b16 %v228
    %v1023 = vunpack.c.l.b16 %v229
    %v1024 = vunpack.c.h.b16 %v229
    %v1025 = vunpack.c.l.b16 %v230
    %v1026 = vunpack.c.h.b16 %v230
    %v1027 = vunpack.c.l.b16 %v231
    %v1028 = vunpack.c.h.b16 %v231
    %v1029 = vunpack.c.l.b16 %v232
    %v1030 = vunpack.c.h.b16 %v232
    %v1031 = vunpack.c.l.b16 %v233
    %v1032 = vunpack.c.h.b16 %v233
    %v1033 = vunpack.c.l.b16 %v234
    %v1034 = vunpack.c.h.b16 %v234
    %v1035 = vunpack.c.l.b16 %v235
    %v1036 = vunpack.c.h.b16 %v235
    %v1037 = vunpack.c.l.b16 %v236
    %v1038 = vunpack.c.h.b16 %v236
    %v1039 = vunpack.c.l.b16 %v237
    %v1040 = vunpack.c.h.b16 %v237
    %v1041 = vunpack.c.l.b16 %v238
    %v1042 = vunpack.c.h.b16 %v238
    %v1043 = vunpack.c.l.b16 %v239
    %v1044 = vunpack.c.h.b16 %v239
    %v1045 = vunpack.c.l.b16 %v240
    %v1046 = vunpack.c.h.b16 %v240
    %v1047 = vunpack.c.l.b16 %v241
    %v1048 = vunpack.c.h.b16 %v241
    %v1049 = vunpack.c.l.b16 %v242
    %v1050 = vunpack.c.h.b16 %v242
    %v1051 = vunpack.c.l.b16 %v243
    %v1052 = vunpack.c.h.b16 %v243
    %v1053 = vunpack.c.l.b16 %v244
    %v1054 = vunpack.c.h.b16 %v244
    %v1055 = vunpack.c.l.b16 %v245
    %v1056 = vunpack.c.h.b16 %v245
    %v1057 = vunpack.c.l.b16 %v246
    %v1058 = vunpack.c.h.b16 %v246
    %v1059 = vunpack.c.l.b16 %v247
    %v1060 = vunpack.c.h.b16 %v247
    %v1061 = vunpack.c.l.b16 %v248
    %v1062 = vunpack.c.h.b16 %v248
    %v1063 = vunpack.c.l.b16 %v249
    %v1064 = vunpack.c.h.b16 %v249
    %v1065 = vunpack.c.l.b16 %v250
    %v1066 = vunpack.c.h.b16 %v250
    %v1067 = vunpack.c.l.b16 %v251
    %v1068 = vunpack.c.h.b16 %v251
    %v1069 = vunpack.c.l.b16 %v252
    %v1070 = vunpack.c.h.b16 %v252
    %v1071 = vunpack.c.l.b16 %v253
    %v1072 = vunpack.c.h.b16 %v253
    %v1073 = vunpack.c.l.b16 %v254
    %v1074 = vunpack.c.h.b16 %v254
    %v1075 = vunpack.c.l.b16 %v255
    %v1076 = vunpack.c.h.b16 %v255
    %v1077 = vunpack.c.l.b16 %v256
    %v1078 = vunpack.c.h.b16 %v256
    %v1079 = vunpack.c.l.b16 %v257
    %v1080 = vunpack.c.h.b16 %v257
    %v1081 = vunpack.c.l.b16 %v258
    %v1082 = vunpack.c.h.b16 %v258
    %v1083 = vunpack.c.l.b16 %v259
    %v1084 = vunpack.c.h.b16 %v259
    %v1085 = vunpack.c.l.b16 %v260
    %v1086 = vunpack.c.h.b16 %v260
    %v1087 = vunpack.c.l.b16 %v261
    %v1088 = vunpack.c.h.b16 %v261
    %v1089 = vunpack.c.l.b16 %v262
    %v1090 = vunpack.c.h.b16 %v262
    %v1091 = vunpack.c.l.b16 %v263
    %v1092 = vunpack.c.h.b16 %v263
    %v1093 = vunpack.c.l.b16 %v264
    %v1094 = vunpack.c.h.b16 %v264
    %v1095 = vunpack.c.l.b16 %v265
    %v1096 = vunpack.c.h.b16 %v265
    %v1097 = vunpack.c.l.b16 %v266
    %v1098 = vunpack.c.h.b16 %v266
    %v1099 = vunpack.c.l.b16 %v267
    %v1100 = vunpack.c.h.b16 %v267
    %v1101 = vunpack.c.l.b16 %v268
    %v1102 = vunpack.c.h.b16 %v268
    %v1103 = vunpack.c.l.b16 %v269
    %v1104 = vunpack.c.h.b16 %v269
    %v1105 = vunpack.c.l.b16 %v270
    %v1106 = vunpack.c.h.b16 %v270
    %v1107 = vunpack.c.l.b16 %v271
    %v1108 = vunpack.c.h.b16 %v271
    %v1109 = vunpack.c.l.b16 %v272
    %v1110 = vunpack.c.h.b16 %v272
    %v1111 = vunpack.c.l.b16 %v273
    %v1112 = vunpack.c.h.b16 %v273
    %v1113 = vunpack.c.l.b16 %v274
    %v1114 = vunpack.c.h.b16 %v274
    %v1115 = vunpack.c.l.b16 %v275
    %v1116 = vunpack.c.h.b16 %v275
    %v1117 = vunpack.c.l.b16 %v276
    %v1118 = vunpack.c.h.b16 %v276
    %v1119 = vunpack.c.l.b16 %v277
    %v1120 = vunpack.c.h.b16 %v277
    %v1121 = vunpack.c.l.b16 %v278
    %v1122 = vunpack.c.h.b16 %v278
    %v1123 = vunpack.c.l.b16 %v279
    %v1124 = vunpack.c.h.b16 %v279
    %v1125 = vunpack.c.l.b16 %v280
    %v1126 = vunpack.c.h.b16 %v280
    %v1127 = vunpack.c.l.b16 %v281
    %v1128 = vunpack.c.h.b16 %v281
    %v1129 = vunpack.c.l.b16 %v282
    %v1130 = vunpack.c.h.b16 %v282
    %v1131 = vunpack.c.l.b16 %v283
    %v1132 = vunpack.c.h.b16 %v283
    %v1133 = vunpack.c.l.b16 %v284
    %v1134 = vunpack.c.h.b16 %v284
    %v1135 = vunpack.c.l.b16 %v285
    %v1136 = vunpack.c.h.b16 %v285
    %v1137 = vunpack.c.l.b16 %v286
    %v1138 = vunpack.c.h.b16 %v286
    %v1139 = vunpack.c.l.b16 %v287
    %v1140 = vunpack.c.h.b16 %v287
    %v1141 = vunpack.c.l.b16 %v288
    %v1142 = vunpack.c.h.b16 %v288
    %v1143 = vunpack.c.l.b16 %v289
    %v1144 = vunpack.c.h.b16 %v289
    %v1145 = vunpack.c.l.b16 %v290
    %v1146 = vunpack.c.h.b16 %v290
    %v1147 = vunpack.c.l.b16 %v291
    %v1148 = vunpack.c.h.b16 %v291
    %v1149 = vunpack.c.l.b16 %v292
    %v1150 = vunpack.c.h.b16 %v292
    %v1151 = vunpack.c.l.b16 %v293
    %v1152 = vunpack.c.h.b16 %v293
    %v1153 = vunpack.c.l.b16 %v294
    %v1154 = vunpack.c.h.b16 %v294
    %v1155 = vunpack.c.l.b16 %v295
    %v1156 = vunpack.c.h.b16 %v295
    %v1157 = vunpack.c.l.b16 %v296
    %v1158 = vunpack.c.h.b16 %v296
    %v1159 = vunpack.c.l.b16 %v297
    %v1160 = vunpack.c.h.b16 %v297
    %v1161 = vunpack.c.l.b16 %v298
    %v1162 = vunpack.c.h.b16 %v298
    %v1163 = vunpack.c.l.b16 %v299
    %v1164 = vunpack.c.h.b16 %v299
    %v1165 = vunpack.c.l.b16 %v300
    %v1166 = vunpack.c.h.b16 %v300
    %v1167 = vunpack.c.l.b16 %v301
    %v1168 = vunpack.c.h.b16 %v301
    %v1169 = vunpack.c.l.b16 %v302
    %v1170 = vunpack.c.h.b16 %v302
    %v1171 = vunpack.c.l.b16 %v303
    %v1172 = vunpack.c.h.b16 %v303
    %v1173 = vunpack.c.l.b16 %v304
    %v1174 = vunpack.c.h.b16 %v304
    %v1175 = vunpack.c.l.b16 %v305
    %v1176 = vunpack.c.h.b16 %v305
    %v1177 = vunpack.c.l.b16 %v306
    %v1178 = vunpack.c.h.b16 %v306
    %v1179 = vunpack.c.l.b16 %v307
    %v1180 = vunpack.c.h.b16 %v307
    %v1181 = vunpack.c.l.b16 %v308
    %v1182 = vunpack.c.h.b16 %v308
    %v1183 = vunpack.c.l.b16 %v309
    %v1184 = vunpack.c.h.b16 %v309
    %v1185 = vunpack.c.l.b16 %v310
    %v1186 = vunpack.c.h.b16 %v310
    %v1187 = vunpack.c.l.b16 %v311
    %v1188 = vunpack.c.h.b16 %v311
    %v1189 = vunpack.c.l.b16 %v312
    %v1190 = vunpack.c.h.b16 %v312
    %v1191 = vunpack.c.l.b16 %v313
    %v1192 = vunpack.c.h.b16 %v313
    %v1193 = vunpack.c.l.b16 %v314
    %v1194 = vunpack.c.h.b16 %v314
    %v1195 = vunpack.c.l.b16 %v315
    %v1196 = vunpack.c.h.b16 %v315
    %v1197 = vunpack.c.l.b16 %v316
    %v1198 = vunpack.c.h.b16 %v316
    %v1199 = vunpack.c.l.b16 %v317
    %v1200 = vunpack.c.h.b16 %v317
    %v1201 = vunpack.c.l.b16 %v318
    %v1202 = vunpack.c.h.b16 %v318
    %v1203 = vunpack.c.l.b16 %v319
    %v1204 = vunpack.c.h.b16 %v319
    %v1205 = vunpack.c.l.b16 %v320
    %v1206 = vunpack.c.h.b16 %v320
    %v1207 = vunpack.c.l.b16 %v321
    %v1208 = vunpack.c.h.b16 %v321
    %v1209 = vunpack.c.l.b16 %v322
    %v1210 = vunpack.c.h.b16 %v322
    %v1211 = vunpack.c.l.b16 %v323
    %v1212 = vunpack.c.h.b16 %v323
    %v1213 = vunpack.c.l.b16 %v324
    %v1214 = vunpack.c.h.b16 %v324
    %v1215 = vunpack.c.l.b16 %v325
    %v1216 = vunpack.c.h.b16 %v325
    %v1217 = vunpack.c.l.b16 %v326
    %v1218 = vunpack.c.h.b16 %v326
    %v1219 = vpack.c.b16 %v655, %v643
    %v1220 = vpack.c.b16 %v656, %v644
    %v1221 = vpack.c.b16 %v657, %v645
    %v1222 = vpack.c.b16 %v658, %v646
    %v1223 = vpack.c.b16 %v659, %v647
    %v1224 = vpack.c.b16 %v660, %v648
    %v1225 = vpack.c.b16 %v661, %v649
    %v1226 = vpack.c.b16 %v662, %v650
    %v1227 = vpack.c.b16 %v663, %v651
    %v1228 = vpack.c.b16 %v664, %v652
    %v1229 = vpack.c.b16 %v665, %v653
    %v1230 = vpack.c.b16 %v666, %v654
    %v1231 = vpack.c.b16 %v679, %v667
    %v1232 = vpack.c.b16 %v680, %v668
    %v1233 = vpack.c.b16 %v681, %v669
    %v1234 = vpack.c.b16 %v682, %v670
    %v1235 = vpack.c.b16 %v683, %v671
    %v1236 = vpack.c.b16 %v684, %v672
    %v1237 = vpack.c.b16 %v685, %v673
    %v1238 = vpack.c.b16 %v686, %v674
    %v1239 = vpack.c.b16 %v687, %v675
    %v1240 = vpack.c.b16 %v688, %v676
    %v1241 = vpack.c.b16 %v689, %v677
    %v1242 = vpack.c.b16 %v690, %v678
    %v1243 = vpack.c.b16 %v703, %v691
    %v1244 = vpack.c.b16 %v704, %v692
    %v1245 = vpack.c.b16 %v705, %v693
    %v1246 = vpack.c.b16 %v706, %v694
    %v1247 = vpack.c.b16 %v707, %v695
    %v1248 = vpack.c.b16 %v708, %v696
    %v1249 = vpack.c.b16 %v709, %v697
    %v1250 = vpack.c.b16 %v710, %v698
    %v1251 = vpack.c.b16 %v711, %v699
    %v1252 = vpack.c.b16 %v712, %v700
    %v1253 = vpack.c.b16 %v713, %v701
    %v1254 = vpack.c.b16 %v714, %v702
    %v1255 = vpack.c.b16 %v727, %v715
    %v1256 = vpack.c.b16 %v728, %v716
    %v1257 = vpack.c.b16 %v729, %v717
    %v1258 = vpack.c.b16 %v730, %v718
    %v1259 = vpack.c.b16 %v731, %v719
    %v1260 = vpack.c.b16 %v732, %v720
    %v1261 = vpack.c.b16 %v733, %v721
    %v1262 = vpack.c.b16 %v734, %v722
    %v1263 = vpack.c.b16 %v735, %v723
    %v1264 = vpack.c.b16 %v736, %v724
    %v1265 = vpack.c.b16 %v737, %v725
    %v1266 = vpack.c.b16 %v738, %v726
    %v1267 = vpack.c.b16 %v751, %v739
    %v1268 = vpack.c.b16 %v752, %v740
    %v1269 = vpack.c.b16 %v753, %v741
    %v1270 = vpack.c.b16 %v754, %v742
    %v1271 = vpack.c.b16 %v755, %v743
    %v1272 = vpack.c.b16 %v756, %v744
    %v1273 = vpack.c.b16 %v757, %v745
    %v1274 = vpack.c.b16 %v758, %v746
    %v1275 = vpack.c.b16 %v759, %v747
    %v1276 = vpack.c.b16 %v760, %v748
    %v1277 = vpack.c.b16 %v761, %v749
    %v1278 = vpack.c.b16 %v762, %v750
    %v1279 = vpack.c.b16 %v775, %v763
    %v1280 = vpack.c.b16 %v776, %v764
    %v1281 = vpack.c.b16 %v777, %v765
    %v1282 = vpack.c.b16 %v778, %v766
    %v1283 = vpack.c.b16 %v779, %v767
    %v1284 = vpack.c.b16 %v780, %v768
    %v1285 = vpack.c.b16 %v781, %v769
    %v1286 = vpack.c.b16 %v782, %v770
    %v1287 = vpack.c.b16 %v783, %v771
    %v1288 = vpack.c.b16 %v784, %v772
    %v1289 = vpack.c.b16 %v785, %v773
    %v1290 = vpack.c.b16 %v786, %v774
    %v1291 = vpack.c.b16 %v799, %v787
    %v1292 = vpack.c.b16 %v800, %v788
    %v1293 = vpack.c.b16 %v801, %v789
    %v1294 = vpack.c.b16 %v802, %v790
    %v1295 = vpack.c.b16 %v803, %v791
    %v1296 = vpack.c.b16 %v804, %v792
    %v1297 = vpack.c.b16 %v805, %v793
    %v1298 = vpack.c.b16 %v806, %v794
    %v1299 = vpack.c.b16 %v807, %v795
    %v1300 = vpack.c.b16 %v808, %v796
    %v1301 = vpack.c.b16 %v809, %v797
    %v1302 = vpack.c.b16 %v810, %v798
    %v1303 = vpack.c.b16 %v823, %v811
    %v1304 = vpack.c.b16 %v824, %v812
    %v1305 = vpack.c.b16 %v825, %v813
    %v1306 = vpack.c.b16 %v826, %v814
    %v1307 = vpack.c.b16 %v827, %v815
    %v1308 = vpack.c.b16 %v828, %v816
    %v1309 = vpack.c.b16 %v829, %v817
    %v1310 = vpack.c.b16 %v830, %v818
    %v1311 = vpack.c.b16 %v831, %v819
    %v1312 = vpack.c.b16 %v832, %v820
    %v1313 = vpack.c.b16 %v833, %v821
    %v1314 = vpack.c.b16 %v834, %v822
    %v1315 = vpack.c.b16 %v847, %v835
    %v1316 = vpack.c.b16 %v848, %v836
    %v1317 = vpack.c.b16 %v849, %v837
    %v1318 = vpack.c.b16 %v850, %v838
    %v1319 = vpack.c.b16 %v851, %v839
    %v1320 = vpack.c.b16 %v852, %v840
    %v1321 = vpack.c.b16 %v853, %v841
    %v1322 = vpack.c.b16 %v854, %v842
    %v1323 = vpack.c.b16 %v855, %v843
    %v1324 = vpack.c.b16 %v856, %v844
    %v1325 = vpack.c.b16 %v857, %v845
    %v1326 = vpack.c.b16 %v858, %v846
    %v1327 = vpack.c.b16 %v871, %v859
    %v1328 = vpack.c.b16 %v872, %v860
    %v1329 = vpack.c.b16 %v873, %v861
    %v1330 = vpack.c.b16 %v874, %v862
    %v1331 = vpack.c.b16 %v875, %v863
    %v1332 = vpack.c.b16 %v876, %v864
    %v1333 = vpack.c.b16 %v877, %v865
    %v1334 = vpack.c.b16 %v878, %v866
    %v1335 = vpack.c.b16 %v879, %v867
    %v1336 = vpack.c.b16 %v880, %v868
    %v1337 = vpack.c.b16 %v881, %v869
    %v1338 = vpack.c.b16 %v882, %v870
    %v1339 = vpack.c.b16 %v895, %v883
    %v1340 = vpack.c.b16 %v896, %v884
    %v1341 = vpack.c.b16 %v897, %v885
    %v1342 = vpack.c.b16 %v898, %v886
    %v1343 = vpack.c.b16 %v899, %v887
    %v1344 = vpack.c.b16 %v900, %v888
    %v1345 = vpack.c.b16 %v901, %v889
    %v1346 = vpack.c.b16 %v902, %v890
    %v1347 = vpack.c.b16 %v903, %v891
    %v1348 = vpack.c.b16 %v904, %v892
    %v1349 = vpack.c.b16 %v905, %v893
    %v1350 = vpack.c.b16 %v906, %v894
    %v1351 = vpack.c.b16 %v919, %v907
    %v1352 = vpack.c.b16 %v920, %v908
    %v1353 = vpack.c.b16 %v921, %v909
    %v1354 = vpack.c.b16 %v922, %v910
    %v1355 = vpack.c.b16 %v923, %v911
    %v1356 = vpack.c.b16 %v924, %v912
    %v1357 = vpack.c.b16 %v925, %v913
    %v1358 = vpack.c.b16 %v926, %v914
    %v1359 = vpack.c.b16 %v927, %v915
    %v1360 = vpack.c.b16 %v928, %v916
    %v1361 = vpack.c.b16 %v929, %v917
    %v1362 = vpack.c.b16 %v930, %v918
    %v1363 = vpack.c.b16 %v943, %v931
    %v1364 = vpack.c.b16 %v944, %v932
    %v1365 = vpack.c.b16 %v945, %v933
    %v1366 = vpack.c.b16 %v946, %v934
    %v1367 = vpack.c.b16 %v947, %v935
    %v1368 = vpack.c.b16 %v948, %v936
    %v1369 = vpack.c.b16 %v949, %v937
    %v1370 = vpack.c.b16 %v950, %v938
    %v1371 = vpack.c.b16 %v951, %v939
    %v1372 = vpack.c.b16 %v952, %v940
    %v1373 = vpack.c.b16 %v953, %v941
    %v1374 = vpack.c.b16 %v954, %v942
    %v1375 = vpack.c.b16 %v967, %v955
    %v1376 = vpack.c.b16 %v968, %v956
    %v1377 = vpack.c.b16 %v969, %v957
    %v1378 = vpack.c.b16 %v970, %v958
    %v1379 = vpack.c.b16 %v971, %v959
    %v1380 = vpack.c.b16 %v972, %v960
    %v1381 = vpack.c.b16 %v973, %v961
    %v1382 = vpack.c.b16 %v974, %v962
    %v1383 = vpack.c.b16 %v975, %v963
    %v1384 = vpack.c.b16 %v976, %v964
    %v1385 = vpack.c.b16 %v977, %v965
    %v1386 = vpack.c.b16 %v978, %v966
    %v1387 = vpack.c.b16 %v991, %v979
    %v1388 = vpack.c.b16 %v992, %v980
    %v1389 = vpack.c.b16 %v993, %v981
    %v1390 = vpack.c.b16 %v994, %v982
    %v1391 = vpack.c.b16 %v995, %v983
    %v1392 = vpack.c.b16 %v996, %v984
    %v1393 = vpack.c.b16 %v997, %v985
    %v1394 = vpack.c.b16 %v998, %v986
    %v1395 = vpack.c.b16 %v999, %v987
    %v1396 = vpack.c.b16 %v1000, %v988
    %v1397 = vpack.c.b16 %v1001, %v989
    %v1398 = vpack.c.b16 %v1002, %v990
    %v1399 = vpack.c.b16 %v1015, %v1003
    %v1400 = vpack.c.b16 %v1016, %v1004
    %v1401 = vpack.c.b16 %v1017, %v1005
    %v1402 = vpack.c.b16 %v1018, %v1006
    %v1403 = vpack.c.b16 %v1019, %v1007
    %v1404 = vpack.c.b16 %v1020, %v1008
    %v1405 = vpack.c.b16 %v1021, %v1009
    %v1406 = vpack.c.b16 %v1022, %v1010
    %v1407 = vpack.c.b16 %v1023, %v1011
    %v1408 = vpack.c.b16 %v1024, %v1012
    %v1409 = vpack.c.b16 %v1025, %v1013
    %v1410 = vpack.c.b16 %v1026, %v1014
    %v1411 = vpack.c.b16 %v1039, %v1027
    %v1412 = vpack.c.b16 %v1040, %v1028
    %v1413 = vpack.c.b16 %v1041, %v1029
    %v1414 = vpack.c.b16 %v1042, %v1030
    %v1415 = vpack.c.b16 %v1043, %v1031
    %v1416 = vpack.c.b16 %v1044, %v1032
    %v1417 = vpack.c.b16 %v1045, %v1033
    %v1418 = vpack.c.b16 %v1046, %v1034
    %v1419 = vpack.c.b16 %v1047, %v1035
    %v1420 = vpack.c.b16 %v1048, %v1036
    %v1421 = vpack.c.b16 %v1049, %v1037
    %v1422 = vpack.c.b16 %v1050, %v1038
    %v1423 = vpack.c.b16 %v1063, %v1051
    %v1424 = vpack.c.b16 %v1064, %v1052
    %v1425 = vpack.c.b16 %v1065, %v1053
    %v1426 = vpack.c.b16 %v1066, %v1054
    %v1427 = vpack.c.b16 %v1067, %v1055
    %v1428 = vpack.c.b16 %v1068, %v1056
    %v1429 = vpack.c.b16 %v1069, %v1057
    %v1430 = vpack.c.b16 %v1070, %v1058
    %v1431 = vpack.c.b16 %v1071, %v1059
    %v1432 = vpack.c.b16 %v1072, %v1060
    %v1433 = vpack.c.b16 %v1073, %v1061
    %v1434 = vpack.c.b16 %v1074, %v1062
    %v1435 = vpack.c.b16 %v1087, %v1075
    %v1436 = vpack.c.b16 %v1088, %v1076
    %v1437 = vpack.c.b16 %v1089, %v1077
    %v1438 = vpack.c.b16 %v1090, %v1078
    %v1439 = vpack.c.b16 %v1091, %v1079
    %v1440 = vpack.c.b16 %v1092, %v1080
    %v1441 = vpack.c.b16 %v1093, %v1081
    %v1442 = vpack.c.b16 %v1094, %v1082
    %v1443 = vpack.c.b16 %v1095, %v1083
    %v1444 = vpack.c.b16 %v1096, %v1084
    %v1445 = vpack.c.b16 %v1097, %v1085
    %v1446 = vpack.c.b16 %v1098, %v1086
    %v1447 = vpack.c.b16 %v1111, %v1099
    %v1448 = vpack.c.b16 %v1112, %v1100
    %v1449 = vpack.c.b16 %v1113, %v1101
    %v1450 = vpack.c.b16 %v1114, %v1102
    %v1451 = vpack.c.b16 %v1115, %v1103
    %v1452 = vpack.c.b16 %v1116, %v1104
    %v1453 = vpack.c.b16 %v1117, %v1105
    %v1454 = vpack.c.b16 %v1118, %v1106
    %v1455 = vpack.c.b16 %v1119, %v1107
    %v1456 = vpack.c.b16 %v1120, %v1108
    %v1457 = vpack.c.b16 %v1121, %v1109
    %v1458 = vpack.c.b16 %v1122, %v1110
    %v1459 = vpack.c.b16 %v1135, %v1123
    %v1460 = vpack.c.b16 %v1136, %v1124
    %v1461 = vpack.c.b16 %v1137, %v1125
    %v1462 = vpack.c.b16 %v1138, %v1126
    %v1463 = vpack.c.b16 %v1139, %v1127
    %v1464 = vpack.c.b16 %v1140, %v1128
    %v1465 = vpack.c.b16 %v1141, %v1129
    %v1466 = vpack.c.b16 %v1142, %v1130
    %v1467 = vpack.c.b16 %v1143, %v1131
    %v1468 = vpack.c.b16 %v1144, %v1132
    %v1469 = vpack.c.b16 %v1145, %v1133
    %v1470 = vpack.c.b16 %v1146, %v1134
    %v1471 = vpack.c.b16 %v1159, %v1147
    %v1472 = vpack.c.b16 %v1160, %v1148
    %v1473 = vpack.c.b16 %v1161, %v1149
    %v1474 = vpack.c.b16 %v1162, %v1150
    %v1475 = vpack.c.b16 %v1163, %v1151
    %v1476 = vpack.c.b16 %v1164, %v1152
    %v1477 = vpack.c.b16 %v1165, %v1153
    %v1478 = vpack.c.b16 %v1166, %v1154
    %v1479 = vpack.c.b16 %v1167, %v1155
    %v1480 = vpack.c.b16 %v1168, %v1156
    %v1481 = vpack.c.b16 %v1169, %v1157
    %v1482 = vpack.c.b16 %v1170, %v1158
    %v1483 = vpack.c.b16 %v1183, %v1171
    %v1484 = vpack.c.b16 %v1184, %v1172
    %v1485 = vpack.c.b16 %v1185, %v1173
    %v1486 = vpack.c.b16 %v1186, %v1174
    %v1487 = vpack.c.b16 %v1187, %v1175
    %v1488 = vpack.c.b16 %v1188, %v1176
    %v1489 = vpack.c.b16 %v1189, %v1177
    %v1490 = vpack.c.b16 %v1190, %v1178
    %v1491 = vpack.c.b16 %v1191, %v1179
    %v1492 = vpack.c.b16 %v1192, %v1180
    %v1493 = vpack.c.b16 %v1193, %v1181
    %v1494 = vpack.c.b16 %v1194, %v1182
    %v1495 = vpack.c.b16 %v1207, %v1195
    %v1496 = vpack.c.b16 %v1208, %v1196
    %v1497 = vpack.c.b16 %v1209, %v1197
    %v1498 = vpack.c.b16 %v1210, %v1198
    %v1499 = vpack.c.b16 %v1211, %v1199
    %v1500 = vpack.c.b16 %v1212, %v1200
    %v1501 = vpack.c.b16 %v1213, %v1201
    %v1502 = vpack.c.b16 %v1214, %v1202
    %v1503 = vpack.c.b16 %v1215, %v1203
    %v1504 = vpack.c.b16 %v1216, %v1204
    %v1505 = vpack.c.b16 %v1217, %v1205
    %v1506 = vpack.c.b16 %v1218, %v1206
    %1795 = vmatpush.bf16.msra.mxu0 %v1303
    %1796 = vmatpush.bf16.msra.mxu0 %v1291
    %1797 = vmatpush.bf16.msra.mxu0 %v1279
    %1798 = vmatpush.bf16.msra.mxu0 %v1267
    %1799 = vmatpush.bf16.msra.mxu0 %v1255
    %1800 = vmatpush.bf16.msra.mxu0 %v1243
    %1801 = vmatpush.bf16.msra.mxu0 %v1231
    %1802 = vmatpush.bf16.msra.mxu0 %v1219
    %1803 = vmatmul.bf16.gmra.mxu0 %v36
    %v1804 = vpop.f32.mrf.mxu0
    %v1805 = vadd.f32 %v331, %v1804
    %v1806 = vpop.f32.mrf.mxu0
    %v1807 = vadd.f32 %v331, %v1806
    %1808 = vdwg.mxu0
    %1809 = vmatpush.bf16.msra.mxu0 %v1399
    %1810 = vmatpush.bf16.msra.mxu0 %v1387
    %1811 = vmatpush.bf16.msra.mxu0 %v1375
    %1812 = vmatpush.bf16.msra.mxu0 %v1363
    %1813 = vmatpush.bf16.msra.mxu0 %v1351
    %1814 = vmatpush.bf16.msra.mxu0 %v1339
    %1815 = vmatpush.bf16.msra.mxu0 %v1327
    %1816 = vmatpush.bf16.msra.mxu0 %v1315
    %1817 = vmatmul.bf16.gmra.mxu0 %v37
    %v1818 = vpop.f32.mrf.mxu0
    %v1819 = vadd.f32 %v1805, %v1818
    %v1820 = vpop.f32.mrf.mxu0
    %v1821 = vadd.f32 %v1807, %v1820
    %1822 = vdwg.mxu0
    %1823 = vmatpush.bf16.msra.mxu0 %v1495
    %1824 = vmatpush.bf16.msra.mxu0 %v1483
    %1825 = vmatpush.bf16.msra.mxu0 %v1471
    %1826 = vmatpush.bf16.msra.mxu0 %v1459
    %1827 = vmatpush.bf16.msra.mxu0 %v1447
    %1828 = vmatpush.bf16.msra.mxu0 %v1435
    %1829 = vmatpush.bf16.msra.mxu0 %v1423
    %1830 = vmatpush.bf16.msra.mxu0 %v1411
    %1831 = vmatmul.bf16.gmra.mxu0 %v38
    %v1832 = vpop.f32.mrf.mxu0
    %v1833 = vadd.f32 %v1819, %v1832
    %v1834 = vpop.f32.mrf.mxu0
    %v1835 = vadd.f32 %v1821, %v1834
    %1836 = vdwg.mxu0
    %1837 = vmatpush.bf16.msra.mxu0 %v1304
    %1838 = vmatpush.bf16.msra.mxu0 %v1292
    %1839 = vmatpush.bf16.msra.mxu0 %v1280
    %1840 = vmatpush.bf16.msra.mxu0 %v1268
    %1841 = vmatpush.bf16.msra.mxu0 %v1256
    %1842 = vmatpush.bf16.msra.mxu0 %v1244
    %1843 = vmatpush.bf16.msra.mxu0 %v1232
    %1844 = vmatpush.bf16.msra.mxu0 %v1220
    %1845 = vmatmul.bf16.gmra.mxu0 %v36
    %v1846 = vpop.f32.mrf.mxu0
    %v1847 = vadd.f32 %v332, %v1846
    %v1848 = vpop.f32.mrf.mxu0
    %v1849 = vadd.f32 %v332, %v1848
    %1850 = vdwg.mxu0
    %1851 = vmatpush.bf16.msra.mxu0 %v1400
    %1852 = vmatpush.bf16.msra.mxu0 %v1388
    %1853 = vmatpush.bf16.msra.mxu0 %v1376
    %1854 = vmatpush.bf16.msra.mxu0 %v1364
    %1855 = vmatpush.bf16.msra.mxu0 %v1352
    %1856 = vmatpush.bf16.msra.mxu0 %v1340
    %1857 = vmatpush.bf16.msra.mxu0 %v1328
    %1858 = vmatpush.bf16.msra.mxu0 %v1316
    %1859 = vmatmul.bf16.gmra.mxu0 %v37
    %v1860 = vpop.f32.mrf.mxu0
    %v1861 = vadd.f32 %v1847, %v1860
    %v1862 = vpop.f32.mrf.mxu0
    %v1863 = vadd.f32 %v1849, %v1862
    %1864 = vdwg.mxu0
    %1865 = vmatpush.bf16.msra.mxu0 %v1496
    %1866 = vmatpush.bf16.msra.mxu0 %v1484
    %1867 = vmatpush.bf16.msra.mxu0 %v1472
    %1868 = vmatpush.bf16.msra.mxu0 %v1460
    %1869 = vmatpush.bf16.msra.mxu0 %v1448
    %1870 = vmatpush.bf16.msra.mxu0 %v1436
    %1871 = vmatpush.bf16.msra.mxu0 %v1424
    %1872 = vmatpush.bf16.msra.mxu0 %v1412
    %1873 = vmatmul.bf16.gmra.mxu0 %v38
    %v1874 = vpop.f32.mrf.mxu0
    %v1875 = vadd.f32 %v1861, %v1874
    %v1876 = vpop.f32.mrf.mxu0
    %v1877 = vadd.f32 %v1863, %v1876
    %1878 = vdwg.mxu0
    %1879 = vmatpush.bf16.msra.mxu0 %v1305
    %1880 = vmatpush.bf16.msra.mxu0 %v1293
    %1881 = vmatpush.bf16.msra.mxu0 %v1281
    %1882 = vmatpush.bf16.msra.mxu0 %v1269
    %1883 = vmatpush.bf16.msra.mxu0 %v1257
    %1884 = vmatpush.bf16.msra.mxu0 %v1245
    %1885 = vmatpush.bf16.msra.mxu0 %v1233
    %1886 = vmatpush.bf16.msra.mxu0 %v1221
    %1887 = vmatmul.bf16.gmra.mxu0 %v36
    %v1888 = vpop.f32.mrf.mxu0
    %v1889 = vadd.f32 %v333, %v1888
    %v1890 = vpop.f32.mrf.mxu0
    %v1891 = vadd.f32 %v333, %v1890
    %1892 = vdwg.mxu0
    %1893 = vmatpush.bf16.msra.mxu0 %v1401
    %1894 = vmatpush.bf16.msra.mxu0 %v1389
    %1895 = vmatpush.bf16.msra.mxu0 %v1377
    %1896 = vmatpush.bf16.msra.mxu0 %v1365
    %1897 = vmatpush.bf16.msra.mxu0 %v1353
    %1898 = vmatpush.bf16.msra.mxu0 %v1341
    %1899 = vmatpush.bf16.msra.mxu0 %v1329
    %1900 = vmatpush.bf16.msra.mxu0 %v1317
    %1901 = vmatmul.bf16.gmra.mxu0 %v37
    %v1902 = vpop.f32.mrf.mxu0
    %v1903 = vadd.f32 %v1889, %v1902
    %v1904 = vpop.f32.mrf.mxu0
    %v1905 = vadd.f32 %v1891, %v1904
    %1906 = vdwg.mxu0
    %1907 = vmatpush.bf16.msra.mxu0 %v1497
    %1908 = vmatpush.bf16.msra.mxu0 %v1485
    %1909 = vmatpush.bf16.msra.mxu0 %v1473
    %1910 = vmatpush.bf16.msra.mxu0 %v1461
    %1911 = vmatpush.bf16.msra.mxu0 %v1449
    %1912 = vmatpush.bf16.msra.mxu0 %v1437
    %1913 = vmatpush.bf16.msra.mxu0 %v1425
    %1914 = vmatpush.bf16.msra.mxu0 %v1413
    %1915 = vmatmul.bf16.gmra.mxu0 %v38
    %v1916 = vpop.f32.mrf.mxu0
    %v1917 = vadd.f32 %v1903, %v1916
    %v1918 = vpop.f32.mrf.mxu0
    %v1919 = vadd.f32 %v1905, %v1918
    %1920 = vdwg.mxu0
    %1921 = vmatpush.bf16.msra.mxu0 %v1306
    %1922 = vmatpush.bf16.msra.mxu0 %v1294
    %1923 = vmatpush.bf16.msra.mxu0 %v1282
    %1924 = vmatpush.bf16.msra.mxu0 %v1270
    %1925 = vmatpush.bf16.msra.mxu0 %v1258
    %1926 = vmatpush.bf16.msra.mxu0 %v1246
    %1927 = vmatpush.bf16.msra.mxu0 %v1234
    %1928 = vmatpush.bf16.msra.mxu0 %v1222
    %1929 = vmatmul.bf16.gmra.mxu0 %v36
    %v1930 = vpop.f32.mrf.mxu0
    %v1931 = vadd.f32 %v334, %v1930
    %v1932 = vpop.f32.mrf.mxu0
    %v1933 = vadd.f32 %v334, %v1932
    %1934 = vdwg.mxu0
    %1935 = vmatpush.bf16.msra.mxu0 %v1402
    %1936 = vmatpush.bf16.msra.mxu0 %v1390
    %1937 = vmatpush.bf16.msra.mxu0 %v1378
    %1938 = vmatpush.bf16.msra.mxu0 %v1366
    %1939 = vmatpush.bf16.msra.mxu0 %v1354
    %1940 = vmatpush.bf16.msra.mxu0 %v1342
    %1941 = vmatpush.bf16.msra.mxu0 %v1330
    %1942 = vmatpush.bf16.msra.mxu0 %v1318
    %1943 = vmatmul.bf16.gmra.mxu0 %v37
    %v1944 = vpop.f32.mrf.mxu0
    %v1945 = vadd.f32 %v1931, %v1944
    %v1946 = vpop.f32.mrf.mxu0
    %v1947 = vadd.f32 %v1933, %v1946
    %1948 = vdwg.mxu0
    %1949 = vmatpush.bf16.msra.mxu0 %v1498
    %1950 = vmatpush.bf16.msra.mxu0 %v1486
    %1951 = vmatpush.bf16.msra.mxu0 %v1474
    %1952 = vmatpush.bf16.msra.mxu0 %v1462
    %1953 = vmatpush.bf16.msra.mxu0 %v1450
    %1954 = vmatpush.bf16.msra.mxu0 %v1438
    %1955 = vmatpush.bf16.msra.mxu0 %v1426
    %1956 = vmatpush.bf16.msra.mxu0 %v1414
    %1957 = vmatmul.bf16.gmra.mxu0 %v38
    %v1958 = vpop.f32.mrf.mxu0
    %v1959 = vadd.f32 %v1945, %v1958
    %v1960 = vpop.f32.mrf.mxu0
    %v1961 = vadd.f32 %v1947, %v1960
    %1962 = vdwg.mxu0
    %1963 = vmatpush.bf16.msra.mxu0 %v1307
    %1964 = vmatpush.bf16.msra.mxu0 %v1295
    %1965 = vmatpush.bf16.msra.mxu0 %v1283
    %1966 = vmatpush.bf16.msra.mxu0 %v1271
    %1967 = vmatpush.bf16.msra.mxu0 %v1259
    %1968 = vmatpush.bf16.msra.mxu0 %v1247
    %1969 = vmatpush.bf16.msra.mxu0 %v1235
    %1970 = vmatpush.bf16.msra.mxu0 %v1223
    %1971 = vmatmul.bf16.gmra.mxu0 %v36
    %v1972 = vpop.f32.mrf.mxu0
    %v1973 = vadd.f32 %v335, %v1972
    %v1974 = vpop.f32.mrf.mxu0
    %v1975 = vadd.f32 %v335, %v1974
    %1976 = vdwg.mxu0
    %1977 = vmatpush.bf16.msra.mxu0 %v1403
    %1978 = vmatpush.bf16.msra.mxu0 %v1391
    %1979 = vmatpush.bf16.msra.mxu0 %v1379
    %1980 = vmatpush.bf16.msra.mxu0 %v1367
    %1981 = vmatpush.bf16.msra.mxu0 %v1355
    %1982 = vmatpush.bf16.msra.mxu0 %v1343
    %1983 = vmatpush.bf16.msra.mxu0 %v1331
    %1984 = vmatpush.bf16.msra.mxu0 %v1319
    %1985 = vmatmul.bf16.gmra.mxu0 %v37
    %v1986 = vpop.f32.mrf.mxu0
    %v1987 = vadd.f32 %v1973, %v1986
    %v1988 = vpop.f32.mrf.mxu0
    %v1989 = vadd.f32 %v1975, %v1988
    %1990 = vdwg.mxu0
    %1991 = vmatpush.bf16.msra.mxu0 %v1499
    %1992 = vmatpush.bf16.msra.mxu0 %v1487
    %1993 = vmatpush.bf16.msra.mxu0 %v1475
    %1994 = vmatpush.bf16.msra.mxu0 %v1463
    %1995 = vmatpush.bf16.msra.mxu0 %v1451
    %1996 = vmatpush.bf16.msra.mxu0 %v1439
    %1997 = vmatpush.bf16.msra.mxu0 %v1427
    %1998 = vmatpush.bf16.msra.mxu0 %v1415
    %1999 = vmatmul.bf16.gmra.mxu0 %v38
    %v2000 = vpop.f32.mrf.mxu0
    %v2001 = vadd.f32 %v1987, %v2000
    %v2002 = vpop.f32.mrf.mxu0
    %v2003 = vadd.f32 %v1989, %v2002
    %2004 = vdwg.mxu0
    %2005 = vmatpush.bf16.msra.mxu0 %v1308
    %2006 = vmatpush.bf16.msra.mxu0 %v1296
    %2007 = vmatpush.bf16.msra.mxu0 %v1284
    %2008 = vmatpush.bf16.msra.mxu0 %v1272
    %2009 = vmatpush.bf16.msra.mxu0 %v1260
    %2010 = vmatpush.bf16.msra.mxu0 %v1248
    %2011 = vmatpush.bf16.msra.mxu0 %v1236
    %2012 = vmatpush.bf16.msra.mxu0 %v1224
    %2013 = vmatmul.bf16.gmra.mxu0 %v36
    %v2014 = vpop.f32.mrf.mxu0
    %v2015 = vadd.f32 %v336, %v2014
    %v2016 = vpop.f32.mrf.mxu0
    %v2017 = vadd.f32 %v336, %v2016
    %2018 = vdwg.mxu0
    %2019 = vmatpush.bf16.msra.mxu0 %v1404
    %2020 = vmatpush.bf16.msra.mxu0 %v1392
    %2021 = vmatpush.bf16.msra.mxu0 %v1380
    %2022 = vmatpush.bf16.msra.mxu0 %v1368
    %2023 = vmatpush.bf16.msra.mxu0 %v1356
    %2024 = vmatpush.bf16.msra.mxu0 %v1344
    %2025 = vmatpush.bf16.msra.mxu0 %v1332
    %2026 = vmatpush.bf16.msra.mxu0 %v1320
    %2027 = vmatmul.bf16.gmra.mxu0 %v37
    %v2028 = vpop.f32.mrf.mxu0
    %v2029 = vadd.f32 %v2015, %v2028
    %v2030 = vpop.f32.mrf.mxu0
    %v2031 = vadd.f32 %v2017, %v2030
    %2032 = vdwg.mxu0
    %2033 = vmatpush.bf16.msra.mxu0 %v1500
    %2034 = vmatpush.bf16.msra.mxu0 %v1488
    %2035 = vmatpush.bf16.msra.mxu0 %v1476
    %2036 = vmatpush.bf16.msra.mxu0 %v1464
    %2037 = vmatpush.bf16.msra.mxu0 %v1452
    %2038 = vmatpush.bf16.msra.mxu0 %v1440
    %2039 = vmatpush.bf16.msra.mxu0 %v1428
    %2040 = vmatpush.bf16.msra.mxu0 %v1416
    %2041 = vmatmul.bf16.gmra.mxu0 %v38
    %v2042 = vpop.f32.mrf.mxu0
    %v2043 = vadd.f32 %v2029, %v2042
    %v2044 = vpop.f32.mrf.mxu0
    %v2045 = vadd.f32 %v2031, %v2044
    %2046 = vdwg.mxu0
    %2047 = vmatpush.bf16.msra.mxu0 %v1309
    %2048 = vmatpush.bf16.msra.mxu0 %v1297
    %2049 = vmatpush.bf16.msra.mxu0 %v1285
    %2050 = vmatpush.bf16.msra.mxu0 %v1273
    %2051 = vmatpush.bf16.msra.mxu0 %v1261
    %2052 = vmatpush.bf16.msra.mxu0 %v1249
    %2053 = vmatpush.bf16.msra.mxu0 %v1237
    %2054 = vmatpush.bf16.msra.mxu0 %v1225
    %2055 = vmatmul.bf16.gmra.mxu0 %v36
    %v2056 = vpop.f32.mrf.mxu0
    %v2057 = vadd.f32 %v337, %v2056
    %v2058 = vpop.f32.mrf.mxu0
    %v2059 = vadd.f32 %v337, %v2058
    %2060 = vdwg.mxu0
    %2061 = vmatpush.bf16.msra.mxu0 %v1405
    %2062 = vmatpush.bf16.msra.mxu0 %v1393
    %2063 = vmatpush.bf16.msra.mxu0 %v1381
    %2064 = vmatpush.bf16.msra.mxu0 %v1369
    %2065 = vmatpush.bf16.msra.mxu0 %v1357
    %2066 = vmatpush.bf16.msra.mxu0 %v1345
    %2067 = vmatpush.bf16.msra.mxu0 %v1333
    %2068 = vmatpush.bf16.msra.mxu0 %v1321
    %2069 = vmatmul.bf16.gmra.mxu0 %v37
    %v2070 = vpop.f32.mrf.mxu0
    %v2071 = vadd.f32 %v2057, %v2070
    %v2072 = vpop.f32.mrf.mxu0
    %v2073 = vadd.f32 %v2059, %v2072
    %2074 = vdwg.mxu0
    %2075 = vmatpush.bf16.msra.mxu0 %v1501
    %2076 = vmatpush.bf16.msra.mxu0 %v1489
    %2077 = vmatpush.bf16.msra.mxu0 %v1477
    %2078 = vmatpush.bf16.msra.mxu0 %v1465
    %2079 = vmatpush.bf16.msra.mxu0 %v1453
    %2080 = vmatpush.bf16.msra.mxu0 %v1441
    %2081 = vmatpush.bf16.msra.mxu0 %v1429
    %2082 = vmatpush.bf16.msra.mxu0 %v1417
    %2083 = vmatmul.bf16.gmra.mxu0 %v38
    %v2084 = vpop.f32.mrf.mxu0
    %v2085 = vadd.f32 %v2071, %v2084
    %v2086 = vpop.f32.mrf.mxu0
    %v2087 = vadd.f32 %v2073, %v2086
    %2088 = vdwg.mxu0
    %2089 = vmatpush.bf16.msra.mxu0 %v1310
    %2090 = vmatpush.bf16.msra.mxu0 %v1298
    %2091 = vmatpush.bf16.msra.mxu0 %v1286
    %2092 = vmatpush.bf16.msra.mxu0 %v1274
    %2093 = vmatpush.bf16.msra.mxu0 %v1262
    %2094 = vmatpush.bf16.msra.mxu0 %v1250
    %2095 = vmatpush.bf16.msra.mxu0 %v1238
    %2096 = vmatpush.bf16.msra.mxu0 %v1226
    %2097 = vmatmul.bf16.gmra.mxu0 %v36
    %v2098 = vpop.f32.mrf.mxu0
    %v2099 = vadd.f32 %v338, %v2098
    %v2100 = vpop.f32.mrf.mxu0
    %v2101 = vadd.f32 %v338, %v2100
    %2102 = vdwg.mxu0
    %2103 = vmatpush.bf16.msra.mxu0 %v1406
    %2104 = vmatpush.bf16.msra.mxu0 %v1394
    %2105 = vmatpush.bf16.msra.mxu0 %v1382
    %2106 = vmatpush.bf16.msra.mxu0 %v1370
    %2107 = vmatpush.bf16.msra.mxu0 %v1358
    %2108 = vmatpush.bf16.msra.mxu0 %v1346
    %2109 = vmatpush.bf16.msra.mxu0 %v1334
    %2110 = vmatpush.bf16.msra.mxu0 %v1322
    %2111 = vmatmul.bf16.gmra.mxu0 %v37
    %v2112 = vpop.f32.mrf.mxu0
    %v2113 = vadd.f32 %v2099, %v2112
    %v2114 = vpop.f32.mrf.mxu0
    %v2115 = vadd.f32 %v2101, %v2114
    %2116 = vdwg.mxu0
    %2117 = vmatpush.bf16.msra.mxu0 %v1502
    %2118 = vmatpush.bf16.msra.mxu0 %v1490
    %2119 = vmatpush.bf16.msra.mxu0 %v1478
    %2120 = vmatpush.bf16.msra.mxu0 %v1466
    %2121 = vmatpush.bf16.msra.mxu0 %v1454
    %2122 = vmatpush.bf16.msra.mxu0 %v1442
    %2123 = vmatpush.bf16.msra.mxu0 %v1430
    %2124 = vmatpush.bf16.msra.mxu0 %v1418
    %2125 = vmatmul.bf16.gmra.mxu0 %v38
    %v2126 = vpop.f32.mrf.mxu0
    %v2127 = vadd.f32 %v2113, %v2126
    %v2128 = vpop.f32.mrf.mxu0
    %v2129 = vadd.f32 %v2115, %v2128
    %2130 = vdwg.mxu0
    %2131 = vmatpush.bf16.msra.mxu0 %v1311
    %2132 = vmatpush.bf16.msra.mxu0 %v1299
    %2133 = vmatpush.bf16.msra.mxu0 %v1287
    %2134 = vmatpush.bf16.msra.mxu0 %v1275
    %2135 = vmatpush.bf16.msra.mxu0 %v1263
    %2136 = vmatpush.bf16.msra.mxu0 %v1251
    %2137 = vmatpush.bf16.msra.mxu0 %v1239
    %2138 = vmatpush.bf16.msra.mxu0 %v1227
    %2139 = vmatmul.bf16.gmra.mxu0 %v36
    %v2140 = vpop.f32.mrf.mxu0
    %v2141 = vadd.f32 %v339, %v2140
    %v2142 = vpop.f32.mrf.mxu0
    %v2143 = vadd.f32 %v339, %v2142
    %2144 = vdwg.mxu0
    %2145 = vmatpush.bf16.msra.mxu0 %v1407
    %2146 = vmatpush.bf16.msra.mxu0 %v1395
    %2147 = vmatpush.bf16.msra.mxu0 %v1383
    %2148 = vmatpush.bf16.msra.mxu0 %v1371
    %2149 = vmatpush.bf16.msra.mxu0 %v1359
    %2150 = vmatpush.bf16.msra.mxu0 %v1347
    %2151 = vmatpush.bf16.msra.mxu0 %v1335
    %2152 = vmatpush.bf16.msra.mxu0 %v1323
    %2153 = vmatmul.bf16.gmra.mxu0 %v37
    %v2154 = vpop.f32.mrf.mxu0
    %v2155 = vadd.f32 %v2141, %v2154
    %v2156 = vpop.f32.mrf.mxu0
    %v2157 = vadd.f32 %v2143, %v2156
    %2158 = vdwg.mxu0
    %2159 = vmatpush.bf16.msra.mxu0 %v1503
    %2160 = vmatpush.bf16.msra.mxu0 %v1491
    %2161 = vmatpush.bf16.msra.mxu0 %v1479
    %2162 = vmatpush.bf16.msra.mxu0 %v1467
    %2163 = vmatpush.bf16.msra.mxu0 %v1455
    %2164 = vmatpush.bf16.msra.mxu0 %v1443
    %2165 = vmatpush.bf16.msra.mxu0 %v1431
    %2166 = vmatpush.bf16.msra.mxu0 %v1419
    %2167 = vmatmul.bf16.gmra.mxu0 %v38
    %v2168 = vpop.f32.mrf.mxu0
    %v2169 = vadd.f32 %v2155, %v2168
    %v2170 = vpop.f32.mrf.mxu0
    %v2171 = vadd.f32 %v2157, %v2170
    %2172 = vdwg.mxu0
    %2173 = vmatpush.bf16.msra.mxu0 %v1312
    %2174 = vmatpush.bf16.msra.mxu0 %v1300
    %2175 = vmatpush.bf16.msra.mxu0 %v1288
    %2176 = vmatpush.bf16.msra.mxu0 %v1276
    %2177 = vmatpush.bf16.msra.mxu0 %v1264
    %2178 = vmatpush.bf16.msra.mxu0 %v1252
    %2179 = vmatpush.bf16.msra.mxu0 %v1240
    %2180 = vmatpush.bf16.msra.mxu0 %v1228
    %2181 = vmatmul.bf16.gmra.mxu0 %v36
    %v2182 = vpop.f32.mrf.mxu0
    %v2183 = vadd.f32 %v340, %v2182
    %v2184 = vpop.f32.mrf.mxu0
    %v2185 = vadd.f32 %v340, %v2184
    %2186 = vdwg.mxu0
    %2187 = vmatpush.bf16.msra.mxu0 %v1408
    %2188 = vmatpush.bf16.msra.mxu0 %v1396
    %2189 = vmatpush.bf16.msra.mxu0 %v1384
    %2190 = vmatpush.bf16.msra.mxu0 %v1372
    %2191 = vmatpush.bf16.msra.mxu0 %v1360
    %2192 = vmatpush.bf16.msra.mxu0 %v1348
    %2193 = vmatpush.bf16.msra.mxu0 %v1336
    %2194 = vmatpush.bf16.msra.mxu0 %v1324
    %2195 = vmatmul.bf16.gmra.mxu0 %v37
    %v2196 = vpop.f32.mrf.mxu0
    %v2197 = vadd.f32 %v2183, %v2196
    %v2198 = vpop.f32.mrf.mxu0
    %v2199 = vadd.f32 %v2185, %v2198
    %2200 = vdwg.mxu0
    %2201 = vmatpush.bf16.msra.mxu0 %v1504
    %2202 = vmatpush.bf16.msra.mxu0 %v1492
    %2203 = vmatpush.bf16.msra.mxu0 %v1480
    %2204 = vmatpush.bf16.msra.mxu0 %v1468
    %2205 = vmatpush.bf16.msra.mxu0 %v1456
    %2206 = vmatpush.bf16.msra.mxu0 %v1444
    %2207 = vmatpush.bf16.msra.mxu0 %v1432
    %2208 = vmatpush.bf16.msra.mxu0 %v1420
    %2209 = vmatmul.bf16.gmra.mxu0 %v38
    %v2210 = vpop.f32.mrf.mxu0
    %v2211 = vadd.f32 %v2197, %v2210
    %v2212 = vpop.f32.mrf.mxu0
    %v2213 = vadd.f32 %v2199, %v2212
    %2214 = vdwg.mxu0
    %2215 = vmatpush.bf16.msra.mxu0 %v1313
    %2216 = vmatpush.bf16.msra.mxu0 %v1301
    %2217 = vmatpush.bf16.msra.mxu0 %v1289
    %2218 = vmatpush.bf16.msra.mxu0 %v1277
    %2219 = vmatpush.bf16.msra.mxu0 %v1265
    %2220 = vmatpush.bf16.msra.mxu0 %v1253
    %2221 = vmatpush.bf16.msra.mxu0 %v1241
    %2222 = vmatpush.bf16.msra.mxu0 %v1229
    %2223 = vmatmul.bf16.gmra.mxu0 %v36
    %v2224 = vpop.f32.mrf.mxu0
    %v2225 = vadd.f32 %v341, %v2224
    %v2226 = vpop.f32.mrf.mxu0
    %v2227 = vadd.f32 %v341, %v2226
    %2228 = vdwg.mxu0
    %2229 = vmatpush.bf16.msra.mxu0 %v1409
    %2230 = vmatpush.bf16.msra.mxu0 %v1397
    %2231 = vmatpush.bf16.msra.mxu0 %v1385
    %2232 = vmatpush.bf16.msra.mxu0 %v1373
    %2233 = vmatpush.bf16.msra.mxu0 %v1361
    %2234 = vmatpush.bf16.msra.mxu0 %v1349
    %2235 = vmatpush.bf16.msra.mxu0 %v1337
    %2236 = vmatpush.bf16.msra.mxu0 %v1325
    %2237 = vmatmul.bf16.gmra.mxu0 %v37
    %v2238 = vpop.f32.mrf.mxu0
    %v2239 = vadd.f32 %v2225, %v2238
    %v2240 = vpop.f32.mrf.mxu0
    %v2241 = vadd.f32 %v2227, %v2240
    %2242 = vdwg.mxu0
    %2243 = vmatpush.bf16.msra.mxu0 %v1505
    %2244 = vmatpush.bf16.msra.mxu0 %v1493
    %2245 = vmatpush.bf16.msra.mxu0 %v1481
    %2246 = vmatpush.bf16.msra.mxu0 %v1469
    %2247 = vmatpush.bf16.msra.mxu0 %v1457
    %2248 = vmatpush.bf16.msra.mxu0 %v1445
    %2249 = vmatpush.bf16.msra.mxu0 %v1433
    %2250 = vmatpush.bf16.msra.mxu0 %v1421
    %2251 = vmatmul.bf16.gmra.mxu0 %v38
    %v2252 = vpop.f32.mrf.mxu0
    %v2253 = vadd.f32 %v2239, %v2252
    %v2254 = vpop.f32.mrf.mxu0
    %v2255 = vadd.f32 %v2241, %v2254
    %2256 = vdwg.mxu0
    %2257 = vmatpush.bf16.msra.mxu0 %v1314
    %2258 = vmatpush.bf16.msra.mxu0 %v1302
    %2259 = vmatpush.bf16.msra.mxu0 %v1290
    %2260 = vmatpush.bf16.msra.mxu0 %v1278
    %2261 = vmatpush.bf16.msra.mxu0 %v1266
    %2262 = vmatpush.bf16.msra.mxu0 %v1254
    %2263 = vmatpush.bf16.msra.mxu0 %v1242
    %2264 = vmatpush.bf16.msra.mxu0 %v1230
    %2265 = vmatmul.bf16.gmra.mxu0 %v36
    %v2266 = vpop.f32.mrf.mxu0
    %v2267 = vadd.f32 %v342, %v2266
    %v2268 = vpop.f32.mrf.mxu0
    %v2269 = vadd.f32 %v342, %v2268
    %2270 = vdwg.mxu0
    %2271 = vmatpush.bf16.msra.mxu0 %v1410
    %2272 = vmatpush.bf16.msra.mxu0 %v1398
    %2273 = vmatpush.bf16.msra.mxu0 %v1386
    %2274 = vmatpush.bf16.msra.mxu0 %v1374
    %2275 = vmatpush.bf16.msra.mxu0 %v1362
    %2276 = vmatpush.bf16.msra.mxu0 %v1350
    %2277 = vmatpush.bf16.msra.mxu0 %v1338
    %2278 = vmatpush.bf16.msra.mxu0 %v1326
    %2279 = vmatmul.bf16.gmra.mxu0 %v37
    %v2280 = vpop.f32.mrf.mxu0
    %v2281 = vadd.f32 %v2267, %v2280
    %v2282 = vpop.f32.mrf.mxu0
    %v2283 = vadd.f32 %v2269, %v2282
    %2284 = vdwg.mxu0
    %2285 = vmatpush.bf16.msra.mxu0 %v1506
    %2286 = vmatpush.bf16.msra.mxu0 %v1494
    %2287 = vmatpush.bf16.msra.mxu0 %v1482
    %2288 = vmatpush.bf16.msra.mxu0 %v1470
    %2289 = vmatpush.bf16.msra.mxu0 %v1458
    %2290 = vmatpush.bf16.msra.mxu0 %v1446
    %2291 = vmatpush.bf16.msra.mxu0 %v1434
    %2292 = vmatpush.bf16.msra.mxu0 %v1422
    %2293 = vmatmul.bf16.gmra.mxu0 %v38
    %v2294 = vpop.f32.mrf.mxu0
    %v2295 = vadd.f32 %v2281, %v2294
    %v2296 = vpop.f32.mrf.mxu0
    %v2297 = vadd.f32 %v2283, %v2296
    %2298 = vdwg.mxu0
    %v2299 = vmax.f32 %v1833, 0.0
    %v2300 = vmax.f32 %v1875, 0.0
    %v2301 = vmax.f32 %v1917, 0.0
    %v2302 = vmax.f32 %v1959, 0.0
    %v2303 = vmax.f32 %v2001, 0.0
    %v2304 = vmax.f32 %v2043, 0.0
    %v2305 = vmax.f32 %v2085, 0.0
    %v2306 = vmax.f32 %v2127, 0.0
    %v2307 = vmax.f32 %v2169, 0.0
    %v2308 = vmax.f32 %v2211, 0.0
    %v2309 = vmax.f32 %v2253, 0.0
    %v2310 = vmax.f32 %v2295, 0.0
    %v2311 = vmax.f32 %v1835, 0.0
    %v2312 = vmax.f32 %v1877, 0.0
    %v2313 = vmax.f32 %v1919, 0.0
    %v2314 = vmax.f32 %v1961, 0.0
    %v2315 = vmax.f32 %v2003, 0.0
    %v2316 = vmax.f32 %v2045, 0.0
    %v2317 = vmax.f32 %v2087, 0.0
    %v2318 = vmax.f32 %v2129, 0.0
    %v2319 = vmax.f32 %v2171, 0.0
    %v2320 = vmax.f32 %v2213, 0.0
    %v2321 = vmax.f32 %v2255, 0.0
    %v2322 = vmax.f32 %v2297, 0.0
    %v2323 = vpack.c.bf16 %v2311, %v2299
    %v2324 = vpack.c.bf16 %v2312, %v2300
    %v2325 = vpack.c.bf16 %v2313, %v2301
    %v2326 = vpack.c.bf16 %v2314, %v2302
    %v2327 = vpack.c.bf16 %v2315, %v2303
    %v2328 = vpack.c.bf16 %v2316, %v2304
    %v2329 = vpack.c.bf16 %v2317, %v2305
    %v2330 = vpack.c.bf16 %v2318, %v2306
    %v2331 = vpack.c.bf16 %v2319, %v2307
    %v2332 = vpack.c.bf16 %v2320, %v2308
    %v2333 = vpack.c.bf16 %v2321, %v2309
    %v2334 = vpack.c.bf16 %v2322, %v2310
    %v2335 = vld [vmem:[%s3] sm:$0xff]
    %v2336 = vld [vmem:[%s3 + $0x8] sm:$0xf]
    %v2337 = vld [vmem:[%s3 + $0xc] sm:$0xff]
    %v2338 = vld [vmem:[%s3 + $0x14] sm:$0xf]
    %v2339 = vld [vmem:[%s3 + $0x18] sm:$0xff]
    %v2340 = vld [vmem:[%s3 + $0x20] sm:$0xf]
    %v2341 = vld [vmem:[%s3 + $0x24] sm:$0xff]
    %v2342 = vld [vmem:[%s3 + $0x2c] sm:$0xf]
    %v2343 = vld [vmem:[%s3 + $0x30] sm:$0xff]
    %v2344 = vld [vmem:[%s3 + $0x38] sm:$0xf]
    %v2345 = vld [vmem:[%s3 + $0x3c] sm:$0xff]
    %v2346 = vld [vmem:[%s3 + $0x44] sm:$0xf]
    %v2347 = vld [vmem:[%s3 + $0x48] sm:$0xff]
    %v2348 = vld [vmem:[%s3 + $0x50] sm:$0xf]
    %v2349 = vld [vmem:[%s3 + $0x54] sm:$0xff]
    %v2350 = vld [vmem:[%s3 + $0x5c] sm:$0xf]
    %v2351 = vld [vmem:[%s3 + $0x60] sm:$0xff]
    %v2352 = vld [vmem:[%s3 + $0x68] sm:$0xf]
    %v2353 = vld [vmem:[%s3 + $0x6c] sm:$0xff]
    %v2354 = vld [vmem:[%s3 + $0x74] sm:$0xf]
    %v2355 = vld [vmem:[%s3 + $0x78] sm:$0xff]
    %v2356 = vld [vmem:[%s3 + $0x80] sm:$0xf]
    %v2357 = vld [vmem:[%s3 + $0x84] sm:$0xff]
    %v2358 = vld [vmem:[%s3 + $0x8c] sm:$0xf]
    %v2359 = vld [vmem:[%s3 + $0x90] sm:$0xff]
    %v2360 = vld [vmem:[%s3 + $0x98] sm:$0xf]
    %v2361 = vld [vmem:[%s3 + $0x9c] sm:$0xff]
    %v2362 = vld [vmem:[%s3 + $0xa4] sm:$0xf]
    %v2363 = vld [vmem:[%s3 + $0xa8] sm:$0xff]
    %v2364 = vld [vmem:[%s3 + $0xb0] sm:$0xf]
    %v2365 = vld [vmem:[%s3 + $0xb4] sm:$0xff]
    %v2366 = vld [vmem:[%s3 + $0xbc] sm:$0xf]
    %v2367 = vld [vmem:[%s3 + $0xc0] sm:$0xff]
    %v2368 = vld [vmem:[%s3 + $0xc8] sm:$0xf]
    %v2369 = vld [vmem:[%s3 + $0xcc] sm:$0xff]
    %v2370 = vld [vmem:[%s3 + $0xd4] sm:$0xf]
    %v2371 = vld [vmem:[%s3 + $0xd8] sm:$0xff]
    %v2372 = vld [vmem:[%s3 + $0xe0] sm:$0xf]
    %v2373 = vld [vmem:[%s3 + $0xe4] sm:$0xff]
    %v2374 = vld [vmem:[%s3 + $0xec] sm:$0xf]
    %v2375 = vld [vmem:[%s3 + $0xf0] sm:$0xff]
    %v2376 = vld [vmem:[%s3 + $0xf8] sm:$0xf]
    %v2377 = vld [vmem:[%s3 + $0xfc] sm:$0xff]
    %v2378 = vld [vmem:[%s3 + $0x104] sm:$0xf]
    %v2379 = vld [vmem:[%s3 + $0x108] sm:$0xff]
    %v2380 = vld [vmem:[%s3 + $0x110] sm:$0xf]
    %v2381 = vld [vmem:[%s3 + $0x114] sm:$0xff]
    %v2382 = vld [vmem:[%s3 + $0x11c] sm:$0xf]
    %v2383 = vld [vmem:[%s3 + $0x120] sm:$0xff]
    %v2384 = vld [vmem:[%s3 + $0x128] sm:$0xf]
    %v2385 = vld [vmem:[%s3 + $0x12c] sm:$0xff]
    %v2386 = vld [vmem:[%s3 + $0x134] sm:$0xf]
    %v2387 = vld [vmem:[%s3 + $0x138] sm:$0xff]
    %v2388 = vld [vmem:[%s3 + $0x140] sm:$0xf]
    %v2389 = vld [vmem:[%s3 + $0x144] sm:$0xff]
    %v2390 = vld [vmem:[%s3 + $0x14c] sm:$0xf]
    %v2391 = vld [vmem:[%s3 + $0x150] sm:$0xff]
    %v2392 = vld [vmem:[%s3 + $0x158] sm:$0xf]
    %v2393 = vld [vmem:[%s3 + $0x15c] sm:$0xff]
    %v2394 = vld [vmem:[%s3 + $0x164] sm:$0xf]
    %v2395 = vld [vmem:[%s3 + $0x168] sm:$0xff]
    %v2396 = vld [vmem:[%s3 + $0x170] sm:$0xf]
    %v2397 = vld [vmem:[%s3 + $0x174] sm:$0xff]
    %v2398 = vld [vmem:[%s3 + $0x17c] sm:$0xf]
    %v2399 = vld [vmem:[%s3 + $0x180] sm:$0xff]
    %v2400 = vld [vmem:[%s3 + $0x188] sm:$0xf]
    %v2401 = vld [vmem:[%s3 + $0x18c] sm:$0xff]
    %v2402 = vld [vmem:[%s3 + $0x194] sm:$0xf]
    %v2403 = vld [vmem:[%s3 + $0x198] sm:$0xff]
    %v2404 = vld [vmem:[%s3 + $0x1a0] sm:$0xf]
    %v2405 = vld [vmem:[%s3 + $0x1a4] sm:$0xff]
    %v2406 = vld [vmem:[%s3 + $0x1ac] sm:$0xf]
    %v2407 = vld [vmem:[%s3 + $0x1b0] sm:$0xff]
    %v2408 = vld [vmem:[%s3 + $0x1b8] sm:$0xf]
    %v2409 = vld [vmem:[%s3 + $0x1bc] sm:$0xff]
    %v2410 = vld [vmem:[%s3 + $0x1c4] sm:$0xf]
    %v2411 = vld [vmem:[%s3 + $0x1c8] sm:$0xff]
    %v2412 = vld [vmem:[%s3 + $0x1d0] sm:$0xf]
    %v2413 = vld [vmem:[%s3 + $0x1d4] sm:$0xff]
    %v2414 = vld [vmem:[%s3 + $0x1dc] sm:$0xf]
    %v2415 = vld [vmem:[%s3 + $0x1e0] sm:$0xff]
    %v2416 = vld [vmem:[%s3 + $0x1e8] sm:$0xf]
    %v2417 = vld [vmem:[%s3 + $0x1ec] sm:$0xff]
    %v2418 = vld [vmem:[%s3 + $0x1f4] sm:$0xf]
    %v2419 = vld [vmem:[%s3 + $0x1f8] sm:$0xff]
    %v2420 = vld [vmem:[%s3 + $0x200] sm:$0xf]
    %v2421 = vld [vmem:[%s3 + $0x204] sm:$0xff]
    %v2422 = vld [vmem:[%s3 + $0x20c] sm:$0xf]
    %v2423 = vld [vmem:[%s3 + $0x210] sm:$0xff]
    %v2424 = vld [vmem:[%s3 + $0x218] sm:$0xf]
    %v2425 = vld [vmem:[%s3 + $0x21c] sm:$0xff]
    %v2426 = vld [vmem:[%s3 + $0x224] sm:$0xf]
    %v2427 = vld [vmem:[%s3 + $0x228] sm:$0xff]
    %v2428 = vld [vmem:[%s3 + $0x230] sm:$0xf]
    %v2429 = vld [vmem:[%s3 + $0x234] sm:$0xff]
    %v2430 = vld [vmem:[%s3 + $0x23c] sm:$0xf]
    %v2431 = vld [vmem:[%s3 + $0x240] sm:$0xff]
    %v2432 = vld [vmem:[%s3 + $0x248] sm:$0xf]
    %v2433 = vld [vmem:[%s3 + $0x24c] sm:$0xff]
    %v2434 = vld [vmem:[%s3 + $0x254] sm:$0xf]
    %v2435 = vld [vmem:[%s3 + $0x258] sm:$0xff]
    %v2436 = vld [vmem:[%s3 + $0x260] sm:$0xf]
    %v2437 = vld [vmem:[%s3 + $0x264] sm:$0xff]
    %v2438 = vld [vmem:[%s3 + $0x26c] sm:$0xf]
    %v2439 = vld [vmem:[%s3 + $0x270] sm:$0xff]
    %v2440 = vld [vmem:[%s3 + $0x278] sm:$0xf]
    %v2441 = vld [vmem:[%s3 + $0x27c] sm:$0xff]
    %v2442 = vld [vmem:[%s3 + $0x284] sm:$0xf]
    %v2443 = vld [vmem:[%s3 + $0x288] sm:$0xff]
    %v2444 = vld [vmem:[%s3 + $0x290] sm:$0xf]
    %v2445 = vld [vmem:[%s3 + $0x294] sm:$0xff]
    %v2446 = vld [vmem:[%s3 + $0x29c] sm:$0xf]
    %v2447 = vld [vmem:[%s3 + $0x2a0] sm:$0xff]
    %v2448 = vld [vmem:[%s3 + $0x2a8] sm:$0xf]
    %v2449 = vld [vmem:[%s3 + $0x2ac] sm:$0xff]
    %v2450 = vld [vmem:[%s3 + $0x2b4] sm:$0xf]
    %v2451 = vld [vmem:[%s3 + $0x2b8] sm:$0xff]
    %v2452 = vld [vmem:[%s3 + $0x2c0] sm:$0xf]
    %v2453 = vld [vmem:[%s3 + $0x2c4] sm:$0xff]
    %v2454 = vld [vmem:[%s3 + $0x2cc] sm:$0xf]
    %v2455 = vld [vmem:[%s3 + $0x2d0] sm:$0xff]
    %v2456 = vld [vmem:[%s3 + $0x2d8] sm:$0xf]
    %v2457 = vld [vmem:[%s3 + $0x2dc] sm:$0xff]
    %v2458 = vld [vmem:[%s3 + $0x2e4] sm:$0xf]
    %v2459 = vld [vmem:[%s3 + $0x2e8] sm:$0xff]
    %v2460 = vld [vmem:[%s3 + $0x2f0] sm:$0xf]
    %v2461 = vld [vmem:[%s3 + $0x2f4] sm:$0xff]
    %v2462 = vld [vmem:[%s3 + $0x2fc] sm:$0xf]
    %v2463 = vld [vmem:[%s3 + $0x300] sm:$0xff]
    %v2464 = vld [vmem:[%s3 + $0x308] sm:$0xf]
    %v2465 = vld [vmem:[%s3 + $0x30c] sm:$0xff]
    %v2466 = vld [vmem:[%s3 + $0x314] sm:$0xf]
    %v2467 = vld [vmem:[%s3 + $0x318] sm:$0xff]
    %v2468 = vld [vmem:[%s3 + $0x320] sm:$0xf]
    %v2469 = vld [vmem:[%s3 + $0x324] sm:$0xff]
    %v2470 = vld [vmem:[%s3 + $0x32c] sm:$0xf]
    %v2471 = vld [vmem:[%s3 + $0x330] sm:$0xff]
    %v2472 = vld [vmem:[%s3 + $0x338] sm:$0xf]
    %v2473 = vld [vmem:[%s3 + $0x33c] sm:$0xff]
    %v2474 = vld [vmem:[%s3 + $0x344] sm:$0xf]
    %v2475 = vld [vmem:[%s3 + $0x348] sm:$0xff]
    %v2476 = vld [vmem:[%s3 + $0x350] sm:$0xf]
    %v2477 = vld [vmem:[%s3 + $0x354] sm:$0xff]
    %v2478 = vld [vmem:[%s3 + $0x35c] sm:$0xf]
    %v2479 = vld [vmem:[%s3 + $0x360] sm:$0xff]
    %v2480 = vld [vmem:[%s3 + $0x368] sm:$0xf]
    %v2481 = vld [vmem:[%s3 + $0x36c] sm:$0xff]
    %v2482 = vld [vmem:[%s3 + $0x374] sm:$0xf]
    %v2483 = vld [vmem:[%s3 + $0x378] sm:$0xff]
    %v2484 = vld [vmem:[%s3 + $0x380] sm:$0xf]
    %v2485 = vld [vmem:[%s3 + $0x384] sm:$0xff]
    %v2486 = vld [vmem:[%s3 + $0x38c] sm:$0xf]
    %v2487 = vld [vmem:[%s3 + $0x390] sm:$0xff]
    %v2488 = vld [vmem:[%s3 + $0x398] sm:$0xf]
    %v2489 = vld [vmem:[%s3 + $0x39c] sm:$0xff]
    %v2490 = vld [vmem:[%s3 + $0x3a4] sm:$0xf]
    %v2491 = vld [vmem:[%s3 + $0x3a8] sm:$0xff]
    %v2492 = vld [vmem:[%s3 + $0x3b0] sm:$0xf]
    %v2493 = vld [vmem:[%s3 + $0x3b4] sm:$0xff]
    %v2494 = vld [vmem:[%s3 + $0x3bc] sm:$0xf]
    %v2495 = vld [vmem:[%s3 + $0x3c0] sm:$0xff]
    %v2496 = vld [vmem:[%s3 + $0x3c8] sm:$0xf]
    %v2497 = vld [vmem:[%s3 + $0x3cc] sm:$0xff]
    %v2498 = vld [vmem:[%s3 + $0x3d4] sm:$0xf]
    %v2499 = vld [vmem:[%s3 + $0x3d8] sm:$0xff]
    %v2500 = vld [vmem:[%s3 + $0x3e0] sm:$0xf]
    %v2501 = vld [vmem:[%s3 + $0x3e4] sm:$0xff]
    %v2502 = vld [vmem:[%s3 + $0x3ec] sm:$0xf]
    %v2503 = vld [vmem:[%s3 + $0x3f0] sm:$0xff]
    %v2504 = vld [vmem:[%s3 + $0x3f8] sm:$0xf]
    %v2505 = vld [vmem:[%s3 + $0x3fc] sm:$0xff]
    %v2506 = vld [vmem:[%s3 + $0x404] sm:$0xf]
    %v2507 = vld [vmem:[%s3 + $0x408] sm:$0xff]
    %v2508 = vld [vmem:[%s3 + $0x410] sm:$0xf]
    %v2509 = vld [vmem:[%s3 + $0x414] sm:$0xff]
    %v2510 = vld [vmem:[%s3 + $0x41c] sm:$0xf]
    %v2511 = vld [vmem:[%s3 + $0x420] sm:$0xff]
    %v2512 = vld [vmem:[%s3 + $0x428] sm:$0xf]
    %v2513 = vld [vmem:[%s3 + $0x42c] sm:$0xff]
    %v2514 = vld [vmem:[%s3 + $0x434] sm:$0xf]
    %v2515 = vld [vmem:[%s3 + $0x438] sm:$0xff]
    %v2516 = vld [vmem:[%s3 + $0x440] sm:$0xf]
    %v2517 = vld [vmem:[%s3 + $0x444] sm:$0xff]
    %v2518 = vld [vmem:[%s3 + $0x44c] sm:$0xf]
    %v2519 = vld [vmem:[%s3 + $0x450] sm:$0xff]
    %v2520 = vld [vmem:[%s3 + $0x458] sm:$0xf]
    %v2521 = vld [vmem:[%s3 + $0x45c] sm:$0xff]
    %v2522 = vld [vmem:[%s3 + $0x464] sm:$0xf]
    %v2523 = vld [vmem:[%s3 + $0x468] sm:$0xff]
    %v2524 = vld [vmem:[%s3 + $0x470] sm:$0xf]
    %v2525 = vld [vmem:[%s3 + $0x474] sm:$0xff]
    %v2526 = vld [vmem:[%s3 + $0x47c] sm:$0xf]
    %v2527 = vld [vmem:[%s3 + $0x480] sm:$0xff]
    %v2528 = vld [vmem:[%s3 + $0x488] sm:$0xf]
    %v2529 = vld [vmem:[%s3 + $0x48c] sm:$0xff]
    %v2530 = vld [vmem:[%s3 + $0x494] sm:$0xf]
    %v2531 = vld [vmem:[%s3 + $0x498] sm:$0xff]
    %v2532 = vld [vmem:[%s3 + $0x4a0] sm:$0xf]
    %v2533 = vld [vmem:[%s3 + $0x4a4] sm:$0xff]
    %v2534 = vld [vmem:[%s3 + $0x4ac] sm:$0xf]
    %v2535 = vld [vmem:[%s3 + $0x4b0] sm:$0xff]
    %v2536 = vld [vmem:[%s3 + $0x4b8] sm:$0xf]
    %v2537 = vld [vmem:[%s3 + $0x4bc] sm:$0xff]
    %v2538 = vld [vmem:[%s3 + $0x4c4] sm:$0xf]
    %v2539 = vld [vmem:[%s3 + $0x4c8] sm:$0xff]
    %v2540 = vld [vmem:[%s3 + $0x4d0] sm:$0xf]
    %v2541 = vld [vmem:[%s3 + $0x4d4] sm:$0xff]
    %v2542 = vld [vmem:[%s3 + $0x4dc] sm:$0xf]
    %v2543 = vld [vmem:[%s3 + $0x4e0] sm:$0xff]
    %v2544 = vld [vmem:[%s3 + $0x4e8] sm:$0xf]
    %v2545 = vld [vmem:[%s3 + $0x4ec] sm:$0xff]
    %v2546 = vld [vmem:[%s3 + $0x4f4] sm:$0xf]
    %v2547 = vld [vmem:[%s3 + $0x4f8] sm:$0xff]
    %v2548 = vld [vmem:[%s3 + $0x500] sm:$0xf]
    %v2549 = vld [vmem:[%s3 + $0x504] sm:$0xff]
    %v2550 = vld [vmem:[%s3 + $0x50c] sm:$0xf]
    %v2551 = vld [vmem:[%s3 + $0x510] sm:$0xff]
    %v2552 = vld [vmem:[%s3 + $0x518] sm:$0xf]
    %v2553 = vld [vmem:[%s3 + $0x51c] sm:$0xff]
    %v2554 = vld [vmem:[%s3 + $0x524] sm:$0xf]
    %v2555 = vld [vmem:[%s3 + $0x528] sm:$0xff]
    %v2556 = vld [vmem:[%s3 + $0x530] sm:$0xf]
    %v2557 = vld [vmem:[%s3 + $0x534] sm:$0xff]
    %v2558 = vld [vmem:[%s3 + $0x53c] sm:$0xf]
    %v2559 = vld [vmem:[%s3 + $0x540] sm:$0xff]
    %v2560 = vld [vmem:[%s3 + $0x548] sm:$0xf]
    %v2561 = vld [vmem:[%s3 + $0x54c] sm:$0xff]
    %v2562 = vld [vmem:[%s3 + $0x554] sm:$0xf]
    %v2563 = vld [vmem:[%s3 + $0x558] sm:$0xff]
    %v2564 = vld [vmem:[%s3 + $0x560] sm:$0xf]
    %v2565 = vld [vmem:[%s3 + $0x564] sm:$0xff]
    %v2566 = vld [vmem:[%s3 + $0x56c] sm:$0xf]
    %v2567 = vld [vmem:[%s3 + $0x570] sm:$0xff]
    %v2568 = vld [vmem:[%s3 + $0x578] sm:$0xf]
    %v2569 = vld [vmem:[%s3 + $0x57c] sm:$0xff]
    %v2570 = vld [vmem:[%s3 + $0x584] sm:$0xf]
    %v2571 = vld [vmem:[%s3 + $0x588] sm:$0xff]
    %v2572 = vld [vmem:[%s3 + $0x590] sm:$0xf]
    %v2573 = vld [vmem:[%s3 + $0x594] sm:$0xff]
    %v2574 = vld [vmem:[%s3 + $0x59c] sm:$0xf]
    %v2575 = vld [vmem:[%s3 + $0x5a0] sm:$0xff]
    %v2576 = vld [vmem:[%s3 + $0x5a8] sm:$0xf]
    %v2577 = vld [vmem:[%s3 + $0x5ac] sm:$0xff]
    %v2578 = vld [vmem:[%s3 + $0x5b4] sm:$0xf]
    %v2579 = vld [vmem:[%s3 + $0x5b8] sm:$0xff]
    %v2580 = vld [vmem:[%s3 + $0x5c0] sm:$0xf]
    %v2581 = vld [vmem:[%s3 + $0x5c4] sm:$0xff]
    %v2582 = vld [vmem:[%s3 + $0x5cc] sm:$0xf]
    %v2583 = vld [vmem:[%s3 + $0x5d0] sm:$0xff]
    %v2584 = vld [vmem:[%s3 + $0x5d8] sm:$0xf]
    %v2585 = vld [vmem:[%s3 + $0x5dc] sm:$0xff]
    %v2586 = vld [vmem:[%s3 + $0x5e4] sm:$0xf]
    %v2587 = vld [vmem:[%s3 + $0x5e8] sm:$0xff]
    %v2588 = vld [vmem:[%s3 + $0x5f0] sm:$0xf]
    %v2589 = vld [vmem:[%s3 + $0x5f4] sm:$0xff]
    %v2590 = vld [vmem:[%s3 + $0x5fc] sm:$0xf]
    %v2591 = vld [vmem:[%s3 + $0x600] sm:$0xff]
    %v2592 = vld [vmem:[%s3 + $0x608] sm:$0xf]
    %v2593 = vld [vmem:[%s3 + $0x60c] sm:$0xff]
    %v2594 = vld [vmem:[%s3 + $0x614] sm:$0xf]
    %v2595 = vld [vmem:[%s3 + $0x618] sm:$0xff]
    %v2596 = vld [vmem:[%s3 + $0x620] sm:$0xf]
    %v2597 = vld [vmem:[%s3 + $0x624] sm:$0xff]
    %v2598 = vld [vmem:[%s3 + $0x62c] sm:$0xf]
    %v2599 = vld [vmem:[%s3 + $0x630] sm:$0xff]
    %v2600 = vld [vmem:[%s3 + $0x638] sm:$0xf]
    %v2601 = vld [vmem:[%s3 + $0x63c] sm:$0xff]
    %v2602 = vld [vmem:[%s3 + $0x644] sm:$0xf]
    %v2603 = vld [vmem:[%s3 + $0x648] sm:$0xff]
    %v2604 = vld [vmem:[%s3 + $0x650] sm:$0xf]
    %v2605 = vld [vmem:[%s3 + $0x654] sm:$0xff]
    %v2606 = vld [vmem:[%s3 + $0x65c] sm:$0xf]
    %v2607 = vld [vmem:[%s3 + $0x660] sm:$0xff]
    %v2608 = vld [vmem:[%s3 + $0x668] sm:$0xf]
    %v2609 = vld [vmem:[%s3 + $0x66c] sm:$0xff]
    %v2610 = vld [vmem:[%s3 + $0x674] sm:$0xf]
    %v2611 = vld [vmem:[%s3 + $0x678] sm:$0xff]
    %v2612 = vld [vmem:[%s3 + $0x680] sm:$0xf]
    %v2613 = vld [vmem:[%s3 + $0x684] sm:$0xff]
    %v2614 = vld [vmem:[%s3 + $0x68c] sm:$0xf]
    %v2615 = vld [vmem:[%s3 + $0x690] sm:$0xff]
    %v2616 = vld [vmem:[%s3 + $0x698] sm:$0xf]
    %v2617 = vld [vmem:[%s3 + $0x69c] sm:$0xff]
    %v2618 = vld [vmem:[%s3 + $0x6a4] sm:$0xf]
    %v2619 = vld [vmem:[%s3 + $0x6a8] sm:$0xff]
    %v2620 = vld [vmem:[%s3 + $0x6b0] sm:$0xf]
    %v2621 = vld [vmem:[%s3 + $0x6b4] sm:$0xff]
    %v2622 = vld [vmem:[%s3 + $0x6bc] sm:$0xf]
    %v2623 = vld [vmem:[%s3 + $0x6c0] sm:$0xff]
    %v2624 = vld [vmem:[%s3 + $0x6c8] sm:$0xf]
    %v2625 = vld [vmem:[%s3 + $0x6cc] sm:$0xff]
    %v2626 = vld [vmem:[%s3 + $0x6d4] sm:$0xf]
    %v2627 = vld [vmem:[%s3 + $0x6d8] sm:$0xff]
    %v2628 = vld [vmem:[%s3 + $0x6e0] sm:$0xf]
    %v2629 = vld [vmem:[%s3 + $0x6e4] sm:$0xff]
    %v2630 = vld [vmem:[%s3 + $0x6ec] sm:$0xf]
    %v2631 = vld [vmem:[%s3 + $0x6f0] sm:$0xff]
    %v2632 = vld [vmem:[%s3 + $0x6f8] sm:$0xf]
    %v2633 = vld [vmem:[%s3 + $0x6fc] sm:$0xff]
    %v2634 = vld [vmem:[%s3 + $0x704] sm:$0xf]
    %v2635 = vld [vmem:[%s3 + $0x708] sm:$0xff]
    %v2636 = vld [vmem:[%s3 + $0x710] sm:$0xf]
    %v2637 = vld [vmem:[%s3 + $0x714] sm:$0xff]
    %v2638 = vld [vmem:[%s3 + $0x71c] sm:$0xf]
    %v2639 = vld [vmem:[%s3 + $0x720] sm:$0xff]
    %v2640 = vld [vmem:[%s3 + $0x728] sm:$0xf]
    %v2641 = vld [vmem:[%s3 + $0x72c] sm:$0xff]
    %v2642 = vld [vmem:[%s3 + $0x734] sm:$0xf]
    %v2643 = vld [vmem:[%s3 + $0x738] sm:$0xff]
    %v2644 = vld [vmem:[%s3 + $0x740] sm:$0xf]
    %v2645 = vld [vmem:[%s3 + $0x744] sm:$0xff]
    %v2646 = vld [vmem:[%s3 + $0x74c] sm:$0xf]
    %v2647 = vld [vmem:[%s3 + $0x750] sm:$0xff]
    %v2648 = vld [vmem:[%s3 + $0x758] sm:$0xf]
    %v2649 = vld [vmem:[%s3 + $0x75c] sm:$0xff]
    %v2650 = vld [vmem:[%s3 + $0x764] sm:$0xf]
    %v2651 = vld [vmem:[%s3 + $0x768] sm:$0xff]
    %v2652 = vld [vmem:[%s3 + $0x770] sm:$0xf]
    %v2653 = vld [vmem:[%s3 + $0x774] sm:$0xff]
    %v2654 = vld [vmem:[%s3 + $0x77c] sm:$0xf]
    %v2655 = vld [vmem:[%s3 + $0x780] sm:$0xff]
    %v2656 = vld [vmem:[%s3 + $0x788] sm:$0xf]
    %v2657 = vld [vmem:[%s3 + $0x78c] sm:$0xff]
    %v2658 = vld [vmem:[%s3 + $0x794] sm:$0xf]
    %v2659 = vld [vmem:[%s3 + $0x798] sm:$0xff]
    %v2660 = vld [vmem:[%s3 + $0x7a0] sm:$0xf]
    %v2661 = vld [vmem:[%s3 + $0x7a4] sm:$0xff]
    %v2662 = vld [vmem:[%s3 + $0x7ac] sm:$0xf]
    %v2663 = vld [vmem:[%s3 + $0x7b0] sm:$0xff]
    %v2664 = vld [vmem:[%s3 + $0x7b8] sm:$0xf]
    %v2665 = vld [vmem:[%s3 + $0x7bc] sm:$0xff]
    %v2666 = vld [vmem:[%s3 + $0x7c4] sm:$0xf]
    %v2667 = vld [vmem:[%s3 + $0x7c8] sm:$0xff]
    %v2668 = vld [vmem:[%s3 + $0x7d0] sm:$0xf]
    %v2669 = vld [vmem:[%s3 + $0x7d4] sm:$0xff]
    %v2670 = vld [vmem:[%s3 + $0x7dc] sm:$0xf]
    %v2671 = vld [vmem:[%s3 + $0x7e0] sm:$0xff]
    %v2672 = vld [vmem:[%s3 + $0x7e8] sm:$0xf]
    %v2673 = vld [vmem:[%s3 + $0x7ec] sm:$0xff]
    %v2674 = vld [vmem:[%s3 + $0x7f4] sm:$0xf]
    %v2675 = vld [vmem:[%s3 + $0x7f8] sm:$0xff]
    %v2676 = vld [vmem:[%s3 + $0x800] sm:$0xf]
    %v2677 = vld [vmem:[%s3 + $0x804] sm:$0xff]
    %v2678 = vld [vmem:[%s3 + $0x80c] sm:$0xf]
    %v2679 = vld [vmem:[%s3 + $0x810] sm:$0xff]
    %v2680 = vld [vmem:[%s3 + $0x818] sm:$0xf]
    %v2681 = vld [vmem:[%s3 + $0x81c] sm:$0xff]
    %v2682 = vld [vmem:[%s3 + $0x824] sm:$0xf]
    %v2683 = vld [vmem:[%s3 + $0x828] sm:$0xff]
    %v2684 = vld [vmem:[%s3 + $0x830] sm:$0xf]
    %v2685 = vld [vmem:[%s3 + $0x834] sm:$0xff]
    %v2686 = vld [vmem:[%s3 + $0x83c] sm:$0xf]
    %v2687 = vld [vmem:[%s3 + $0x840] sm:$0xff]
    %v2688 = vld [vmem:[%s3 + $0x848] sm:$0xf]
    %v2689 = vld [vmem:[%s3 + $0x84c] sm:$0xff]
    %v2690 = vld [vmem:[%s3 + $0x854] sm:$0xf]
    %v2691 = vld [vmem:[%s3 + $0x858] sm:$0xff]
    %v2692 = vld [vmem:[%s3 + $0x860] sm:$0xf]
    %v2693 = vld [vmem:[%s3 + $0x864] sm:$0xff]
    %v2694 = vld [vmem:[%s3 + $0x86c] sm:$0xf]
    %v2695 = vld [vmem:[%s3 + $0x870] sm:$0xff]
    %v2696 = vld [vmem:[%s3 + $0x878] sm:$0xf]
    %v2697 = vld [vmem:[%s3 + $0x87c] sm:$0xff]
    %v2698 = vld [vmem:[%s3 + $0x884] sm:$0xf]
    %v2699 = vld [vmem:[%s3 + $0x888] sm:$0xff]
    %v2700 = vld [vmem:[%s3 + $0x890] sm:$0xf]
    %v2701 = vld [vmem:[%s3 + $0x894] sm:$0xff]
    %v2702 = vld [vmem:[%s3 + $0x89c] sm:$0xf]
    %v2703 = vld [vmem:[%s3 + $0x8a0] sm:$0xff]
    %v2704 = vld [vmem:[%s3 + $0x8a8] sm:$0xf]
    %v2705 = vld [vmem:[%s3 + $0x8ac] sm:$0xff]
    %v2706 = vld [vmem:[%s3 + $0x8b4] sm:$0xf]
    %v2707 = vld [vmem:[%s3 + $0x8b8] sm:$0xff]
    %v2708 = vld [vmem:[%s3 + $0x8c0] sm:$0xf]
    %v2709 = vld [vmem:[%s3 + $0x8c4] sm:$0xff]
    %v2710 = vld [vmem:[%s3 + $0x8cc] sm:$0xf]
    %v2711 = vld [vmem:[%s3 + $0x8d0] sm:$0xff]
    %v2712 = vld [vmem:[%s3 + $0x8d8] sm:$0xf]
    %v2713 = vld [vmem:[%s3 + $0x8dc] sm:$0xff]
    %v2714 = vld [vmem:[%s3 + $0x8e4] sm:$0xf]
    %v2715 = vld [vmem:[%s3 + $0x8e8] sm:$0xff]
    %v2716 = vld [vmem:[%s3 + $0x8f0] sm:$0xf]
    %v2717 = vld [vmem:[%s3 + $0x8f4] sm:$0xff]
    %v2718 = vld [vmem:[%s3 + $0x8fc] sm:$0xf]
    %v2719 = vld [vmem:[%s4] sm:$0x7]
    %v2721 = vperm.slane %v2719, 0
    %v2722 = vperm.slane %v2719, 1
    %v2723 = vperm.slane %v2719, 2
    %v3111 = vunpack.c.l.b16 %v2335
    %v3112 = vunpack.c.h.b16 %v2335
    %v3113 = vunpack.c.l.b16 %v2336
    %v3114 = vunpack.c.l.b16 %v2337
    %v3115 = vunpack.c.h.b16 %v2337
    %v3116 = vunpack.c.l.b16 %v2338
    %v3117 = vunpack.c.l.b16 %v2339
    %v3118 = vunpack.c.h.b16 %v2339
    %v3119 = vunpack.c.l.b16 %v2340
    %v3120 = vunpack.c.l.b16 %v2341
    %v3121 = vunpack.c.h.b16 %v2341
    %v3122 = vunpack.c.l.b16 %v2342
    %v3123 = vunpack.c.l.b16 %v2343
    %v3124 = vunpack.c.h.b16 %v2343
    %v3125 = vunpack.c.l.b16 %v2344
    %v3126 = vunpack.c.l.b16 %v2345
    %v3127 = vunpack.c.h.b16 %v2345
    %v3128 = vunpack.c.l.b16 %v2346
    %v3129 = vunpack.c.l.b16 %v2347
    %v3130 = vunpack.c.h.b16 %v2347
    %v3131 = vunpack.c.l.b16 %v2348
    %v3132 = vunpack.c.l.b16 %v2349
    %v3133 = vunpack.c.h.b16 %v2349
    %v3134 = vunpack.c.l.b16 %v2350
    %v3135 = vunpack.c.l.b16 %v2351
    %v3136 = vunpack.c.h.b16 %v2351
    %v3137 = vunpack.c.l.b16 %v2352
    %v3138 = vunpack.c.l.b16 %v2353
    %v3139 = vunpack.c.h.b16 %v2353
    %v3140 = vunpack.c.l.b16 %v2354
    %v3141 = vunpack.c.l.b16 %v2355
    %v3142 = vunpack.c.h.b16 %v2355
    %v3143 = vunpack.c.l.b16 %v2356
    %v3144 = vunpack.c.l.b16 %v2357
    %v3145 = vunpack.c.h.b16 %v2357
    %v3146 = vunpack.c.l.b16 %v2358
    %v3147 = vunpack.c.l.b16 %v2359
    %v3148 = vunpack.c.h.b16 %v2359
    %v3149 = vunpack.c.l.b16 %v2360
    %v3150 = vunpack.c.l.b16 %v2361
    %v3151 = vunpack.c.h.b16 %v2361
    %v3152 = vunpack.c.l.b16 %v2362
    %v3153 = vunpack.c.l.b16 %v2363
    %v3154 = vunpack.c.h.b16 %v2363
    %v3155 = vunpack.c.l.b16 %v2364
    %v3156 = vunpack.c.l.b16 %v2365
    %v3157 = vunpack.c.h.b16 %v2365
    %v3158 = vunpack.c.l.b16 %v2366
    %v3159 = vunpack.c.l.b16 %v2367
    %v3160 = vunpack.c.h.b16 %v2367
    %v3161 = vunpack.c.l.b16 %v2368
    %v3162 = vunpack.c.l.b16 %v2369
    %v3163 = vunpack.c.h.b16 %v2369
    %v3164 = vunpack.c.l.b16 %v2370
    %v3165 = vunpack.c.l.b16 %v2371
    %v3166 = vunpack.c.h.b16 %v2371
    %v3167 = vunpack.c.l.b16 %v2372
    %v3168 = vunpack.c.l.b16 %v2373
    %v3169 = vunpack.c.h.b16 %v2373
    %v3170 = vunpack.c.l.b16 %v2374
    %v3171 = vunpack.c.l.b16 %v2375
    %v3172 = vunpack.c.h.b16 %v2375
    %v3173 = vunpack.c.l.b16 %v2376
    %v3174 = vunpack.c.l.b16 %v2377
    %v3175 = vunpack.c.h.b16 %v2377
    %v3176 = vunpack.c.l.b16 %v2378
    %v3177 = vunpack.c.l.b16 %v2379
    %v3178 = vunpack.c.h.b16 %v2379
    %v3179 = vunpack.c.l.b16 %v2380
    %v3180 = vunpack.c.l.b16 %v2381
    %v3181 = vunpack.c.h.b16 %v2381
    %v3182 = vunpack.c.l.b16 %v2382
    %v3183 = vunpack.c.l.b16 %v2383
    %v3184 = vunpack.c.h.b16 %v2383
    %v3185 = vunpack.c.l.b16 %v2384
    %v3186 = vunpack.c.l.b16 %v2385
    %v3187 = vunpack.c.h.b16 %v2385
    %v3188 = vunpack.c.l.b16 %v2386
    %v3189 = vunpack.c.l.b16 %v2387
    %v3190 = vunpack.c.h.b16 %v2387
    %v3191 = vunpack.c.l.b16 %v2388
    %v3192 = vunpack.c.l.b16 %v2389
    %v3193 = vunpack.c.h.b16 %v2389
    %v3194 = vunpack.c.l.b16 %v2390
    %v3195 = vunpack.c.l.b16 %v2391
    %v3196 = vunpack.c.h.b16 %v2391
    %v3197 = vunpack.c.l.b16 %v2392
    %v3198 = vunpack.c.l.b16 %v2393
    %v3199 = vunpack.c.h.b16 %v2393
    %v3200 = vunpack.c.l.b16 %v2394
    %v3201 = vunpack.c.l.b16 %v2395
    %v3202 = vunpack.c.h.b16 %v2395
    %v3203 = vunpack.c.l.b16 %v2396
    %v3204 = vunpack.c.l.b16 %v2397
    %v3205 = vunpack.c.h.b16 %v2397
    %v3206 = vunpack.c.l.b16 %v2398
    %v3207 = vunpack.c.l.b16 %v2399
    %v3208 = vunpack.c.h.b16 %v2399
    %v3209 = vunpack.c.l.b16 %v2400
    %v3210 = vunpack.c.l.b16 %v2401
    %v3211 = vunpack.c.h.b16 %v2401
    %v3212 = vunpack.c.l.b16 %v2402
    %v3213 = vunpack.c.l.b16 %v2403
    %v3214 = vunpack.c.h.b16 %v2403
    %v3215 = vunpack.c.l.b16 %v2404
    %v3216 = vunpack.c.l.b16 %v2405
    %v3217 = vunpack.c.h.b16 %v2405
    %v3218 = vunpack.c.l.b16 %v2406
    %v3219 = vunpack.c.l.b16 %v2407
    %v3220 = vunpack.c.h.b16 %v2407
    %v3221 = vunpack.c.l.b16 %v2408
    %v3222 = vunpack.c.l.b16 %v2409
    %v3223 = vunpack.c.h.b16 %v2409
    %v3224 = vunpack.c.l.b16 %v2410
    %v3225 = vunpack.c.l.b16 %v2411
    %v3226 = vunpack.c.h.b16 %v2411
    %v3227 = vunpack.c.l.b16 %v2412
    %v3228 = vunpack.c.l.b16 %v2413
    %v3229 = vunpack.c.h.b16 %v2413
    %v3230 = vunpack.c.l.b16 %v2414
    %v3231 = vunpack.c.l.b16 %v2415
    %v3232 = vunpack.c.h.b16 %v2415
    %v3233 = vunpack.c.l.b16 %v2416
    %v3234 = vunpack.c.l.b16 %v2417
    %v3235 = vunpack.c.h.b16 %v2417
    %v3236 = vunpack.c.l.b16 %v2418
    %v3237 = vunpack.c.l.b16 %v2419
    %v3238 = vunpack.c.h.b16 %v2419
    %v3239 = vunpack.c.l.b16 %v2420
    %v3240 = vunpack.c.l.b16 %v2421
    %v3241 = vunpack.c.h.b16 %v2421
    %v3242 = vunpack.c.l.b16 %v2422
    %v3243 = vunpack.c.l.b16 %v2423
    %v3244 = vunpack.c.h.b16 %v2423
    %v3245 = vunpack.c.l.b16 %v2424
    %v3246 = vunpack.c.l.b16 %v2425
    %v3247 = vunpack.c.h.b16 %v2425
    %v3248 = vunpack.c.l.b16 %v2426
    %v3249 = vunpack.c.l.b16 %v2427
    %v3250 = vunpack.c.h.b16 %v2427
    %v3251 = vunpack.c.l.b16 %v2428
    %v3252 = vunpack.c.l.b16 %v2429
    %v3253 = vunpack.c.h.b16 %v2429
    %v3254 = vunpack.c.l.b16 %v2430
    %v3255 = vunpack.c.l.b16 %v2431
    %v3256 = vunpack.c.h.b16 %v2431
    %v3257 = vunpack.c.l.b16 %v2432
    %v3258 = vunpack.c.l.b16 %v2433
    %v3259 = vunpack.c.h.b16 %v2433
    %v3260 = vunpack.c.l.b16 %v2434
    %v3261 = vunpack.c.l.b16 %v2435
    %v3262 = vunpack.c.h.b16 %v2435
    %v3263 = vunpack.c.l.b16 %v2436
    %v3264 = vunpack.c.l.b16 %v2437
    %v3265 = vunpack.c.h.b16 %v2437
    %v3266 = vunpack.c.l.b16 %v2438
    %v3267 = vunpack.c.l.b16 %v2439
    %v3268 = vunpack.c.h.b16 %v2439
    %v3269 = vunpack.c.l.b16 %v2440
    %v3270 = vunpack.c.l.b16 %v2441
    %v3271 = vunpack.c.h.b16 %v2441
    %v3272 = vunpack.c.l.b16 %v2442
    %v3273 = vunpack.c.l.b16 %v2443
    %v3274 = vunpack.c.h.b16 %v2443
    %v3275 = vunpack.c.l.b16 %v2444
    %v3276 = vunpack.c.l.b16 %v2445
    %v3277 = vunpack.c.h.b16 %v2445
    %v3278 = vunpack.c.l.b16 %v2446
    %v3279 = vunpack.c.l.b16 %v2447
    %v3280 = vunpack.c.h.b16 %v2447
    %v3281 = vunpack.c.l.b16 %v2448
    %v3282 = vunpack.c.l.b16 %v2449
    %v3283 = vunpack.c.h.b16 %v2449
    %v3284 = vunpack.c.l.b16 %v2450
    %v3285 = vunpack.c.l.b16 %v2451
    %v3286 = vunpack.c.h.b16 %v2451
    %v3287 = vunpack.c.l.b16 %v2452
    %v3288 = vunpack.c.l.b16 %v2453
    %v3289 = vunpack.c.h.b16 %v2453
    %v3290 = vunpack.c.l.b16 %v2454
    %v3291 = vunpack.c.l.b16 %v2455
    %v3292 = vunpack.c.h.b16 %v2455
    %v3293 = vunpack.c.l.b16 %v2456
    %v3294 = vunpack.c.l.b16 %v2457
    %v3295 = vunpack.c.h.b16 %v2457
    %v3296 = vunpack.c.l.b16 %v2458
    %v3297 = vunpack.c.l.b16 %v2459
    %v3298 = vunpack.c.h.b16 %v2459
    %v3299 = vunpack.c.l.b16 %v2460
    %v3300 = vunpack.c.l.b16 %v2461
    %v3301 = vunpack.c.h.b16 %v2461
    %v3302 = vunpack.c.l.b16 %v2462
    %v3303 = vunpack.c.l.b16 %v2463
    %v3304 = vunpack.c.h.b16 %v2463
    %v3305 = vunpack.c.l.b16 %v2464
    %v3306 = vunpack.c.l.b16 %v2465
    %v3307 = vunpack.c.h.b16 %v2465
    %v3308 = vunpack.c.l.b16 %v2466
    %v3309 = vunpack.c.l.b16 %v2467
    %v3310 = vunpack.c.h.b16 %v2467
    %v3311 = vunpack.c.l.b16 %v2468
    %v3312 = vunpack.c.l.b16 %v2469
    %v3313 = vunpack.c.h.b16 %v2469
    %v3314 = vunpack.c.l.b16 %v2470
    %v3315 = vunpack.c.l.b16 %v2471
    %v3316 = vunpack.c.h.b16 %v2471
    %v3317 = vunpack.c.l.b16 %v2472
    %v3318 = vunpack.c.l.b16 %v2473
    %v3319 = vunpack.c.h.b16 %v2473
    %v3320 = vunpack.c.l.b16 %v2474
    %v3321 = vunpack.c.l.b16 %v2475
    %v3322 = vunpack.c.h.b16 %v2475
    %v3323 = vunpack.c.l.b16 %v2476
    %v3324 = vunpack.c.l.b16 %v2477
    %v3325 = vunpack.c.h.b16 %v2477
    %v3326 = vunpack.c.l.b16 %v2478
    %v3327 = vunpack.c.l.b16 %v2479
    %v3328 = vunpack.c.h.b16 %v2479
    %v3329 = vunpack.c.l.b16 %v2480
    %v3330 = vunpack.c.l.b16 %v2481
    %v3331 = vunpack.c.h.b16 %v2481
    %v3332 = vunpack.c.l.b16 %v2482
    %v3333 = vunpack.c.l.b16 %v2483
    %v3334 = vunpack.c.h.b16 %v2483
    %v3335 = vunpack.c.l.b16 %v2484
    %v3336 = vunpack.c.l.b16 %v2485
    %v3337 = vunpack.c.h.b16 %v2485
    %v3338 = vunpack.c.l.b16 %v2486
    %v3339 = vunpack.c.l.b16 %v2487
    %v3340 = vunpack.c.h.b16 %v2487
    %v3341 = vunpack.c.l.b16 %v2488
    %v3342 = vunpack.c.l.b16 %v2489
    %v3343 = vunpack.c.h.b16 %v2489
    %v3344 = vunpack.c.l.b16 %v2490
    %v3345 = vunpack.c.l.b16 %v2491
    %v3346 = vunpack.c.h.b16 %v2491
    %v3347 = vunpack.c.l.b16 %v2492
    %v3348 = vunpack.c.l.b16 %v2493
    %v3349 = vunpack.c.h.b16 %v2493
    %v3350 = vunpack.c.l.b16 %v2494
    %v3351 = vunpack.c.l.b16 %v2495
    %v3352 = vunpack.c.h.b16 %v2495
    %v3353 = vunpack.c.l.b16 %v2496
    %v3354 = vunpack.c.l.b16 %v2497
    %v3355 = vunpack.c.h.b16 %v2497
    %v3356 = vunpack.c.l.b16 %v2498
    %v3357 = vunpack.c.l.b16 %v2499
    %v3358 = vunpack.c.h.b16 %v2499
    %v3359 = vunpack.c.l.b16 %v2500
    %v3360 = vunpack.c.l.b16 %v2501
    %v3361 = vunpack.c.h.b16 %v2501
    %v3362 = vunpack.c.l.b16 %v2502
    %v3363 = vunpack.c.l.b16 %v2503
    %v3364 = vunpack.c.h.b16 %v2503
    %v3365 = vunpack.c.l.b16 %v2504
    %v3366 = vunpack.c.l.b16 %v2505
    %v3367 = vunpack.c.h.b16 %v2505
    %v3368 = vunpack.c.l.b16 %v2506
    %v3369 = vunpack.c.l.b16 %v2507
    %v3370 = vunpack.c.h.b16 %v2507
    %v3371 = vunpack.c.l.b16 %v2508
    %v3372 = vunpack.c.l.b16 %v2509
    %v3373 = vunpack.c.h.b16 %v2509
    %v3374 = vunpack.c.l.b16 %v2510
    %v3375 = vunpack.c.l.b16 %v2511
    %v3376 = vunpack.c.h.b16 %v2511
    %v3377 = vunpack.c.l.b16 %v2512
    %v3378 = vunpack.c.l.b16 %v2513
    %v3379 = vunpack.c.h.b16 %v2513
    %v3380 = vunpack.c.l.b16 %v2514
    %v3381 = vunpack.c.l.b16 %v2515
    %v3382 = vunpack.c.h.b16 %v2515
    %v3383 = vunpack.c.l.b16 %v2516
    %v3384 = vunpack.c.l.b16 %v2517
    %v3385 = vunpack.c.h.b16 %v2517
    %v3386 = vunpack.c.l.b16 %v2518
    %v3387 = vunpack.c.l.b16 %v2519
    %v3388 = vunpack.c.h.b16 %v2519
    %v3389 = vunpack.c.l.b16 %v2520
    %v3390 = vunpack.c.l.b16 %v2521
    %v3391 = vunpack.c.h.b16 %v2521
    %v3392 = vunpack.c.l.b16 %v2522
    %v3393 = vunpack.c.l.b16 %v2523
    %v3394 = vunpack.c.h.b16 %v2523
    %v3395 = vunpack.c.l.b16 %v2524
    %v3396 = vunpack.c.l.b16 %v2525
    %v3397 = vunpack.c.h.b16 %v2525
    %v3398 = vunpack.c.l.b16 %v2526
    %v3399 = vunpack.c.l.b16 %v2527
    %v3400 = vunpack.c.h.b16 %v2527
    %v3401 = vunpack.c.l.b16 %v2528
    %v3402 = vunpack.c.l.b16 %v2529
    %v3403 = vunpack.c.h.b16 %v2529
    %v3404 = vunpack.c.l.b16 %v2530
    %v3405 = vunpack.c.l.b16 %v2531
    %v3406 = vunpack.c.h.b16 %v2531
    %v3407 = vunpack.c.l.b16 %v2532
    %v3408 = vunpack.c.l.b16 %v2533
    %v3409 = vunpack.c.h.b16 %v2533
    %v3410 = vunpack.c.l.b16 %v2534
    %v3411 = vunpack.c.l.b16 %v2535
    %v3412 = vunpack.c.h.b16 %v2535
    %v3413 = vunpack.c.l.b16 %v2536
    %v3414 = vunpack.c.l.b16 %v2537
    %v3415 = vunpack.c.h.b16 %v2537
    %v3416 = vunpack.c.l.b16 %v2538
    %v3417 = vunpack.c.l.b16 %v2539
    %v3418 = vunpack.c.h.b16 %v2539
    %v3419 = vunpack.c.l.b16 %v2540
    %v3420 = vunpack.c.l.b16 %v2541
    %v3421 = vunpack.c.h.b16 %v2541
    %v3422 = vunpack.c.l.b16 %v2542
    %v3423 = vunpack.c.l.b16 %v2543
    %v3424 = vunpack.c.h.b16 %v2543
    %v3425 = vunpack.c.l.b16 %v2544
    %v3426 = vunpack.c.l.b16 %v2545
    %v3427 = vunpack.c.h.b16 %v2545
    %v3428 = vunpack.c.l.b16 %v2546
    %v3429 = vunpack.c.l.b16 %v2547
    %v3430 = vunpack.c.h.b16 %v2547
    %v3431 = vunpack.c.l.b16 %v2548
    %v3432 = vunpack.c.l.b16 %v2549
    %v3433 = vunpack.c.h.b16 %v2549
    %v3434 = vunpack.c.l.b16 %v2550
    %v3435 = vunpack.c.l.b16 %v2551
    %v3436 = vunpack.c.h.b16 %v2551
    %v3437 = vunpack.c.l.b16 %v2552
    %v3438 = vunpack.c.l.b16 %v2553
    %v3439 = vunpack.c.h.b16 %v2553
    %v3440 = vunpack.c.l.b16 %v2554
    %v3441 = vunpack.c.l.b16 %v2555
    %v3442 = vunpack.c.h.b16 %v2555
    %v3443 = vunpack.c.l.b16 %v2556
    %v3444 = vunpack.c.l.b16 %v2557
    %v3445 = vunpack.c.h.b16 %v2557
    %v3446 = vunpack.c.l.b16 %v2558
    %v3447 = vunpack.c.l.b16 %v2559
    %v3448 = vunpack.c.h.b16 %v2559
    %v3449 = vunpack.c.l.b16 %v2560
    %v3450 = vunpack.c.l.b16 %v2561
    %v3451 = vunpack.c.h.b16 %v2561
    %v3452 = vunpack.c.l.b16 %v2562
    %v3453 = vunpack.c.l.b16 %v2563
    %v3454 = vunpack.c.h.b16 %v2563
    %v3455 = vunpack.c.l.b16 %v2564
    %v3456 = vunpack.c.l.b16 %v2565
    %v3457 = vunpack.c.h.b16 %v2565
    %v3458 = vunpack.c.l.b16 %v2566
    %v3459 = vunpack.c.l.b16 %v2567
    %v3460 = vunpack.c.h.b16 %v2567
    %v3461 = vunpack.c.l.b16 %v2568
    %v3462 = vunpack.c.l.b16 %v2569
    %v3463 = vunpack.c.h.b16 %v2569
    %v3464 = vunpack.c.l.b16 %v2570
    %v3465 = vunpack.c.l.b16 %v2571
    %v3466 = vunpack.c.h.b16 %v2571
    %v3467 = vunpack.c.l.b16 %v2572
    %v3468 = vunpack.c.l.b16 %v2573
    %v3469 = vunpack.c.h.b16 %v2573
    %v3470 = vunpack.c.l.b16 %v2574
    %v3471 = vunpack.c.l.b16 %v2575
    %v3472 = vunpack.c.h.b16 %v2575
    %v3473 = vunpack.c.l.b16 %v2576
    %v3474 = vunpack.c.l.b16 %v2577
    %v3475 = vunpack.c.h.b16 %v2577
    %v3476 = vunpack.c.l.b16 %v2578
    %v3477 = vunpack.c.l.b16 %v2579
    %v3478 = vunpack.c.h.b16 %v2579
    %v3479 = vunpack.c.l.b16 %v2580
    %v3480 = vunpack.c.l.b16 %v2581
    %v3481 = vunpack.c.h.b16 %v2581
    %v3482 = vunpack.c.l.b16 %v2582
    %v3483 = vunpack.c.l.b16 %v2583
    %v3484 = vunpack.c.h.b16 %v2583
    %v3485 = vunpack.c.l.b16 %v2584
    %v3486 = vunpack.c.l.b16 %v2585
    %v3487 = vunpack.c.h.b16 %v2585
    %v3488 = vunpack.c.l.b16 %v2586
    %v3489 = vunpack.c.l.b16 %v2587
    %v3490 = vunpack.c.h.b16 %v2587
    %v3491 = vunpack.c.l.b16 %v2588
    %v3492 = vunpack.c.l.b16 %v2589
    %v3493 = vunpack.c.h.b16 %v2589
    %v3494 = vunpack.c.l.b16 %v2590
    %v3495 = vunpack.c.l.b16 %v2591
    %v3496 = vunpack.c.h.b16 %v2591
    %v3497 = vunpack.c.l.b16 %v2592
    %v3498 = vunpack.c.l.b16 %v2593
    %v3499 = vunpack.c.h.b16 %v2593
    %v3500 = vunpack.c.l.b16 %v2594
    %v3501 = vunpack.c.l.b16 %v2595
    %v3502 = vunpack.c.h.b16 %v2595
    %v3503 = vunpack.c.l.b16 %v2596
    %v3504 = vunpack.c.l.b16 %v2597
    %v3505 = vunpack.c.h.b16 %v2597
    %v3506 = vunpack.c.l.b16 %v2598
    %v3507 = vunpack.c.l.b16 %v2599
    %v3508 = vunpack.c.h.b16 %v2599
    %v3509 = vunpack.c.l.b16 %v2600
    %v3510 = vunpack.c.l.b16 %v2601
    %v3511 = vunpack.c.h.b16 %v2601
    %v3512 = vunpack.c.l.b16 %v2602
    %v3513 = vunpack.c.l.b16 %v2603
    %v3514 = vunpack.c.h.b16 %v2603
    %v3515 = vunpack.c.l.b16 %v2604
    %v3516 = vunpack.c.l.b16 %v2605
    %v3517 = vunpack.c.h.b16 %v2605
    %v3518 = vunpack.c.l.b16 %v2606
    %v3519 = vunpack.c.l.b16 %v2607
    %v3520 = vunpack.c.h.b16 %v2607
    %v3521 = vunpack.c.l.b16 %v2608
    %v3522 = vunpack.c.l.b16 %v2609
    %v3523 = vunpack.c.h.b16 %v2609
    %v3524 = vunpack.c.l.b16 %v2610
    %v3525 = vunpack.c.l.b16 %v2611
    %v3526 = vunpack.c.h.b16 %v2611
    %v3527 = vunpack.c.l.b16 %v2612
    %v3528 = vunpack.c.l.b16 %v2613
    %v3529 = vunpack.c.h.b16 %v2613
    %v3530 = vunpack.c.l.b16 %v2614
    %v3531 = vunpack.c.l.b16 %v2615
    %v3532 = vunpack.c.h.b16 %v2615
    %v3533 = vunpack.c.l.b16 %v2616
    %v3534 = vunpack.c.l.b16 %v2617
    %v3535 = vunpack.c.h.b16 %v2617
    %v3536 = vunpack.c.l.b16 %v2618
    %v3537 = vunpack.c.l.b16 %v2619
    %v3538 = vunpack.c.h.b16 %v2619
    %v3539 = vunpack.c.l.b16 %v2620
    %v3540 = vunpack.c.l.b16 %v2621
    %v3541 = vunpack.c.h.b16 %v2621
    %v3542 = vunpack.c.l.b16 %v2622
    %v3543 = vunpack.c.l.b16 %v2623
    %v3544 = vunpack.c.h.b16 %v2623
    %v3545 = vunpack.c.l.b16 %v2624
    %v3546 = vunpack.c.l.b16 %v2625
    %v3547 = vunpack.c.h.b16 %v2625
    %v3548 = vunpack.c.l.b16 %v2626
    %v3549 = vunpack.c.l.b16 %v2627
    %v3550 = vunpack.c.h.b16 %v2627
    %v3551 = vunpack.c.l.b16 %v2628
    %v3552 = vunpack.c.l.b16 %v2629
    %v3553 = vunpack.c.h.b16 %v2629
    %v3554 = vunpack.c.l.b16 %v2630
    %v3555 = vunpack.c.l.b16 %v2631
    %v3556 = vunpack.c.h.b16 %v2631
    %v3557 = vunpack.c.l.b16 %v2632
    %v3558 = vunpack.c.l.b16 %v2633
    %v3559 = vunpack.c.h.b16 %v2633
    %v3560 = vunpack.c.l.b16 %v2634
    %v3561 = vunpack.c.l.b16 %v2635
    %v3562 = vunpack.c.h.b16 %v2635
    %v3563 = vunpack.c.l.b16 %v2636
    %v3564 = vunpack.c.l.b16 %v2637
    %v3565 = vunpack.c.h.b16 %v2637
    %v3566 = vunpack.c.l.b16 %v2638
    %v3567 = vunpack.c.l.b16 %v2639
    %v3568 = vunpack.c.h.b16 %v2639
    %v3569 = vunpack.c.l.b16 %v2640
    %v3570 = vunpack.c.l.b16 %v2641
    %v3571 = vunpack.c.h.b16 %v2641
    %v3572 = vunpack.c.l.b16 %v2642
    %v3573 = vunpack.c.l.b16 %v2643
    %v3574 = vunpack.c.h.b16 %v2643
    %v3575 = vunpack.c.l.b16 %v2644
    %v3576 = vunpack.c.l.b16 %v2645
    %v3577 = vunpack.c.h.b16 %v2645
    %v3578 = vunpack.c.l.b16 %v2646
    %v3579 = vunpack.c.l.b16 %v2647
    %v3580 = vunpack.c.h.b16 %v2647
    %v3581 = vunpack.c.l.b16 %v2648
    %v3582 = vunpack.c.l.b16 %v2649
    %v3583 = vunpack.c.h.b16 %v2649
    %v3584 = vunpack.c.l.b16 %v2650
    %v3585 = vunpack.c.l.b16 %v2651
    %v3586 = vunpack.c.h.b16 %v2651
    %v3587 = vunpack.c.l.b16 %v2652
    %v3588 = vunpack.c.l.b16 %v2653
    %v3589 = vunpack.c.h.b16 %v2653
    %v3590 = vunpack.c.l.b16 %v2654
    %v3591 = vunpack.c.l.b16 %v2655
    %v3592 = vunpack.c.h.b16 %v2655
    %v3593 = vunpack.c.l.b16 %v2656
    %v3594 = vunpack.c.l.b16 %v2657
    %v3595 = vunpack.c.h.b16 %v2657
    %v3596 = vunpack.c.l.b16 %v2658
    %v3597 = vunpack.c.l.b16 %v2659
    %v3598 = vunpack.c.h.b16 %v2659
    %v3599 = vunpack.c.l.b16 %v2660
    %v3600 = vunpack.c.l.b16 %v2661
    %v3601 = vunpack.c.h.b16 %v2661
    %v3602 = vunpack.c.l.b16 %v2662
    %v3603 = vunpack.c.l.b16 %v2663
    %v3604 = vunpack.c.h.b16 %v2663
    %v3605 = vunpack.c.l.b16 %v2664
    %v3606 = vunpack.c.l.b16 %v2665
    %v3607 = vunpack.c.h.b16 %v2665
    %v3608 = vunpack.c.l.b16 %v2666
    %v3609 = vunpack.c.l.b16 %v2667
    %v3610 = vunpack.c.h.b16 %v2667
    %v3611 = vunpack.c.l.b16 %v2668
    %v3612 = vunpack.c.l.b16 %v2669
    %v3613 = vunpack.c.h.b16 %v2669
    %v3614 = vunpack.c.l.b16 %v2670
    %v3615 = vunpack.c.l.b16 %v2671
    %v3616 = vunpack.c.h.b16 %v2671
    %v3617 = vunpack.c.l.b16 %v2672
    %v3618 = vunpack.c.l.b16 %v2673
    %v3619 = vunpack.c.h.b16 %v2673
    %v3620 = vunpack.c.l.b16 %v2674
    %v3621 = vunpack.c.l.b16 %v2675
    %v3622 = vunpack.c.h.b16 %v2675
    %v3623 = vunpack.c.l.b16 %v2676
    %v3624 = vunpack.c.l.b16 %v2677
    %v3625 = vunpack.c.h.b16 %v2677
    %v3626 = vunpack.c.l.b16 %v2678
    %v3627 = vunpack.c.l.b16 %v2679
    %v3628 = vunpack.c.h.b16 %v2679
    %v3629 = vunpack.c.l.b16 %v2680
    %v3630 = vunpack.c.l.b16 %v2681
    %v3631 = vunpack.c.h.b16 %v2681
    %v3632 = vunpack.c.l.b16 %v2682
    %v3633 = vunpack.c.l.b16 %v2683
    %v3634 = vunpack.c.h.b16 %v2683
    %v3635 = vunpack.c.l.b16 %v2684
    %v3636 = vunpack.c.l.b16 %v2685
    %v3637 = vunpack.c.h.b16 %v2685
    %v3638 = vunpack.c.l.b16 %v2686
    %v3639 = vunpack.c.l.b16 %v2687
    %v3640 = vunpack.c.h.b16 %v2687
    %v3641 = vunpack.c.l.b16 %v2688
    %v3642 = vunpack.c.l.b16 %v2689
    %v3643 = vunpack.c.h.b16 %v2689
    %v3644 = vunpack.c.l.b16 %v2690
    %v3645 = vunpack.c.l.b16 %v2691
    %v3646 = vunpack.c.h.b16 %v2691
    %v3647 = vunpack.c.l.b16 %v2692
    %v3648 = vunpack.c.l.b16 %v2693
    %v3649 = vunpack.c.h.b16 %v2693
    %v3650 = vunpack.c.l.b16 %v2694
    %v3651 = vunpack.c.l.b16 %v2695
    %v3652 = vunpack.c.h.b16 %v2695
    %v3653 = vunpack.c.l.b16 %v2696
    %v3654 = vunpack.c.l.b16 %v2697
    %v3655 = vunpack.c.h.b16 %v2697
    %v3656 = vunpack.c.l.b16 %v2698
    %v3657 = vunpack.c.l.b16 %v2699
    %v3658 = vunpack.c.h.b16 %v2699
    %v3659 = vunpack.c.l.b16 %v2700
    %v3660 = vunpack.c.l.b16 %v2701
    %v3661 = vunpack.c.h.b16 %v2701
    %v3662 = vunpack.c.l.b16 %v2702
    %v3663 = vunpack.c.l.b16 %v2703
    %v3664 = vunpack.c.h.b16 %v2703
    %v3665 = vunpack.c.l.b16 %v2704
    %v3666 = vunpack.c.l.b16 %v2705
    %v3667 = vunpack.c.h.b16 %v2705
    %v3668 = vunpack.c.l.b16 %v2706
    %v3669 = vunpack.c.l.b16 %v2707
    %v3670 = vunpack.c.h.b16 %v2707
    %v3671 = vunpack.c.l.b16 %v2708
    %v3672 = vunpack.c.l.b16 %v2709
    %v3673 = vunpack.c.h.b16 %v2709
    %v3674 = vunpack.c.l.b16 %v2710
    %v3675 = vunpack.c.l.b16 %v2711
    %v3676 = vunpack.c.h.b16 %v2711
    %v3677 = vunpack.c.l.b16 %v2712
    %v3678 = vunpack.c.l.b16 %v2713
    %v3679 = vunpack.c.h.b16 %v2713
    %v3680 = vunpack.c.l.b16 %v2714
    %v3681 = vunpack.c.l.b16 %v2715
    %v3682 = vunpack.c.h.b16 %v2715
    %v3683 = vunpack.c.l.b16 %v2716
    %v3684 = vunpack.c.l.b16 %v2717
    %v3685 = vunpack.c.h.b16 %v2717
    %v3686 = vunpack.c.l.b16 %v2718
    %v3687 = vpack.c.b16 %v3114, %v3111
    %v3688 = vpack.c.b16 %v3115, %v3112
    %v3689 = vpack.c.b16 %v3116, %v3113
    %v3690 = vpack.c.b16 %v3120, %v3117
    %v3691 = vpack.c.b16 %v3121, %v3118
    %v3692 = vpack.c.b16 %v3122, %v3119
    %v3693 = vpack.c.b16 %v3126, %v3123
    %v3694 = vpack.c.b16 %v3127, %v3124
    %v3695 = vpack.c.b16 %v3128, %v3125
    %v3696 = vpack.c.b16 %v3132, %v3129
    %v3697 = vpack.c.b16 %v3133, %v3130
    %v3698 = vpack.c.b16 %v3134, %v3131
    %v3699 = vpack.c.b16 %v3138, %v3135
    %v3700 = vpack.c.b16 %v3139, %v3136
    %v3701 = vpack.c.b16 %v3140, %v3137
    %v3702 = vpack.c.b16 %v3144, %v3141
    %v3703 = vpack.c.b16 %v3145, %v3142
    %v3704 = vpack.c.b16 %v3146, %v3143
    %v3705 = vpack.c.b16 %v3150, %v3147
    %v3706 = vpack.c.b16 %v3151, %v3148
    %v3707 = vpack.c.b16 %v3152, %v3149
    %v3708 = vpack.c.b16 %v3156, %v3153
    %v3709 = vpack.c.b16 %v3157, %v3154
    %v3710 = vpack.c.b16 %v3158, %v3155
    %v3711 = vpack.c.b16 %v3162, %v3159
    %v3712 = vpack.c.b16 %v3163, %v3160
    %v3713 = vpack.c.b16 %v3164, %v3161
    %v3714 = vpack.c.b16 %v3168, %v3165
    %v3715 = vpack.c.b16 %v3169, %v3166
    %v3716 = vpack.c.b16 %v3170, %v3167
    %v3717 = vpack.c.b16 %v3174, %v3171
    %v3718 = vpack.c.b16 %v3175, %v3172
    %v3719 = vpack.c.b16 %v3176, %v3173
    %v3720 = vpack.c.b16 %v3180, %v3177
    %v3721 = vpack.c.b16 %v3181, %v3178
    %v3722 = vpack.c.b16 %v3182, %v3179
    %v3723 = vpack.c.b16 %v3186, %v3183
    %v3724 = vpack.c.b16 %v3187, %v3184
    %v3725 = vpack.c.b16 %v3188, %v3185
    %v3726 = vpack.c.b16 %v3192, %v3189
    %v3727 = vpack.c.b16 %v3193, %v3190
    %v3728 = vpack.c.b16 %v3194, %v3191
    %v3729 = vpack.c.b16 %v3198, %v3195
    %v3730 = vpack.c.b16 %v3199, %v3196
    %v3731 = vpack.c.b16 %v3200, %v3197
    %v3732 = vpack.c.b16 %v3204, %v3201
    %v3733 = vpack.c.b16 %v3205, %v3202
    %v3734 = vpack.c.b16 %v3206, %v3203
    %v3735 = vpack.c.b16 %v3210, %v3207
    %v3736 = vpack.c.b16 %v3211, %v3208
    %v3737 = vpack.c.b16 %v3212, %v3209
    %v3738 = vpack.c.b16 %v3216, %v3213
    %v3739 = vpack.c.b16 %v3217, %v3214
    %v3740 = vpack.c.b16 %v3218, %v3215
    %v3741 = vpack.c.b16 %v3222, %v3219
    %v3742 = vpack.c.b16 %v3223, %v3220
    %v3743 = vpack.c.b16 %v3224, %v3221
    %v3744 = vpack.c.b16 %v3228, %v3225
    %v3745 = vpack.c.b16 %v3229, %v3226
    %v3746 = vpack.c.b16 %v3230, %v3227
    %v3747 = vpack.c.b16 %v3234, %v3231
    %v3748 = vpack.c.b16 %v3235, %v3232
    %v3749 = vpack.c.b16 %v3236, %v3233
    %v3750 = vpack.c.b16 %v3240, %v3237
    %v3751 = vpack.c.b16 %v3241, %v3238
    %v3752 = vpack.c.b16 %v3242, %v3239
    %v3753 = vpack.c.b16 %v3246, %v3243
    %v3754 = vpack.c.b16 %v3247, %v3244
    %v3755 = vpack.c.b16 %v3248, %v3245
    %v3756 = vpack.c.b16 %v3252, %v3249
    %v3757 = vpack.c.b16 %v3253, %v3250
    %v3758 = vpack.c.b16 %v3254, %v3251
    %v3759 = vpack.c.b16 %v3258, %v3255
    %v3760 = vpack.c.b16 %v3259, %v3256
    %v3761 = vpack.c.b16 %v3260, %v3257
    %v3762 = vpack.c.b16 %v3264, %v3261
    %v3763 = vpack.c.b16 %v3265, %v3262
    %v3764 = vpack.c.b16 %v3266, %v3263
    %v3765 = vpack.c.b16 %v3270, %v3267
    %v3766 = vpack.c.b16 %v3271, %v3268
    %v3767 = vpack.c.b16 %v3272, %v3269
    %v3768 = vpack.c.b16 %v3276, %v3273
    %v3769 = vpack.c.b16 %v3277, %v3274
    %v3770 = vpack.c.b16 %v3278, %v3275
    %v3771 = vpack.c.b16 %v3282, %v3279
    %v3772 = vpack.c.b16 %v3283, %v3280
    %v3773 = vpack.c.b16 %v3284, %v3281
    %v3774 = vpack.c.b16 %v3288, %v3285
    %v3775 = vpack.c.b16 %v3289, %v3286
    %v3776 = vpack.c.b16 %v3290, %v3287
    %v3777 = vpack.c.b16 %v3294, %v3291
    %v3778 = vpack.c.b16 %v3295, %v3292
    %v3779 = vpack.c.b16 %v3296, %v3293
    %v3780 = vpack.c.b16 %v3300, %v3297
    %v3781 = vpack.c.b16 %v3301, %v3298
    %v3782 = vpack.c.b16 %v3302, %v3299
    %v3783 = vpack.c.b16 %v3306, %v3303
    %v3784 = vpack.c.b16 %v3307, %v3304
    %v3785 = vpack.c.b16 %v3308, %v3305
    %v3786 = vpack.c.b16 %v3312, %v3309
    %v3787 = vpack.c.b16 %v3313, %v3310
    %v3788 = vpack.c.b16 %v3314, %v3311
    %v3789 = vpack.c.b16 %v3318, %v3315
    %v3790 = vpack.c.b16 %v3319, %v3316
    %v3791 = vpack.c.b16 %v3320, %v3317
    %v3792 = vpack.c.b16 %v3324, %v3321
    %v3793 = vpack.c.b16 %v3325, %v3322
    %v3794 = vpack.c.b16 %v3326, %v3323
    %v3795 = vpack.c.b16 %v3330, %v3327
    %v3796 = vpack.c.b16 %v3331, %v3328
    %v3797 = vpack.c.b16 %v3332, %v3329
    %v3798 = vpack.c.b16 %v3336, %v3333
    %v3799 = vpack.c.b16 %v3337, %v3334
    %v3800 = vpack.c.b16 %v3338, %v3335
    %v3801 = vpack.c.b16 %v3342, %v3339
    %v3802 = vpack.c.b16 %v3343, %v3340
    %v3803 = vpack.c.b16 %v3344, %v3341
    %v3804 = vpack.c.b16 %v3348, %v3345
    %v3805 = vpack.c.b16 %v3349, %v3346
    %v3806 = vpack.c.b16 %v3350, %v3347
    %v3807 = vpack.c.b16 %v3354, %v3351
    %v3808 = vpack.c.b16 %v3355, %v3352
    %v3809 = vpack.c.b16 %v3356, %v3353
    %v3810 = vpack.c.b16 %v3360, %v3357
    %v3811 = vpack.c.b16 %v3361, %v3358
    %v3812 = vpack.c.b16 %v3362, %v3359
    %v3813 = vpack.c.b16 %v3366, %v3363
    %v3814 = vpack.c.b16 %v3367, %v3364
    %v3815 = vpack.c.b16 %v3368, %v3365
    %v3816 = vpack.c.b16 %v3372, %v3369
    %v3817 = vpack.c.b16 %v3373, %v3370
    %v3818 = vpack.c.b16 %v3374, %v3371
    %v3819 = vpack.c.b16 %v3378, %v3375
    %v3820 = vpack.c.b16 %v3379, %v3376
    %v3821 = vpack.c.b16 %v3380, %v3377
    %v3822 = vpack.c.b16 %v3384, %v3381
    %v3823 = vpack.c.b16 %v3385, %v3382
    %v3824 = vpack.c.b16 %v3386, %v3383
    %v3825 = vpack.c.b16 %v3390, %v3387
    %v3826 = vpack.c.b16 %v3391, %v3388
    %v3827 = vpack.c.b16 %v3392, %v3389
    %v3828 = vpack.c.b16 %v3396, %v3393
    %v3829 = vpack.c.b16 %v3397, %v3394
    %v3830 = vpack.c.b16 %v3398, %v3395
    %v3831 = vpack.c.b16 %v3402, %v3399
    %v3832 = vpack.c.b16 %v3403, %v3400
    %v3833 = vpack.c.b16 %v3404, %v3401
    %v3834 = vpack.c.b16 %v3408, %v3405
    %v3835 = vpack.c.b16 %v3409, %v3406
    %v3836 = vpack.c.b16 %v3410, %v3407
    %v3837 = vpack.c.b16 %v3414, %v3411
    %v3838 = vpack.c.b16 %v3415, %v3412
    %v3839 = vpack.c.b16 %v3416, %v3413
    %v3840 = vpack.c.b16 %v3420, %v3417
    %v3841 = vpack.c.b16 %v3421, %v3418
    %v3842 = vpack.c.b16 %v3422, %v3419
    %v3843 = vpack.c.b16 %v3426, %v3423
    %v3844 = vpack.c.b16 %v3427, %v3424
    %v3845 = vpack.c.b16 %v3428, %v3425
    %v3846 = vpack.c.b16 %v3432, %v3429
    %v3847 = vpack.c.b16 %v3433, %v3430
    %v3848 = vpack.c.b16 %v3434, %v3431
    %v3849 = vpack.c.b16 %v3438, %v3435
    %v3850 = vpack.c.b16 %v3439, %v3436
    %v3851 = vpack.c.b16 %v3440, %v3437
    %v3852 = vpack.c.b16 %v3444, %v3441
    %v3853 = vpack.c.b16 %v3445, %v3442
    %v3854 = vpack.c.b16 %v3446, %v3443
    %v3855 = vpack.c.b16 %v3450, %v3447
    %v3856 = vpack.c.b16 %v3451, %v3448
    %v3857 = vpack.c.b16 %v3452, %v3449
    %v3858 = vpack.c.b16 %v3456, %v3453
    %v3859 = vpack.c.b16 %v3457, %v3454
    %v3860 = vpack.c.b16 %v3458, %v3455
    %v3861 = vpack.c.b16 %v3462, %v3459
    %v3862 = vpack.c.b16 %v3463, %v3460
    %v3863 = vpack.c.b16 %v3464, %v3461
    %v3864 = vpack.c.b16 %v3468, %v3465
    %v3865 = vpack.c.b16 %v3469, %v3466
    %v3866 = vpack.c.b16 %v3470, %v3467
    %v3867 = vpack.c.b16 %v3474, %v3471
    %v3868 = vpack.c.b16 %v3475, %v3472
    %v3869 = vpack.c.b16 %v3476, %v3473
    %v3870 = vpack.c.b16 %v3480, %v3477
    %v3871 = vpack.c.b16 %v3481, %v3478
    %v3872 = vpack.c.b16 %v3482, %v3479
    %v3873 = vpack.c.b16 %v3486, %v3483
    %v3874 = vpack.c.b16 %v3487, %v3484
    %v3875 = vpack.c.b16 %v3488, %v3485
    %v3876 = vpack.c.b16 %v3492, %v3489
    %v3877 = vpack.c.b16 %v3493, %v3490
    %v3878 = vpack.c.b16 %v3494, %v3491
    %v3879 = vpack.c.b16 %v3498, %v3495
    %v3880 = vpack.c.b16 %v3499, %v3496
    %v3881 = vpack.c.b16 %v3500, %v3497
    %v3882 = vpack.c.b16 %v3504, %v3501
    %v3883 = vpack.c.b16 %v3505, %v3502
    %v3884 = vpack.c.b16 %v3506, %v3503
    %v3885 = vpack.c.b16 %v3510, %v3507
    %v3886 = vpack.c.b16 %v3511, %v3508
    %v3887 = vpack.c.b16 %v3512, %v3509
    %v3888 = vpack.c.b16 %v3516, %v3513
    %v3889 = vpack.c.b16 %v3517, %v3514
    %v3890 = vpack.c.b16 %v3518, %v3515
    %v3891 = vpack.c.b16 %v3522, %v3519
    %v3892 = vpack.c.b16 %v3523, %v3520
    %v3893 = vpack.c.b16 %v3524, %v3521
    %v3894 = vpack.c.b16 %v3528, %v3525
    %v3895 = vpack.c.b16 %v3529, %v3526
    %v3896 = vpack.c.b16 %v3530, %v3527
    %v3897 = vpack.c.b16 %v3534, %v3531
    %v3898 = vpack.c.b16 %v3535, %v3532
    %v3899 = vpack.c.b16 %v3536, %v3533
    %v3900 = vpack.c.b16 %v3540, %v3537
    %v3901 = vpack.c.b16 %v3541, %v3538
    %v3902 = vpack.c.b16 %v3542, %v3539
    %v3903 = vpack.c.b16 %v3546, %v3543
    %v3904 = vpack.c.b16 %v3547, %v3544
    %v3905 = vpack.c.b16 %v3548, %v3545
    %v3906 = vpack.c.b16 %v3552, %v3549
    %v3907 = vpack.c.b16 %v3553, %v3550
    %v3908 = vpack.c.b16 %v3554, %v3551
    %v3909 = vpack.c.b16 %v3558, %v3555
    %v3910 = vpack.c.b16 %v3559, %v3556
    %v3911 = vpack.c.b16 %v3560, %v3557
    %v3912 = vpack.c.b16 %v3564, %v3561
    %v3913 = vpack.c.b16 %v3565, %v3562
    %v3914 = vpack.c.b16 %v3566, %v3563
    %v3915 = vpack.c.b16 %v3570, %v3567
    %v3916 = vpack.c.b16 %v3571, %v3568
    %v3917 = vpack.c.b16 %v3572, %v3569
    %v3918 = vpack.c.b16 %v3576, %v3573
    %v3919 = vpack.c.b16 %v3577, %v3574
    %v3920 = vpack.c.b16 %v3578, %v3575
    %v3921 = vpack.c.b16 %v3582, %v3579
    %v3922 = vpack.c.b16 %v3583, %v3580
    %v3923 = vpack.c.b16 %v3584, %v3581
    %v3924 = vpack.c.b16 %v3588, %v3585
    %v3925 = vpack.c.b16 %v3589, %v3586
    %v3926 = vpack.c.b16 %v3590, %v3587
    %v3927 = vpack.c.b16 %v3594, %v3591
    %v3928 = vpack.c.b16 %v3595, %v3592
    %v3929 = vpack.c.b16 %v3596, %v3593
    %v3930 = vpack.c.b16 %v3600, %v3597
    %v3931 = vpack.c.b16 %v3601, %v3598
    %v3932 = vpack.c.b16 %v3602, %v3599
    %v3933 = vpack.c.b16 %v3606, %v3603
    %v3934 = vpack.c.b16 %v3607, %v3604
    %v3935 = vpack.c.b16 %v3608, %v3605
    %v3936 = vpack.c.b16 %v3612, %v3609
    %v3937 = vpack.c.b16 %v3613, %v3610
    %v3938 = vpack.c.b16 %v3614, %v3611
    %v3939 = vpack.c.b16 %v3618, %v3615
    %v3940 = vpack.c.b16 %v3619, %v3616
    %v3941 = vpack.c.b16 %v3620, %v3617
    %v3942 = vpack.c.b16 %v3624, %v3621
    %v3943 = vpack.c.b16 %v3625, %v3622
    %v3944 = vpack.c.b16 %v3626, %v3623
    %v3945 = vpack.c.b16 %v3630, %v3627
    %v3946 = vpack.c.b16 %v3631, %v3628
    %v3947 = vpack.c.b16 %v3632, %v3629
    %v3948 = vpack.c.b16 %v3636, %v3633
    %v3949 = vpack.c.b16 %v3637, %v3634
    %v3950 = vpack.c.b16 %v3638, %v3635
    %v3951 = vpack.c.b16 %v3642, %v3639
    %v3952 = vpack.c.b16 %v3643, %v3640
    %v3953 = vpack.c.b16 %v3644, %v3641
    %v3954 = vpack.c.b16 %v3648, %v3645
    %v3955 = vpack.c.b16 %v3649, %v3646
    %v3956 = vpack.c.b16 %v3650, %v3647
    %v3957 = vpack.c.b16 %v3654, %v3651
    %v3958 = vpack.c.b16 %v3655, %v3652
    %v3959 = vpack.c.b16 %v3656, %v3653
    %v3960 = vpack.c.b16 %v3660, %v3657
    %v3961 = vpack.c.b16 %v3661, %v3658
    %v3962 = vpack.c.b16 %v3662, %v3659
    %v3963 = vpack.c.b16 %v3666, %v3663
    %v3964 = vpack.c.b16 %v3667, %v3664
    %v3965 = vpack.c.b16 %v3668, %v3665
    %v3966 = vpack.c.b16 %v3672, %v3669
    %v3967 = vpack.c.b16 %v3673, %v3670
    %v3968 = vpack.c.b16 %v3674, %v3671
    %v3969 = vpack.c.b16 %v3678, %v3675
    %v3970 = vpack.c.b16 %v3679, %v3676
    %v3971 = vpack.c.b16 %v3680, %v3677
    %v3972 = vpack.c.b16 %v3684, %v3681
    %v3973 = vpack.c.b16 %v3685, %v3682
    %v3974 = vpack.c.b16 %v3686, %v3683
    %4263 = vmatpush.bf16.msra.mxu0 %v3708
    %4264 = vmatpush.bf16.msra.mxu0 %v3705
    %4265 = vmatpush.bf16.msra.mxu0 %v3702
    %4266 = vmatpush.bf16.msra.mxu0 %v3699
    %4267 = vmatpush.bf16.msra.mxu0 %v3696
    %4268 = vmatpush.bf16.msra.mxu0 %v3693
    %4269 = vmatpush.bf16.msra.mxu0 %v3690
    %4270 = vmatpush.bf16.msra.mxu0 %v3687
    %4271 = vmatmul.bf16.gmra.mxu0 %v2323
    %v4272 = vpop.f32.mrf.mxu0
    %v4273 = vadd.f32 %v2721, %v4272
    %v4274 = vpop.f32.mrf.mxu0
    %v4275 = vadd.f32 %v2721, %v4274
    %4276 = vdwg.mxu0
    %4277 = vmatpush.bf16.msra.mxu0 %v3732
    %4278 = vmatpush.bf16.msra.mxu0 %v3729
    %4279 = vmatpush.bf16.msra.mxu0 %v3726
    %4280 = vmatpush.bf16.msra.mxu0 %v3723
    %4281 = vmatpush.bf16.msra.mxu0 %v3720
    %4282 = vmatpush.bf16.msra.mxu0 %v3717
    %4283 = vmatpush.bf16.msra.mxu0 %v3714
    %4284 = vmatpush.bf16.msra.mxu0 %v3711
    %4285 = vmatmul.bf16.gmra.mxu0 %v2324
    %v4286 = vpop.f32.mrf.mxu0
    %v4287 = vadd.f32 %v4273, %v4286
    %v4288 = vpop.f32.mrf.mxu0
    %v4289 = vadd.f32 %v4275, %v4288
    %4290 = vdwg.mxu0
    %4291 = vmatpush.bf16.msra.mxu0 %v3756
    %4292 = vmatpush.bf16.msra.mxu0 %v3753
    %4293 = vmatpush.bf16.msra.mxu0 %v3750
    %4294 = vmatpush.bf16.msra.mxu0 %v3747
    %4295 = vmatpush.bf16.msra.mxu0 %v3744
    %4296 = vmatpush.bf16.msra.mxu0 %v3741
    %4297 = vmatpush.bf16.msra.mxu0 %v3738
    %4298 = vmatpush.bf16.msra.mxu0 %v3735
    %4299 = vmatmul.bf16.gmra.mxu0 %v2325
    %v4300 = vpop.f32.mrf.mxu0
    %v4301 = vadd.f32 %v4287, %v4300
    %v4302 = vpop.f32.mrf.mxu0
    %v4303 = vadd.f32 %v4289, %v4302
    %4304 = vdwg.mxu0
    %4305 = vmatpush.bf16.msra.mxu0 %v3780
    %4306 = vmatpush.bf16.msra.mxu0 %v3777
    %4307 = vmatpush.bf16.msra.mxu0 %v3774
    %4308 = vmatpush.bf16.msra.mxu0 %v3771
    %4309 = vmatpush.bf16.msra.mxu0 %v3768
    %4310 = vmatpush.bf16.msra.mxu0 %v3765
    %4311 = vmatpush.bf16.msra.mxu0 %v3762
    %4312 = vmatpush.bf16.msra.mxu0 %v3759
    %4313 = vmatmul.bf16.gmra.mxu0 %v2326
    %v4314 = vpop.f32.mrf.mxu0
    %v4315 = vadd.f32 %v4301, %v4314
    %v4316 = vpop.f32.mrf.mxu0
    %v4317 = vadd.f32 %v4303, %v4316
    %4318 = vdwg.mxu0
    %4319 = vmatpush.bf16.msra.mxu0 %v3804
    %4320 = vmatpush.bf16.msra.mxu0 %v3801
    %4321 = vmatpush.bf16.msra.mxu0 %v3798
    %4322 = vmatpush.bf16.msra.mxu0 %v3795
    %4323 = vmatpush.bf16.msra.mxu0 %v3792
    %4324 = vmatpush.bf16.msra.mxu0 %v3789
    %4325 = vmatpush.bf16.msra.mxu0 %v3786
    %4326 = vmatpush.bf16.msra.mxu0 %v3783
    %4327 = vmatmul.bf16.gmra.mxu0 %v2327
    %v4328 = vpop.f32.mrf.mxu0
    %v4329 = vadd.f32 %v4315, %v4328
    %v4330 = vpop.f32.mrf.mxu0
    %v4331 = vadd.f32 %v4317, %v4330
    %4332 = vdwg.mxu0
    %4333 = vmatpush.bf16.msra.mxu0 %v3828
    %4334 = vmatpush.bf16.msra.mxu0 %v3825
    %4335 = vmatpush.bf16.msra.mxu0 %v3822
    %4336 = vmatpush.bf16.msra.mxu0 %v3819
    %4337 = vmatpush.bf16.msra.mxu0 %v3816
    %4338 = vmatpush.bf16.msra.mxu0 %v3813
    %4339 = vmatpush.bf16.msra.mxu0 %v3810
    %4340 = vmatpush.bf16.msra.mxu0 %v3807
    %4341 = vmatmul.bf16.gmra.mxu0 %v2328
    %v4342 = vpop.f32.mrf.mxu0
    %v4343 = vadd.f32 %v4329, %v4342
    %v4344 = vpop.f32.mrf.mxu0
    %v4345 = vadd.f32 %v4331, %v4344
    %4346 = vdwg.mxu0
    %4347 = vmatpush.bf16.msra.mxu0 %v3852
    %4348 = vmatpush.bf16.msra.mxu0 %v3849
    %4349 = vmatpush.bf16.msra.mxu0 %v3846
    %4350 = vmatpush.bf16.msra.mxu0 %v3843
    %4351 = vmatpush.bf16.msra.mxu0 %v3840
    %4352 = vmatpush.bf16.msra.mxu0 %v3837
    %4353 = vmatpush.bf16.msra.mxu0 %v3834
    %4354 = vmatpush.bf16.msra.mxu0 %v3831
    %4355 = vmatmul.bf16.gmra.mxu0 %v2329
    %v4356 = vpop.f32.mrf.mxu0
    %v4357 = vadd.f32 %v4343, %v4356
    %v4358 = vpop.f32.mrf.mxu0
    %v4359 = vadd.f32 %v4345, %v4358
    %4360 = vdwg.mxu0
    %4361 = vmatpush.bf16.msra.mxu0 %v3876
    %4362 = vmatpush.bf16.msra.mxu0 %v3873
    %4363 = vmatpush.bf16.msra.mxu0 %v3870
    %4364 = vmatpush.bf16.msra.mxu0 %v3867
    %4365 = vmatpush.bf16.msra.mxu0 %v3864
    %4366 = vmatpush.bf16.msra.mxu0 %v3861
    %4367 = vmatpush.bf16.msra.mxu0 %v3858
    %4368 = vmatpush.bf16.msra.mxu0 %v3855
    %4369 = vmatmul.bf16.gmra.mxu0 %v2330
    %v4370 = vpop.f32.mrf.mxu0
    %v4371 = vadd.f32 %v4357, %v4370
    %v4372 = vpop.f32.mrf.mxu0
    %v4373 = vadd.f32 %v4359, %v4372
    %4374 = vdwg.mxu0
    %4375 = vmatpush.bf16.msra.mxu0 %v3900
    %4376 = vmatpush.bf16.msra.mxu0 %v3897
    %4377 = vmatpush.bf16.msra.mxu0 %v3894
    %4378 = vmatpush.bf16.msra.mxu0 %v3891
    %4379 = vmatpush.bf16.msra.mxu0 %v3888
    %4380 = vmatpush.bf16.msra.mxu0 %v3885
    %4381 = vmatpush.bf16.msra.mxu0 %v3882
    %4382 = vmatpush.bf16.msra.mxu0 %v3879
    %4383 = vmatmul.bf16.gmra.mxu0 %v2331
    %v4384 = vpop.f32.mrf.mxu0
    %v4385 = vadd.f32 %v4371, %v4384
    %v4386 = vpop.f32.mrf.mxu0
    %v4387 = vadd.f32 %v4373, %v4386
    %4388 = vdwg.mxu0
    %4389 = vmatpush.bf16.msra.mxu0 %v3924
    %4390 = vmatpush.bf16.msra.mxu0 %v3921
    %4391 = vmatpush.bf16.msra.mxu0 %v3918
    %4392 = vmatpush.bf16.msra.mxu0 %v3915
    %4393 = vmatpush.bf16.msra.mxu0 %v3912
    %4394 = vmatpush.bf16.msra.mxu0 %v3909
    %4395 = vmatpush.bf16.msra.mxu0 %v3906
    %4396 = vmatpush.bf16.msra.mxu0 %v3903
    %4397 = vmatmul.bf16.gmra.mxu0 %v2332
    %v4398 = vpop.f32.mrf.mxu0
    %v4399 = vadd.f32 %v4385, %v4398
    %v4400 = vpop.f32.mrf.mxu0
    %v4401 = vadd.f32 %v4387, %v4400
    %4402 = vdwg.mxu0
    %4403 = vmatpush.bf16.msra.mxu0 %v3948
    %4404 = vmatpush.bf16.msra.mxu0 %v3945
    %4405 = vmatpush.bf16.msra.mxu0 %v3942
    %4406 = vmatpush.bf16.msra.mxu0 %v3939
    %4407 = vmatpush.bf16.msra.mxu0 %v3936
    %4408 = vmatpush.bf16.msra.mxu0 %v3933
    %4409 = vmatpush.bf16.msra.mxu0 %v3930
    %4410 = vmatpush.bf16.msra.mxu0 %v3927
    %4411 = vmatmul.bf16.gmra.mxu0 %v2333
    %v4412 = vpop.f32.mrf.mxu0
    %v4413 = vadd.f32 %v4399, %v4412
    %v4414 = vpop.f32.mrf.mxu0
    %v4415 = vadd.f32 %v4401, %v4414
    %4416 = vdwg.mxu0
    %4417 = vmatpush.bf16.msra.mxu0 %v3972
    %4418 = vmatpush.bf16.msra.mxu0 %v3969
    %4419 = vmatpush.bf16.msra.mxu0 %v3966
    %4420 = vmatpush.bf16.msra.mxu0 %v3963
    %4421 = vmatpush.bf16.msra.mxu0 %v3960
    %4422 = vmatpush.bf16.msra.mxu0 %v3957
    %4423 = vmatpush.bf16.msra.mxu0 %v3954
    %4424 = vmatpush.bf16.msra.mxu0 %v3951
    %4425 = vmatmul.bf16.gmra.mxu0 %v2334
    %v4426 = vpop.f32.mrf.mxu0
    %v4427 = vadd.f32 %v4413, %v4426
    %v4428 = vpop.f32.mrf.mxu0
    %v4429 = vadd.f32 %v4415, %v4428
    %4430 = vdwg.mxu0
    %4431 = vmatpush.bf16.msra.mxu0 %v3709
    %4432 = vmatpush.bf16.msra.mxu0 %v3706
    %4433 = vmatpush.bf16.msra.mxu0 %v3703
    %4434 = vmatpush.bf16.msra.mxu0 %v3700
    %4435 = vmatpush.bf16.msra.mxu0 %v3697
    %4436 = vmatpush.bf16.msra.mxu0 %v3694
    %4437 = vmatpush.bf16.msra.mxu0 %v3691
    %4438 = vmatpush.bf16.msra.mxu0 %v3688
    %4439 = vmatmul.bf16.gmra.mxu0 %v2323
    %v4440 = vpop.f32.mrf.mxu0
    %v4441 = vadd.f32 %v2722, %v4440
    %v4442 = vpop.f32.mrf.mxu0
    %v4443 = vadd.f32 %v2722, %v4442
    %4444 = vdwg.mxu0
    %4445 = vmatpush.bf16.msra.mxu0 %v3733
    %4446 = vmatpush.bf16.msra.mxu0 %v3730
    %4447 = vmatpush.bf16.msra.mxu0 %v3727
    %4448 = vmatpush.bf16.msra.mxu0 %v3724
    %4449 = vmatpush.bf16.msra.mxu0 %v3721
    %4450 = vmatpush.bf16.msra.mxu0 %v3718
    %4451 = vmatpush.bf16.msra.mxu0 %v3715
    %4452 = vmatpush.bf16.msra.mxu0 %v3712
    %4453 = vmatmul.bf16.gmra.mxu0 %v2324
    %v4454 = vpop.f32.mrf.mxu0
    %v4455 = vadd.f32 %v4441, %v4454
    %v4456 = vpop.f32.mrf.mxu0
    %v4457 = vadd.f32 %v4443, %v4456
    %4458 = vdwg.mxu0
    %4459 = vmatpush.bf16.msra.mxu0 %v3757
    %4460 = vmatpush.bf16.msra.mxu0 %v3754
    %4461 = vmatpush.bf16.msra.mxu0 %v3751
    %4462 = vmatpush.bf16.msra.mxu0 %v3748
    %4463 = vmatpush.bf16.msra.mxu0 %v3745
    %4464 = vmatpush.bf16.msra.mxu0 %v3742
    %4465 = vmatpush.bf16.msra.mxu0 %v3739
    %4466 = vmatpush.bf16.msra.mxu0 %v3736
    %4467 = vmatmul.bf16.gmra.mxu0 %v2325
    %v4468 = vpop.f32.mrf.mxu0
    %v4469 = vadd.f32 %v4455, %v4468
    %v4470 = vpop.f32.mrf.mxu0
    %v4471 = vadd.f32 %v4457, %v4470
    %4472 = vdwg.mxu0
    %4473 = vmatpush.bf16.msra.mxu0 %v3781
    %4474 = vmatpush.bf16.msra.mxu0 %v3778
    %4475 = vmatpush.bf16.msra.mxu0 %v3775
    %4476 = vmatpush.bf16.msra.mxu0 %v3772
    %4477 = vmatpush.bf16.msra.mxu0 %v3769
    %4478 = vmatpush.bf16.msra.mxu0 %v3766
    %4479 = vmatpush.bf16.msra.mxu0 %v3763
    %4480 = vmatpush.bf16.msra.mxu0 %v3760
    %4481 = vmatmul.bf16.gmra.mxu0 %v2326
    %v4482 = vpop.f32.mrf.mxu0
    %v4483 = vadd.f32 %v4469, %v4482
    %v4484 = vpop.f32.mrf.mxu0
    %v4485 = vadd.f32 %v4471, %v4484
    %4486 = vdwg.mxu0
    %4487 = vmatpush.bf16.msra.mxu0 %v3805
    %4488 = vmatpush.bf16.msra.mxu0 %v3802
    %4489 = vmatpush.bf16.msra.mxu0 %v3799
    %4490 = vmatpush.bf16.msra.mxu0 %v3796
    %4491 = vmatpush.bf16.msra.mxu0 %v3793
    %4492 = vmatpush.bf16.msra.mxu0 %v3790
    %4493 = vmatpush.bf16.msra.mxu0 %v3787
    %4494 = vmatpush.bf16.msra.mxu0 %v3784
    %4495 = vmatmul.bf16.gmra.mxu0 %v2327
    %v4496 = vpop.f32.mrf.mxu0
    %v4497 = vadd.f32 %v4483, %v4496
    %v4498 = vpop.f32.mrf.mxu0
    %v4499 = vadd.f32 %v4485, %v4498
    %4500 = vdwg.mxu0
    %4501 = vmatpush.bf16.msra.mxu0 %v3829
    %4502 = vmatpush.bf16.msra.mxu0 %v3826
    %4503 = vmatpush.bf16.msra.mxu0 %v3823
    %4504 = vmatpush.bf16.msra.mxu0 %v3820
    %4505 = vmatpush.bf16.msra.mxu0 %v3817
    %4506 = vmatpush.bf16.msra.mxu0 %v3814
    %4507 = vmatpush.bf16.msra.mxu0 %v3811
    %4508 = vmatpush.bf16.msra.mxu0 %v3808
    %4509 = vmatmul.bf16.gmra.mxu0 %v2328
    %v4510 = vpop.f32.mrf.mxu0
    %v4511 = vadd.f32 %v4497, %v4510
    %v4512 = vpop.f32.mrf.mxu0
    %v4513 = vadd.f32 %v4499, %v4512
    %4514 = vdwg.mxu0
    %4515 = vmatpush.bf16.msra.mxu0 %v3853
    %4516 = vmatpush.bf16.msra.mxu0 %v3850
    %4517 = vmatpush.bf16.msra.mxu0 %v3847
    %4518 = vmatpush.bf16.msra.mxu0 %v3844
    %4519 = vmatpush.bf16.msra.mxu0 %v3841
    %4520 = vmatpush.bf16.msra.mxu0 %v3838
    %4521 = vmatpush.bf16.msra.mxu0 %v3835
    %4522 = vmatpush.bf16.msra.mxu0 %v3832
    %4523 = vmatmul.bf16.gmra.mxu0 %v2329
    %v4524 = vpop.f32.mrf.mxu0
    %v4525 = vadd.f32 %v4511, %v4524
    %v4526 = vpop.f32.mrf.mxu0
    %v4527 = vadd.f32 %v4513, %v4526
    %4528 = vdwg.mxu0
    %4529 = vmatpush.bf16.msra.mxu0 %v3877
    %4530 = vmatpush.bf16.msra.mxu0 %v3874
    %4531 = vmatpush.bf16.msra.mxu0 %v3871
    %4532 = vmatpush.bf16.msra.mxu0 %v3868
    %4533 = vmatpush.bf16.msra.mxu0 %v3865
    %4534 = vmatpush.bf16.msra.mxu0 %v3862
    %4535 = vmatpush.bf16.msra.mxu0 %v3859
    %4536 = vmatpush.bf16.msra.mxu0 %v3856
    %4537 = vmatmul.bf16.gmra.mxu0 %v2330
    %v4538 = vpop.f32.mrf.mxu0
    %v4539 = vadd.f32 %v4525, %v4538
    %v4540 = vpop.f32.mrf.mxu0
    %v4541 = vadd.f32 %v4527, %v4540
    %4542 = vdwg.mxu0
    %4543 = vmatpush.bf16.msra.mxu0 %v3901
    %4544 = vmatpush.bf16.msra.mxu0 %v3898
    %4545 = vmatpush.bf16.msra.mxu0 %v3895
    %4546 = vmatpush.bf16.msra.mxu0 %v3892
    %4547 = vmatpush.bf16.msra.mxu0 %v3889
    %4548 = vmatpush.bf16.msra.mxu0 %v3886
    %4549 = vmatpush.bf16.msra.mxu0 %v3883
    %4550 = vmatpush.bf16.msra.mxu0 %v3880
    %4551 = vmatmul.bf16.gmra.mxu0 %v2331
    %v4552 = vpop.f32.mrf.mxu0
    %v4553 = vadd.f32 %v4539, %v4552
    %v4554 = vpop.f32.mrf.mxu0
    %v4555 = vadd.f32 %v4541, %v4554
    %4556 = vdwg.mxu0
    %4557 = vmatpush.bf16.msra.mxu0 %v3925
    %4558 = vmatpush.bf16.msra.mxu0 %v3922
    %4559 = vmatpush.bf16.msra.mxu0 %v3919
    %4560 = vmatpush.bf16.msra.mxu0 %v3916
    %4561 = vmatpush.bf16.msra.mxu0 %v3913
    %4562 = vmatpush.bf16.msra.mxu0 %v3910
    %4563 = vmatpush.bf16.msra.mxu0 %v3907
    %4564 = vmatpush.bf16.msra.mxu0 %v3904
    %4565 = vmatmul.bf16.gmra.mxu0 %v2332
    %v4566 = vpop.f32.mrf.mxu0
    %v4567 = vadd.f32 %v4553, %v4566
    %v4568 = vpop.f32.mrf.mxu0
    %v4569 = vadd.f32 %v4555, %v4568
    %4570 = vdwg.mxu0
    %4571 = vmatpush.bf16.msra.mxu0 %v3949
    %4572 = vmatpush.bf16.msra.mxu0 %v3946
    %4573 = vmatpush.bf16.msra.mxu0 %v3943
    %4574 = vmatpush.bf16.msra.mxu0 %v3940
    %4575 = vmatpush.bf16.msra.mxu0 %v3937
    %4576 = vmatpush.bf16.msra.mxu0 %v3934
    %4577 = vmatpush.bf16.msra.mxu0 %v3931
    %4578 = vmatpush.bf16.msra.mxu0 %v3928
    %4579 = vmatmul.bf16.gmra.mxu0 %v2333
    %v4580 = vpop.f32.mrf.mxu0
    %v4581 = vadd.f32 %v4567, %v4580
    %v4582 = vpop.f32.mrf.mxu0
    %v4583 = vadd.f32 %v4569, %v4582
    %4584 = vdwg.mxu0
    %4585 = vmatpush.bf16.msra.mxu0 %v3973
    %4586 = vmatpush.bf16.msra.mxu0 %v3970
    %4587 = vmatpush.bf16.msra.mxu0 %v3967
    %4588 = vmatpush.bf16.msra.mxu0 %v3964
    %4589 = vmatpush.bf16.msra.mxu0 %v3961
    %4590 = vmatpush.bf16.msra.mxu0 %v3958
    %4591 = vmatpush.bf16.msra.mxu0 %v3955
    %4592 = vmatpush.bf16.msra.mxu0 %v3952
    %4593 = vmatmul.bf16.gmra.mxu0 %v2334
    %v4594 = vpop.f32.mrf.mxu0
    %v4595 = vadd.f32 %v4581, %v4594
    %v4596 = vpop.f32.mrf.mxu0
    %v4597 = vadd.f32 %v4583, %v4596
    %4598 = vdwg.mxu0
    %4599 = vmatpush.bf16.msra.mxu0 %v3710
    %4600 = vmatpush.bf16.msra.mxu0 %v3707
    %4601 = vmatpush.bf16.msra.mxu0 %v3704
    %4602 = vmatpush.bf16.msra.mxu0 %v3701
    %4603 = vmatpush.bf16.msra.mxu0 %v3698
    %4604 = vmatpush.bf16.msra.mxu0 %v3695
    %4605 = vmatpush.bf16.msra.mxu0 %v3692
    %4606 = vmatpush.bf16.msra.mxu0 %v3689
    %4607 = vmatmul.bf16.gmra.mxu0 %v2323
    %v4608 = vpop.f32.mrf.mxu0
    %v4609 = vadd.f32 %v2723, %v4608
    %v4610 = vpop.f32.mrf.mxu0
    %v4611 = vadd.f32 %v2723, %v4610
    %4612 = vdwg.mxu0
    %4613 = vmatpush.bf16.msra.mxu0 %v3734
    %4614 = vmatpush.bf16.msra.mxu0 %v3731
    %4615 = vmatpush.bf16.msra.mxu0 %v3728
    %4616 = vmatpush.bf16.msra.mxu0 %v3725
    %4617 = vmatpush.bf16.msra.mxu0 %v3722
    %4618 = vmatpush.bf16.msra.mxu0 %v3719
    %4619 = vmatpush.bf16.msra.mxu0 %v3716
    %4620 = vmatpush.bf16.msra.mxu0 %v3713
    %4621 = vmatmul.bf16.gmra.mxu0 %v2324
    %v4622 = vpop.f32.mrf.mxu0
    %v4623 = vadd.f32 %v4609, %v4622
    %v4624 = vpop.f32.mrf.mxu0
    %v4625 = vadd.f32 %v4611, %v4624
    %4626 = vdwg.mxu0
    %4627 = vmatpush.bf16.msra.mxu0 %v3758
    %4628 = vmatpush.bf16.msra.mxu0 %v3755
    %4629 = vmatpush.bf16.msra.mxu0 %v3752
    %4630 = vmatpush.bf16.msra.mxu0 %v3749
    %4631 = vmatpush.bf16.msra.mxu0 %v3746
    %4632 = vmatpush.bf16.msra.mxu0 %v3743
    %4633 = vmatpush.bf16.msra.mxu0 %v3740
    %4634 = vmatpush.bf16.msra.mxu0 %v3737
    %4635 = vmatmul.bf16.gmra.mxu0 %v2325
    %v4636 = vpop.f32.mrf.mxu0
    %v4637 = vadd.f32 %v4623, %v4636
    %v4638 = vpop.f32.mrf.mxu0
    %v4639 = vadd.f32 %v4625, %v4638
    %4640 = vdwg.mxu0
    %4641 = vmatpush.bf16.msra.mxu0 %v3782
    %4642 = vmatpush.bf16.msra.mxu0 %v3779
    %4643 = vmatpush.bf16.msra.mxu0 %v3776
    %4644 = vmatpush.bf16.msra.mxu0 %v3773
    %4645 = vmatpush.bf16.msra.mxu0 %v3770
    %4646 = vmatpush.bf16.msra.mxu0 %v3767
    %4647 = vmatpush.bf16.msra.mxu0 %v3764
    %4648 = vmatpush.bf16.msra.mxu0 %v3761
    %4649 = vmatmul.bf16.gmra.mxu0 %v2326
    %v4650 = vpop.f32.mrf.mxu0
    %v4651 = vadd.f32 %v4637, %v4650
    %v4652 = vpop.f32.mrf.mxu0
    %v4653 = vadd.f32 %v4639, %v4652
    %4654 = vdwg.mxu0
    %4655 = vmatpush.bf16.msra.mxu0 %v3806
    %4656 = vmatpush.bf16.msra.mxu0 %v3803
    %4657 = vmatpush.bf16.msra.mxu0 %v3800
    %4658 = vmatpush.bf16.msra.mxu0 %v3797
    %4659 = vmatpush.bf16.msra.mxu0 %v3794
    %4660 = vmatpush.bf16.msra.mxu0 %v3791
    %4661 = vmatpush.bf16.msra.mxu0 %v3788
    %4662 = vmatpush.bf16.msra.mxu0 %v3785
    %4663 = vmatmul.bf16.gmra.mxu0 %v2327
    %v4664 = vpop.f32.mrf.mxu0
    %v4665 = vadd.f32 %v4651, %v4664
    %v4666 = vpop.f32.mrf.mxu0
    %v4667 = vadd.f32 %v4653, %v4666
    %4668 = vdwg.mxu0
    %4669 = vmatpush.bf16.msra.mxu0 %v3830
    %4670 = vmatpush.bf16.msra.mxu0 %v3827
    %4671 = vmatpush.bf16.msra.mxu0 %v3824
    %4672 = vmatpush.bf16.msra.mxu0 %v3821
    %4673 = vmatpush.bf16.msra.mxu0 %v3818
    %4674 = vmatpush.bf16.msra.mxu0 %v3815
    %4675 = vmatpush.bf16.msra.mxu0 %v3812
    %4676 = vmatpush.bf16.msra.mxu0 %v3809
    %4677 = vmatmul.bf16.gmra.mxu0 %v2328
    %v4678 = vpop.f32.mrf.mxu0
    %v4679 = vadd.f32 %v4665, %v4678
    %v4680 = vpop.f32.mrf.mxu0
    %v4681 = vadd.f32 %v4667, %v4680
    %4682 = vdwg.mxu0
    %4683 = vmatpush.bf16.msra.mxu0 %v3854
    %4684 = vmatpush.bf16.msra.mxu0 %v3851
    %4685 = vmatpush.bf16.msra.mxu0 %v3848
    %4686 = vmatpush.bf16.msra.mxu0 %v3845
    %4687 = vmatpush.bf16.msra.mxu0 %v3842
    %4688 = vmatpush.bf16.msra.mxu0 %v3839
    %4689 = vmatpush.bf16.msra.mxu0 %v3836
    %4690 = vmatpush.bf16.msra.mxu0 %v3833
    %4691 = vmatmul.bf16.gmra.mxu0 %v2329
    %v4692 = vpop.f32.mrf.mxu0
    %v4693 = vadd.f32 %v4679, %v4692
    %v4694 = vpop.f32.mrf.mxu0
    %v4695 = vadd.f32 %v4681, %v4694
    %4696 = vdwg.mxu0
    %4697 = vmatpush.bf16.msra.mxu0 %v3878
    %4698 = vmatpush.bf16.msra.mxu0 %v3875
    %4699 = vmatpush.bf16.msra.mxu0 %v3872
    %4700 = vmatpush.bf16.msra.mxu0 %v3869
    %4701 = vmatpush.bf16.msra.mxu0 %v3866
    %4702 = vmatpush.bf16.msra.mxu0 %v3863
    %4703 = vmatpush.bf16.msra.mxu0 %v3860
    %4704 = vmatpush.bf16.msra.mxu0 %v3857
    %4705 = vmatmul.bf16.gmra.mxu0 %v2330
    %v4706 = vpop.f32.mrf.mxu0
    %v4707 = vadd.f32 %v4693, %v4706
    %v4708 = vpop.f32.mrf.mxu0
    %v4709 = vadd.f32 %v4695, %v4708
    %4710 = vdwg.mxu0
    %4711 = vmatpush.bf16.msra.mxu0 %v3902
    %4712 = vmatpush.bf16.msra.mxu0 %v3899
    %4713 = vmatpush.bf16.msra.mxu0 %v3896
    %4714 = vmatpush.bf16.msra.mxu0 %v3893
    %4715 = vmatpush.bf16.msra.mxu0 %v3890
    %4716 = vmatpush.bf16.msra.mxu0 %v3887
    %4717 = vmatpush.bf16.msra.mxu0 %v3884
    %4718 = vmatpush.bf16.msra.mxu0 %v3881
    %4719 = vmatmul.bf16.gmra.mxu0 %v2331
    %v4720 = vpop.f32.mrf.mxu0
    %v4721 = vadd.f32 %v4707, %v4720
    %v4722 = vpop.f32.mrf.mxu0
    %v4723 = vadd.f32 %v4709, %v4722
    %4724 = vdwg.mxu0
    %4725 = vmatpush.bf16.msra.mxu0 %v3926
    %4726 = vmatpush.bf16.msra.mxu0 %v3923
    %4727 = vmatpush.bf16.msra.mxu0 %v3920
    %4728 = vmatpush.bf16.msra.mxu0 %v3917
    %4729 = vmatpush.bf16.msra.mxu0 %v3914
    %4730 = vmatpush.bf16.msra.mxu0 %v3911
    %4731 = vmatpush.bf16.msra.mxu0 %v3908
    %4732 = vmatpush.bf16.msra.mxu0 %v3905
    %4733 = vmatmul.bf16.gmra.mxu0 %v2332
    %v4734 = vpop.f32.mrf.mxu0
    %v4735 = vadd.f32 %v4721, %v4734
    %v4736 = vpop.f32.mrf.mxu0
    %v4737 = vadd.f32 %v4723, %v4736
    %4738 = vdwg.mxu0
    %4739 = vmatpush.bf16.msra.mxu0 %v3950
    %4740 = vmatpush.bf16.msra.mxu0 %v3947
    %4741 = vmatpush.bf16.msra.mxu0 %v3944
    %4742 = vmatpush.bf16.msra.mxu0 %v3941
    %4743 = vmatpush.bf16.msra.mxu0 %v3938
    %4744 = vmatpush.bf16.msra.mxu0 %v3935
    %4745 = vmatpush.bf16.msra.mxu0 %v3932
    %4746 = vmatpush.bf16.msra.mxu0 %v3929
    %4747 = vmatmul.bf16.gmra.mxu0 %v2333
    %v4748 = vpop.f32.mrf.mxu0
    %v4749 = vadd.f32 %v4735, %v4748
    %v4750 = vpop.f32.mrf.mxu0
    %v4751 = vadd.f32 %v4737, %v4750
    %4752 = vdwg.mxu0
    %4753 = vmatpush.bf16.msra.mxu0 %v3974
    %4754 = vmatpush.bf16.msra.mxu0 %v3971
    %4755 = vmatpush.bf16.msra.mxu0 %v3968
    %4756 = vmatpush.bf16.msra.mxu0 %v3965
    %4757 = vmatpush.bf16.msra.mxu0 %v3962
    %4758 = vmatpush.bf16.msra.mxu0 %v3959
    %4759 = vmatpush.bf16.msra.mxu0 %v3956
    %4760 = vmatpush.bf16.msra.mxu0 %v3953
    %4761 = vmatmul.bf16.gmra.mxu0 %v2334
    %v4762 = vpop.f32.mrf.mxu0
    %v4763 = vadd.f32 %v4749, %v4762
    %v4764 = vpop.f32.mrf.mxu0
    %v4765 = vadd.f32 %v4751, %v4764
    %4766 = vdwg.mxu0
    %v4767 = vld [vmem:[%s5] sm:$0xff]
    %v4768 = vld [vmem:[%s5 + $0x8] sm:$0xf]
    %v4769 = vld [vmem:[%s5 + $0xc] sm:$0xff]
    %v4770 = vld [vmem:[%s5 + $0x14] sm:$0xf]
    %v4771 = vunpack.c.l.bf16 %v4767
    %v4772 = vunpack.c.h.bf16 %v4767
    %v4773 = vunpack.c.l.bf16 %v4768
    %v4774 = vunpack.c.l.bf16 %v4769
    %v4775 = vunpack.c.h.bf16 %v4769
    %v4776 = vunpack.c.l.bf16 %v4770
    %v4777 = vmul.f32 %v4427, %v4771
    %v4778 = vmul.f32 %v4595, %v4772
    %v4779 = vmul.f32 %v4763, %v4773
    %v4780 = vmul.f32 %v4429, %v4774
    %v4781 = vmul.f32 %v4597, %v4775
    %v4782 = vmul.f32 %v4765, %v4776
    %v4783 = vadd.f32 %v30, %v4777
    %v4784 = vadd.f32 %v31, %v4778
    %v4785 = vadd.f32 %v32, %v4779
    %v4786 = vadd.f32 %v33, %v4780
    %v4787 = vadd.f32 %v34, %v4781
    %v4788 = vadd.f32 %v35, %v4782
    %v4789 = vadd.f32 %v4783, %v4784
    %v4790 = vadd.f32 %v4789, %v4785
    %4791 = vadd.xlane.f32.xlu0 %v4790
    %v4792 = vpop.xlane.xlu0 %4791
    %v4793 = vadd.f32 %v4786, %v4787
    %v4794 = vadd.f32 %v4793, %v4788
    %4795 = vadd.xlane.f32.xlu0 %v4794
    %v4796 = vpop.xlane.xlu0 %4795
    %v4797 = vrcp.pop 384.0
    %v4798 = vmul.f32 384.0, %v4797
    %v4799 = vsub.f32 1.0, %v4798
    %v4800 = vmul.f32 %v4797, %v4799
    %v4801 = vadd.f32 %v4797, %v4800
    %vm4802 = vweird.f32 %v4797
    %v4803 = vsel %vm4802, %v4797, %v4801
    %v4804 = vmul.f32 %v4792, %v4803
    %v4805 = vmul.f32 %v4796, %v4803
    %v4806 = vsub.f32 %v4783, %v4804
    %v4807 = vsub.f32 %v4784, %v4804
    %v4808 = vsub.f32 %v4785, %v4804
    %v4809 = vsub.f32 %v4786, %v4805
    %v4810 = vsub.f32 %v4787, %v4805
    %v4811 = vsub.f32 %v4788, %v4805
    %v4812 = vmul.f32 %v4806, %v4806
    %v4813 = vmul.f32 %v4807, %v4807
    %v4814 = vmul.f32 %v4808, %v4808
    %v4815 = vmul.f32 %v4809, %v4809
    %v4816 = vmul.f32 %v4810, %v4810
    %v4817 = vmul.f32 %v4811, %v4811
    %v4818 = vadd.f32 %v4812, %v4813
    %v4819 = vadd.f32 %v4818, %v4814
    %4820 = vadd.xlane.f32.xlu0 %v4819
    %v4821 = vpop.xlane.xlu0 %4820
    %v4822 = vadd.f32 %v4815, %v4816
    %v4823 = vadd.f32 %v4822, %v4817
    %4824 = vadd.xlane.f32.xlu0 %v4823
    %v4825 = vpop.xlane.xlu0 %4824
    %v4826 = vmul.f32 %v4821, %v4803
    %v4827 = vmul.f32 %v4825, %v4803
    %v4828 = vadd.f32 %v4826, 1e-05
    %v4829 = vadd.f32 %v4827, 1e-05
    %v4830 = vrsqrt.pop %v4828
    %v4831 = vmul.f32 %v4830, %v4828
    %v4832 = vmul.f32 %v4831, %v4830
    %v4833 = vmul.f32 0.5, %v4832
    %v4834 = vsub.f32 1.5, %v4833
    %v4835 = vmul.f32 %v4830, %v4834
    %vm4836 = vweird.f32 %v4828
    %vm4837 = vweird.f32 %v4830
    %vm4838 = vmor %vm4836, %vm4837
    %v4839 = vsel %vm4838, %v4830, %v4835
    %v4840 = vrsqrt.pop %v4829
    %v4841 = vmul.f32 %v4840, %v4829
    %v4842 = vmul.f32 %v4841, %v4840
    %v4843 = vmul.f32 0.5, %v4842
    %v4844 = vsub.f32 1.5, %v4843
    %v4845 = vmul.f32 %v4840, %v4844
    %vm4846 = vweird.f32 %v4829
    %vm4847 = vweird.f32 %v4840
    %vm4848 = vmor %vm4846, %vm4847
    %v4849 = vsel %vm4848, %v4840, %v4845
    %v4850 = vmul.f32 %v4806, %v4839
    %v4851 = vmul.f32 %v4807, %v4839
    %v4852 = vmul.f32 %v4808, %v4839
    %v4853 = vmul.f32 %v4809, %v4849
    %v4854 = vmul.f32 %v4810, %v4849
    %v4855 = vmul.f32 %v4811, %v4849
    %v4856 = vld [vmem:[%s6] sm:$0x7]
    %v4858 = vperm.slane %v4856, 0
    %v4859 = vperm.slane %v4856, 1
    %v4860 = vperm.slane %v4856, 2
    %v4864 = vmul.f32 %v4850, %v4858
    %v4865 = vmul.f32 %v4851, %v4859
    %v4866 = vmul.f32 %v4852, %v4860
    %v4867 = vmul.f32 %v4853, %v4858
    %v4868 = vmul.f32 %v4854, %v4859
    %v4869 = vmul.f32 %v4855, %v4860
    %v4870 = vld [vmem:[%s7] sm:$0x7]
    %v4872 = vperm.slane %v4870, 0
    %v4873 = vperm.slane %v4870, 1
    %v4874 = vperm.slane %v4870, 2
    %v4878 = vadd.f32 %v4864, %v4872
    %v4879 = vadd.f32 %v4865, %v4873
    %v4880 = vadd.f32 %v4866, %v4874
    %v4881 = vadd.f32 %v4867, %v4872
    %v4882 = vadd.f32 %v4868, %v4873
    %v4883 = vadd.f32 %v4869, %v4874
    %4884 = vst [vmem:[#allocation2] sm:$0xff] %v4878
    %4885 = vst [vmem:[#allocation2 + $0x8] sm:$0xff] %v4879
    %4886 = vst [vmem:[#allocation2 + $0x10] sm:$0xff] %v4880
    %4887 = vst [vmem:[#allocation2 + $0x18] sm:$0xff] %v4881
    %4888 = vst [vmem:[#allocation2 + $0x20] sm:$0xff] %v4882
    %4889 = vst [vmem:[#allocation2 + $0x28] sm:$0xff] %v4883
    // Predicated region
    $region34: #{transformer_block.3} parent=1 // pred_check
      _
    $region35: #{transformer_block.3} parent=1 // pred_check_branch
      %4891 = sbr.rel (0) target = $region37
    $region36: #{transformer_block.3} parent=1 // pred_region
      %4893 = vsyncadd [#allocation3], 0
      %s4894 = sshll.u32 [#allocation2], 4
      %s4895 = int_to_ptr.vmem [resolvable:$true] %s4894
      %s4896 = sshll.u32 %s8, 4
      %s4897 = int_to_ptr.hbm [resolvable:$true] %s4896
      %4902 = dma.vmem_to_hbm [thread:$0]  %s4895, 768, %s4897, [#allocation3], 384, 384, 24
    $region37: #{transformer_block.3} parent=1 // pred_fallthru
      _
    // Predicated region
    $region38: #{transformer_block.3} parent=1 // pred_check
      _
    $region39: #{transformer_block.3} parent=1 // pred_check_branch
      %4904 = sbr.rel (0) target = $region41
    $region40: #{transformer_block.3} parent=1 // pred_region
      %4906 = dma.done [#allocation3], 768
    $region41: #{transformer_block.3} parent=1 // pred_fallthru
      _
    %4907 = vsyncpa [#allocation3], 1

</llo_original>
